<compile_context>
chip_gen: v6e
topology: v6e:2x2x1
jax: 0.10.0
libtpu: 0.0.40
codegen_flags: <defaults>
</compile_context>

<pallas_src>
import functools

import jax
import jax.numpy as jnp
from jax.experimental import pallas as pl
from jax.experimental.pallas import tpu as pltpu

EPS = 1e-5      # BatchNorm1d default eps
PAD_CIN = 8     # pad the 2 input channels up to one sublane row


def _bn_relu(y, gamma, beta):
    # Training-mode BatchNorm1d over all B*N rows (biased variance) + ReLU.
    mean = jnp.mean(y, axis=0, keepdims=True)
    centered = y - mean
    var = jnp.mean(jnp.square(centered), axis=0, keepdims=True)
    scale = gamma / jnp.sqrt(var + EPS)
    return jnp.maximum(centered * scale + beta, 0.0)


def _encoder_kernel(B, N, x_ref,
                    w1, b1, g1, be1,
                    w2, b2, g2, be2,
                    w3, b3, g3, be3,
                    w4, b4, g4, be4,
                    w5l, w5g, b5, g5, be5,
                    w6, b6, g6, be6,
                    w7, b7, g7, be7,
                    out_ref):
    def conv_bn_relu(h, w, b, g, be):
        # 1x1 conv == matmul (f32 operands, f32 accumulation) + bias, then BN+ReLU.
        y = jnp.dot(h, w[...], preferred_element_type=jnp.float32) + b[...]
        return _bn_relu(y, g[...], be[...])

    x = x_ref[...]                                        # (B*N, 8) f32, zero-padded

    # --- PointNet backbone ---
    h1 = conv_bn_relu(x, w1, b1, g1, be1)                 # (B*N, 64)
    h2 = conv_bn_relu(h1, w2, b2, g2, be2)                # (B*N, 64)   local features
    h3 = conv_bn_relu(h2, w3, b3, g3, be3)                # (B*N, 128)
    h4 = conv_bn_relu(h3, w4, b4, g4, be4)                # (B*N, 1024)

    # Per-batch global max-pool over the N points (B is small & static; the
    # Python loop unrolls, every slice is sublane-aligned since N % 8 == 0).
    gmax = jnp.concatenate(
        [jnp.max(h4[b * N:(b + 1) * N], axis=0, keepdims=True) for b in range(B)],
        axis=0)                                           # (B, 1024)

    # cat([local, global]) @ W5 == local @ W5[:64] + global @ W5[64:].
    # Global rows are identical within a batch -> the 1024x512 matmul is done
    # once per batch and broadcast-added to the per-point local contribution.
    y5l = jnp.dot(h2, w5l[...], preferred_element_type=jnp.float32)    # (B*N, 512)
    g5b = jnp.dot(gmax, w5g[...], preferred_element_type=jnp.float32)  # (B, 512)
    y5 = jnp.concatenate(
        [y5l[b * N:(b + 1) * N] + g5b[b:b + 1] for b in range(B)],
        axis=0) + b5[...]                                 # (B*N, 512)
    h5 = _bn_relu(y5, g5[...], be5[...])                  # (B*N, 512)

    h6 = conv_bn_relu(h5, w6, b6, g6, be6)                # (B*N, 256)
    h7 = conv_bn_relu(h6, w7, b7, g7, be7)                # (B*N, 64)

    out_ref[...] = h7


def init_params(key):
    # (Cin, Cout) of every 1x1 conv in forward order.
    layer_dims = [(2, 64), (64, 64), (64, 128), (128, 1024),
                  (1088, 512), (512, 256), (256, 64)]
    ws, bs, gs, bes = [], [], [], []
    keys = jax.random.split(key, 2 * len(layer_dims))
    for i, (cin, cout) in enumerate(layer_dims):
        bound = 1.0 / (cin ** 0.5)  # PyTorch Conv1d default init bound
        ws.append(jax.random.uniform(keys[2 * i], (cin, cout), jnp.float32, -bound, bound))
        bs.append(jax.random.uniform(keys[2 * i + 1], (1, cout), jnp.float32, -bound, bound))
        gs.append(jnp.ones((1, cout), jnp.float32))    # BatchNorm weight init
        bes.append(jnp.zeros((1, cout), jnp.float32))  # BatchNorm bias init
    return ws, bs, gs, bes


@jax.jit
def pointnet_encoder(points, params):
    B, N, C = points.shape
    ws, bs, gs, bes = params

    # Pad the 2 input channels (and matching W1 rows) up to 8 with zeros (exact).
    x = jnp.pad(points.reshape(B * N, C), ((0, 0), (0, PAD_CIN - C)))
    w1 = jnp.pad(ws[0], ((0, PAD_CIN - C), (0, 0)))
    w5l, w5g = ws[4][:64], ws[4][64:]   # local / global split of the 1088x512 weight

    kernel_inputs = [x,
                     w1, bs[0], gs[0], bes[0],
                     ws[1], bs[1], gs[1], bes[1],
                     ws[2], bs[2], gs[2], bes[2],
                     ws[3], bs[3], gs[3], bes[3],
                     w5l, w5g, bs[4], gs[4], bes[4],
                     ws[5], bs[5], gs[5], bes[5],
                     ws[6], bs[6], gs[6], bes[6]]

    vmem = pl.BlockSpec(memory_space=pltpu.MemorySpace.VMEM)
    out = pl.pallas_call(
        functools.partial(_encoder_kernel, B, N),
        out_shape=jax.ShapeDtypeStruct((B * N, 64), jnp.float32),
        in_specs=[vmem] * len(kernel_inputs),
        out_specs=vmem,
        # Working set (weights + activations) is a few MiB; leave headroom on
        # v7x's 64 MiB of physical VMEM.
        compiler_params=pltpu.CompilerParams(vmem_limit_bytes=32 << 20),
    )(*kernel_inputs)
    return out.reshape(B, N, 64)


def reference(points, params):
    """Pure-JAX replica of PointNetEncoder.forward (train-mode BN, f32 HIGHEST)."""
    ws, bs, gs, bes = params
    B, N, C = points.shape
    h = points.reshape(B * N, C)
    hp = jax.lax.Precision.HIGHEST

    def layer(h, i):
        y = jnp.dot(h, ws[i], preferred_element_type=jnp.float32, precision=hp) + bs[i]
        mean = y.mean(0, keepdims=True)
        centered = y - mean
        var = jnp.square(centered).mean(0, keepdims=True)
        return jnp.maximum(centered * (gs[i] / jnp.sqrt(var + EPS)) + bes[i], 0.0)

    h1 = layer(h, 0)
    h2 = layer(h1, 1)
    h3 = layer(h2, 2)
    h4 = layer(h3, 3)
    gmax = h4.reshape(B, N, -1).max(axis=1)                       # (B, 1024)
    gfull = jnp.broadcast_to(gmax[:, None, :], (B, N, gmax.shape[-1])).reshape(B * N, -1)
    feat = jnp.concatenate([h2, gfull], axis=-1)                  # (B*N, 1088)
    h5 = layer(feat, 4)
    h6 = layer(h5, 5)
    h7 = layer(h6, 6)
    return h7.reshape(B, N, 64)


if __name__ == "__main__":
    key = jax.random.PRNGKey(0)
    k_pts, k_par = jax.random.split(key)

    B, N, C = 2, 64, 2          # channel=2, point_num=64 as in the module
    points = jax.random.normal(k_pts, (B, N, C), dtype=jnp.float32)
    params = init_params(k_par)

    out = jax.block_until_ready(pointnet_encoder(points, params))
    assert out.shape == (B, N, 64) and out.dtype == jnp.float32

    # Both sides are full-f32; tolerance absorbs Mosaic-vs-XLA matmul / rsqrt
    # accumulation differences across 7 BatchNorm-renormalized layers while
    # still catching any structural error (those are O(1) on BN-scaled outputs).
    ref = reference(points, params)
    assert jnp.allclose(out, ref, atol=3e-2, rtol=3e-2), "kernel/reference mismatch"

    print("KERNEL_OK")
</pallas_src>

<mosaic_0001>
module attributes {stable_mosaic.version = 11 : i64} {
  func.func @_encoder_kernel(%arg0: memref<128x8xf32, #tpu.memory_space<vmem>>, %arg1: memref<8x64xf32, #tpu.memory_space<vmem>>, %arg2: memref<1x64xf32, #tpu.memory_space<vmem>>, %arg3: memref<1x64xf32, #tpu.memory_space<vmem>>, %arg4: memref<1x64xf32, #tpu.memory_space<vmem>>, %arg5: memref<64x64xf32, #tpu.memory_space<vmem>>, %arg6: memref<1x64xf32, #tpu.memory_space<vmem>>, %arg7: memref<1x64xf32, #tpu.memory_space<vmem>>, %arg8: memref<1x64xf32, #tpu.memory_space<vmem>>, %arg9: memref<64x128xf32, #tpu.memory_space<vmem>>, %arg10: memref<1x128xf32, #tpu.memory_space<vmem>>, %arg11: memref<1x128xf32, #tpu.memory_space<vmem>>, %arg12: memref<1x128xf32, #tpu.memory_space<vmem>>, %arg13: memref<128x1024xf32, #tpu.memory_space<vmem>>, %arg14: memref<1x1024xf32, #tpu.memory_space<vmem>>, %arg15: memref<1x1024xf32, #tpu.memory_space<vmem>>, %arg16: memref<1x1024xf32, #tpu.memory_space<vmem>>, %arg17: memref<64x512xf32, #tpu.memory_space<vmem>>, %arg18: memref<1024x512xf32, #tpu.memory_space<vmem>>, %arg19: memref<1x512xf32, #tpu.memory_space<vmem>>, %arg20: memref<1x512xf32, #tpu.memory_space<vmem>>, %arg21: memref<1x512xf32, #tpu.memory_space<vmem>>, %arg22: memref<512x256xf32, #tpu.memory_space<vmem>>, %arg23: memref<1x256xf32, #tpu.memory_space<vmem>>, %arg24: memref<1x256xf32, #tpu.memory_space<vmem>>, %arg25: memref<1x256xf32, #tpu.memory_space<vmem>>, %arg26: memref<256x64xf32, #tpu.memory_space<vmem>>, %arg27: memref<1x64xf32, #tpu.memory_space<vmem>>, %arg28: memref<1x64xf32, #tpu.memory_space<vmem>>, %arg29: memref<1x64xf32, #tpu.memory_space<vmem>>, %arg30: memref<128x64xf32, #tpu.memory_space<vmem>>) attributes {dimension_semantics = [], scalar_prefetch = 0 : i64, scratch_operands = 0 : i64, tpu.core_type = #tpu.core_type<tc>} {
    %c0 = arith.constant 0 : index
    %c0_0 = arith.constant 0 : index
    %0 = vector.load %arg0[%c0, %c0_0] : memref<128x8xf32, #tpu.memory_space<vmem>>, vector<128x8xf32>
    %c0_1 = arith.constant 0 : index
    %c0_2 = arith.constant 0 : index
    %1 = vector.load %arg1[%c0_1, %c0_2] : memref<8x64xf32, #tpu.memory_space<vmem>>, vector<8x64xf32>
    %cst = arith.constant dense<0.000000e+00> : vector<128x64xf32>
    %2 = tpu.matmul %0, %1, %cst {dimension_numbers = #tpu.dot_dimension_numbers<[1], [0], [0], [1], [0, 0, 1, 1], [], []>} : vector<128x8xf32>, vector<8x64xf32>, vector<128x64xf32> -> vector<128x64xf32>
    %c0_3 = arith.constant 0 : index
    %c0_4 = arith.constant 0 : index
    %3 = vector.load %arg2[%c0_3, %c0_4] : memref<1x64xf32, #tpu.memory_space<vmem>>, vector<1x64xf32>
    %4 = vector.broadcast %3 : vector<1x64xf32> to vector<128x64xf32>
    %5 = arith.addf %2, %4 : vector<128x64xf32>
    %c0_5 = arith.constant 0 : index
    %c0_6 = arith.constant 0 : index
    %6 = vector.load %arg3[%c0_5, %c0_6] : memref<1x64xf32, #tpu.memory_space<vmem>>, vector<1x64xf32>
    %c0_7 = arith.constant 0 : index
    %c0_8 = arith.constant 0 : index
    %7 = vector.load %arg4[%c0_7, %c0_8] : memref<1x64xf32, #tpu.memory_space<vmem>>, vector<1x64xf32>
    %cst_9 = arith.constant dense<0.000000e+00> : vector<64xf32>
    %8 = vector.multi_reduction <add>, %5, %cst_9 [0] : vector<128x64xf32> to vector<64xf32>
    %9 = vector.shape_cast %8 : vector<64xf32> to vector<1x64xf32>
    %cst_10 = arith.constant 1.280000e+02 : f32
    %10 = vector.broadcast %cst_10 : f32 to vector<1x64xf32>
    %11 = arith.divf %9, %10 : vector<1x64xf32>
    %12 = vector.broadcast %11 : vector<1x64xf32> to vector<128x64xf32>
    %13 = arith.subf %5, %12 : vector<128x64xf32>
    %14 = arith.mulf %13, %13 : vector<128x64xf32>
    %cst_11 = arith.constant dense<0.000000e+00> : vector<64xf32>
    %15 = vector.multi_reduction <add>, %14, %cst_11 [0] : vector<128x64xf32> to vector<64xf32>
    %16 = vector.shape_cast %15 : vector<64xf32> to vector<1x64xf32>
    %cst_12 = arith.constant 1.280000e+02 : f32
    %17 = vector.broadcast %cst_12 : f32 to vector<1x64xf32>
    %18 = arith.divf %16, %17 : vector<1x64xf32>
    %cst_13 = arith.constant 9.99999974E-6 : f32
    %19 = vector.broadcast %cst_13 : f32 to vector<1x64xf32>
    %20 = arith.addf %18, %19 : vector<1x64xf32>
    %21 = math.sqrt %20 : vector<1x64xf32>
    %22 = arith.divf %6, %21 : vector<1x64xf32>
    %23 = vector.broadcast %22 : vector<1x64xf32> to vector<128x64xf32>
    %24 = arith.mulf %13, %23 : vector<128x64xf32>
    %25 = vector.broadcast %7 : vector<1x64xf32> to vector<128x64xf32>
    %26 = arith.addf %24, %25 : vector<128x64xf32>
    %cst_14 = arith.constant 0.000000e+00 : f32
    %27 = vector.broadcast %cst_14 : f32 to vector<128x64xf32>
    %28 = arith.maximumf %26, %27 : vector<128x64xf32>
    %c0_15 = arith.constant 0 : index
    %c0_16 = arith.constant 0 : index
    %29 = vector.load %arg5[%c0_15, %c0_16] : memref<64x64xf32, #tpu.memory_space<vmem>>, vector<64x64xf32>
    %cst_17 = arith.constant dense<0.000000e+00> : vector<128x64xf32>
    %30 = tpu.matmul %28, %29, %cst_17 {dimension_numbers = #tpu.dot_dimension_numbers<[1], [0], [0], [1], [0, 0, 1, 1], [], []>} : vector<128x64xf32>, vector<64x64xf32>, vector<128x64xf32> -> vector<128x64xf32>
    %c0_18 = arith.constant 0 : index
    %c0_19 = arith.constant 0 : index
    %31 = vector.load %arg6[%c0_18, %c0_19] : memref<1x64xf32, #tpu.memory_space<vmem>>, vector<1x64xf32>
    %32 = vector.broadcast %31 : vector<1x64xf32> to vector<128x64xf32>
    %33 = arith.addf %30, %32 : vector<128x64xf32>
    %c0_20 = arith.constant 0 : index
    %c0_21 = arith.constant 0 : index
    %34 = vector.load %arg7[%c0_20, %c0_21] : memref<1x64xf32, #tpu.memory_space<vmem>>, vector<1x64xf32>
    %c0_22 = arith.constant 0 : index
    %c0_23 = arith.constant 0 : index
    %35 = vector.load %arg8[%c0_22, %c0_23] : memref<1x64xf32, #tpu.memory_space<vmem>>, vector<1x64xf32>
    %cst_24 = arith.constant dense<0.000000e+00> : vector<64xf32>
    %36 = vector.multi_reduction <add>, %33, %cst_24 [0] : vector<128x64xf32> to vector<64xf32>
    %37 = vector.shape_cast %36 : vector<64xf32> to vector<1x64xf32>
    %cst_25 = arith.constant 1.280000e+02 : f32
    %38 = vector.broadcast %cst_25 : f32 to vector<1x64xf32>
    %39 = arith.divf %37, %38 : vector<1x64xf32>
    %40 = vector.broadcast %39 : vector<1x64xf32> to vector<128x64xf32>
    %41 = arith.subf %33, %40 : vector<128x64xf32>
    %42 = arith.mulf %41, %41 : vector<128x64xf32>
    %cst_26 = arith.constant dense<0.000000e+00> : vector<64xf32>
    %43 = vector.multi_reduction <add>, %42, %cst_26 [0] : vector<128x64xf32> to vector<64xf32>
    %44 = vector.shape_cast %43 : vector<64xf32> to vector<1x64xf32>
    %cst_27 = arith.constant 1.280000e+02 : f32
    %45 = vector.broadcast %cst_27 : f32 to vector<1x64xf32>
    %46 = arith.divf %44, %45 : vector<1x64xf32>
    %cst_28 = arith.constant 9.99999974E-6 : f32
    %47 = vector.broadcast %cst_28 : f32 to vector<1x64xf32>
    %48 = arith.addf %46, %47 : vector<1x64xf32>
    %49 = math.sqrt %48 : vector<1x64xf32>
    %50 = arith.divf %34, %49 : vector<1x64xf32>
    %51 = vector.broadcast %50 : vector<1x64xf32> to vector<128x64xf32>
    %52 = arith.mulf %41, %51 : vector<128x64xf32>
    %53 = vector.broadcast %35 : vector<1x64xf32> to vector<128x64xf32>
    %54 = arith.addf %52, %53 : vector<128x64xf32>
    %cst_29 = arith.constant 0.000000e+00 : f32
    %55 = vector.broadcast %cst_29 : f32 to vector<128x64xf32>
    %56 = arith.maximumf %54, %55 : vector<128x64xf32>
    %c0_30 = arith.constant 0 : index
    %c0_31 = arith.constant 0 : index
    %57 = vector.load %arg9[%c0_30, %c0_31] : memref<64x128xf32, #tpu.memory_space<vmem>>, vector<64x128xf32>
    %cst_32 = arith.constant dense<0.000000e+00> : vector<128x128xf32>
    %58 = tpu.matmul %56, %57, %cst_32 {dimension_numbers = #tpu.dot_dimension_numbers<[1], [0], [0], [1], [0, 0, 1, 1], [], []>} : vector<128x64xf32>, vector<64x128xf32>, vector<128x128xf32> -> vector<128x128xf32>
    %c0_33 = arith.constant 0 : index
    %c0_34 = arith.constant 0 : index
    %59 = vector.load %arg10[%c0_33, %c0_34] : memref<1x128xf32, #tpu.memory_space<vmem>>, vector<1x128xf32>
    %60 = vector.broadcast %59 : vector<1x128xf32> to vector<128x128xf32>
    %61 = arith.addf %58, %60 : vector<128x128xf32>
    %c0_35 = arith.constant 0 : index
    %c0_36 = arith.constant 0 : index
    %62 = vector.load %arg11[%c0_35, %c0_36] : memref<1x128xf32, #tpu.memory_space<vmem>>, vector<1x128xf32>
    %c0_37 = arith.constant 0 : index
    %c0_38 = arith.constant 0 : index
    %63 = vector.load %arg12[%c0_37, %c0_38] : memref<1x128xf32, #tpu.memory_space<vmem>>, vector<1x128xf32>
    %cst_39 = arith.constant dense<0.000000e+00> : vector<128xf32>
    %64 = vector.multi_reduction <add>, %61, %cst_39 [0] : vector<128x128xf32> to vector<128xf32>
    %65 = vector.shape_cast %64 : vector<128xf32> to vector<1x128xf32>
    %cst_40 = arith.constant 1.280000e+02 : f32
    %66 = vector.broadcast %cst_40 : f32 to vector<1x128xf32>
    %67 = arith.divf %65, %66 : vector<1x128xf32>
    %68 = vector.broadcast %67 : vector<1x128xf32> to vector<128x128xf32>
    %69 = arith.subf %61, %68 : vector<128x128xf32>
    %70 = arith.mulf %69, %69 : vector<128x128xf32>
    %cst_41 = arith.constant dense<0.000000e+00> : vector<128xf32>
    %71 = vector.multi_reduction <add>, %70, %cst_41 [0] : vector<128x128xf32> to vector<128xf32>
    %72 = vector.shape_cast %71 : vector<128xf32> to vector<1x128xf32>
    %cst_42 = arith.constant 1.280000e+02 : f32
    %73 = vector.broadcast %cst_42 : f32 to vector<1x128xf32>
    %74 = arith.divf %72, %73 : vector<1x128xf32>
    %cst_43 = arith.constant 9.99999974E-6 : f32
    %75 = vector.broadcast %cst_43 : f32 to vector<1x128xf32>
    %76 = arith.addf %74, %75 : vector<1x128xf32>
    %77 = math.sqrt %76 : vector<1x128xf32>
    %78 = arith.divf %62, %77 : vector<1x128xf32>
    %79 = vector.broadcast %78 : vector<1x128xf32> to vector<128x128xf32>
    %80 = arith.mulf %69, %79 : vector<128x128xf32>
    %81 = vector.broadcast %63 : vector<1x128xf32> to vector<128x128xf32>
    %82 = arith.addf %80, %81 : vector<128x128xf32>
    %cst_44 = arith.constant 0.000000e+00 : f32
    %83 = vector.broadcast %cst_44 : f32 to vector<128x128xf32>
    %84 = arith.maximumf %82, %83 : vector<128x128xf32>
    %c0_45 = arith.constant 0 : index
    %c0_46 = arith.constant 0 : index
    %85 = vector.load %arg13[%c0_45, %c0_46] : memref<128x1024xf32, #tpu.memory_space<vmem>>, vector<128x1024xf32>
    %cst_47 = arith.constant dense<0.000000e+00> : vector<128x1024xf32>
    %86 = tpu.matmul %84, %85, %cst_47 {dimension_numbers = #tpu.dot_dimension_numbers<[1], [0], [0], [1], [0, 0, 1, 1], [], []>} : vector<128x128xf32>, vector<128x1024xf32>, vector<128x1024xf32> -> vector<128x1024xf32>
    %c0_48 = arith.constant 0 : index
    %c0_49 = arith.constant 0 : index
    %87 = vector.load %arg14[%c0_48, %c0_49] : memref<1x1024xf32, #tpu.memory_space<vmem>>, vector<1x1024xf32>
    %88 = vector.broadcast %87 : vector<1x1024xf32> to vector<128x1024xf32>
    %89 = arith.addf %86, %88 : vector<128x1024xf32>
    %c0_50 = arith.constant 0 : index
    %c0_51 = arith.constant 0 : index
    %90 = vector.load %arg15[%c0_50, %c0_51] : memref<1x1024xf32, #tpu.memory_space<vmem>>, vector<1x1024xf32>
    %c0_52 = arith.constant 0 : index
    %c0_53 = arith.constant 0 : index
    %91 = vector.load %arg16[%c0_52, %c0_53] : memref<1x1024xf32, #tpu.memory_space<vmem>>, vector<1x1024xf32>
    %cst_54 = arith.constant dense<0.000000e+00> : vector<1024xf32>
    %92 = vector.multi_reduction <add>, %89, %cst_54 [0] : vector<128x1024xf32> to vector<1024xf32>
    %93 = vector.shape_cast %92 : vector<1024xf32> to vector<1x1024xf32>
    %cst_55 = arith.constant 1.280000e+02 : f32
    %94 = vector.broadcast %cst_55 : f32 to vector<1x1024xf32>
    %95 = arith.divf %93, %94 : vector<1x1024xf32>
    %96 = vector.broadcast %95 : vector<1x1024xf32> to vector<128x1024xf32>
    %97 = arith.subf %89, %96 : vector<128x1024xf32>
    %98 = arith.mulf %97, %97 : vector<128x1024xf32>
    %cst_56 = arith.constant dense<0.000000e+00> : vector<1024xf32>
    %99 = vector.multi_reduction <add>, %98, %cst_56 [0] : vector<128x1024xf32> to vector<1024xf32>
    %100 = vector.shape_cast %99 : vector<1024xf32> to vector<1x1024xf32>
    %cst_57 = arith.constant 1.280000e+02 : f32
    %101 = vector.broadcast %cst_57 : f32 to vector<1x1024xf32>
    %102 = arith.divf %100, %101 : vector<1x1024xf32>
    %cst_58 = arith.constant 9.99999974E-6 : f32
    %103 = vector.broadcast %cst_58 : f32 to vector<1x1024xf32>
    %104 = arith.addf %102, %103 : vector<1x1024xf32>
    %105 = math.sqrt %104 : vector<1x1024xf32>
    %106 = arith.divf %90, %105 : vector<1x1024xf32>
    %107 = vector.broadcast %106 : vector<1x1024xf32> to vector<128x1024xf32>
    %108 = arith.mulf %97, %107 : vector<128x1024xf32>
    %109 = vector.broadcast %91 : vector<1x1024xf32> to vector<128x1024xf32>
    %110 = arith.addf %108, %109 : vector<128x1024xf32>
    %cst_59 = arith.constant 0.000000e+00 : f32
    %111 = vector.broadcast %cst_59 : f32 to vector<128x1024xf32>
    %112 = arith.maximumf %110, %111 : vector<128x1024xf32>
    %113 = vector.extract_strided_slice %112 {offsets = [0, 0], sizes = [64, 1024], strides = [1, 1]} : vector<128x1024xf32> to vector<64x1024xf32>
    %cst_60 = arith.constant dense<0xFF800000> : vector<1024xf32>
    %114 = vector.multi_reduction <maximumf>, %113, %cst_60 [0] : vector<64x1024xf32> to vector<1024xf32>
    %115 = vector.shape_cast %114 : vector<1024xf32> to vector<1x1024xf32>
    %116 = vector.extract_strided_slice %112 {offsets = [64, 0], sizes = [64, 1024], strides = [1, 1]} : vector<128x1024xf32> to vector<64x1024xf32>
    %cst_61 = arith.constant dense<0xFF800000> : vector<1024xf32>
    %117 = vector.multi_reduction <maximumf>, %116, %cst_61 [0] : vector<64x1024xf32> to vector<1024xf32>
    %118 = vector.shape_cast %117 : vector<1024xf32> to vector<1x1024xf32>
    %119 = tpu.concatenate %115, %118 in 0 : vector<1x1024xf32>, vector<1x1024xf32> -> vector<2x1024xf32>
    %c0_62 = arith.constant 0 : index
    %c0_63 = arith.constant 0 : index
    %120 = vector.load %arg17[%c0_62, %c0_63] : memref<64x512xf32, #tpu.memory_space<vmem>>, vector<64x512xf32>
    %cst_64 = arith.constant dense<0.000000e+00> : vector<128x512xf32>
    %121 = tpu.matmul %56, %120, %cst_64 {dimension_numbers = #tpu.dot_dimension_numbers<[1], [0], [0], [1], [0, 0, 1, 1], [], []>} : vector<128x64xf32>, vector<64x512xf32>, vector<128x512xf32> -> vector<128x512xf32>
    %c0_65 = arith.constant 0 : index
    %c0_66 = arith.constant 0 : index
    %122 = vector.load %arg18[%c0_65, %c0_66] : memref<1024x512xf32, #tpu.memory_space<vmem>>, vector<1024x512xf32>
    %cst_67 = arith.constant dense<0.000000e+00> : vector<2x512xf32>
    %123 = tpu.matmul %119, %122, %cst_67 {dimension_numbers = #tpu.dot_dimension_numbers<[1], [0], [0], [1], [0, 0, 1, 1], [], []>} : vector<2x1024xf32>, vector<1024x512xf32>, vector<2x512xf32> -> vector<2x512xf32>
    %124 = vector.extract_strided_slice %121 {offsets = [0, 0], sizes = [64, 512], strides = [1, 1]} : vector<128x512xf32> to vector<64x512xf32>
    %125 = vector.extract_strided_slice %123 {offsets = [0, 0], sizes = [1, 512], strides = [1, 1]} : vector<2x512xf32> to vector<1x512xf32>
    %126 = vector.broadcast %125 : vector<1x512xf32> to vector<64x512xf32>
    %127 = arith.addf %124, %126 : vector<64x512xf32>
    %128 = vector.extract_strided_slice %121 {offsets = [64, 0], sizes = [64, 512], strides = [1, 1]} : vector<128x512xf32> to vector<64x512xf32>
    %129 = vector.extract_strided_slice %123 {offsets = [1, 0], sizes = [1, 512], strides = [1, 1]} : vector<2x512xf32> to vector<1x512xf32>
    %130 = vector.broadcast %129 : vector<1x512xf32> to vector<64x512xf32>
    %131 = arith.addf %128, %130 : vector<64x512xf32>
    %132 = tpu.concatenate %127, %131 in 0 : vector<64x512xf32>, vector<64x512xf32> -> vector<128x512xf32>
    %c0_68 = arith.constant 0 : index
    %c0_69 = arith.constant 0 : index
    %133 = vector.load %arg19[%c0_68, %c0_69] : memref<1x512xf32, #tpu.memory_space<vmem>>, vector<1x512xf32>
    %134 = vector.broadcast %133 : vector<1x512xf32> to vector<128x512xf32>
    %135 = arith.addf %132, %134 : vector<128x512xf32>
    %c0_70 = arith.constant 0 : index
    %c0_71 = arith.constant 0 : index
    %136 = vector.load %arg20[%c0_70, %c0_71] : memref<1x512xf32, #tpu.memory_space<vmem>>, vector<1x512xf32>
    %c0_72 = arith.constant 0 : index
    %c0_73 = arith.constant 0 : index
    %137 = vector.load %arg21[%c0_72, %c0_73] : memref<1x512xf32, #tpu.memory_space<vmem>>, vector<1x512xf32>
    %cst_74 = arith.constant dense<0.000000e+00> : vector<512xf32>
    %138 = vector.multi_reduction <add>, %135, %cst_74 [0] : vector<128x512xf32> to vector<512xf32>
    %139 = vector.shape_cast %138 : vector<512xf32> to vector<1x512xf32>
    %cst_75 = arith.constant 1.280000e+02 : f32
    %140 = vector.broadcast %cst_75 : f32 to vector<1x512xf32>
    %141 = arith.divf %139, %140 : vector<1x512xf32>
    %142 = vector.broadcast %141 : vector<1x512xf32> to vector<128x512xf32>
    %143 = arith.subf %135, %142 : vector<128x512xf32>
    %144 = arith.mulf %143, %143 : vector<128x512xf32>
    %cst_76 = arith.constant dense<0.000000e+00> : vector<512xf32>
    %145 = vector.multi_reduction <add>, %144, %cst_76 [0] : vector<128x512xf32> to vector<512xf32>
    %146 = vector.shape_cast %145 : vector<512xf32> to vector<1x512xf32>
    %cst_77 = arith.constant 1.280000e+02 : f32
    %147 = vector.broadcast %cst_77 : f32 to vector<1x512xf32>
    %148 = arith.divf %146, %147 : vector<1x512xf32>
    %cst_78 = arith.constant 9.99999974E-6 : f32
    %149 = vector.broadcast %cst_78 : f32 to vector<1x512xf32>
    %150 = arith.addf %148, %149 : vector<1x512xf32>
    %151 = math.sqrt %150 : vector<1x512xf32>
    %152 = arith.divf %136, %151 : vector<1x512xf32>
    %153 = vector.broadcast %152 : vector<1x512xf32> to vector<128x512xf32>
    %154 = arith.mulf %143, %153 : vector<128x512xf32>
    %155 = vector.broadcast %137 : vector<1x512xf32> to vector<128x512xf32>
    %156 = arith.addf %154, %155 : vector<128x512xf32>
    %cst_79 = arith.constant 0.000000e+00 : f32
    %157 = vector.broadcast %cst_79 : f32 to vector<128x512xf32>
    %158 = arith.maximumf %156, %157 : vector<128x512xf32>
    %c0_80 = arith.constant 0 : index
    %c0_81 = arith.constant 0 : index
    %159 = vector.load %arg22[%c0_80, %c0_81] : memref<512x256xf32, #tpu.memory_space<vmem>>, vector<512x256xf32>
    %cst_82 = arith.constant dense<0.000000e+00> : vector<128x256xf32>
    %160 = tpu.matmul %158, %159, %cst_82 {dimension_numbers = #tpu.dot_dimension_numbers<[1], [0], [0], [1], [0, 0, 1, 1], [], []>} : vector<128x512xf32>, vector<512x256xf32>, vector<128x256xf32> -> vector<128x256xf32>
    %c0_83 = arith.constant 0 : index
    %c0_84 = arith.constant 0 : index
    %161 = vector.load %arg23[%c0_83, %c0_84] : memref<1x256xf32, #tpu.memory_space<vmem>>, vector<1x256xf32>
    %162 = vector.broadcast %161 : vector<1x256xf32> to vector<128x256xf32>
    %163 = arith.addf %160, %162 : vector<128x256xf32>
    %c0_85 = arith.constant 0 : index
    %c0_86 = arith.constant 0 : index
    %164 = vector.load %arg24[%c0_85, %c0_86] : memref<1x256xf32, #tpu.memory_space<vmem>>, vector<1x256xf32>
    %c0_87 = arith.constant 0 : index
    %c0_88 = arith.constant 0 : index
    %165 = vector.load %arg25[%c0_87, %c0_88] : memref<1x256xf32, #tpu.memory_space<vmem>>, vector<1x256xf32>
    %cst_89 = arith.constant dense<0.000000e+00> : vector<256xf32>
    %166 = vector.multi_reduction <add>, %163, %cst_89 [0] : vector<128x256xf32> to vector<256xf32>
    %167 = vector.shape_cast %166 : vector<256xf32> to vector<1x256xf32>
    %cst_90 = arith.constant 1.280000e+02 : f32
    %168 = vector.broadcast %cst_90 : f32 to vector<1x256xf32>
    %169 = arith.divf %167, %168 : vector<1x256xf32>
    %170 = vector.broadcast %169 : vector<1x256xf32> to vector<128x256xf32>
    %171 = arith.subf %163, %170 : vector<128x256xf32>
    %172 = arith.mulf %171, %171 : vector<128x256xf32>
    %cst_91 = arith.constant dense<0.000000e+00> : vector<256xf32>
    %173 = vector.multi_reduction <add>, %172, %cst_91 [0] : vector<128x256xf32> to vector<256xf32>
    %174 = vector.shape_cast %173 : vector<256xf32> to vector<1x256xf32>
    %cst_92 = arith.constant 1.280000e+02 : f32
    %175 = vector.broadcast %cst_92 : f32 to vector<1x256xf32>
    %176 = arith.divf %174, %175 : vector<1x256xf32>
    %cst_93 = arith.constant 9.99999974E-6 : f32
    %177 = vector.broadcast %cst_93 : f32 to vector<1x256xf32>
    %178 = arith.addf %176, %177 : vector<1x256xf32>
    %179 = math.sqrt %178 : vector<1x256xf32>
    %180 = arith.divf %164, %179 : vector<1x256xf32>
    %181 = vector.broadcast %180 : vector<1x256xf32> to vector<128x256xf32>
    %182 = arith.mulf %171, %181 : vector<128x256xf32>
    %183 = vector.broadcast %165 : vector<1x256xf32> to vector<128x256xf32>
    %184 = arith.addf %182, %183 : vector<128x256xf32>
    %cst_94 = arith.constant 0.000000e+00 : f32
    %185 = vector.broadcast %cst_94 : f32 to vector<128x256xf32>
    %186 = arith.maximumf %184, %185 : vector<128x256xf32>
    %c0_95 = arith.constant 0 : index
    %c0_96 = arith.constant 0 : index
    %187 = vector.load %arg26[%c0_95, %c0_96] : memref<256x64xf32, #tpu.memory_space<vmem>>, vector<256x64xf32>
    %cst_97 = arith.constant dense<0.000000e+00> : vector<128x64xf32>
    %188 = tpu.matmul %186, %187, %cst_97 {dimension_numbers = #tpu.dot_dimension_numbers<[1], [0], [0], [1], [0, 0, 1, 1], [], []>} : vector<128x256xf32>, vector<256x64xf32>, vector<128x64xf32> -> vector<128x64xf32>
    %c0_98 = arith.constant 0 : index
    %c0_99 = arith.constant 0 : index
    %189 = vector.load %arg27[%c0_98, %c0_99] : memref<1x64xf32, #tpu.memory_space<vmem>>, vector<1x64xf32>
    %190 = vector.broadcast %189 : vector<1x64xf32> to vector<128x64xf32>
    %191 = arith.addf %188, %190 : vector<128x64xf32>
    %c0_100 = arith.constant 0 : index
    %c0_101 = arith.constant 0 : index
    %192 = vector.load %arg28[%c0_100, %c0_101] : memref<1x64xf32, #tpu.memory_space<vmem>>, vector<1x64xf32>
    %c0_102 = arith.constant 0 : index
    %c0_103 = arith.constant 0 : index
    %193 = vector.load %arg29[%c0_102, %c0_103] : memref<1x64xf32, #tpu.memory_space<vmem>>, vector<1x64xf32>
    %cst_104 = arith.constant dense<0.000000e+00> : vector<64xf32>
    %194 = vector.multi_reduction <add>, %191, %cst_104 [0] : vector<128x64xf32> to vector<64xf32>
    %195 = vector.shape_cast %194 : vector<64xf32> to vector<1x64xf32>
    %cst_105 = arith.constant 1.280000e+02 : f32
    %196 = vector.broadcast %cst_105 : f32 to vector<1x64xf32>
    %197 = arith.divf %195, %196 : vector<1x64xf32>
    %198 = vector.broadcast %197 : vector<1x64xf32> to vector<128x64xf32>
    %199 = arith.subf %191, %198 : vector<128x64xf32>
    %200 = arith.mulf %199, %199 : vector<128x64xf32>
    %cst_106 = arith.constant dense<0.000000e+00> : vector<64xf32>
    %201 = vector.multi_reduction <add>, %200, %cst_106 [0] : vector<128x64xf32> to vector<64xf32>
    %202 = vector.shape_cast %201 : vector<64xf32> to vector<1x64xf32>
    %cst_107 = arith.constant 1.280000e+02 : f32
    %203 = vector.broadcast %cst_107 : f32 to vector<1x64xf32>
    %204 = arith.divf %202, %203 : vector<1x64xf32>
    %cst_108 = arith.constant 9.99999974E-6 : f32
    %205 = vector.broadcast %cst_108 : f32 to vector<1x64xf32>
    %206 = arith.addf %204, %205 : vector<1x64xf32>
    %207 = math.sqrt %206 : vector<1x64xf32>
    %208 = arith.divf %192, %207 : vector<1x64xf32>
    %209 = vector.broadcast %208 : vector<1x64xf32> to vector<128x64xf32>
    %210 = arith.mulf %199, %209 : vector<128x64xf32>
    %211 = vector.broadcast %193 : vector<1x64xf32> to vector<128x64xf32>
    %212 = arith.addf %210, %211 : vector<128x64xf32>
    %cst_109 = arith.constant 0.000000e+00 : f32
    %213 = vector.broadcast %cst_109 : f32 to vector<128x64xf32>
    %214 = arith.maximumf %212, %213 : vector<128x64xf32>
    %c0_110 = arith.constant 0 : index
    %c0_111 = arith.constant 0 : index
    %215 = vector.load %arg30[%c0_110, %c0_111] : memref<128x64xf32, #tpu.memory_space<vmem>>, vector<128x64xf32>
    tpu.vector_store %arg30[%c0_110, %c0_111], %214 {strides = array<i32>} : memref<128x64xf32, #tpu.memory_space<vmem>>, vector<128x64xf32>,
    return
  }
}

</mosaic_0001>

<llo_original>
// kernel: pointnet_encoder.1
$region0: #{pointnet_encoder.1}
  #allocation0 [shape = 'u32[]', space=smem, size = 0x4, offset = 0x4, fixed_abs, tag = 'smem constant byte address 0x4 - core index']
  #allocation1 [shape = 'u32[144,128]{1,0:T(1,128)}', space=vmem, size = 0x12000, scoped, tag = 'internal scratch']
  %s0 = inlined_call_operand.smem [shape: u32[31], index: -1, kind: input, shape index: {}]
  %s1 = sld [smem:[%s0]]
  %s2 = scalar_lea.smem %s0, 1
  %s3 = sld [smem:[%s2]]
  %s4 = scalar_lea.smem %s0, 2
  %s5 = sld [smem:[%s4]]
  %s6 = scalar_lea.smem %s0, 3
  %s7 = sld [smem:[%s6]]
  %s8 = scalar_lea.smem %s0, 4
  %s9 = sld [smem:[%s8]]
  %s10 = scalar_lea.smem %s0, 5
  %s11 = sld [smem:[%s10]]
  %s12 = scalar_lea.smem %s0, 6
  %s13 = sld [smem:[%s12]]
  %s14 = scalar_lea.smem %s0, 7
  %s15 = sld [smem:[%s14]]
  %s16 = scalar_lea.smem %s0, 8
  %s17 = sld [smem:[%s16]]
  %s18 = scalar_lea.smem %s0, 9
  %s19 = sld [smem:[%s18]]
  %s20 = scalar_lea.smem %s0, 10
  %s21 = sld [smem:[%s20]]
  %s22 = scalar_lea.smem %s0, 11
  %s23 = sld [smem:[%s22]]
  %s24 = scalar_lea.smem %s0, 12
  %s25 = sld [smem:[%s24]]
  %s26 = scalar_lea.smem %s0, 13
  %s27 = sld [smem:[%s26]]
  %s28 = scalar_lea.smem %s0, 14
  %s29 = sld [smem:[%s28]]
  %s30 = scalar_lea.smem %s0, 15
  %s31 = sld [smem:[%s30]]
  %s32 = scalar_lea.smem %s0, 16
  %s33 = sld [smem:[%s32]]
  %s34 = scalar_lea.smem %s0, 17
  %s35 = sld [smem:[%s34]]
  %s36 = scalar_lea.smem %s0, 18
  %s37 = sld [smem:[%s36]]
  %s38 = scalar_lea.smem %s0, 19
  %s39 = sld [smem:[%s38]]
  %s40 = scalar_lea.smem %s0, 20
  %s41 = sld [smem:[%s40]]
  %s42 = scalar_lea.smem %s0, 21
  %s43 = sld [smem:[%s42]]
  %s44 = scalar_lea.smem %s0, 22
  %s45 = sld [smem:[%s44]]
  %s46 = scalar_lea.smem %s0, 23
  %s47 = sld [smem:[%s46]]
  %s48 = scalar_lea.smem %s0, 24
  %s49 = sld [smem:[%s48]]
  %s50 = scalar_lea.smem %s0, 25
  %s51 = sld [smem:[%s50]]
  %s52 = scalar_lea.smem %s0, 26
  %s53 = sld [smem:[%s52]]
  %s54 = scalar_lea.smem %s0, 27
  %s55 = sld [smem:[%s54]]
  %s56 = scalar_lea.smem %s0, 28
  %s57 = sld [smem:[%s56]]
  %s58 = scalar_lea.smem %s0, 29
  %s59 = sld [smem:[%s58]]
  %s60 = scalar_lea.smem %s0, 30
  %s61 = sld [smem:[%s60]]
  %s62 = sld [smem:[#allocation0]]
  $region130: #{pointnet_encoder.1} parent=0
    _
  %s64 = ssub.s32 1, %s62
  %s65 = scalar_select 0, %s64, %s62
  $region1: #{pointnet_encoder.1} parent=0
    #allocation2 [shape = 'u8[65536]{0}', space=vmem, size = 0x10000, scoped, tag = 'output window, operand 0, single buffered']
    #allocation3 [shape = 's32[1]{0}', space=sflag, size = 0x4, scoped, tag = 'scoped memory for pointnet_encoder.1']
    %66 = vsyncpa [#allocation3], 0
    // Predicated region
    $region2: #{pointnet_encoder.1} parent=1 // pred_check
      _
    $region3: #{pointnet_encoder.1} parent=1 // pred_check_branch
      %68 = sbr.rel (0) target = $region5
    $region4: #{pointnet_encoder.1} parent=1 // pred_region
      _
    $region5: #{pointnet_encoder.1} parent=1 // pred_fallthru
      _
    // Predicated region
    $region6: #{pointnet_encoder.1} parent=1 // pred_check
      _
    $region7: #{pointnet_encoder.1} parent=1 // pred_check_branch
      %70 = sbr.rel (0) target = $region9
    $region8: #{pointnet_encoder.1} parent=1 // pred_region
      _
    $region9: #{pointnet_encoder.1} parent=1 // pred_fallthru
      _
    // Predicated region
    $region10: #{pointnet_encoder.1} parent=1 // pred_check
      _
    $region11: #{pointnet_encoder.1} parent=1 // pred_check_branch
      %72 = sbr.rel (0) target = $region13
    $region12: #{pointnet_encoder.1} parent=1 // pred_region
      _
    $region13: #{pointnet_encoder.1} parent=1 // pred_fallthru
      _
    // Predicated region
    $region14: #{pointnet_encoder.1} parent=1 // pred_check
      _
    $region15: #{pointnet_encoder.1} parent=1 // pred_check_branch
      %74 = sbr.rel (0) target = $region17
    $region16: #{pointnet_encoder.1} parent=1 // pred_region
      _
    $region17: #{pointnet_encoder.1} parent=1 // pred_fallthru
      _
    // Predicated region
    $region18: #{pointnet_encoder.1} parent=1 // pred_check
      _
    $region19: #{pointnet_encoder.1} parent=1 // pred_check_branch
      %76 = sbr.rel (0) target = $region21
    $region20: #{pointnet_encoder.1} parent=1 // pred_region
      _
    $region21: #{pointnet_encoder.1} parent=1 // pred_fallthru
      _
    // Predicated region
    $region22: #{pointnet_encoder.1} parent=1 // pred_check
      _
    $region23: #{pointnet_encoder.1} parent=1 // pred_check_branch
      %78 = sbr.rel (0) target = $region25
    $region24: #{pointnet_encoder.1} parent=1 // pred_region
      _
    $region25: #{pointnet_encoder.1} parent=1 // pred_fallthru
      _
    // Predicated region
    $region26: #{pointnet_encoder.1} parent=1 // pred_check
      _
    $region27: #{pointnet_encoder.1} parent=1 // pred_check_branch
      %80 = sbr.rel (0) target = $region29
    $region28: #{pointnet_encoder.1} parent=1 // pred_region
      _
    $region29: #{pointnet_encoder.1} parent=1 // pred_fallthru
      _
    // Predicated region
    $region30: #{pointnet_encoder.1} parent=1 // pred_check
      _
    $region31: #{pointnet_encoder.1} parent=1 // pred_check_branch
      %82 = sbr.rel (0) target = $region33
    $region32: #{pointnet_encoder.1} parent=1 // pred_region
      _
    $region33: #{pointnet_encoder.1} parent=1 // pred_fallthru
      _
    // Predicated region
    $region34: #{pointnet_encoder.1} parent=1 // pred_check
      _
    $region35: #{pointnet_encoder.1} parent=1 // pred_check_branch
      %84 = sbr.rel (0) target = $region37
    $region36: #{pointnet_encoder.1} parent=1 // pred_region
      _
    $region37: #{pointnet_encoder.1} parent=1 // pred_fallthru
      _
    // Predicated region
    $region38: #{pointnet_encoder.1} parent=1 // pred_check
      _
    $region39: #{pointnet_encoder.1} parent=1 // pred_check_branch
      %86 = sbr.rel (0) target = $region41
    $region40: #{pointnet_encoder.1} parent=1 // pred_region
      _
    $region41: #{pointnet_encoder.1} parent=1 // pred_fallthru
      _
    // Predicated region
    $region42: #{pointnet_encoder.1} parent=1 // pred_check
      _
    $region43: #{pointnet_encoder.1} parent=1 // pred_check_branch
      %88 = sbr.rel (0) target = $region45
    $region44: #{pointnet_encoder.1} parent=1 // pred_region
      _
    $region45: #{pointnet_encoder.1} parent=1 // pred_fallthru
      _
    // Predicated region
    $region46: #{pointnet_encoder.1} parent=1 // pred_check
      _
    $region47: #{pointnet_encoder.1} parent=1 // pred_check_branch
      %90 = sbr.rel (0) target = $region49
    $region48: #{pointnet_encoder.1} parent=1 // pred_region
      _
    $region49: #{pointnet_encoder.1} parent=1 // pred_fallthru
      _
    // Predicated region
    $region50: #{pointnet_encoder.1} parent=1 // pred_check
      _
    $region51: #{pointnet_encoder.1} parent=1 // pred_check_branch
      %92 = sbr.rel (0) target = $region53
    $region52: #{pointnet_encoder.1} parent=1 // pred_region
      _
    $region53: #{pointnet_encoder.1} parent=1 // pred_fallthru
      _
    // Predicated region
    $region54: #{pointnet_encoder.1} parent=1 // pred_check
      _
    $region55: #{pointnet_encoder.1} parent=1 // pred_check_branch
      %94 = sbr.rel (0) target = $region57
    $region56: #{pointnet_encoder.1} parent=1 // pred_region
      _
    $region57: #{pointnet_encoder.1} parent=1 // pred_fallthru
      _
    // Predicated region
    $region58: #{pointnet_encoder.1} parent=1 // pred_check
      _
    $region59: #{pointnet_encoder.1} parent=1 // pred_check_branch
      %96 = sbr.rel (0) target = $region61
    $region60: #{pointnet_encoder.1} parent=1 // pred_region
      _
    $region61: #{pointnet_encoder.1} parent=1 // pred_fallthru
      _
    // Predicated region
    $region62: #{pointnet_encoder.1} parent=1 // pred_check
      _
    $region63: #{pointnet_encoder.1} parent=1 // pred_check_branch
      %98 = sbr.rel (0) target = $region65
    $region64: #{pointnet_encoder.1} parent=1 // pred_region
      _
    $region65: #{pointnet_encoder.1} parent=1 // pred_fallthru
      _
    // Predicated region
    $region66: #{pointnet_encoder.1} parent=1 // pred_check
      _
    $region67: #{pointnet_encoder.1} parent=1 // pred_check_branch
      %100 = sbr.rel (0) target = $region69
    $region68: #{pointnet_encoder.1} parent=1 // pred_region
      _
    $region69: #{pointnet_encoder.1} parent=1 // pred_fallthru
      _
    // Predicated region
    $region70: #{pointnet_encoder.1} parent=1 // pred_check
      _
    $region71: #{pointnet_encoder.1} parent=1 // pred_check_branch
      %102 = sbr.rel (0) target = $region73
    $region72: #{pointnet_encoder.1} parent=1 // pred_region
      _
    $region73: #{pointnet_encoder.1} parent=1 // pred_fallthru
      _
    // Predicated region
    $region74: #{pointnet_encoder.1} parent=1 // pred_check
      _
    $region75: #{pointnet_encoder.1} parent=1 // pred_check_branch
      %104 = sbr.rel (0) target = $region77
    $region76: #{pointnet_encoder.1} parent=1 // pred_region
      _
    $region77: #{pointnet_encoder.1} parent=1 // pred_fallthru
      _
    // Predicated region
    $region78: #{pointnet_encoder.1} parent=1 // pred_check
      _
    $region79: #{pointnet_encoder.1} parent=1 // pred_check_branch
      %106 = sbr.rel (0) target = $region81
    $region80: #{pointnet_encoder.1} parent=1 // pred_region
      _
    $region81: #{pointnet_encoder.1} parent=1 // pred_fallthru
      _
    // Predicated region
    $region82: #{pointnet_encoder.1} parent=1 // pred_check
      _
    $region83: #{pointnet_encoder.1} parent=1 // pred_check_branch
      %108 = sbr.rel (0) target = $region85
    $region84: #{pointnet_encoder.1} parent=1 // pred_region
      _
    $region85: #{pointnet_encoder.1} parent=1 // pred_fallthru
      _
    // Predicated region
    $region86: #{pointnet_encoder.1} parent=1 // pred_check
      _
    $region87: #{pointnet_encoder.1} parent=1 // pred_check_branch
      %110 = sbr.rel (0) target = $region89
    $region88: #{pointnet_encoder.1} parent=1 // pred_region
      _
    $region89: #{pointnet_encoder.1} parent=1 // pred_fallthru
      _
    // Predicated region
    $region90: #{pointnet_encoder.1} parent=1 // pred_check
      _
    $region91: #{pointnet_encoder.1} parent=1 // pred_check_branch
      %112 = sbr.rel (0) target = $region93
    $region92: #{pointnet_encoder.1} parent=1 // pred_region
      _
    $region93: #{pointnet_encoder.1} parent=1 // pred_fallthru
      _
    // Predicated region
    $region94: #{pointnet_encoder.1} parent=1 // pred_check
      _
    $region95: #{pointnet_encoder.1} parent=1 // pred_check_branch
      %114 = sbr.rel (0) target = $region97
    $region96: #{pointnet_encoder.1} parent=1 // pred_region
      _
    $region97: #{pointnet_encoder.1} parent=1 // pred_fallthru
      _
    // Predicated region
    $region98: #{pointnet_encoder.1} parent=1 // pred_check
      _
    $region99: #{pointnet_encoder.1} parent=1 // pred_check_branch
      %116 = sbr.rel (0) target = $region101
    $region100: #{pointnet_encoder.1} parent=1 // pred_region
      _
    $region101: #{pointnet_encoder.1} parent=1 // pred_fallthru
      _
    // Predicated region
    $region102: #{pointnet_encoder.1} parent=1 // pred_check
      _
    $region103: #{pointnet_encoder.1} parent=1 // pred_check_branch
      %118 = sbr.rel (0) target = $region105
    $region104: #{pointnet_encoder.1} parent=1 // pred_region
      _
    $region105: #{pointnet_encoder.1} parent=1 // pred_fallthru
      _
    // Predicated region
    $region106: #{pointnet_encoder.1} parent=1 // pred_check
      _
    $region107: #{pointnet_encoder.1} parent=1 // pred_check_branch
      %120 = sbr.rel (0) target = $region109
    $region108: #{pointnet_encoder.1} parent=1 // pred_region
      _
    $region109: #{pointnet_encoder.1} parent=1 // pred_fallthru
      _
    // Predicated region
    $region110: #{pointnet_encoder.1} parent=1 // pred_check
      _
    $region111: #{pointnet_encoder.1} parent=1 // pred_check_branch
      %122 = sbr.rel (0) target = $region113
    $region112: #{pointnet_encoder.1} parent=1 // pred_region
      _
    $region113: #{pointnet_encoder.1} parent=1 // pred_fallthru
      _
    // Predicated region
    $region114: #{pointnet_encoder.1} parent=1 // pred_check
      _
    $region115: #{pointnet_encoder.1} parent=1 // pred_check_branch
      %124 = sbr.rel (0) target = $region117
    $region116: #{pointnet_encoder.1} parent=1 // pred_region
      _
    $region117: #{pointnet_encoder.1} parent=1 // pred_fallthru
      _
    // Predicated region
    $region118: #{pointnet_encoder.1} parent=1 // pred_check
      _
    $region119: #{pointnet_encoder.1} parent=1 // pred_check_branch
      %126 = sbr.rel (0) target = $region121
    $region120: #{pointnet_encoder.1} parent=1 // pred_region
      _
    $region121: #{pointnet_encoder.1} parent=1 // pred_fallthru
      _
    %v127 = vld [vmem:[%s1] sm:$0xff]
    %v128 = vld [vmem:[%s1 + $0x8] sm:$0xff]
    %v129 = vld [vmem:[%s1 + $0x10] sm:$0xff]
    %v130 = vld [vmem:[%s1 + $0x18] sm:$0xff]
    %v131 = vld [vmem:[%s1 + $0x20] sm:$0xff]
    %v132 = vld [vmem:[%s1 + $0x28] sm:$0xff]
    %v133 = vld [vmem:[%s1 + $0x30] sm:$0xff]
    %v134 = vld [vmem:[%s1 + $0x38] sm:$0xff]
    %v135 = vld [vmem:[%s1 + $0x40] sm:$0xff]
    %v136 = vld [vmem:[%s1 + $0x48] sm:$0xff]
    %v137 = vld [vmem:[%s1 + $0x50] sm:$0xff]
    %v138 = vld [vmem:[%s1 + $0x58] sm:$0xff]
    %v139 = vld [vmem:[%s1 + $0x60] sm:$0xff]
    %v140 = vld [vmem:[%s1 + $0x68] sm:$0xff]
    %v141 = vld [vmem:[%s1 + $0x70] sm:$0xff]
    %v142 = vld [vmem:[%s1 + $0x78] sm:$0xff]
    %v143 = vld [vmem:[%s3] sm:$0xff]
    %v144 = vld [vmem:[%s5] sm:$0x1]
    %v146 = vlaneseq
    %v147 = vshrl.u32 %v146, 7
    %v148 = vsub.s32 0, %v147
    %v149 = vrot.slane %v144, %v148
    %vm151 = vcmask 64512
    %v153 = vsel %vm151, %v127, 0
    %v156 = vsel %vm151, %v128, 0
    %v159 = vsel %vm151, %v129, 0
    %v162 = vsel %vm151, %v130, 0
    %v165 = vsel %vm151, %v131, 0
    %v168 = vsel %vm151, %v132, 0
    %v171 = vsel %vm151, %v133, 0
    %v174 = vsel %vm151, %v134, 0
    %v177 = vsel %vm151, %v135, 0
    %v180 = vsel %vm151, %v136, 0
    %v183 = vsel %vm151, %v137, 0
    %v186 = vsel %vm151, %v138, 0
    %v189 = vsel %vm151, %v139, 0
    %v192 = vsel %vm151, %v140, 0
    %v195 = vsel %vm151, %v141, 0
    %v198 = vsel %vm151, %v142, 0
    %200 = vmatprep.subr.mxu0 0.0
    %201 = vmatpush1.msra.mxu0 0.0
    %202 = vmatprep.subr.mxu0 0.0
    %203 = vmatpush1.msra.mxu0 0.0
    %204 = vmatprep.subr.mxu0 0.0
    %205 = vmatpush1.msra.mxu0 0.0
    %206 = vmatprep.subr.mxu0 0.0
    %207 = vmatpush1.msra.mxu0 0.0
    %208 = vmatprep.subr.mxu0 0.0
    %209 = vmatpush1.msra.mxu0 0.0
    %210 = vmatprep.subr.mxu0 0.0
    %211 = vmatpush1.msra.mxu0 0.0
    %212 = vmatprep.subr.mxu0 0.0
    %213 = vmatpush1.msra.mxu0 0.0
    %214 = vmatprep.subr.mxu0 0.0
    %215 = vmatpush1.msra.mxu0 0.0
    %216 = vmatprep.subr.mxu0 0.0
    %217 = vmatpush1.msra.mxu0 0.0
    %218 = vmatprep.subr.mxu0 0.0
    %219 = vmatpush1.msra.mxu0 0.0
    %220 = vmatprep.subr.mxu0 0.0
    %221 = vmatpush1.msra.mxu0 0.0
    %222 = vmatprep.subr.mxu0 0.0
    %223 = vmatpush1.msra.mxu0 0.0
    %224 = vmatprep.subr.mxu0 0.0
    %225 = vmatpush1.msra.mxu0 0.0
    %226 = vmatprep.subr.mxu0 0.0
    %227 = vmatpush1.msra.mxu0 0.0
    %228 = vmatprep.subr.mxu0 0.0
    %229 = vmatpush1.msra.mxu0 0.0
    %230 = vmatprep.subr.mxu0 0.0
    %231 = vmatpush1.msra.mxu0 %v143
    %232 = vmatprep.subr.mxu0 0.0
    %233 = vmatpush2.msra.mxu0 0.0
    %234 = vmatprep.subr.mxu0 0.0
    %235 = vmatpush2.msra.mxu0 0.0
    %236 = vmatprep.subr.mxu0 0.0
    %237 = vmatpush2.msra.mxu0 0.0
    %238 = vmatprep.subr.mxu0 0.0
    %239 = vmatpush2.msra.mxu0 0.0
    %240 = vmatprep.subr.mxu0 0.0
    %241 = vmatpush2.msra.mxu0 0.0
    %242 = vmatprep.subr.mxu0 0.0
    %243 = vmatpush2.msra.mxu0 0.0
    %244 = vmatprep.subr.mxu0 0.0
    %245 = vmatpush2.msra.mxu0 0.0
    %246 = vmatprep.subr.mxu0 0.0
    %247 = vmatpush2.msra.mxu0 0.0
    %248 = vmatprep.subr.mxu0 0.0
    %249 = vmatpush2.msra.mxu0 0.0
    %250 = vmatprep.subr.mxu0 0.0
    %251 = vmatpush2.msra.mxu0 0.0
    %252 = vmatprep.subr.mxu0 0.0
    %253 = vmatpush2.msra.mxu0 0.0
    %254 = vmatprep.subr.mxu0 0.0
    %255 = vmatpush2.msra.mxu0 0.0
    %256 = vmatprep.subr.mxu0 0.0
    %257 = vmatpush2.msra.mxu0 0.0
    %258 = vmatprep.subr.mxu0 0.0
    %259 = vmatpush2.msra.mxu0 0.0
    %260 = vmatprep.subr.mxu0 0.0
    %261 = vmatpush2.msra.mxu0 0.0
    %262 = vmatprep.subr.mxu0 0.0
    %263 = vmatpush2.msra.mxu0 0.0
    %264 = vmatprep.mubr.f32.mxu0 0.0
    %265 = vmatmul.mubr.f32.gmra.mxu0 %v153
    %v266 = vpop.f32.mrf.mxu0
    %v267 = vadd.f32 %v149, %v266
    %v268 = vpop.f32.mrf.mxu0
    %269 = vmatprep.mubr.f32.mxu0 0.0
    %270 = vmatmul.mubr.f32.gmra.mxu0 %v156
    %v271 = vpop.f32.mrf.mxu0
    %v272 = vadd.f32 %v149, %v271
    %v273 = vpop.f32.mrf.mxu0
    %274 = vmatprep.mubr.f32.mxu0 0.0
    %275 = vmatmul.mubr.f32.gmra.mxu0 %v159
    %v276 = vpop.f32.mrf.mxu0
    %v277 = vadd.f32 %v149, %v276
    %v278 = vpop.f32.mrf.mxu0
    %279 = vmatprep.mubr.f32.mxu0 0.0
    %280 = vmatmul.mubr.f32.gmra.mxu0 %v162
    %v281 = vpop.f32.mrf.mxu0
    %v282 = vadd.f32 %v149, %v281
    %v283 = vpop.f32.mrf.mxu0
    %284 = vmatprep.mubr.f32.mxu0 0.0
    %285 = vmatmul.mubr.f32.gmra.mxu0 %v165
    %v286 = vpop.f32.mrf.mxu0
    %v287 = vadd.f32 %v149, %v286
    %v288 = vpop.f32.mrf.mxu0
    %289 = vmatprep.mubr.f32.mxu0 0.0
    %290 = vmatmul.mubr.f32.gmra.mxu0 %v168
    %v291 = vpop.f32.mrf.mxu0
    %v292 = vadd.f32 %v149, %v291
    %v293 = vpop.f32.mrf.mxu0
    %294 = vmatprep.mubr.f32.mxu0 0.0
    %295 = vmatmul.mubr.f32.gmra.mxu0 %v171
    %v296 = vpop.f32.mrf.mxu0
    %v297 = vadd.f32 %v149, %v296
    %v298 = vpop.f32.mrf.mxu0
    %299 = vmatprep.mubr.f32.mxu0 0.0
    %300 = vmatmul.mubr.f32.gmra.mxu0 %v174
    %v301 = vpop.f32.mrf.mxu0
    %v302 = vadd.f32 %v149, %v301
    %v303 = vpop.f32.mrf.mxu0
    %304 = vmatprep.mubr.f32.mxu0 0.0
    %305 = vmatmul.mubr.f32.gmra.mxu0 %v177
    %v306 = vpop.f32.mrf.mxu0
    %v307 = vadd.f32 %v149, %v306
    %v308 = vpop.f32.mrf.mxu0
    %309 = vmatprep.mubr.f32.mxu0 0.0
    %310 = vmatmul.mubr.f32.gmra.mxu0 %v180
    %v311 = vpop.f32.mrf.mxu0
    %v312 = vadd.f32 %v149, %v311
    %v313 = vpop.f32.mrf.mxu0
    %314 = vmatprep.mubr.f32.mxu0 0.0
    %315 = vmatmul.mubr.f32.gmra.mxu0 %v183
    %v316 = vpop.f32.mrf.mxu0
    %v317 = vadd.f32 %v149, %v316
    %v318 = vpop.f32.mrf.mxu0
    %319 = vmatprep.mubr.f32.mxu0 0.0
    %320 = vmatmul.mubr.f32.gmra.mxu0 %v186
    %v321 = vpop.f32.mrf.mxu0
    %v322 = vadd.f32 %v149, %v321
    %v323 = vpop.f32.mrf.mxu0
    %324 = vmatprep.mubr.f32.mxu0 0.0
    %325 = vmatmul.mubr.f32.gmra.mxu0 %v189
    %v326 = vpop.f32.mrf.mxu0
    %v327 = vadd.f32 %v149, %v326
    %v328 = vpop.f32.mrf.mxu0
    %329 = vmatprep.mubr.f32.mxu0 0.0
    %330 = vmatmul.mubr.f32.gmra.mxu0 %v192
    %v331 = vpop.f32.mrf.mxu0
    %v332 = vadd.f32 %v149, %v331
    %v333 = vpop.f32.mrf.mxu0
    %334 = vmatprep.mubr.f32.mxu0 0.0
    %335 = vmatmul.mubr.f32.gmra.mxu0 %v195
    %v336 = vpop.f32.mrf.mxu0
    %v337 = vadd.f32 %v149, %v336
    %v338 = vpop.f32.mrf.mxu0
    %339 = vmatprep.mubr.f32.mxu0 0.0
    %340 = vmatmul.mubr.f32.gmra.mxu0 %v198
    %v341 = vpop.f32.mrf.mxu0
    %v342 = vadd.f32 %v149, %v341
    %v343 = vpop.f32.mrf.mxu0
    %344 = vdwg.mxu0
    %v345 = vld [vmem:[%s7] sm:$0x1]
    %v346 = vld [vmem:[%s9] sm:$0x1]
    %vm347 = vcmask 523264
    %v348 = vsel %vm347, %v267, 0.0
    %v349 = vsel %vm347, %v272, 0.0
    %v350 = vadd.f32 %v348, %v349
    %v351 = vsel %vm347, %v277, 0.0
    %v352 = vadd.f32 %v350, %v351
    %v353 = vsel %vm347, %v282, 0.0
    %v354 = vadd.f32 %v352, %v353
    %v355 = vsel %vm347, %v287, 0.0
    %v356 = vadd.f32 %v354, %v355
    %v357 = vsel %vm347, %v292, 0.0
    %v358 = vadd.f32 %v356, %v357
    %v359 = vsel %vm347, %v297, 0.0
    %v360 = vadd.f32 %v358, %v359
    %v361 = vsel %vm347, %v302, 0.0
    %v362 = vadd.f32 %v360, %v361
    %v363 = vsel %vm347, %v307, 0.0
    %v364 = vadd.f32 %v362, %v363
    %v365 = vsel %vm347, %v312, 0.0
    %v366 = vadd.f32 %v364, %v365
    %v367 = vsel %vm347, %v317, 0.0
    %v368 = vadd.f32 %v366, %v367
    %v369 = vsel %vm347, %v322, 0.0
    %v370 = vadd.f32 %v368, %v369
    %v371 = vsel %vm347, %v327, 0.0
    %v372 = vadd.f32 %v370, %v371
    %v373 = vsel %vm347, %v332, 0.0
    %v374 = vadd.f32 %v372, %v373
    %v375 = vsel %vm347, %v337, 0.0
    %v376 = vadd.f32 %v374, %v375
    %v377 = vsel %vm347, %v342, 0.0
    %v378 = vadd.f32 %v376, %v377
    %v379 = vrot.slane %v378, 4
    %v380 = vadd.f32 %v378, %v379
    %v381 = vrot.slane %v380, 2
    %v382 = vadd.f32 %v380, %v381
    %v383 = vrot.slane %v382, 1
    %v384 = vadd.f32 %v382, %v383
    %v385 = vrcp.pop 128.0
    %v386 = vmul.f32 %v384, %v385
    %v387 = vsub.f32 %v267, %v386
    %v388 = vsub.f32 %v272, %v386
    %v389 = vsub.f32 %v277, %v386
    %v390 = vsub.f32 %v282, %v386
    %v391 = vsub.f32 %v287, %v386
    %v392 = vsub.f32 %v292, %v386
    %v393 = vsub.f32 %v297, %v386
    %v394 = vsub.f32 %v302, %v386
    %v395 = vsub.f32 %v307, %v386
    %v396 = vsub.f32 %v312, %v386
    %v397 = vsub.f32 %v317, %v386
    %v398 = vsub.f32 %v322, %v386
    %v399 = vsub.f32 %v327, %v386
    %v400 = vsub.f32 %v332, %v386
    %v401 = vsub.f32 %v337, %v386
    %v402 = vsub.f32 %v342, %v386
    %v403 = vmul.f32 %v387, %v387
    %v404 = vmul.f32 %v388, %v388
    %v405 = vmul.f32 %v389, %v389
    %v406 = vmul.f32 %v390, %v390
    %v407 = vmul.f32 %v391, %v391
    %v408 = vmul.f32 %v392, %v392
    %v409 = vmul.f32 %v393, %v393
    %v410 = vmul.f32 %v394, %v394
    %v411 = vmul.f32 %v395, %v395
    %v412 = vmul.f32 %v396, %v396
    %v413 = vmul.f32 %v397, %v397
    %v414 = vmul.f32 %v398, %v398
    %v415 = vmul.f32 %v399, %v399
    %v416 = vmul.f32 %v400, %v400
    %v417 = vmul.f32 %v401, %v401
    %v418 = vmul.f32 %v402, %v402
    %v419 = vsel %vm347, %v403, 0.0
    %v420 = vsel %vm347, %v404, 0.0
    %v421 = vadd.f32 %v419, %v420
    %v422 = vsel %vm347, %v405, 0.0
    %v423 = vadd.f32 %v421, %v422
    %v424 = vsel %vm347, %v406, 0.0
    %v425 = vadd.f32 %v423, %v424
    %v426 = vsel %vm347, %v407, 0.0
    %v427 = vadd.f32 %v425, %v426
    %v428 = vsel %vm347, %v408, 0.0
    %v429 = vadd.f32 %v427, %v428
    %v430 = vsel %vm347, %v409, 0.0
    %v431 = vadd.f32 %v429, %v430
    %v432 = vsel %vm347, %v410, 0.0
    %v433 = vadd.f32 %v431, %v432
    %v434 = vsel %vm347, %v411, 0.0
    %v435 = vadd.f32 %v433, %v434
    %v436 = vsel %vm347, %v412, 0.0
    %v437 = vadd.f32 %v435, %v436
    %v438 = vsel %vm347, %v413, 0.0
    %v439 = vadd.f32 %v437, %v438
    %v440 = vsel %vm347, %v414, 0.0
    %v441 = vadd.f32 %v439, %v440
    %v442 = vsel %vm347, %v415, 0.0
    %v443 = vadd.f32 %v441, %v442
    %v444 = vsel %vm347, %v416, 0.0
    %v445 = vadd.f32 %v443, %v444
    %v446 = vsel %vm347, %v417, 0.0
    %v447 = vadd.f32 %v445, %v446
    %v448 = vsel %vm347, %v418, 0.0
    %v449 = vadd.f32 %v447, %v448
    %v450 = vrot.slane %v449, 4
    %v451 = vadd.f32 %v449, %v450
    %v452 = vrot.slane %v451, 2
    %v453 = vadd.f32 %v451, %v452
    %v454 = vrot.slane %v453, 1
    %v455 = vadd.f32 %v453, %v454
    %v456 = vmul.f32 %v455, %v385
    %v457 = vadd.f32 %v456, 1e-05
    %v458 = vrsqrt.pop %v457
    %v459 = vmul.f32 %v457, %v458
    %vm460 = vcmp.eq.f32.partialorder %v457, inf
    %v461 = vsel %vm460, %v457, %v459
    %vm462 = vcmp.eq.f32.partialorder %v457, 0.0
    %v463 = vand.u32 %v457, 2147483648
    %v464 = vsel %vm462, %v463, %v461
    %v465 = vrcp.pop %v464
    %v466 = vmul.f32 %v345, %v465
    %v468 = vlaneseq
    %v469 = vshrl.u32 %v468, 7
    %v470 = vsub.s32 0, %v469
    %v471 = vrot.slane %v466, %v470
    %v473 = vmul.f32 %v387, %v471
    %v474 = vmul.f32 %v388, %v471
    %v475 = vmul.f32 %v389, %v471
    %v476 = vmul.f32 %v390, %v471
    %v477 = vmul.f32 %v391, %v471
    %v478 = vmul.f32 %v392, %v471
    %v479 = vmul.f32 %v393, %v471
    %v480 = vmul.f32 %v394, %v471
    %v481 = vmul.f32 %v395, %v471
    %v482 = vmul.f32 %v396, %v471
    %v483 = vmul.f32 %v397, %v471
    %v484 = vmul.f32 %v398, %v471
    %v485 = vmul.f32 %v399, %v471
    %v486 = vmul.f32 %v400, %v471
    %v487 = vmul.f32 %v401, %v471
    %v488 = vmul.f32 %v402, %v471
    %v490 = vlaneseq
    %v491 = vshrl.u32 %v490, 7
    %v492 = vsub.s32 0, %v491
    %v493 = vrot.slane %v346, %v492
    %v495 = vadd.f32 %v473, %v493
    %v496 = vadd.f32 %v474, %v493
    %v497 = vadd.f32 %v475, %v493
    %v498 = vadd.f32 %v476, %v493
    %v499 = vadd.f32 %v477, %v493
    %v500 = vadd.f32 %v478, %v493
    %v501 = vadd.f32 %v479, %v493
    %v502 = vadd.f32 %v480, %v493
    %v503 = vadd.f32 %v481, %v493
    %v504 = vadd.f32 %v482, %v493
    %v505 = vadd.f32 %v483, %v493
    %v506 = vadd.f32 %v484, %v493
    %v507 = vadd.f32 %v485, %v493
    %v508 = vadd.f32 %v486, %v493
    %v509 = vadd.f32 %v487, %v493
    %v510 = vadd.f32 %v488, %v493
    %v511 = vmax.f32 %v495, 0.0
    %v512 = vmax.f32 %v496, 0.0
    %v513 = vmax.f32 %v497, 0.0
    %v514 = vmax.f32 %v498, 0.0
    %v515 = vmax.f32 %v499, 0.0
    %v516 = vmax.f32 %v500, 0.0
    %v517 = vmax.f32 %v501, 0.0
    %v518 = vmax.f32 %v502, 0.0
    %v519 = vmax.f32 %v503, 0.0
    %v520 = vmax.f32 %v504, 0.0
    %v521 = vmax.f32 %v505, 0.0
    %v522 = vmax.f32 %v506, 0.0
    %v523 = vmax.f32 %v507, 0.0
    %v524 = vmax.f32 %v508, 0.0
    %v525 = vmax.f32 %v509, 0.0
    %v526 = vmax.f32 %v510, 0.0
    %v527 = vld [vmem:[%s11] sm:$0xff]
    %v528 = vld [vmem:[%s11 + $0x8] sm:$0xff]
    %v529 = vld [vmem:[%s11 + $0x10] sm:$0xff]
    %v530 = vld [vmem:[%s11 + $0x18] sm:$0xff]
    %v531 = vld [vmem:[%s11 + $0x20] sm:$0xff]
    %v532 = vld [vmem:[%s11 + $0x28] sm:$0xff]
    %v533 = vld [vmem:[%s11 + $0x30] sm:$0xff]
    %v534 = vld [vmem:[%s11 + $0x38] sm:$0xff]
    %v535 = vld [vmem:[%s13] sm:$0x1]
    %v537 = vlaneseq
    %v538 = vshrl.u32 %v537, 7
    %v539 = vsub.s32 0, %v538
    %v540 = vrot.slane %v535, %v539
    %v543 = vsel %vm347, %v511, 0
    %v546 = vsel %vm347, %v512, 0
    %v549 = vsel %vm347, %v513, 0
    %v552 = vsel %vm347, %v514, 0
    %v555 = vsel %vm347, %v515, 0
    %v558 = vsel %vm347, %v516, 0
    %v561 = vsel %vm347, %v517, 0
    %v564 = vsel %vm347, %v518, 0
    %v567 = vsel %vm347, %v519, 0
    %v570 = vsel %vm347, %v520, 0
    %v573 = vsel %vm347, %v521, 0
    %v576 = vsel %vm347, %v522, 0
    %v579 = vsel %vm347, %v523, 0
    %v582 = vsel %vm347, %v524, 0
    %v585 = vsel %vm347, %v525, 0
    %v588 = vsel %vm347, %v526, 0
    %590 = vmatprep.subr.mxu0 0.0
    %591 = vmatpush1.msra.mxu0 0.0
    %592 = vmatprep.subr.mxu0 0.0
    %593 = vmatpush1.msra.mxu0 0.0
    %594 = vmatprep.subr.mxu0 0.0
    %595 = vmatpush1.msra.mxu0 0.0
    %596 = vmatprep.subr.mxu0 0.0
    %597 = vmatpush1.msra.mxu0 0.0
    %598 = vmatprep.subr.mxu0 0.0
    %599 = vmatpush1.msra.mxu0 0.0
    %600 = vmatprep.subr.mxu0 0.0
    %601 = vmatpush1.msra.mxu0 0.0
    %602 = vmatprep.subr.mxu0 0.0
    %603 = vmatpush1.msra.mxu0 0.0
    %604 = vmatprep.subr.mxu0 0.0
    %605 = vmatpush1.msra.mxu0 0.0
    %606 = vmatprep.subr.mxu0 0.0
    %607 = vmatpush1.msra.mxu0 %v534
    %608 = vmatprep.subr.mxu0 0.0
    %609 = vmatpush1.msra.mxu0 %v533
    %610 = vmatprep.subr.mxu0 0.0
    %611 = vmatpush1.msra.mxu0 %v532
    %612 = vmatprep.subr.mxu0 0.0
    %613 = vmatpush1.msra.mxu0 %v531
    %614 = vmatprep.subr.mxu0 0.0
    %615 = vmatpush1.msra.mxu0 %v530
    %616 = vmatprep.subr.mxu0 0.0
    %617 = vmatpush1.msra.mxu0 %v529
    %618 = vmatprep.subr.mxu0 0.0
    %619 = vmatpush1.msra.mxu0 %v528
    %620 = vmatprep.subr.mxu0 0.0
    %621 = vmatpush1.msra.mxu0 %v527
    %622 = vmatprep.subr.mxu0 0.0
    %623 = vmatpush2.msra.mxu0 0.0
    %624 = vmatprep.subr.mxu0 0.0
    %625 = vmatpush2.msra.mxu0 0.0
    %626 = vmatprep.subr.mxu0 0.0
    %627 = vmatpush2.msra.mxu0 0.0
    %628 = vmatprep.subr.mxu0 0.0
    %629 = vmatpush2.msra.mxu0 0.0
    %630 = vmatprep.subr.mxu0 0.0
    %631 = vmatpush2.msra.mxu0 0.0
    %632 = vmatprep.subr.mxu0 0.0
    %633 = vmatpush2.msra.mxu0 0.0
    %634 = vmatprep.subr.mxu0 0.0
    %635 = vmatpush2.msra.mxu0 0.0
    %636 = vmatprep.subr.mxu0 0.0
    %637 = vmatpush2.msra.mxu0 0.0
    %638 = vmatprep.subr.mxu0 0.0
    %639 = vmatpush2.msra.mxu0 0.0
    %640 = vmatprep.subr.mxu0 0.0
    %641 = vmatpush2.msra.mxu0 0.0
    %642 = vmatprep.subr.mxu0 0.0
    %643 = vmatpush2.msra.mxu0 0.0
    %644 = vmatprep.subr.mxu0 0.0
    %645 = vmatpush2.msra.mxu0 0.0
    %646 = vmatprep.subr.mxu0 0.0
    %647 = vmatpush2.msra.mxu0 0.0
    %648 = vmatprep.subr.mxu0 0.0
    %649 = vmatpush2.msra.mxu0 0.0
    %650 = vmatprep.subr.mxu0 0.0
    %651 = vmatpush2.msra.mxu0 0.0
    %652 = vmatprep.subr.mxu0 0.0
    %653 = vmatpush2.msra.mxu0 0.0
    %654 = vmatprep.mubr.f32.mxu0 0.0
    %655 = vmatmul.mubr.f32.gmra.mxu0 %v543
    %v656 = vpop.f32.mrf.mxu0
    %v657 = vadd.f32 %v540, %v656
    %v658 = vpop.f32.mrf.mxu0
    %659 = vmatprep.mubr.f32.mxu0 0.0
    %660 = vmatmul.mubr.f32.gmra.mxu0 %v546
    %v661 = vpop.f32.mrf.mxu0
    %v662 = vadd.f32 %v540, %v661
    %v663 = vpop.f32.mrf.mxu0
    %664 = vmatprep.mubr.f32.mxu0 0.0
    %665 = vmatmul.mubr.f32.gmra.mxu0 %v549
    %v666 = vpop.f32.mrf.mxu0
    %v667 = vadd.f32 %v540, %v666
    %v668 = vpop.f32.mrf.mxu0
    %669 = vmatprep.mubr.f32.mxu0 0.0
    %670 = vmatmul.mubr.f32.gmra.mxu0 %v552
    %v671 = vpop.f32.mrf.mxu0
    %v672 = vadd.f32 %v540, %v671
    %v673 = vpop.f32.mrf.mxu0
    %674 = vmatprep.mubr.f32.mxu0 0.0
    %675 = vmatmul.mubr.f32.gmra.mxu0 %v555
    %v676 = vpop.f32.mrf.mxu0
    %v677 = vadd.f32 %v540, %v676
    %v678 = vpop.f32.mrf.mxu0
    %679 = vmatprep.mubr.f32.mxu0 0.0
    %680 = vmatmul.mubr.f32.gmra.mxu0 %v558
    %v681 = vpop.f32.mrf.mxu0
    %v682 = vadd.f32 %v540, %v681
    %v683 = vpop.f32.mrf.mxu0
    %684 = vmatprep.mubr.f32.mxu0 0.0
    %685 = vmatmul.mubr.f32.gmra.mxu0 %v561
    %v686 = vpop.f32.mrf.mxu0
    %v687 = vadd.f32 %v540, %v686
    %v688 = vpop.f32.mrf.mxu0
    %689 = vmatprep.mubr.f32.mxu0 0.0
    %690 = vmatmul.mubr.f32.gmra.mxu0 %v564
    %v691 = vpop.f32.mrf.mxu0
    %v692 = vadd.f32 %v540, %v691
    %v693 = vpop.f32.mrf.mxu0
    %694 = vmatprep.mubr.f32.mxu0 0.0
    %695 = vmatmul.mubr.f32.gmra.mxu0 %v567
    %v696 = vpop.f32.mrf.mxu0
    %v697 = vadd.f32 %v540, %v696
    %v698 = vpop.f32.mrf.mxu0
    %699 = vmatprep.mubr.f32.mxu0 0.0
    %700 = vmatmul.mubr.f32.gmra.mxu0 %v570
    %v701 = vpop.f32.mrf.mxu0
    %v702 = vadd.f32 %v540, %v701
    %v703 = vpop.f32.mrf.mxu0
    %704 = vmatprep.mubr.f32.mxu0 0.0
    %705 = vmatmul.mubr.f32.gmra.mxu0 %v573
    %v706 = vpop.f32.mrf.mxu0
    %v707 = vadd.f32 %v540, %v706
    %v708 = vpop.f32.mrf.mxu0
    %709 = vmatprep.mubr.f32.mxu0 0.0
    %710 = vmatmul.mubr.f32.gmra.mxu0 %v576
    %v711 = vpop.f32.mrf.mxu0
    %v712 = vadd.f32 %v540, %v711
    %v713 = vpop.f32.mrf.mxu0
    %714 = vmatprep.mubr.f32.mxu0 0.0
    %715 = vmatmul.mubr.f32.gmra.mxu0 %v579
    %v716 = vpop.f32.mrf.mxu0
    %v717 = vadd.f32 %v540, %v716
    %v718 = vpop.f32.mrf.mxu0
    %719 = vmatprep.mubr.f32.mxu0 0.0
    %720 = vmatmul.mubr.f32.gmra.mxu0 %v582
    %v721 = vpop.f32.mrf.mxu0
    %v722 = vadd.f32 %v540, %v721
    %v723 = vpop.f32.mrf.mxu0
    %724 = vmatprep.mubr.f32.mxu0 0.0
    %725 = vmatmul.mubr.f32.gmra.mxu0 %v585
    %v726 = vpop.f32.mrf.mxu0
    %v727 = vadd.f32 %v540, %v726
    %v728 = vpop.f32.mrf.mxu0
    %729 = vmatprep.mubr.f32.mxu0 0.0
    %730 = vmatmul.mubr.f32.gmra.mxu0 %v588
    %v731 = vpop.f32.mrf.mxu0
    %v732 = vadd.f32 %v540, %v731
    %v733 = vpop.f32.mrf.mxu0
    %734 = vdwg.mxu0
    %v735 = vld [vmem:[%s15] sm:$0x1]
    %v736 = vld [vmem:[%s17] sm:$0x1]
    %v737 = vsel %vm347, %v657, 0.0
    %v738 = vsel %vm347, %v662, 0.0
    %v739 = vadd.f32 %v737, %v738
    %v740 = vsel %vm347, %v667, 0.0
    %v741 = vadd.f32 %v739, %v740
    %v742 = vsel %vm347, %v672, 0.0
    %v743 = vadd.f32 %v741, %v742
    %v744 = vsel %vm347, %v677, 0.0
    %v745 = vadd.f32 %v743, %v744
    %v746 = vsel %vm347, %v682, 0.0
    %v747 = vadd.f32 %v745, %v746
    %v748 = vsel %vm347, %v687, 0.0
    %v749 = vadd.f32 %v747, %v748
    %v750 = vsel %vm347, %v692, 0.0
    %v751 = vadd.f32 %v749, %v750
    %v752 = vsel %vm347, %v697, 0.0
    %v753 = vadd.f32 %v751, %v752
    %v754 = vsel %vm347, %v702, 0.0
    %v755 = vadd.f32 %v753, %v754
    %v756 = vsel %vm347, %v707, 0.0
    %v757 = vadd.f32 %v755, %v756
    %v758 = vsel %vm347, %v712, 0.0
    %v759 = vadd.f32 %v757, %v758
    %v760 = vsel %vm347, %v717, 0.0
    %v761 = vadd.f32 %v759, %v760
    %v762 = vsel %vm347, %v722, 0.0
    %v763 = vadd.f32 %v761, %v762
    %v764 = vsel %vm347, %v727, 0.0
    %v765 = vadd.f32 %v763, %v764
    %v766 = vsel %vm347, %v732, 0.0
    %v767 = vadd.f32 %v765, %v766
    %v768 = vrot.slane %v767, 4
    %v769 = vadd.f32 %v767, %v768
    %v770 = vrot.slane %v769, 2
    %v771 = vadd.f32 %v769, %v770
    %v772 = vrot.slane %v771, 1
    %v773 = vadd.f32 %v771, %v772
    %v774 = vmul.f32 %v773, %v385
    %v775 = vsub.f32 %v657, %v774
    %v776 = vsub.f32 %v662, %v774
    %v777 = vsub.f32 %v667, %v774
    %v778 = vsub.f32 %v672, %v774
    %v779 = vsub.f32 %v677, %v774
    %v780 = vsub.f32 %v682, %v774
    %v781 = vsub.f32 %v687, %v774
    %v782 = vsub.f32 %v692, %v774
    %v783 = vsub.f32 %v697, %v774
    %v784 = vsub.f32 %v702, %v774
    %v785 = vsub.f32 %v707, %v774
    %v786 = vsub.f32 %v712, %v774
    %v787 = vsub.f32 %v717, %v774
    %v788 = vsub.f32 %v722, %v774
    %v789 = vsub.f32 %v727, %v774
    %v790 = vsub.f32 %v732, %v774
    %v791 = vmul.f32 %v775, %v775
    %v792 = vmul.f32 %v776, %v776
    %v793 = vmul.f32 %v777, %v777
    %v794 = vmul.f32 %v778, %v778
    %v795 = vmul.f32 %v779, %v779
    %v796 = vmul.f32 %v780, %v780
    %v797 = vmul.f32 %v781, %v781
    %v798 = vmul.f32 %v782, %v782
    %v799 = vmul.f32 %v783, %v783
    %v800 = vmul.f32 %v784, %v784
    %v801 = vmul.f32 %v785, %v785
    %v802 = vmul.f32 %v786, %v786
    %v803 = vmul.f32 %v787, %v787
    %v804 = vmul.f32 %v788, %v788
    %v805 = vmul.f32 %v789, %v789
    %v806 = vmul.f32 %v790, %v790
    %v807 = vsel %vm347, %v791, 0.0
    %v808 = vsel %vm347, %v792, 0.0
    %v809 = vadd.f32 %v807, %v808
    %v810 = vsel %vm347, %v793, 0.0
    %v811 = vadd.f32 %v809, %v810
    %v812 = vsel %vm347, %v794, 0.0
    %v813 = vadd.f32 %v811, %v812
    %v814 = vsel %vm347, %v795, 0.0
    %v815 = vadd.f32 %v813, %v814
    %v816 = vsel %vm347, %v796, 0.0
    %v817 = vadd.f32 %v815, %v816
    %v818 = vsel %vm347, %v797, 0.0
    %v819 = vadd.f32 %v817, %v818
    %v820 = vsel %vm347, %v798, 0.0
    %v821 = vadd.f32 %v819, %v820
    %v822 = vsel %vm347, %v799, 0.0
    %v823 = vadd.f32 %v821, %v822
    %v824 = vsel %vm347, %v800, 0.0
    %v825 = vadd.f32 %v823, %v824
    %v826 = vsel %vm347, %v801, 0.0
    %v827 = vadd.f32 %v825, %v826
    %v828 = vsel %vm347, %v802, 0.0
    %v829 = vadd.f32 %v827, %v828
    %v830 = vsel %vm347, %v803, 0.0
    %v831 = vadd.f32 %v829, %v830
    %v832 = vsel %vm347, %v804, 0.0
    %v833 = vadd.f32 %v831, %v832
    %v834 = vsel %vm347, %v805, 0.0
    %v835 = vadd.f32 %v833, %v834
    %v836 = vsel %vm347, %v806, 0.0
    %v837 = vadd.f32 %v835, %v836
    %v838 = vrot.slane %v837, 4
    %v839 = vadd.f32 %v837, %v838
    %v840 = vrot.slane %v839, 2
    %v841 = vadd.f32 %v839, %v840
    %v842 = vrot.slane %v841, 1
    %v843 = vadd.f32 %v841, %v842
    %v844 = vmul.f32 %v843, %v385
    %v845 = vadd.f32 %v844, 1e-05
    %v846 = vrsqrt.pop %v845
    %v847 = vmul.f32 %v845, %v846
    %vm848 = vcmp.eq.f32.partialorder %v845, inf
    %v849 = vsel %vm848, %v845, %v847
    %vm850 = vcmp.eq.f32.partialorder %v845, 0.0
    %v851 = vand.u32 %v845, 2147483648
    %v852 = vsel %vm850, %v851, %v849
    %v853 = vrcp.pop %v852
    %v854 = vmul.f32 %v735, %v853
    %v856 = vlaneseq
    %v857 = vshrl.u32 %v856, 7
    %v858 = vsub.s32 0, %v857
    %v859 = vrot.slane %v854, %v858
    %v861 = vmul.f32 %v775, %v859
    %v862 = vmul.f32 %v776, %v859
    %v863 = vmul.f32 %v777, %v859
    %v864 = vmul.f32 %v778, %v859
    %v865 = vmul.f32 %v779, %v859
    %v866 = vmul.f32 %v780, %v859
    %v867 = vmul.f32 %v781, %v859
    %v868 = vmul.f32 %v782, %v859
    %v869 = vmul.f32 %v783, %v859
    %v870 = vmul.f32 %v784, %v859
    %v871 = vmul.f32 %v785, %v859
    %v872 = vmul.f32 %v786, %v859
    %v873 = vmul.f32 %v787, %v859
    %v874 = vmul.f32 %v788, %v859
    %v875 = vmul.f32 %v789, %v859
    %v876 = vmul.f32 %v790, %v859
    %v878 = vlaneseq
    %v879 = vshrl.u32 %v878, 7
    %v880 = vsub.s32 0, %v879
    %v881 = vrot.slane %v736, %v880
    %v883 = vadd.f32 %v861, %v881
    %v884 = vadd.f32 %v862, %v881
    %v885 = vadd.f32 %v863, %v881
    %v886 = vadd.f32 %v864, %v881
    %v887 = vadd.f32 %v865, %v881
    %v888 = vadd.f32 %v866, %v881
    %v889 = vadd.f32 %v867, %v881
    %v890 = vadd.f32 %v868, %v881
    %v891 = vadd.f32 %v869, %v881
    %v892 = vadd.f32 %v870, %v881
    %v893 = vadd.f32 %v871, %v881
    %v894 = vadd.f32 %v872, %v881
    %v895 = vadd.f32 %v873, %v881
    %v896 = vadd.f32 %v874, %v881
    %v897 = vadd.f32 %v875, %v881
    %v898 = vadd.f32 %v876, %v881
    %v899 = vmax.f32 %v883, 0.0
    %v900 = vmax.f32 %v884, 0.0
    %v901 = vmax.f32 %v885, 0.0
    %v902 = vmax.f32 %v886, 0.0
    %v903 = vmax.f32 %v887, 0.0
    %v904 = vmax.f32 %v888, 0.0
    %v905 = vmax.f32 %v889, 0.0
    %v906 = vmax.f32 %v890, 0.0
    %v907 = vmax.f32 %v891, 0.0
    %v908 = vmax.f32 %v892, 0.0
    %v909 = vmax.f32 %v893, 0.0
    %v910 = vmax.f32 %v894, 0.0
    %v911 = vmax.f32 %v895, 0.0
    %v912 = vmax.f32 %v896, 0.0
    %v913 = vmax.f32 %v897, 0.0
    %v914 = vmax.f32 %v898, 0.0
    %v915 = vld [vmem:[%s19] sm:$0xff]
    %v916 = vld [vmem:[%s19 + $0x8] sm:$0xff]
    %v917 = vld [vmem:[%s19 + $0x10] sm:$0xff]
    %v918 = vld [vmem:[%s19 + $0x18] sm:$0xff]
    %v919 = vld [vmem:[%s19 + $0x20] sm:$0xff]
    %v920 = vld [vmem:[%s19 + $0x28] sm:$0xff]
    %v921 = vld [vmem:[%s19 + $0x30] sm:$0xff]
    %v922 = vld [vmem:[%s19 + $0x38] sm:$0xff]
    %v923 = vld [vmem:[%s21] sm:$0x1]
    %v925 = vlaneseq
    %v926 = vshrl.u32 %v925, 7
    %v927 = vsub.s32 0, %v926
    %v928 = vrot.slane %v923, %v927
    %v931 = vsel %vm347, %v899, 0
    %v934 = vsel %vm347, %v900, 0
    %v937 = vsel %vm347, %v901, 0
    %v940 = vsel %vm347, %v902, 0
    %v943 = vsel %vm347, %v903, 0
    %v946 = vsel %vm347, %v904, 0
    %v949 = vsel %vm347, %v905, 0
    %v952 = vsel %vm347, %v906, 0
    %v955 = vsel %vm347, %v907, 0
    %v958 = vsel %vm347, %v908, 0
    %v961 = vsel %vm347, %v909, 0
    %v964 = vsel %vm347, %v910, 0
    %v967 = vsel %vm347, %v911, 0
    %v970 = vsel %vm347, %v912, 0
    %v973 = vsel %vm347, %v913, 0
    %v976 = vsel %vm347, %v914, 0
    %978 = vmatprep.subr.mxu0 0.0
    %979 = vmatpush1.msra.mxu0 0.0
    %980 = vmatprep.subr.mxu0 0.0
    %981 = vmatpush1.msra.mxu0 0.0
    %982 = vmatprep.subr.mxu0 0.0
    %983 = vmatpush1.msra.mxu0 0.0
    %984 = vmatprep.subr.mxu0 0.0
    %985 = vmatpush1.msra.mxu0 0.0
    %986 = vmatprep.subr.mxu0 0.0
    %987 = vmatpush1.msra.mxu0 0.0
    %988 = vmatprep.subr.mxu0 0.0
    %989 = vmatpush1.msra.mxu0 0.0
    %990 = vmatprep.subr.mxu0 0.0
    %991 = vmatpush1.msra.mxu0 0.0
    %992 = vmatprep.subr.mxu0 0.0
    %993 = vmatpush1.msra.mxu0 0.0
    %994 = vmatprep.subr.mxu0 0.0
    %995 = vmatpush1.msra.mxu0 %v922
    %996 = vmatprep.subr.mxu0 0.0
    %997 = vmatpush1.msra.mxu0 %v921
    %998 = vmatprep.subr.mxu0 0.0
    %999 = vmatpush1.msra.mxu0 %v920
    %1000 = vmatprep.subr.mxu0 0.0
    %1001 = vmatpush1.msra.mxu0 %v919
    %1002 = vmatprep.subr.mxu0 0.0
    %1003 = vmatpush1.msra.mxu0 %v918
    %1004 = vmatprep.subr.mxu0 0.0
    %1005 = vmatpush1.msra.mxu0 %v917
    %1006 = vmatprep.subr.mxu0 0.0
    %1007 = vmatpush1.msra.mxu0 %v916
    %1008 = vmatprep.subr.mxu0 0.0
    %1009 = vmatpush1.msra.mxu0 %v915
    %1010 = vmatprep.subr.mxu0 0.0
    %1011 = vmatpush2.msra.mxu0 0.0
    %1012 = vmatprep.subr.mxu0 0.0
    %1013 = vmatpush2.msra.mxu0 0.0
    %1014 = vmatprep.subr.mxu0 0.0
    %1015 = vmatpush2.msra.mxu0 0.0
    %1016 = vmatprep.subr.mxu0 0.0
    %1017 = vmatpush2.msra.mxu0 0.0
    %1018 = vmatprep.subr.mxu0 0.0
    %1019 = vmatpush2.msra.mxu0 0.0
    %1020 = vmatprep.subr.mxu0 0.0
    %1021 = vmatpush2.msra.mxu0 0.0
    %1022 = vmatprep.subr.mxu0 0.0
    %1023 = vmatpush2.msra.mxu0 0.0
    %1024 = vmatprep.subr.mxu0 0.0
    %1025 = vmatpush2.msra.mxu0 0.0
    %1026 = vmatprep.subr.mxu0 0.0
    %1027 = vmatpush2.msra.mxu0 0.0
    %1028 = vmatprep.subr.mxu0 0.0
    %1029 = vmatpush2.msra.mxu0 0.0
    %1030 = vmatprep.subr.mxu0 0.0
    %1031 = vmatpush2.msra.mxu0 0.0
    %1032 = vmatprep.subr.mxu0 0.0
    %1033 = vmatpush2.msra.mxu0 0.0
    %1034 = vmatprep.subr.mxu0 0.0
    %1035 = vmatpush2.msra.mxu0 0.0
    %1036 = vmatprep.subr.mxu0 0.0
    %1037 = vmatpush2.msra.mxu0 0.0
    %1038 = vmatprep.subr.mxu0 0.0
    %1039 = vmatpush2.msra.mxu0 0.0
    %1040 = vmatprep.subr.mxu0 0.0
    %1041 = vmatpush2.msra.mxu0 0.0
    %1042 = vmatprep.mubr.f32.mxu0 0.0
    %1043 = vmatmul.mubr.f32.gmra.mxu0 %v931
    %v1044 = vpop.f32.mrf.mxu0
    %v1045 = vadd.f32 %v928, %v1044
    %v1046 = vpop.f32.mrf.mxu0
    %1047 = vmatprep.mubr.f32.mxu0 0.0
    %1048 = vmatmul.mubr.f32.gmra.mxu0 %v934
    %v1049 = vpop.f32.mrf.mxu0
    %v1050 = vadd.f32 %v928, %v1049
    %v1051 = vpop.f32.mrf.mxu0
    %1052 = vmatprep.mubr.f32.mxu0 0.0
    %1053 = vmatmul.mubr.f32.gmra.mxu0 %v937
    %v1054 = vpop.f32.mrf.mxu0
    %v1055 = vadd.f32 %v928, %v1054
    %v1056 = vpop.f32.mrf.mxu0
    %1057 = vmatprep.mubr.f32.mxu0 0.0
    %1058 = vmatmul.mubr.f32.gmra.mxu0 %v940
    %v1059 = vpop.f32.mrf.mxu0
    %v1060 = vadd.f32 %v928, %v1059
    %v1061 = vpop.f32.mrf.mxu0
    %1062 = vmatprep.mubr.f32.mxu0 0.0
    %1063 = vmatmul.mubr.f32.gmra.mxu0 %v943
    %v1064 = vpop.f32.mrf.mxu0
    %v1065 = vadd.f32 %v928, %v1064
    %v1066 = vpop.f32.mrf.mxu0
    %1067 = vmatprep.mubr.f32.mxu0 0.0
    %1068 = vmatmul.mubr.f32.gmra.mxu0 %v946
    %v1069 = vpop.f32.mrf.mxu0
    %v1070 = vadd.f32 %v928, %v1069
    %v1071 = vpop.f32.mrf.mxu0
    %1072 = vmatprep.mubr.f32.mxu0 0.0
    %1073 = vmatmul.mubr.f32.gmra.mxu0 %v949
    %v1074 = vpop.f32.mrf.mxu0
    %v1075 = vadd.f32 %v928, %v1074
    %v1076 = vpop.f32.mrf.mxu0
    %1077 = vmatprep.mubr.f32.mxu0 0.0
    %1078 = vmatmul.mubr.f32.gmra.mxu0 %v952
    %v1079 = vpop.f32.mrf.mxu0
    %v1080 = vadd.f32 %v928, %v1079
    %v1081 = vpop.f32.mrf.mxu0
    %1082 = vmatprep.mubr.f32.mxu0 0.0
    %1083 = vmatmul.mubr.f32.gmra.mxu0 %v955
    %v1084 = vpop.f32.mrf.mxu0
    %v1085 = vadd.f32 %v928, %v1084
    %v1086 = vpop.f32.mrf.mxu0
    %1087 = vmatprep.mubr.f32.mxu0 0.0
    %1088 = vmatmul.mubr.f32.gmra.mxu0 %v958
    %v1089 = vpop.f32.mrf.mxu0
    %v1090 = vadd.f32 %v928, %v1089
    %v1091 = vpop.f32.mrf.mxu0
    %1092 = vmatprep.mubr.f32.mxu0 0.0
    %1093 = vmatmul.mubr.f32.gmra.mxu0 %v961
    %v1094 = vpop.f32.mrf.mxu0
    %v1095 = vadd.f32 %v928, %v1094
    %v1096 = vpop.f32.mrf.mxu0
    %1097 = vmatprep.mubr.f32.mxu0 0.0
    %1098 = vmatmul.mubr.f32.gmra.mxu0 %v964
    %v1099 = vpop.f32.mrf.mxu0
    %v1100 = vadd.f32 %v928, %v1099
    %v1101 = vpop.f32.mrf.mxu0
    %1102 = vmatprep.mubr.f32.mxu0 0.0
    %1103 = vmatmul.mubr.f32.gmra.mxu0 %v967
    %v1104 = vpop.f32.mrf.mxu0
    %v1105 = vadd.f32 %v928, %v1104
    %v1106 = vpop.f32.mrf.mxu0
    %1107 = vmatprep.mubr.f32.mxu0 0.0
    %1108 = vmatmul.mubr.f32.gmra.mxu0 %v970
    %v1109 = vpop.f32.mrf.mxu0
    %v1110 = vadd.f32 %v928, %v1109
    %v1111 = vpop.f32.mrf.mxu0
    %1112 = vmatprep.mubr.f32.mxu0 0.0
    %1113 = vmatmul.mubr.f32.gmra.mxu0 %v973
    %v1114 = vpop.f32.mrf.mxu0
    %v1115 = vadd.f32 %v928, %v1114
    %v1116 = vpop.f32.mrf.mxu0
    %1117 = vmatprep.mubr.f32.mxu0 0.0
    %1118 = vmatmul.mubr.f32.gmra.mxu0 %v976
    %v1119 = vpop.f32.mrf.mxu0
    %v1120 = vadd.f32 %v928, %v1119
    %v1121 = vpop.f32.mrf.mxu0
    %1122 = vdwg.mxu0
    %v1123 = vld [vmem:[%s23] sm:$0x1]
    %v1124 = vld [vmem:[%s25] sm:$0x1]
    %v1125 = vadd.f32 %v1045, %v1050
    %v1126 = vadd.f32 %v1125, %v1055
    %v1127 = vadd.f32 %v1126, %v1060
    %v1128 = vadd.f32 %v1127, %v1065
    %v1129 = vadd.f32 %v1128, %v1070
    %v1130 = vadd.f32 %v1129, %v1075
    %v1131 = vadd.f32 %v1130, %v1080
    %v1132 = vadd.f32 %v1131, %v1085
    %v1133 = vadd.f32 %v1132, %v1090
    %v1134 = vadd.f32 %v1133, %v1095
    %v1135 = vadd.f32 %v1134, %v1100
    %v1136 = vadd.f32 %v1135, %v1105
    %v1137 = vadd.f32 %v1136, %v1110
    %v1138 = vadd.f32 %v1137, %v1115
    %v1139 = vadd.f32 %v1138, %v1120
    %v1140 = vrot.slane %v1139, 4
    %v1141 = vadd.f32 %v1139, %v1140
    %v1142 = vrot.slane %v1141, 2
    %v1143 = vadd.f32 %v1141, %v1142
    %v1144 = vrot.slane %v1143, 1
    %v1145 = vadd.f32 %v1143, %v1144
    %v1146 = vmul.f32 %v1145, %v385
    %v1147 = vsub.f32 %v1045, %v1146
    %v1148 = vsub.f32 %v1050, %v1146
    %v1149 = vsub.f32 %v1055, %v1146
    %v1150 = vsub.f32 %v1060, %v1146
    %v1151 = vsub.f32 %v1065, %v1146
    %v1152 = vsub.f32 %v1070, %v1146
    %v1153 = vsub.f32 %v1075, %v1146
    %v1154 = vsub.f32 %v1080, %v1146
    %v1155 = vsub.f32 %v1085, %v1146
    %v1156 = vsub.f32 %v1090, %v1146
    %v1157 = vsub.f32 %v1095, %v1146
    %v1158 = vsub.f32 %v1100, %v1146
    %v1159 = vsub.f32 %v1105, %v1146
    %v1160 = vsub.f32 %v1110, %v1146
    %v1161 = vsub.f32 %v1115, %v1146
    %v1162 = vsub.f32 %v1120, %v1146
    %v1163 = vmul.f32 %v1147, %v1147
    %v1164 = vmul.f32 %v1148, %v1148
    %v1165 = vmul.f32 %v1149, %v1149
    %v1166 = vmul.f32 %v1150, %v1150
    %v1167 = vmul.f32 %v1151, %v1151
    %v1168 = vmul.f32 %v1152, %v1152
    %v1169 = vmul.f32 %v1153, %v1153
    %v1170 = vmul.f32 %v1154, %v1154
    %v1171 = vmul.f32 %v1155, %v1155
    %v1172 = vmul.f32 %v1156, %v1156
    %v1173 = vmul.f32 %v1157, %v1157
    %v1174 = vmul.f32 %v1158, %v1158
    %v1175 = vmul.f32 %v1159, %v1159
    %v1176 = vmul.f32 %v1160, %v1160
    %v1177 = vmul.f32 %v1161, %v1161
    %v1178 = vmul.f32 %v1162, %v1162
    %v1179 = vadd.f32 %v1163, %v1164
    %v1180 = vadd.f32 %v1179, %v1165
    %v1181 = vadd.f32 %v1180, %v1166
    %v1182 = vadd.f32 %v1181, %v1167
    %v1183 = vadd.f32 %v1182, %v1168
    %v1184 = vadd.f32 %v1183, %v1169
    %v1185 = vadd.f32 %v1184, %v1170
    %v1186 = vadd.f32 %v1185, %v1171
    %v1187 = vadd.f32 %v1186, %v1172
    %v1188 = vadd.f32 %v1187, %v1173
    %v1189 = vadd.f32 %v1188, %v1174
    %v1190 = vadd.f32 %v1189, %v1175
    %v1191 = vadd.f32 %v1190, %v1176
    %v1192 = vadd.f32 %v1191, %v1177
    %v1193 = vadd.f32 %v1192, %v1178
    %v1194 = vrot.slane %v1193, 4
    %v1195 = vadd.f32 %v1193, %v1194
    %v1196 = vrot.slane %v1195, 2
    %v1197 = vadd.f32 %v1195, %v1196
    %v1198 = vrot.slane %v1197, 1
    %v1199 = vadd.f32 %v1197, %v1198
    %v1200 = vmul.f32 %v1199, %v385
    %v1201 = vadd.f32 %v1200, 1e-05
    %v1202 = vrsqrt.pop %v1201
    %v1203 = vmul.f32 %v1201, %v1202
    %vm1204 = vcmp.eq.f32.partialorder %v1201, inf
    %v1205 = vsel %vm1204, %v1201, %v1203
    %vm1206 = vcmp.eq.f32.partialorder %v1201, 0.0
    %v1207 = vand.u32 %v1201, 2147483648
    %v1208 = vsel %vm1206, %v1207, %v1205
    %v1209 = vrcp.pop %v1208
    %v1210 = vmul.f32 %v1123, %v1209
    %v1212 = vlaneseq
    %v1213 = vshrl.u32 %v1212, 7
    %v1214 = vsub.s32 0, %v1213
    %v1215 = vrot.slane %v1210, %v1214
    %v1217 = vmul.f32 %v1147, %v1215
    %v1218 = vmul.f32 %v1148, %v1215
    %v1219 = vmul.f32 %v1149, %v1215
    %v1220 = vmul.f32 %v1150, %v1215
    %v1221 = vmul.f32 %v1151, %v1215
    %v1222 = vmul.f32 %v1152, %v1215
    %v1223 = vmul.f32 %v1153, %v1215
    %v1224 = vmul.f32 %v1154, %v1215
    %v1225 = vmul.f32 %v1155, %v1215
    %v1226 = vmul.f32 %v1156, %v1215
    %v1227 = vmul.f32 %v1157, %v1215
    %v1228 = vmul.f32 %v1158, %v1215
    %v1229 = vmul.f32 %v1159, %v1215
    %v1230 = vmul.f32 %v1160, %v1215
    %v1231 = vmul.f32 %v1161, %v1215
    %v1232 = vmul.f32 %v1162, %v1215
    %v1234 = vlaneseq
    %v1235 = vshrl.u32 %v1234, 7
    %v1236 = vsub.s32 0, %v1235
    %v1237 = vrot.slane %v1124, %v1236
    %v1239 = vadd.f32 %v1217, %v1237
    %v1240 = vadd.f32 %v1218, %v1237
    %v1241 = vadd.f32 %v1219, %v1237
    %v1242 = vadd.f32 %v1220, %v1237
    %v1243 = vadd.f32 %v1221, %v1237
    %v1244 = vadd.f32 %v1222, %v1237
    %v1245 = vadd.f32 %v1223, %v1237
    %v1246 = vadd.f32 %v1224, %v1237
    %v1247 = vadd.f32 %v1225, %v1237
    %v1248 = vadd.f32 %v1226, %v1237
    %v1249 = vadd.f32 %v1227, %v1237
    %v1250 = vadd.f32 %v1228, %v1237
    %v1251 = vadd.f32 %v1229, %v1237
    %v1252 = vadd.f32 %v1230, %v1237
    %v1253 = vadd.f32 %v1231, %v1237
    %v1254 = vadd.f32 %v1232, %v1237
    %v1255 = vmax.f32 %v1239, 0.0
    %v1256 = vmax.f32 %v1240, 0.0
    %v1257 = vmax.f32 %v1241, 0.0
    %v1258 = vmax.f32 %v1242, 0.0
    %v1259 = vmax.f32 %v1243, 0.0
    %v1260 = vmax.f32 %v1244, 0.0
    %v1261 = vmax.f32 %v1245, 0.0
    %v1262 = vmax.f32 %v1246, 0.0
    %v1263 = vmax.f32 %v1247, 0.0
    %v1264 = vmax.f32 %v1248, 0.0
    %v1265 = vmax.f32 %v1249, 0.0
    %v1266 = vmax.f32 %v1250, 0.0
    %v1267 = vmax.f32 %v1251, 0.0
    %v1268 = vmax.f32 %v1252, 0.0
    %v1269 = vmax.f32 %v1253, 0.0
    %v1270 = vmax.f32 %v1254, 0.0
    %v1271 = vld [vmem:[%s27] sm:$0xff]
    %v1272 = vld [vmem:[%s27 + $0x8] sm:$0xff]
    %v1273 = vld [vmem:[%s27 + $0x10] sm:$0xff]
    %v1274 = vld [vmem:[%s27 + $0x18] sm:$0xff]
    %v1275 = vld [vmem:[%s27 + $0x20] sm:$0xff]
    %v1276 = vld [vmem:[%s27 + $0x28] sm:$0xff]
    %v1277 = vld [vmem:[%s27 + $0x30] sm:$0xff]
    %v1278 = vld [vmem:[%s27 + $0x38] sm:$0xff]
    %v1279 = vld [vmem:[%s27 + $0x40] sm:$0xff]
    %v1280 = vld [vmem:[%s27 + $0x48] sm:$0xff]
    %v1281 = vld [vmem:[%s27 + $0x50] sm:$0xff]
    %v1282 = vld [vmem:[%s27 + $0x58] sm:$0xff]
    %v1283 = vld [vmem:[%s27 + $0x60] sm:$0xff]
    %v1284 = vld [vmem:[%s27 + $0x68] sm:$0xff]
    %v1285 = vld [vmem:[%s27 + $0x70] sm:$0xff]
    %v1286 = vld [vmem:[%s27 + $0x78] sm:$0xff]
    %v1287 = vld [vmem:[%s27 + $0x80] sm:$0xff]
    %v1288 = vld [vmem:[%s27 + $0x88] sm:$0xff]
    %v1289 = vld [vmem:[%s27 + $0x90] sm:$0xff]
    %v1290 = vld [vmem:[%s27 + $0x98] sm:$0xff]
    %v1291 = vld [vmem:[%s27 + $0xa0] sm:$0xff]
    %v1292 = vld [vmem:[%s27 + $0xa8] sm:$0xff]
    %v1293 = vld [vmem:[%s27 + $0xb0] sm:$0xff]
    %v1294 = vld [vmem:[%s27 + $0xb8] sm:$0xff]
    %v1295 = vld [vmem:[%s27 + $0xc0] sm:$0xff]
    %v1296 = vld [vmem:[%s27 + $0xc8] sm:$0xff]
    %v1297 = vld [vmem:[%s27 + $0xd0] sm:$0xff]
    %v1298 = vld [vmem:[%s27 + $0xd8] sm:$0xff]
    %v1299 = vld [vmem:[%s27 + $0xe0] sm:$0xff]
    %v1300 = vld [vmem:[%s27 + $0xe8] sm:$0xff]
    %v1301 = vld [vmem:[%s27 + $0xf0] sm:$0xff]
    %v1302 = vld [vmem:[%s27 + $0xf8] sm:$0xff]
    %v1303 = vld [vmem:[%s27 + $0x100] sm:$0xff]
    %v1304 = vld [vmem:[%s27 + $0x108] sm:$0xff]
    %v1305 = vld [vmem:[%s27 + $0x110] sm:$0xff]
    %v1306 = vld [vmem:[%s27 + $0x118] sm:$0xff]
    %v1307 = vld [vmem:[%s27 + $0x120] sm:$0xff]
    %v1308 = vld [vmem:[%s27 + $0x128] sm:$0xff]
    %v1309 = vld [vmem:[%s27 + $0x130] sm:$0xff]
    %v1310 = vld [vmem:[%s27 + $0x138] sm:$0xff]
    %v1311 = vld [vmem:[%s27 + $0x140] sm:$0xff]
    %v1312 = vld [vmem:[%s27 + $0x148] sm:$0xff]
    %v1313 = vld [vmem:[%s27 + $0x150] sm:$0xff]
    %v1314 = vld [vmem:[%s27 + $0x158] sm:$0xff]
    %v1315 = vld [vmem:[%s27 + $0x160] sm:$0xff]
    %v1316 = vld [vmem:[%s27 + $0x168] sm:$0xff]
    %v1317 = vld [vmem:[%s27 + $0x170] sm:$0xff]
    %v1318 = vld [vmem:[%s27 + $0x178] sm:$0xff]
    %v1319 = vld [vmem:[%s27 + $0x180] sm:$0xff]
    %v1320 = vld [vmem:[%s27 + $0x188] sm:$0xff]
    %v1321 = vld [vmem:[%s27 + $0x190] sm:$0xff]
    %v1322 = vld [vmem:[%s27 + $0x198] sm:$0xff]
    %v1323 = vld [vmem:[%s27 + $0x1a0] sm:$0xff]
    %v1324 = vld [vmem:[%s27 + $0x1a8] sm:$0xff]
    %v1325 = vld [vmem:[%s27 + $0x1b0] sm:$0xff]
    %v1326 = vld [vmem:[%s27 + $0x1b8] sm:$0xff]
    %v1327 = vld [vmem:[%s27 + $0x1c0] sm:$0xff]
    %v1328 = vld [vmem:[%s27 + $0x1c8] sm:$0xff]
    %v1329 = vld [vmem:[%s27 + $0x1d0] sm:$0xff]
    %v1330 = vld [vmem:[%s27 + $0x1d8] sm:$0xff]
    %v1331 = vld [vmem:[%s27 + $0x1e0] sm:$0xff]
    %v1332 = vld [vmem:[%s27 + $0x1e8] sm:$0xff]
    %v1333 = vld [vmem:[%s27 + $0x1f0] sm:$0xff]
    %v1334 = vld [vmem:[%s27 + $0x1f8] sm:$0xff]
    %v1335 = vld [vmem:[%s27 + $0x200] sm:$0xff]
    %v1336 = vld [vmem:[%s27 + $0x208] sm:$0xff]
    %v1337 = vld [vmem:[%s27 + $0x210] sm:$0xff]
    %v1338 = vld [vmem:[%s27 + $0x218] sm:$0xff]
    %v1339 = vld [vmem:[%s27 + $0x220] sm:$0xff]
    %v1340 = vld [vmem:[%s27 + $0x228] sm:$0xff]
    %v1341 = vld [vmem:[%s27 + $0x230] sm:$0xff]
    %v1342 = vld [vmem:[%s27 + $0x238] sm:$0xff]
    %v1343 = vld [vmem:[%s27 + $0x240] sm:$0xff]
    %v1344 = vld [vmem:[%s27 + $0x248] sm:$0xff]
    %v1345 = vld [vmem:[%s27 + $0x250] sm:$0xff]
    %v1346 = vld [vmem:[%s27 + $0x258] sm:$0xff]
    %v1347 = vld [vmem:[%s27 + $0x260] sm:$0xff]
    %v1348 = vld [vmem:[%s27 + $0x268] sm:$0xff]
    %v1349 = vld [vmem:[%s27 + $0x270] sm:$0xff]
    %v1350 = vld [vmem:[%s27 + $0x278] sm:$0xff]
    %v1351 = vld [vmem:[%s27 + $0x280] sm:$0xff]
    %v1352 = vld [vmem:[%s27 + $0x288] sm:$0xff]
    %v1353 = vld [vmem:[%s27 + $0x290] sm:$0xff]
    %v1354 = vld [vmem:[%s27 + $0x298] sm:$0xff]
    %v1355 = vld [vmem:[%s27 + $0x2a0] sm:$0xff]
    %v1356 = vld [vmem:[%s27 + $0x2a8] sm:$0xff]
    %v1357 = vld [vmem:[%s27 + $0x2b0] sm:$0xff]
    %v1358 = vld [vmem:[%s27 + $0x2b8] sm:$0xff]
    %v1359 = vld [vmem:[%s27 + $0x2c0] sm:$0xff]
    %v1360 = vld [vmem:[%s27 + $0x2c8] sm:$0xff]
    %v1361 = vld [vmem:[%s27 + $0x2d0] sm:$0xff]
    %v1362 = vld [vmem:[%s27 + $0x2d8] sm:$0xff]
    %v1363 = vld [vmem:[%s27 + $0x2e0] sm:$0xff]
    %v1364 = vld [vmem:[%s27 + $0x2e8] sm:$0xff]
    %v1365 = vld [vmem:[%s27 + $0x2f0] sm:$0xff]
    %v1366 = vld [vmem:[%s27 + $0x2f8] sm:$0xff]
    %v1367 = vld [vmem:[%s27 + $0x300] sm:$0xff]
    %v1368 = vld [vmem:[%s27 + $0x308] sm:$0xff]
    %v1369 = vld [vmem:[%s27 + $0x310] sm:$0xff]
    %v1370 = vld [vmem:[%s27 + $0x318] sm:$0xff]
    %v1371 = vld [vmem:[%s27 + $0x320] sm:$0xff]
    %v1372 = vld [vmem:[%s27 + $0x328] sm:$0xff]
    %v1373 = vld [vmem:[%s27 + $0x330] sm:$0xff]
    %v1374 = vld [vmem:[%s27 + $0x338] sm:$0xff]
    %v1375 = vld [vmem:[%s27 + $0x340] sm:$0xff]
    %v1376 = vld [vmem:[%s27 + $0x348] sm:$0xff]
    %v1377 = vld [vmem:[%s27 + $0x350] sm:$0xff]
    %v1378 = vld [vmem:[%s27 + $0x358] sm:$0xff]
    %v1379 = vld [vmem:[%s27 + $0x360] sm:$0xff]
    %v1380 = vld [vmem:[%s27 + $0x368] sm:$0xff]
    %v1381 = vld [vmem:[%s27 + $0x370] sm:$0xff]
    %v1382 = vld [vmem:[%s27 + $0x378] sm:$0xff]
    %v1383 = vld [vmem:[%s27 + $0x380] sm:$0xff]
    %v1384 = vld [vmem:[%s27 + $0x388] sm:$0xff]
    %v1385 = vld [vmem:[%s27 + $0x390] sm:$0xff]
    %v1386 = vld [vmem:[%s27 + $0x398] sm:$0xff]
    %v1387 = vld [vmem:[%s27 + $0x3a0] sm:$0xff]
    %v1388 = vld [vmem:[%s27 + $0x3a8] sm:$0xff]
    %v1389 = vld [vmem:[%s27 + $0x3b0] sm:$0xff]
    %v1390 = vld [vmem:[%s27 + $0x3b8] sm:$0xff]
    %v1391 = vld [vmem:[%s27 + $0x3c0] sm:$0xff]
    %v1392 = vld [vmem:[%s27 + $0x3c8] sm:$0xff]
    %v1393 = vld [vmem:[%s27 + $0x3d0] sm:$0xff]
    %v1394 = vld [vmem:[%s27 + $0x3d8] sm:$0xff]
    %v1395 = vld [vmem:[%s27 + $0x3e0] sm:$0xff]
    %v1396 = vld [vmem:[%s27 + $0x3e8] sm:$0xff]
    %v1397 = vld [vmem:[%s27 + $0x3f0] sm:$0xff]
    %v1398 = vld [vmem:[%s27 + $0x3f8] sm:$0xff]
    %v1399 = vld [vmem:[%s29] sm:$0xff]
    %v1401 = vlaneseq
    %v1402 = vshrl.u32 %v1401, 7
    %v1403 = vsub.s32 0, %v1402
    %v1404 = vrot.slane %v1399, %v1403
    %v1405 = vlaneseq
    %v1406 = vshrl.u32 %v1405, 7
    %v1407 = vsub.s32 1, %v1406
    %v1408 = vrot.slane %v1399, %v1407
    %v1409 = vlaneseq
    %v1410 = vshrl.u32 %v1409, 7
    %v1411 = vsub.s32 2, %v1410
    %v1412 = vrot.slane %v1399, %v1411
    %v1413 = vlaneseq
    %v1414 = vshrl.u32 %v1413, 7
    %v1415 = vsub.s32 3, %v1414
    %v1416 = vrot.slane %v1399, %v1415
    %v1417 = vlaneseq
    %v1418 = vshrl.u32 %v1417, 7
    %v1419 = vsub.s32 4, %v1418
    %v1420 = vrot.slane %v1399, %v1419
    %v1421 = vlaneseq
    %v1422 = vshrl.u32 %v1421, 7
    %v1423 = vsub.s32 5, %v1422
    %v1424 = vrot.slane %v1399, %v1423
    %v1425 = vlaneseq
    %v1426 = vshrl.u32 %v1425, 7
    %v1427 = vsub.s32 6, %v1426
    %v1428 = vrot.slane %v1399, %v1427
    %v1429 = vlaneseq
    %v1430 = vshrl.u32 %v1429, 7
    %v1431 = vsub.s32 7, %v1430
    %v1432 = vrot.slane %v1399, %v1431
    %1441 = vmatprep.subr.mxu0 %v1392
    %1442 = vmatpush1.msra.mxu0 %v1391
    %1443 = vmatprep.subr.mxu0 %v1384
    %1444 = vmatpush1.msra.mxu0 %v1383
    %1445 = vmatprep.subr.mxu0 %v1376
    %1446 = vmatpush1.msra.mxu0 %v1375
    %1447 = vmatprep.subr.mxu0 %v1368
    %1448 = vmatpush1.msra.mxu0 %v1367
    %1449 = vmatprep.subr.mxu0 %v1360
    %1450 = vmatpush1.msra.mxu0 %v1359
    %1451 = vmatprep.subr.mxu0 %v1352
    %1452 = vmatpush1.msra.mxu0 %v1351
    %1453 = vmatprep.subr.mxu0 %v1344
    %1454 = vmatpush1.msra.mxu0 %v1343
    %1455 = vmatprep.subr.mxu0 %v1336
    %1456 = vmatpush1.msra.mxu0 %v1335
    %1457 = vmatprep.subr.mxu0 %v1328
    %1458 = vmatpush1.msra.mxu0 %v1327
    %1459 = vmatprep.subr.mxu0 %v1320
    %1460 = vmatpush1.msra.mxu0 %v1319
    %1461 = vmatprep.subr.mxu0 %v1312
    %1462 = vmatpush1.msra.mxu0 %v1311
    %1463 = vmatprep.subr.mxu0 %v1304
    %1464 = vmatpush1.msra.mxu0 %v1303
    %1465 = vmatprep.subr.mxu0 %v1296
    %1466 = vmatpush1.msra.mxu0 %v1295
    %1467 = vmatprep.subr.mxu0 %v1288
    %1468 = vmatpush1.msra.mxu0 %v1287
    %1469 = vmatprep.subr.mxu0 %v1280
    %1470 = vmatpush1.msra.mxu0 %v1279
    %1471 = vmatprep.subr.mxu0 %v1272
    %1472 = vmatpush1.msra.mxu0 %v1271
    %1473 = vmatprep.subr.mxu0 0.0
    %1474 = vmatpush2.msra.mxu0 0.0
    %1475 = vmatprep.subr.mxu0 0.0
    %1476 = vmatpush2.msra.mxu0 0.0
    %1477 = vmatprep.subr.mxu0 0.0
    %1478 = vmatpush2.msra.mxu0 0.0
    %1479 = vmatprep.subr.mxu0 0.0
    %1480 = vmatpush2.msra.mxu0 0.0
    %1481 = vmatprep.subr.mxu0 0.0
    %1482 = vmatpush2.msra.mxu0 0.0
    %1483 = vmatprep.subr.mxu0 0.0
    %1484 = vmatpush2.msra.mxu0 0.0
    %1485 = vmatprep.subr.mxu0 0.0
    %1486 = vmatpush2.msra.mxu0 0.0
    %1487 = vmatprep.subr.mxu0 0.0
    %1488 = vmatpush2.msra.mxu0 0.0
    %1489 = vmatprep.subr.mxu0 0.0
    %1490 = vmatpush2.msra.mxu0 0.0
    %1491 = vmatprep.subr.mxu0 0.0
    %1492 = vmatpush2.msra.mxu0 0.0
    %1493 = vmatprep.subr.mxu0 0.0
    %1494 = vmatpush2.msra.mxu0 0.0
    %1495 = vmatprep.subr.mxu0 0.0
    %1496 = vmatpush2.msra.mxu0 0.0
    %1497 = vmatprep.subr.mxu0 0.0
    %1498 = vmatpush2.msra.mxu0 0.0
    %1499 = vmatprep.subr.mxu0 0.0
    %1500 = vmatpush2.msra.mxu0 0.0
    %1501 = vmatprep.subr.mxu0 0.0
    %1502 = vmatpush2.msra.mxu0 0.0
    %1503 = vmatprep.subr.mxu0 0.0
    %1504 = vmatpush2.msra.mxu0 0.0
    %1505 = vmatprep.mubr.f32.mxu0 0.0
    %1506 = vmatmul.mubr.f32.gmra.mxu0 %v1255
    %v1507 = vpop.f32.mrf.mxu0
    %v1508 = vadd.f32 %v1404, %v1507
    %v1509 = vpop.f32.mrf.mxu0
    %v1510 = vadd.f32 %v1408, %v1509
    %1511 = vmatprep.mubr.f32.mxu0 0.0
    %1512 = vmatmul.mubr.f32.gmra.mxu0 %v1256
    %v1513 = vpop.f32.mrf.mxu0
    %v1514 = vadd.f32 %v1404, %v1513
    %v1515 = vpop.f32.mrf.mxu0
    %v1516 = vadd.f32 %v1408, %v1515
    %1517 = vmatprep.mubr.f32.mxu0 0.0
    %1518 = vmatmul.mubr.f32.gmra.mxu0 %v1257
    %v1519 = vpop.f32.mrf.mxu0
    %v1520 = vadd.f32 %v1404, %v1519
    %v1521 = vpop.f32.mrf.mxu0
    %v1522 = vadd.f32 %v1408, %v1521
    %1523 = vmatprep.mubr.f32.mxu0 0.0
    %1524 = vmatmul.mubr.f32.gmra.mxu0 %v1258
    %v1525 = vpop.f32.mrf.mxu0
    %v1526 = vadd.f32 %v1404, %v1525
    %v1527 = vpop.f32.mrf.mxu0
    %v1528 = vadd.f32 %v1408, %v1527
    %1529 = vmatprep.mubr.f32.mxu0 0.0
    %1530 = vmatmul.mubr.f32.gmra.mxu0 %v1259
    %v1531 = vpop.f32.mrf.mxu0
    %v1532 = vadd.f32 %v1404, %v1531
    %v1533 = vpop.f32.mrf.mxu0
    %v1534 = vadd.f32 %v1408, %v1533
    %1535 = vmatprep.mubr.f32.mxu0 0.0
    %1536 = vmatmul.mubr.f32.gmra.mxu0 %v1260
    %v1537 = vpop.f32.mrf.mxu0
    %v1538 = vadd.f32 %v1404, %v1537
    %v1539 = vpop.f32.mrf.mxu0
    %v1540 = vadd.f32 %v1408, %v1539
    %1541 = vmatprep.mubr.f32.mxu0 0.0
    %1542 = vmatmul.mubr.f32.gmra.mxu0 %v1261
    %v1543 = vpop.f32.mrf.mxu0
    %v1544 = vadd.f32 %v1404, %v1543
    %v1545 = vpop.f32.mrf.mxu0
    %v1546 = vadd.f32 %v1408, %v1545
    %1547 = vmatprep.mubr.f32.mxu0 0.0
    %1548 = vmatmul.mubr.f32.gmra.mxu0 %v1262
    %v1549 = vpop.f32.mrf.mxu0
    %v1550 = vadd.f32 %v1404, %v1549
    %v1551 = vpop.f32.mrf.mxu0
    %v1552 = vadd.f32 %v1408, %v1551
    %1553 = vmatprep.mubr.f32.mxu0 0.0
    %1554 = vmatmul.mubr.f32.gmra.mxu0 %v1263
    %v1555 = vpop.f32.mrf.mxu0
    %v1556 = vadd.f32 %v1404, %v1555
    %v1557 = vpop.f32.mrf.mxu0
    %v1558 = vadd.f32 %v1408, %v1557
    %1559 = vmatprep.mubr.f32.mxu0 0.0
    %1560 = vmatmul.mubr.f32.gmra.mxu0 %v1264
    %v1561 = vpop.f32.mrf.mxu0
    %v1562 = vadd.f32 %v1404, %v1561
    %v1563 = vpop.f32.mrf.mxu0
    %v1564 = vadd.f32 %v1408, %v1563
    %1565 = vmatprep.mubr.f32.mxu0 0.0
    %1566 = vmatmul.mubr.f32.gmra.mxu0 %v1265
    %v1567 = vpop.f32.mrf.mxu0
    %v1568 = vadd.f32 %v1404, %v1567
    %v1569 = vpop.f32.mrf.mxu0
    %v1570 = vadd.f32 %v1408, %v1569
    %1571 = vmatprep.mubr.f32.mxu0 0.0
    %1572 = vmatmul.mubr.f32.gmra.mxu0 %v1266
    %v1573 = vpop.f32.mrf.mxu0
    %v1574 = vadd.f32 %v1404, %v1573
    %v1575 = vpop.f32.mrf.mxu0
    %v1576 = vadd.f32 %v1408, %v1575
    %1577 = vmatprep.mubr.f32.mxu0 0.0
    %1578 = vmatmul.mubr.f32.gmra.mxu0 %v1267
    %v1579 = vpop.f32.mrf.mxu0
    %v1580 = vadd.f32 %v1404, %v1579
    %v1581 = vpop.f32.mrf.mxu0
    %v1582 = vadd.f32 %v1408, %v1581
    %1583 = vmatprep.mubr.f32.mxu0 0.0
    %1584 = vmatmul.mubr.f32.gmra.mxu0 %v1268
    %v1585 = vpop.f32.mrf.mxu0
    %v1586 = vadd.f32 %v1404, %v1585
    %v1587 = vpop.f32.mrf.mxu0
    %v1588 = vadd.f32 %v1408, %v1587
    %1589 = vmatprep.mubr.f32.mxu0 0.0
    %1590 = vmatmul.mubr.f32.gmra.mxu0 %v1269
    %v1591 = vpop.f32.mrf.mxu0
    %v1592 = vadd.f32 %v1404, %v1591
    %v1593 = vpop.f32.mrf.mxu0
    %v1594 = vadd.f32 %v1408, %v1593
    %1595 = vmatprep.mubr.f32.mxu0 0.0
    %1596 = vmatmul.mubr.f32.gmra.mxu0 %v1270
    %v1597 = vpop.f32.mrf.mxu0
    %v1598 = vadd.f32 %v1404, %v1597
    %v1599 = vpop.f32.mrf.mxu0
    %v1600 = vadd.f32 %v1408, %v1599
    %1601 = vdwg.mxu0
    %1602 = vmatprep.subr.mxu0 %v1394
    %1603 = vmatpush1.msra.mxu0 %v1393
    %1604 = vmatprep.subr.mxu0 %v1386
    %1605 = vmatpush1.msra.mxu0 %v1385
    %1606 = vmatprep.subr.mxu0 %v1378
    %1607 = vmatpush1.msra.mxu0 %v1377
    %1608 = vmatprep.subr.mxu0 %v1370
    %1609 = vmatpush1.msra.mxu0 %v1369
    %1610 = vmatprep.subr.mxu0 %v1362
    %1611 = vmatpush1.msra.mxu0 %v1361
    %1612 = vmatprep.subr.mxu0 %v1354
    %1613 = vmatpush1.msra.mxu0 %v1353
    %1614 = vmatprep.subr.mxu0 %v1346
    %1615 = vmatpush1.msra.mxu0 %v1345
    %1616 = vmatprep.subr.mxu0 %v1338
    %1617 = vmatpush1.msra.mxu0 %v1337
    %1618 = vmatprep.subr.mxu0 %v1330
    %1619 = vmatpush1.msra.mxu0 %v1329
    %1620 = vmatprep.subr.mxu0 %v1322
    %1621 = vmatpush1.msra.mxu0 %v1321
    %1622 = vmatprep.subr.mxu0 %v1314
    %1623 = vmatpush1.msra.mxu0 %v1313
    %1624 = vmatprep.subr.mxu0 %v1306
    %1625 = vmatpush1.msra.mxu0 %v1305
    %1626 = vmatprep.subr.mxu0 %v1298
    %1627 = vmatpush1.msra.mxu0 %v1297
    %1628 = vmatprep.subr.mxu0 %v1290
    %1629 = vmatpush1.msra.mxu0 %v1289
    %1630 = vmatprep.subr.mxu0 %v1282
    %1631 = vmatpush1.msra.mxu0 %v1281
    %1632 = vmatprep.subr.mxu0 %v1274
    %1633 = vmatpush1.msra.mxu0 %v1273
    %1634 = vmatprep.subr.mxu0 0.0
    %1635 = vmatpush2.msra.mxu0 0.0
    %1636 = vmatprep.subr.mxu0 0.0
    %1637 = vmatpush2.msra.mxu0 0.0
    %1638 = vmatprep.subr.mxu0 0.0
    %1639 = vmatpush2.msra.mxu0 0.0
    %1640 = vmatprep.subr.mxu0 0.0
    %1641 = vmatpush2.msra.mxu0 0.0
    %1642 = vmatprep.subr.mxu0 0.0
    %1643 = vmatpush2.msra.mxu0 0.0
    %1644 = vmatprep.subr.mxu0 0.0
    %1645 = vmatpush2.msra.mxu0 0.0
    %1646 = vmatprep.subr.mxu0 0.0
    %1647 = vmatpush2.msra.mxu0 0.0
    %1648 = vmatprep.subr.mxu0 0.0
    %1649 = vmatpush2.msra.mxu0 0.0
    %1650 = vmatprep.subr.mxu0 0.0
    %1651 = vmatpush2.msra.mxu0 0.0
    %1652 = vmatprep.subr.mxu0 0.0
    %1653 = vmatpush2.msra.mxu0 0.0
    %1654 = vmatprep.subr.mxu0 0.0
    %1655 = vmatpush2.msra.mxu0 0.0
    %1656 = vmatprep.subr.mxu0 0.0
    %1657 = vmatpush2.msra.mxu0 0.0
    %1658 = vmatprep.subr.mxu0 0.0
    %1659 = vmatpush2.msra.mxu0 0.0
    %1660 = vmatprep.subr.mxu0 0.0
    %1661 = vmatpush2.msra.mxu0 0.0
    %1662 = vmatprep.subr.mxu0 0.0
    %1663 = vmatpush2.msra.mxu0 0.0
    %1664 = vmatprep.subr.mxu0 0.0
    %1665 = vmatpush2.msra.mxu0 0.0
    %1666 = vmatprep.mubr.f32.mxu0 0.0
    %1667 = vmatmul.mubr.f32.gmra.mxu0 %v1255
    %v1668 = vpop.f32.mrf.mxu0
    %v1669 = vadd.f32 %v1412, %v1668
    %v1670 = vpop.f32.mrf.mxu0
    %v1671 = vadd.f32 %v1416, %v1670
    %1672 = vmatprep.mubr.f32.mxu0 0.0
    %1673 = vmatmul.mubr.f32.gmra.mxu0 %v1256
    %v1674 = vpop.f32.mrf.mxu0
    %v1675 = vadd.f32 %v1412, %v1674
    %v1676 = vpop.f32.mrf.mxu0
    %v1677 = vadd.f32 %v1416, %v1676
    %1678 = vmatprep.mubr.f32.mxu0 0.0
    %1679 = vmatmul.mubr.f32.gmra.mxu0 %v1257
    %v1680 = vpop.f32.mrf.mxu0
    %v1681 = vadd.f32 %v1412, %v1680
    %v1682 = vpop.f32.mrf.mxu0
    %v1683 = vadd.f32 %v1416, %v1682
    %1684 = vmatprep.mubr.f32.mxu0 0.0
    %1685 = vmatmul.mubr.f32.gmra.mxu0 %v1258
    %v1686 = vpop.f32.mrf.mxu0
    %v1687 = vadd.f32 %v1412, %v1686
    %v1688 = vpop.f32.mrf.mxu0
    %v1689 = vadd.f32 %v1416, %v1688
    %1690 = vmatprep.mubr.f32.mxu0 0.0
    %1691 = vmatmul.mubr.f32.gmra.mxu0 %v1259
    %v1692 = vpop.f32.mrf.mxu0
    %v1693 = vadd.f32 %v1412, %v1692
    %v1694 = vpop.f32.mrf.mxu0
    %v1695 = vadd.f32 %v1416, %v1694
    %1696 = vmatprep.mubr.f32.mxu0 0.0
    %1697 = vmatmul.mubr.f32.gmra.mxu0 %v1260
    %v1698 = vpop.f32.mrf.mxu0
    %v1699 = vadd.f32 %v1412, %v1698
    %v1700 = vpop.f32.mrf.mxu0
    %v1701 = vadd.f32 %v1416, %v1700
    %1702 = vmatprep.mubr.f32.mxu0 0.0
    %1703 = vmatmul.mubr.f32.gmra.mxu0 %v1261
    %v1704 = vpop.f32.mrf.mxu0
    %v1705 = vadd.f32 %v1412, %v1704
    %v1706 = vpop.f32.mrf.mxu0
    %v1707 = vadd.f32 %v1416, %v1706
    %1708 = vmatprep.mubr.f32.mxu0 0.0
    %1709 = vmatmul.mubr.f32.gmra.mxu0 %v1262
    %v1710 = vpop.f32.mrf.mxu0
    %v1711 = vadd.f32 %v1412, %v1710
    %v1712 = vpop.f32.mrf.mxu0
    %v1713 = vadd.f32 %v1416, %v1712
    %1714 = vmatprep.mubr.f32.mxu0 0.0
    %1715 = vmatmul.mubr.f32.gmra.mxu0 %v1263
    %v1716 = vpop.f32.mrf.mxu0
    %v1717 = vadd.f32 %v1412, %v1716
    %v1718 = vpop.f32.mrf.mxu0
    %v1719 = vadd.f32 %v1416, %v1718
    %1720 = vmatprep.mubr.f32.mxu0 0.0
    %1721 = vmatmul.mubr.f32.gmra.mxu0 %v1264
    %v1722 = vpop.f32.mrf.mxu0
    %v1723 = vadd.f32 %v1412, %v1722
    %v1724 = vpop.f32.mrf.mxu0
    %v1725 = vadd.f32 %v1416, %v1724
    %1726 = vmatprep.mubr.f32.mxu0 0.0
    %1727 = vmatmul.mubr.f32.gmra.mxu0 %v1265
    %v1728 = vpop.f32.mrf.mxu0
    %v1729 = vadd.f32 %v1412, %v1728
    %v1730 = vpop.f32.mrf.mxu0
    %v1731 = vadd.f32 %v1416, %v1730
    %1732 = vmatprep.mubr.f32.mxu0 0.0
    %1733 = vmatmul.mubr.f32.gmra.mxu0 %v1266
    %v1734 = vpop.f32.mrf.mxu0
    %v1735 = vadd.f32 %v1412, %v1734
    %v1736 = vpop.f32.mrf.mxu0
    %v1737 = vadd.f32 %v1416, %v1736
    %1738 = vmatprep.mubr.f32.mxu0 0.0
    %1739 = vmatmul.mubr.f32.gmra.mxu0 %v1267
    %v1740 = vpop.f32.mrf.mxu0
    %v1741 = vadd.f32 %v1412, %v1740
    %v1742 = vpop.f32.mrf.mxu0
    %v1743 = vadd.f32 %v1416, %v1742
    %1744 = vmatprep.mubr.f32.mxu0 0.0
    %1745 = vmatmul.mubr.f32.gmra.mxu0 %v1268
    %v1746 = vpop.f32.mrf.mxu0
    %v1747 = vadd.f32 %v1412, %v1746
    %v1748 = vpop.f32.mrf.mxu0
    %v1749 = vadd.f32 %v1416, %v1748
    %1750 = vmatprep.mubr.f32.mxu0 0.0
    %1751 = vmatmul.mubr.f32.gmra.mxu0 %v1269
    %v1752 = vpop.f32.mrf.mxu0
    %v1753 = vadd.f32 %v1412, %v1752
    %v1754 = vpop.f32.mrf.mxu0
    %v1755 = vadd.f32 %v1416, %v1754
    %1756 = vmatprep.mubr.f32.mxu0 0.0
    %1757 = vmatmul.mubr.f32.gmra.mxu0 %v1270
    %v1758 = vpop.f32.mrf.mxu0
    %v1759 = vadd.f32 %v1412, %v1758
    %v1760 = vpop.f32.mrf.mxu0
    %v1761 = vadd.f32 %v1416, %v1760
    %1762 = vdwg.mxu0
    %1763 = vmatprep.subr.mxu0 %v1396
    %1764 = vmatpush1.msra.mxu0 %v1395
    %1765 = vmatprep.subr.mxu0 %v1388
    %1766 = vmatpush1.msra.mxu0 %v1387
    %1767 = vmatprep.subr.mxu0 %v1380
    %1768 = vmatpush1.msra.mxu0 %v1379
    %1769 = vmatprep.subr.mxu0 %v1372
    %1770 = vmatpush1.msra.mxu0 %v1371
    %1771 = vmatprep.subr.mxu0 %v1364
    %1772 = vmatpush1.msra.mxu0 %v1363
    %1773 = vmatprep.subr.mxu0 %v1356
    %1774 = vmatpush1.msra.mxu0 %v1355
    %1775 = vmatprep.subr.mxu0 %v1348
    %1776 = vmatpush1.msra.mxu0 %v1347
    %1777 = vmatprep.subr.mxu0 %v1340
    %1778 = vmatpush1.msra.mxu0 %v1339
    %1779 = vmatprep.subr.mxu0 %v1332
    %1780 = vmatpush1.msra.mxu0 %v1331
    %1781 = vmatprep.subr.mxu0 %v1324
    %1782 = vmatpush1.msra.mxu0 %v1323
    %1783 = vmatprep.subr.mxu0 %v1316
    %1784 = vmatpush1.msra.mxu0 %v1315
    %1785 = vmatprep.subr.mxu0 %v1308
    %1786 = vmatpush1.msra.mxu0 %v1307
    %1787 = vmatprep.subr.mxu0 %v1300
    %1788 = vmatpush1.msra.mxu0 %v1299
    %1789 = vmatprep.subr.mxu0 %v1292
    %1790 = vmatpush1.msra.mxu0 %v1291
    %1791 = vmatprep.subr.mxu0 %v1284
    %1792 = vmatpush1.msra.mxu0 %v1283
    %1793 = vmatprep.subr.mxu0 %v1276
    %1794 = vmatpush1.msra.mxu0 %v1275
    %1795 = vmatprep.subr.mxu0 0.0
    %1796 = vmatpush2.msra.mxu0 0.0
    %1797 = vmatprep.subr.mxu0 0.0
    %1798 = vmatpush2.msra.mxu0 0.0
    %1799 = vmatprep.subr.mxu0 0.0
    %1800 = vmatpush2.msra.mxu0 0.0
    %1801 = vmatprep.subr.mxu0 0.0
    %1802 = vmatpush2.msra.mxu0 0.0
    %1803 = vmatprep.subr.mxu0 0.0
    %1804 = vmatpush2.msra.mxu0 0.0
    %1805 = vmatprep.subr.mxu0 0.0
    %1806 = vmatpush2.msra.mxu0 0.0
    %1807 = vmatprep.subr.mxu0 0.0
    %1808 = vmatpush2.msra.mxu0 0.0
    %1809 = vmatprep.subr.mxu0 0.0
    %1810 = vmatpush2.msra.mxu0 0.0
    %1811 = vmatprep.subr.mxu0 0.0
    %1812 = vmatpush2.msra.mxu0 0.0
    %1813 = vmatprep.subr.mxu0 0.0
    %1814 = vmatpush2.msra.mxu0 0.0
    %1815 = vmatprep.subr.mxu0 0.0
    %1816 = vmatpush2.msra.mxu0 0.0
    %1817 = vmatprep.subr.mxu0 0.0
    %1818 = vmatpush2.msra.mxu0 0.0
    %1819 = vmatprep.subr.mxu0 0.0
    %1820 = vmatpush2.msra.mxu0 0.0
    %1821 = vmatprep.subr.mxu0 0.0
    %1822 = vmatpush2.msra.mxu0 0.0
    %1823 = vmatprep.subr.mxu0 0.0
    %1824 = vmatpush2.msra.mxu0 0.0
    %1825 = vmatprep.subr.mxu0 0.0
    %1826 = vmatpush2.msra.mxu0 0.0
    %1827 = vmatprep.mubr.f32.mxu0 0.0
    %1828 = vmatmul.mubr.f32.gmra.mxu0 %v1255
    %v1829 = vpop.f32.mrf.mxu0
    %v1830 = vadd.f32 %v1420, %v1829
    %v1831 = vpop.f32.mrf.mxu0
    %v1832 = vadd.f32 %v1424, %v1831
    %1833 = vmatprep.mubr.f32.mxu0 0.0
    %1834 = vmatmul.mubr.f32.gmra.mxu0 %v1256
    %v1835 = vpop.f32.mrf.mxu0
    %v1836 = vadd.f32 %v1420, %v1835
    %v1837 = vpop.f32.mrf.mxu0
    %v1838 = vadd.f32 %v1424, %v1837
    %1839 = vmatprep.mubr.f32.mxu0 0.0
    %1840 = vmatmul.mubr.f32.gmra.mxu0 %v1257
    %v1841 = vpop.f32.mrf.mxu0
    %v1842 = vadd.f32 %v1420, %v1841
    %v1843 = vpop.f32.mrf.mxu0
    %v1844 = vadd.f32 %v1424, %v1843
    %1845 = vmatprep.mubr.f32.mxu0 0.0
    %1846 = vmatmul.mubr.f32.gmra.mxu0 %v1258
    %v1847 = vpop.f32.mrf.mxu0
    %v1848 = vadd.f32 %v1420, %v1847
    %v1849 = vpop.f32.mrf.mxu0
    %v1850 = vadd.f32 %v1424, %v1849
    %1851 = vmatprep.mubr.f32.mxu0 0.0
    %1852 = vmatmul.mubr.f32.gmra.mxu0 %v1259
    %v1853 = vpop.f32.mrf.mxu0
    %v1854 = vadd.f32 %v1420, %v1853
    %v1855 = vpop.f32.mrf.mxu0
    %v1856 = vadd.f32 %v1424, %v1855
    %1857 = vmatprep.mubr.f32.mxu0 0.0
    %1858 = vmatmul.mubr.f32.gmra.mxu0 %v1260
    %v1859 = vpop.f32.mrf.mxu0
    %v1860 = vadd.f32 %v1420, %v1859
    %v1861 = vpop.f32.mrf.mxu0
    %v1862 = vadd.f32 %v1424, %v1861
    %1863 = vmatprep.mubr.f32.mxu0 0.0
    %1864 = vmatmul.mubr.f32.gmra.mxu0 %v1261
    %v1865 = vpop.f32.mrf.mxu0
    %v1866 = vadd.f32 %v1420, %v1865
    %v1867 = vpop.f32.mrf.mxu0
    %v1868 = vadd.f32 %v1424, %v1867
    %1869 = vmatprep.mubr.f32.mxu0 0.0
    %1870 = vmatmul.mubr.f32.gmra.mxu0 %v1262
    %v1871 = vpop.f32.mrf.mxu0
    %v1872 = vadd.f32 %v1420, %v1871
    %v1873 = vpop.f32.mrf.mxu0
    %v1874 = vadd.f32 %v1424, %v1873
    %1875 = vmatprep.mubr.f32.mxu0 0.0
    %1876 = vmatmul.mubr.f32.gmra.mxu0 %v1263
    %v1877 = vpop.f32.mrf.mxu0
    %v1878 = vadd.f32 %v1420, %v1877
    %v1879 = vpop.f32.mrf.mxu0
    %v1880 = vadd.f32 %v1424, %v1879
    %1881 = vmatprep.mubr.f32.mxu0 0.0
    %1882 = vmatmul.mubr.f32.gmra.mxu0 %v1264
    %v1883 = vpop.f32.mrf.mxu0
    %v1884 = vadd.f32 %v1420, %v1883
    %v1885 = vpop.f32.mrf.mxu0
    %v1886 = vadd.f32 %v1424, %v1885
    %1887 = vmatprep.mubr.f32.mxu0 0.0
    %1888 = vmatmul.mubr.f32.gmra.mxu0 %v1265
    %v1889 = vpop.f32.mrf.mxu0
    %v1890 = vadd.f32 %v1420, %v1889
    %v1891 = vpop.f32.mrf.mxu0
    %v1892 = vadd.f32 %v1424, %v1891
    %1893 = vmatprep.mubr.f32.mxu0 0.0
    %1894 = vmatmul.mubr.f32.gmra.mxu0 %v1266
    %v1895 = vpop.f32.mrf.mxu0
    %v1896 = vadd.f32 %v1420, %v1895
    %v1897 = vpop.f32.mrf.mxu0
    %v1898 = vadd.f32 %v1424, %v1897
    %1899 = vmatprep.mubr.f32.mxu0 0.0
    %1900 = vmatmul.mubr.f32.gmra.mxu0 %v1267
    %v1901 = vpop.f32.mrf.mxu0
    %v1902 = vadd.f32 %v1420, %v1901
    %v1903 = vpop.f32.mrf.mxu0
    %v1904 = vadd.f32 %v1424, %v1903
    %1905 = vmatprep.mubr.f32.mxu0 0.0
    %1906 = vmatmul.mubr.f32.gmra.mxu0 %v1268
    %v1907 = vpop.f32.mrf.mxu0
    %v1908 = vadd.f32 %v1420, %v1907
    %v1909 = vpop.f32.mrf.mxu0
    %v1910 = vadd.f32 %v1424, %v1909
    %1911 = vmatprep.mubr.f32.mxu0 0.0
    %1912 = vmatmul.mubr.f32.gmra.mxu0 %v1269
    %v1913 = vpop.f32.mrf.mxu0
    %v1914 = vadd.f32 %v1420, %v1913
    %v1915 = vpop.f32.mrf.mxu0
    %v1916 = vadd.f32 %v1424, %v1915
    %1917 = vmatprep.mubr.f32.mxu0 0.0
    %1918 = vmatmul.mubr.f32.gmra.mxu0 %v1270
    %v1919 = vpop.f32.mrf.mxu0
    %v1920 = vadd.f32 %v1420, %v1919
    %v1921 = vpop.f32.mrf.mxu0
    %v1922 = vadd.f32 %v1424, %v1921
    %1923 = vdwg.mxu0
    %1924 = vmatprep.subr.mxu0 %v1398
    %1925 = vmatpush1.msra.mxu0 %v1397
    %1926 = vmatprep.subr.mxu0 %v1390
    %1927 = vmatpush1.msra.mxu0 %v1389
    %1928 = vmatprep.subr.mxu0 %v1382
    %1929 = vmatpush1.msra.mxu0 %v1381
    %1930 = vmatprep.subr.mxu0 %v1374
    %1931 = vmatpush1.msra.mxu0 %v1373
    %1932 = vmatprep.subr.mxu0 %v1366
    %1933 = vmatpush1.msra.mxu0 %v1365
    %1934 = vmatprep.subr.mxu0 %v1358
    %1935 = vmatpush1.msra.mxu0 %v1357
    %1936 = vmatprep.subr.mxu0 %v1350
    %1937 = vmatpush1.msra.mxu0 %v1349
    %1938 = vmatprep.subr.mxu0 %v1342
    %1939 = vmatpush1.msra.mxu0 %v1341
    %1940 = vmatprep.subr.mxu0 %v1334
    %1941 = vmatpush1.msra.mxu0 %v1333
    %1942 = vmatprep.subr.mxu0 %v1326
    %1943 = vmatpush1.msra.mxu0 %v1325
    %1944 = vmatprep.subr.mxu0 %v1318
    %1945 = vmatpush1.msra.mxu0 %v1317
    %1946 = vmatprep.subr.mxu0 %v1310
    %1947 = vmatpush1.msra.mxu0 %v1309
    %1948 = vmatprep.subr.mxu0 %v1302
    %1949 = vmatpush1.msra.mxu0 %v1301
    %1950 = vmatprep.subr.mxu0 %v1294
    %1951 = vmatpush1.msra.mxu0 %v1293
    %1952 = vmatprep.subr.mxu0 %v1286
    %1953 = vmatpush1.msra.mxu0 %v1285
    %1954 = vmatprep.subr.mxu0 %v1278
    %1955 = vmatpush1.msra.mxu0 %v1277
    %1956 = vmatprep.subr.mxu0 0.0
    %1957 = vmatpush2.msra.mxu0 0.0
    %1958 = vmatprep.subr.mxu0 0.0
    %1959 = vmatpush2.msra.mxu0 0.0
    %1960 = vmatprep.subr.mxu0 0.0
    %1961 = vmatpush2.msra.mxu0 0.0
    %1962 = vmatprep.subr.mxu0 0.0
    %1963 = vmatpush2.msra.mxu0 0.0
    %1964 = vmatprep.subr.mxu0 0.0
    %1965 = vmatpush2.msra.mxu0 0.0
    %1966 = vmatprep.subr.mxu0 0.0
    %1967 = vmatpush2.msra.mxu0 0.0
    %1968 = vmatprep.subr.mxu0 0.0
    %1969 = vmatpush2.msra.mxu0 0.0
    %1970 = vmatprep.subr.mxu0 0.0
    %1971 = vmatpush2.msra.mxu0 0.0
    %1972 = vmatprep.subr.mxu0 0.0
    %1973 = vmatpush2.msra.mxu0 0.0
    %1974 = vmatprep.subr.mxu0 0.0
    %1975 = vmatpush2.msra.mxu0 0.0
    %1976 = vmatprep.subr.mxu0 0.0
    %1977 = vmatpush2.msra.mxu0 0.0
    %1978 = vmatprep.subr.mxu0 0.0
    %1979 = vmatpush2.msra.mxu0 0.0
    %1980 = vmatprep.subr.mxu0 0.0
    %1981 = vmatpush2.msra.mxu0 0.0
    %1982 = vmatprep.subr.mxu0 0.0
    %1983 = vmatpush2.msra.mxu0 0.0
    %1984 = vmatprep.subr.mxu0 0.0
    %1985 = vmatpush2.msra.mxu0 0.0
    %1986 = vmatprep.subr.mxu0 0.0
    %1987 = vmatpush2.msra.mxu0 0.0
    %1988 = vmatprep.mubr.f32.mxu0 0.0
    %1989 = vmatmul.mubr.f32.gmra.mxu0 %v1255
    %v1990 = vpop.f32.mrf.mxu0
    %v1991 = vadd.f32 %v1428, %v1990
    %v1992 = vpop.f32.mrf.mxu0
    %v1993 = vadd.f32 %v1432, %v1992
    %1994 = vmatprep.mubr.f32.mxu0 0.0
    %1995 = vmatmul.mubr.f32.gmra.mxu0 %v1256
    %v1996 = vpop.f32.mrf.mxu0
    %v1997 = vadd.f32 %v1428, %v1996
    %v1998 = vpop.f32.mrf.mxu0
    %v1999 = vadd.f32 %v1432, %v1998
    %2000 = vmatprep.mubr.f32.mxu0 0.0
    %2001 = vmatmul.mubr.f32.gmra.mxu0 %v1257
    %v2002 = vpop.f32.mrf.mxu0
    %v2003 = vadd.f32 %v1428, %v2002
    %v2004 = vpop.f32.mrf.mxu0
    %v2005 = vadd.f32 %v1432, %v2004
    %2006 = vmatprep.mubr.f32.mxu0 0.0
    %2007 = vmatmul.mubr.f32.gmra.mxu0 %v1258
    %v2008 = vpop.f32.mrf.mxu0
    %v2009 = vadd.f32 %v1428, %v2008
    %v2010 = vpop.f32.mrf.mxu0
    %v2011 = vadd.f32 %v1432, %v2010
    %2012 = vmatprep.mubr.f32.mxu0 0.0
    %2013 = vmatmul.mubr.f32.gmra.mxu0 %v1259
    %v2014 = vpop.f32.mrf.mxu0
    %v2015 = vadd.f32 %v1428, %v2014
    %v2016 = vpop.f32.mrf.mxu0
    %v2017 = vadd.f32 %v1432, %v2016
    %2018 = vmatprep.mubr.f32.mxu0 0.0
    %2019 = vmatmul.mubr.f32.gmra.mxu0 %v1260
    %v2020 = vpop.f32.mrf.mxu0
    %v2021 = vadd.f32 %v1428, %v2020
    %v2022 = vpop.f32.mrf.mxu0
    %v2023 = vadd.f32 %v1432, %v2022
    %2024 = vmatprep.mubr.f32.mxu0 0.0
    %2025 = vmatmul.mubr.f32.gmra.mxu0 %v1261
    %v2026 = vpop.f32.mrf.mxu0
    %v2027 = vadd.f32 %v1428, %v2026
    %v2028 = vpop.f32.mrf.mxu0
    %v2029 = vadd.f32 %v1432, %v2028
    %2030 = vmatprep.mubr.f32.mxu0 0.0
    %2031 = vmatmul.mubr.f32.gmra.mxu0 %v1262
    %v2032 = vpop.f32.mrf.mxu0
    %v2033 = vadd.f32 %v1428, %v2032
    %v2034 = vpop.f32.mrf.mxu0
    %v2035 = vadd.f32 %v1432, %v2034
    %2036 = vmatprep.mubr.f32.mxu0 0.0
    %2037 = vmatmul.mubr.f32.gmra.mxu0 %v1263
    %v2038 = vpop.f32.mrf.mxu0
    %v2039 = vadd.f32 %v1428, %v2038
    %v2040 = vpop.f32.mrf.mxu0
    %v2041 = vadd.f32 %v1432, %v2040
    %2042 = vmatprep.mubr.f32.mxu0 0.0
    %2043 = vmatmul.mubr.f32.gmra.mxu0 %v1264
    %v2044 = vpop.f32.mrf.mxu0
    %v2045 = vadd.f32 %v1428, %v2044
    %v2046 = vpop.f32.mrf.mxu0
    %v2047 = vadd.f32 %v1432, %v2046
    %2048 = vmatprep.mubr.f32.mxu0 0.0
    %2049 = vmatmul.mubr.f32.gmra.mxu0 %v1265
    %v2050 = vpop.f32.mrf.mxu0
    %v2051 = vadd.f32 %v1428, %v2050
    %v2052 = vpop.f32.mrf.mxu0
    %v2053 = vadd.f32 %v1432, %v2052
    %2054 = vmatprep.mubr.f32.mxu0 0.0
    %2055 = vmatmul.mubr.f32.gmra.mxu0 %v1266
    %v2056 = vpop.f32.mrf.mxu0
    %v2057 = vadd.f32 %v1428, %v2056
    %v2058 = vpop.f32.mrf.mxu0
    %v2059 = vadd.f32 %v1432, %v2058
    %2060 = vmatprep.mubr.f32.mxu0 0.0
    %2061 = vmatmul.mubr.f32.gmra.mxu0 %v1267
    %v2062 = vpop.f32.mrf.mxu0
    %v2063 = vadd.f32 %v1428, %v2062
    %v2064 = vpop.f32.mrf.mxu0
    %v2065 = vadd.f32 %v1432, %v2064
    %2066 = vmatprep.mubr.f32.mxu0 0.0
    %2067 = vmatmul.mubr.f32.gmra.mxu0 %v1268
    %v2068 = vpop.f32.mrf.mxu0
    %v2069 = vadd.f32 %v1428, %v2068
    %v2070 = vpop.f32.mrf.mxu0
    %v2071 = vadd.f32 %v1432, %v2070
    %2072 = vmatprep.mubr.f32.mxu0 0.0
    %2073 = vmatmul.mubr.f32.gmra.mxu0 %v1269
    %v2074 = vpop.f32.mrf.mxu0
    %v2075 = vadd.f32 %v1428, %v2074
    %v2076 = vpop.f32.mrf.mxu0
    %v2077 = vadd.f32 %v1432, %v2076
    %2078 = vmatprep.mubr.f32.mxu0 0.0
    %2079 = vmatmul.mubr.f32.gmra.mxu0 %v1270
    %v2080 = vpop.f32.mrf.mxu0
    %v2081 = vadd.f32 %v1428, %v2080
    %v2082 = vpop.f32.mrf.mxu0
    %v2083 = vadd.f32 %v1432, %v2082
    %2084 = vdwg.mxu0
    %v2085 = vld [vmem:[%s31] sm:$0xff]
    %v2086 = vld [vmem:[%s33] sm:$0xff]
    %v2087 = vadd.f32 %v1508, %v1514
    %v2088 = vadd.f32 %v2087, %v1520
    %v2089 = vadd.f32 %v2088, %v1526
    %v2090 = vadd.f32 %v2089, %v1532
    %v2091 = vadd.f32 %v2090, %v1538
    %v2092 = vadd.f32 %v2091, %v1544
    %v2093 = vadd.f32 %v2092, %v1550
    %v2094 = vadd.f32 %v2093, %v1556
    %v2095 = vadd.f32 %v2094, %v1562
    %v2096 = vadd.f32 %v2095, %v1568
    %v2097 = vadd.f32 %v2096, %v1574
    %v2098 = vadd.f32 %v2097, %v1580
    %v2099 = vadd.f32 %v2098, %v1586
    %v2100 = vadd.f32 %v2099, %v1592
    %v2101 = vadd.f32 %v2100, %v1598
    %v2102 = vrot.slane %v2101, 4
    %v2103 = vadd.f32 %v2101, %v2102
    %v2104 = vrot.slane %v2103, 2
    %v2105 = vadd.f32 %v2103, %v2104
    %v2106 = vrot.slane %v2105, 1
    %v2107 = vadd.f32 %v2105, %v2106
    %v2108 = vadd.f32 %v1510, %v1516
    %v2109 = vadd.f32 %v2108, %v1522
    %v2110 = vadd.f32 %v2109, %v1528
    %v2111 = vadd.f32 %v2110, %v1534
    %v2112 = vadd.f32 %v2111, %v1540
    %v2113 = vadd.f32 %v2112, %v1546
    %v2114 = vadd.f32 %v2113, %v1552
    %v2115 = vadd.f32 %v2114, %v1558
    %v2116 = vadd.f32 %v2115, %v1564
    %v2117 = vadd.f32 %v2116, %v1570
    %v2118 = vadd.f32 %v2117, %v1576
    %v2119 = vadd.f32 %v2118, %v1582
    %v2120 = vadd.f32 %v2119, %v1588
    %v2121 = vadd.f32 %v2120, %v1594
    %v2122 = vadd.f32 %v2121, %v1600
    %v2123 = vrot.slane %v2122, 4
    %v2124 = vadd.f32 %v2122, %v2123
    %v2125 = vrot.slane %v2124, 2
    %v2126 = vadd.f32 %v2124, %v2125
    %v2127 = vrot.slane %v2126, 1
    %v2128 = vadd.f32 %v2126, %v2127
    %v2129 = vadd.f32 %v1669, %v1675
    %v2130 = vadd.f32 %v2129, %v1681
    %v2131 = vadd.f32 %v2130, %v1687
    %v2132 = vadd.f32 %v2131, %v1693
    %v2133 = vadd.f32 %v2132, %v1699
    %v2134 = vadd.f32 %v2133, %v1705
    %v2135 = vadd.f32 %v2134, %v1711
    %v2136 = vadd.f32 %v2135, %v1717
    %v2137 = vadd.f32 %v2136, %v1723
    %v2138 = vadd.f32 %v2137, %v1729
    %v2139 = vadd.f32 %v2138, %v1735
    %v2140 = vadd.f32 %v2139, %v1741
    %v2141 = vadd.f32 %v2140, %v1747
    %v2142 = vadd.f32 %v2141, %v1753
    %v2143 = vadd.f32 %v2142, %v1759
    %v2144 = vrot.slane %v2143, 4
    %v2145 = vadd.f32 %v2143, %v2144
    %v2146 = vrot.slane %v2145, 2
    %v2147 = vadd.f32 %v2145, %v2146
    %v2148 = vrot.slane %v2147, 1
    %v2149 = vadd.f32 %v2147, %v2148
    %v2150 = vadd.f32 %v1671, %v1677
    %v2151 = vadd.f32 %v2150, %v1683
    %v2152 = vadd.f32 %v2151, %v1689
    %v2153 = vadd.f32 %v2152, %v1695
    %v2154 = vadd.f32 %v2153, %v1701
    %v2155 = vadd.f32 %v2154, %v1707
    %v2156 = vadd.f32 %v2155, %v1713
    %v2157 = vadd.f32 %v2156, %v1719
    %v2158 = vadd.f32 %v2157, %v1725
    %v2159 = vadd.f32 %v2158, %v1731
    %v2160 = vadd.f32 %v2159, %v1737
    %v2161 = vadd.f32 %v2160, %v1743
    %v2162 = vadd.f32 %v2161, %v1749
    %v2163 = vadd.f32 %v2162, %v1755
    %v2164 = vadd.f32 %v2163, %v1761
    %v2165 = vrot.slane %v2164, 4
    %v2166 = vadd.f32 %v2164, %v2165
    %v2167 = vrot.slane %v2166, 2
    %v2168 = vadd.f32 %v2166, %v2167
    %v2169 = vrot.slane %v2168, 1
    %v2170 = vadd.f32 %v2168, %v2169
    %v2171 = vadd.f32 %v1830, %v1836
    %v2172 = vadd.f32 %v2171, %v1842
    %v2173 = vadd.f32 %v2172, %v1848
    %v2174 = vadd.f32 %v2173, %v1854
    %v2175 = vadd.f32 %v2174, %v1860
    %v2176 = vadd.f32 %v2175, %v1866
    %v2177 = vadd.f32 %v2176, %v1872
    %v2178 = vadd.f32 %v2177, %v1878
    %v2179 = vadd.f32 %v2178, %v1884
    %v2180 = vadd.f32 %v2179, %v1890
    %v2181 = vadd.f32 %v2180, %v1896
    %v2182 = vadd.f32 %v2181, %v1902
    %v2183 = vadd.f32 %v2182, %v1908
    %v2184 = vadd.f32 %v2183, %v1914
    %v2185 = vadd.f32 %v2184, %v1920
    %v2186 = vrot.slane %v2185, 4
    %v2187 = vadd.f32 %v2185, %v2186
    %v2188 = vrot.slane %v2187, 2
    %v2189 = vadd.f32 %v2187, %v2188
    %v2190 = vrot.slane %v2189, 1
    %v2191 = vadd.f32 %v2189, %v2190
    %v2192 = vadd.f32 %v1832, %v1838
    %v2193 = vadd.f32 %v2192, %v1844
    %v2194 = vadd.f32 %v2193, %v1850
    %v2195 = vadd.f32 %v2194, %v1856
    %v2196 = vadd.f32 %v2195, %v1862
    %v2197 = vadd.f32 %v2196, %v1868
    %v2198 = vadd.f32 %v2197, %v1874
    %v2199 = vadd.f32 %v2198, %v1880
    %v2200 = vadd.f32 %v2199, %v1886
    %v2201 = vadd.f32 %v2200, %v1892
    %v2202 = vadd.f32 %v2201, %v1898
    %v2203 = vadd.f32 %v2202, %v1904
    %v2204 = vadd.f32 %v2203, %v1910
    %v2205 = vadd.f32 %v2204, %v1916
    %v2206 = vadd.f32 %v2205, %v1922
    %v2207 = vrot.slane %v2206, 4
    %v2208 = vadd.f32 %v2206, %v2207
    %v2209 = vrot.slane %v2208, 2
    %v2210 = vadd.f32 %v2208, %v2209
    %v2211 = vrot.slane %v2210, 1
    %v2212 = vadd.f32 %v2210, %v2211
    %v2213 = vadd.f32 %v1991, %v1997
    %v2214 = vadd.f32 %v2213, %v2003
    %v2215 = vadd.f32 %v2214, %v2009
    %v2216 = vadd.f32 %v2215, %v2015
    %v2217 = vadd.f32 %v2216, %v2021
    %v2218 = vadd.f32 %v2217, %v2027
    %v2219 = vadd.f32 %v2218, %v2033
    %v2220 = vadd.f32 %v2219, %v2039
    %v2221 = vadd.f32 %v2220, %v2045
    %v2222 = vadd.f32 %v2221, %v2051
    %v2223 = vadd.f32 %v2222, %v2057
    %v2224 = vadd.f32 %v2223, %v2063
    %v2225 = vadd.f32 %v2224, %v2069
    %v2226 = vadd.f32 %v2225, %v2075
    %v2227 = vadd.f32 %v2226, %v2081
    %v2228 = vrot.slane %v2227, 4
    %v2229 = vadd.f32 %v2227, %v2228
    %v2230 = vrot.slane %v2229, 2
    %v2231 = vadd.f32 %v2229, %v2230
    %v2232 = vrot.slane %v2231, 1
    %v2233 = vadd.f32 %v2231, %v2232
    %v2234 = vadd.f32 %v1993, %v1999
    %v2235 = vadd.f32 %v2234, %v2005
    %v2236 = vadd.f32 %v2235, %v2011
    %v2237 = vadd.f32 %v2236, %v2017
    %v2238 = vadd.f32 %v2237, %v2023
    %v2239 = vadd.f32 %v2238, %v2029
    %v2240 = vadd.f32 %v2239, %v2035
    %v2241 = vadd.f32 %v2240, %v2041
    %v2242 = vadd.f32 %v2241, %v2047
    %v2243 = vadd.f32 %v2242, %v2053
    %v2244 = vadd.f32 %v2243, %v2059
    %v2245 = vadd.f32 %v2244, %v2065
    %v2246 = vadd.f32 %v2245, %v2071
    %v2247 = vadd.f32 %v2246, %v2077
    %v2248 = vadd.f32 %v2247, %v2083
    %v2249 = vrot.slane %v2248, 4
    %v2250 = vadd.f32 %v2248, %v2249
    %v2251 = vrot.slane %v2250, 2
    %v2252 = vadd.f32 %v2250, %v2251
    %v2253 = vrot.slane %v2252, 1
    %v2254 = vadd.f32 %v2252, %v2253
    %v2255 = vmul.f32 %v2107, %v385
    %v2256 = vmul.f32 %v2128, %v385
    %v2257 = vmul.f32 %v2149, %v385
    %v2258 = vmul.f32 %v2170, %v385
    %v2259 = vmul.f32 %v2191, %v385
    %v2260 = vmul.f32 %v2212, %v385
    %v2261 = vmul.f32 %v2233, %v385
    %v2262 = vmul.f32 %v2254, %v385
    %v2263 = vsub.f32 %v1508, %v2255
    %v2264 = vsub.f32 %v1510, %v2256
    %v2265 = vsub.f32 %v1669, %v2257
    %v2266 = vsub.f32 %v1671, %v2258
    %v2267 = vsub.f32 %v1830, %v2259
    %v2268 = vsub.f32 %v1832, %v2260
    %v2269 = vsub.f32 %v1991, %v2261
    %v2270 = vsub.f32 %v1993, %v2262
    %v2271 = vsub.f32 %v1514, %v2255
    %v2272 = vsub.f32 %v1516, %v2256
    %v2273 = vsub.f32 %v1675, %v2257
    %v2274 = vsub.f32 %v1677, %v2258
    %v2275 = vsub.f32 %v1836, %v2259
    %v2276 = vsub.f32 %v1838, %v2260
    %v2277 = vsub.f32 %v1997, %v2261
    %v2278 = vsub.f32 %v1999, %v2262
    %v2279 = vsub.f32 %v1520, %v2255
    %v2280 = vsub.f32 %v1522, %v2256
    %v2281 = vsub.f32 %v1681, %v2257
    %v2282 = vsub.f32 %v1683, %v2258
    %v2283 = vsub.f32 %v1842, %v2259
    %v2284 = vsub.f32 %v1844, %v2260
    %v2285 = vsub.f32 %v2003, %v2261
    %v2286 = vsub.f32 %v2005, %v2262
    %v2287 = vsub.f32 %v1526, %v2255
    %v2288 = vsub.f32 %v1528, %v2256
    %v2289 = vsub.f32 %v1687, %v2257
    %v2290 = vsub.f32 %v1689, %v2258
    %v2291 = vsub.f32 %v1848, %v2259
    %v2292 = vsub.f32 %v1850, %v2260
    %v2293 = vsub.f32 %v2009, %v2261
    %v2294 = vsub.f32 %v2011, %v2262
    %v2295 = vsub.f32 %v1532, %v2255
    %v2296 = vsub.f32 %v1534, %v2256
    %v2297 = vsub.f32 %v1693, %v2257
    %v2298 = vsub.f32 %v1695, %v2258
    %v2299 = vsub.f32 %v1854, %v2259
    %v2300 = vsub.f32 %v1856, %v2260
    %v2301 = vsub.f32 %v2015, %v2261
    %v2302 = vsub.f32 %v2017, %v2262
    %v2303 = vsub.f32 %v1538, %v2255
    %v2304 = vsub.f32 %v1540, %v2256
    %v2305 = vsub.f32 %v1699, %v2257
    %v2306 = vsub.f32 %v1701, %v2258
    %v2307 = vsub.f32 %v1860, %v2259
    %v2308 = vsub.f32 %v1862, %v2260
    %v2309 = vsub.f32 %v2021, %v2261
    %v2310 = vsub.f32 %v2023, %v2262
    %v2311 = vsub.f32 %v1544, %v2255
    %v2312 = vsub.f32 %v1546, %v2256
    %v2313 = vsub.f32 %v1705, %v2257
    %v2314 = vsub.f32 %v1707, %v2258
    %v2315 = vsub.f32 %v1866, %v2259
    %v2316 = vsub.f32 %v1868, %v2260
    %v2317 = vsub.f32 %v2027, %v2261
    %v2318 = vsub.f32 %v2029, %v2262
    %v2319 = vsub.f32 %v1550, %v2255
    %v2320 = vsub.f32 %v1552, %v2256
    %v2321 = vsub.f32 %v1711, %v2257
    %v2322 = vsub.f32 %v1713, %v2258
    %v2323 = vsub.f32 %v1872, %v2259
    %v2324 = vsub.f32 %v1874, %v2260
    %v2325 = vsub.f32 %v2033, %v2261
    %v2326 = vsub.f32 %v2035, %v2262
    %v2327 = vsub.f32 %v1556, %v2255
    %v2328 = vsub.f32 %v1558, %v2256
    %v2329 = vsub.f32 %v1717, %v2257
    %v2330 = vsub.f32 %v1719, %v2258
    %v2331 = vsub.f32 %v1878, %v2259
    %v2332 = vsub.f32 %v1880, %v2260
    %v2333 = vsub.f32 %v2039, %v2261
    %v2334 = vsub.f32 %v2041, %v2262
    %v2335 = vsub.f32 %v1562, %v2255
    %v2336 = vsub.f32 %v1564, %v2256
    %v2337 = vsub.f32 %v1723, %v2257
    %v2338 = vsub.f32 %v1725, %v2258
    %v2339 = vsub.f32 %v1884, %v2259
    %v2340 = vsub.f32 %v1886, %v2260
    %v2341 = vsub.f32 %v2045, %v2261
    %v2342 = vsub.f32 %v2047, %v2262
    %v2343 = vsub.f32 %v1568, %v2255
    %v2344 = vsub.f32 %v1570, %v2256
    %v2345 = vsub.f32 %v1729, %v2257
    %v2346 = vsub.f32 %v1731, %v2258
    %v2347 = vsub.f32 %v1890, %v2259
    %v2348 = vsub.f32 %v1892, %v2260
    %v2349 = vsub.f32 %v2051, %v2261
    %v2350 = vsub.f32 %v2053, %v2262
    %v2351 = vsub.f32 %v1574, %v2255
    %v2352 = vsub.f32 %v1576, %v2256
    %v2353 = vsub.f32 %v1735, %v2257
    %v2354 = vsub.f32 %v1737, %v2258
    %v2355 = vsub.f32 %v1896, %v2259
    %v2356 = vsub.f32 %v1898, %v2260
    %v2357 = vsub.f32 %v2057, %v2261
    %v2358 = vsub.f32 %v2059, %v2262
    %v2359 = vsub.f32 %v1580, %v2255
    %v2360 = vsub.f32 %v1582, %v2256
    %v2361 = vsub.f32 %v1741, %v2257
    %v2362 = vsub.f32 %v1743, %v2258
    %v2363 = vsub.f32 %v1902, %v2259
    %v2364 = vsub.f32 %v1904, %v2260
    %v2365 = vsub.f32 %v2063, %v2261
    %v2366 = vsub.f32 %v2065, %v2262
    %v2367 = vsub.f32 %v1586, %v2255
    %v2368 = vsub.f32 %v1588, %v2256
    %v2369 = vsub.f32 %v1747, %v2257
    %v2370 = vsub.f32 %v1749, %v2258
    %v2371 = vsub.f32 %v1908, %v2259
    %v2372 = vsub.f32 %v1910, %v2260
    %v2373 = vsub.f32 %v2069, %v2261
    %v2374 = vsub.f32 %v2071, %v2262
    %v2375 = vsub.f32 %v1592, %v2255
    %v2376 = vsub.f32 %v1594, %v2256
    %v2377 = vsub.f32 %v1753, %v2257
    %v2378 = vsub.f32 %v1755, %v2258
    %v2379 = vsub.f32 %v1914, %v2259
    %v2380 = vsub.f32 %v1916, %v2260
    %v2381 = vsub.f32 %v2075, %v2261
    %v2382 = vsub.f32 %v2077, %v2262
    %v2383 = vsub.f32 %v1598, %v2255
    %v2384 = vsub.f32 %v1600, %v2256
    %v2385 = vsub.f32 %v1759, %v2257
    %v2386 = vsub.f32 %v1761, %v2258
    %v2387 = vsub.f32 %v1920, %v2259
    %v2388 = vsub.f32 %v1922, %v2260
    %v2389 = vsub.f32 %v2081, %v2261
    %v2390 = vsub.f32 %v2083, %v2262
    %v2391 = vmul.f32 %v2263, %v2263
    %v2392 = vmul.f32 %v2264, %v2264
    %v2393 = vmul.f32 %v2265, %v2265
    %v2394 = vmul.f32 %v2266, %v2266
    %v2395 = vmul.f32 %v2267, %v2267
    %v2396 = vmul.f32 %v2268, %v2268
    %v2397 = vmul.f32 %v2269, %v2269
    %v2398 = vmul.f32 %v2270, %v2270
    %v2399 = vmul.f32 %v2271, %v2271
    %v2400 = vmul.f32 %v2272, %v2272
    %v2401 = vmul.f32 %v2273, %v2273
    %v2402 = vmul.f32 %v2274, %v2274
    %v2403 = vmul.f32 %v2275, %v2275
    %v2404 = vmul.f32 %v2276, %v2276
    %v2405 = vmul.f32 %v2277, %v2277
    %v2406 = vmul.f32 %v2278, %v2278
    %v2407 = vmul.f32 %v2279, %v2279
    %v2408 = vmul.f32 %v2280, %v2280
    %v2409 = vmul.f32 %v2281, %v2281
    %v2410 = vmul.f32 %v2282, %v2282
    %v2411 = vmul.f32 %v2283, %v2283
    %v2412 = vmul.f32 %v2284, %v2284
    %v2413 = vmul.f32 %v2285, %v2285
    %v2414 = vmul.f32 %v2286, %v2286
    %v2415 = vmul.f32 %v2287, %v2287
    %v2416 = vmul.f32 %v2288, %v2288
    %v2417 = vmul.f32 %v2289, %v2289
    %v2418 = vmul.f32 %v2290, %v2290
    %v2419 = vmul.f32 %v2291, %v2291
    %v2420 = vmul.f32 %v2292, %v2292
    %v2421 = vmul.f32 %v2293, %v2293
    %v2422 = vmul.f32 %v2294, %v2294
    %v2423 = vmul.f32 %v2295, %v2295
    %v2424 = vmul.f32 %v2296, %v2296
    %v2425 = vmul.f32 %v2297, %v2297
    %v2426 = vmul.f32 %v2298, %v2298
    %v2427 = vmul.f32 %v2299, %v2299
    %v2428 = vmul.f32 %v2300, %v2300
    %v2429 = vmul.f32 %v2301, %v2301
    %v2430 = vmul.f32 %v2302, %v2302
    %v2431 = vmul.f32 %v2303, %v2303
    %v2432 = vmul.f32 %v2304, %v2304
    %v2433 = vmul.f32 %v2305, %v2305
    %v2434 = vmul.f32 %v2306, %v2306
    %v2435 = vmul.f32 %v2307, %v2307
    %v2436 = vmul.f32 %v2308, %v2308
    %v2437 = vmul.f32 %v2309, %v2309
    %v2438 = vmul.f32 %v2310, %v2310
    %v2439 = vmul.f32 %v2311, %v2311
    %v2440 = vmul.f32 %v2312, %v2312
    %v2441 = vmul.f32 %v2313, %v2313
    %v2442 = vmul.f32 %v2314, %v2314
    %v2443 = vmul.f32 %v2315, %v2315
    %v2444 = vmul.f32 %v2316, %v2316
    %v2445 = vmul.f32 %v2317, %v2317
    %v2446 = vmul.f32 %v2318, %v2318
    %v2447 = vmul.f32 %v2319, %v2319
    %v2448 = vmul.f32 %v2320, %v2320
    %v2449 = vmul.f32 %v2321, %v2321
    %v2450 = vmul.f32 %v2322, %v2322
    %v2451 = vmul.f32 %v2323, %v2323
    %v2452 = vmul.f32 %v2324, %v2324
    %v2453 = vmul.f32 %v2325, %v2325
    %v2454 = vmul.f32 %v2326, %v2326
    %v2455 = vmul.f32 %v2327, %v2327
    %v2456 = vmul.f32 %v2328, %v2328
    %v2457 = vmul.f32 %v2329, %v2329
    %v2458 = vmul.f32 %v2330, %v2330
    %v2459 = vmul.f32 %v2331, %v2331
    %v2460 = vmul.f32 %v2332, %v2332
    %v2461 = vmul.f32 %v2333, %v2333
    %v2462 = vmul.f32 %v2334, %v2334
    %v2463 = vmul.f32 %v2335, %v2335
    %v2464 = vmul.f32 %v2336, %v2336
    %v2465 = vmul.f32 %v2337, %v2337
    %v2466 = vmul.f32 %v2338, %v2338
    %v2467 = vmul.f32 %v2339, %v2339
    %v2468 = vmul.f32 %v2340, %v2340
    %v2469 = vmul.f32 %v2341, %v2341
    %v2470 = vmul.f32 %v2342, %v2342
    %v2471 = vmul.f32 %v2343, %v2343
    %v2472 = vmul.f32 %v2344, %v2344
    %v2473 = vmul.f32 %v2345, %v2345
    %v2474 = vmul.f32 %v2346, %v2346
    %v2475 = vmul.f32 %v2347, %v2347
    %v2476 = vmul.f32 %v2348, %v2348
    %v2477 = vmul.f32 %v2349, %v2349
    %v2478 = vmul.f32 %v2350, %v2350
    %v2479 = vmul.f32 %v2351, %v2351
    %v2480 = vmul.f32 %v2352, %v2352
    %v2481 = vmul.f32 %v2353, %v2353
    %v2482 = vmul.f32 %v2354, %v2354
    %v2483 = vmul.f32 %v2355, %v2355
    %v2484 = vmul.f32 %v2356, %v2356
    %v2485 = vmul.f32 %v2357, %v2357
    %v2486 = vmul.f32 %v2358, %v2358
    %v2487 = vmul.f32 %v2359, %v2359
    %v2488 = vmul.f32 %v2360, %v2360
    %v2489 = vmul.f32 %v2361, %v2361
    %v2490 = vmul.f32 %v2362, %v2362
    %v2491 = vmul.f32 %v2363, %v2363
    %v2492 = vmul.f32 %v2364, %v2364
    %v2493 = vmul.f32 %v2365, %v2365
    %v2494 = vmul.f32 %v2366, %v2366
    %v2495 = vmul.f32 %v2367, %v2367
    %v2496 = vmul.f32 %v2368, %v2368
    %v2497 = vmul.f32 %v2369, %v2369
    %v2498 = vmul.f32 %v2370, %v2370
    %v2499 = vmul.f32 %v2371, %v2371
    %v2500 = vmul.f32 %v2372, %v2372
    %v2501 = vmul.f32 %v2373, %v2373
    %v2502 = vmul.f32 %v2374, %v2374
    %v2503 = vmul.f32 %v2375, %v2375
    %v2504 = vmul.f32 %v2376, %v2376
    %v2505 = vmul.f32 %v2377, %v2377
    %v2506 = vmul.f32 %v2378, %v2378
    %v2507 = vmul.f32 %v2379, %v2379
    %v2508 = vmul.f32 %v2380, %v2380
    %v2509 = vmul.f32 %v2381, %v2381
    %v2510 = vmul.f32 %v2382, %v2382
    %v2511 = vmul.f32 %v2383, %v2383
    %v2512 = vmul.f32 %v2384, %v2384
    %v2513 = vmul.f32 %v2385, %v2385
    %v2514 = vmul.f32 %v2386, %v2386
    %v2515 = vmul.f32 %v2387, %v2387
    %v2516 = vmul.f32 %v2388, %v2388
    %v2517 = vmul.f32 %v2389, %v2389
    %v2518 = vmul.f32 %v2390, %v2390
    %v2519 = vadd.f32 %v2391, %v2399
    %v2520 = vadd.f32 %v2519, %v2407
    %v2521 = vadd.f32 %v2520, %v2415
    %v2522 = vadd.f32 %v2521, %v2423
    %v2523 = vadd.f32 %v2522, %v2431
    %v2524 = vadd.f32 %v2523, %v2439
    %v2525 = vadd.f32 %v2524, %v2447
    %v2526 = vadd.f32 %v2525, %v2455
    %v2527 = vadd.f32 %v2526, %v2463
    %v2528 = vadd.f32 %v2527, %v2471
    %v2529 = vadd.f32 %v2528, %v2479
    %v2530 = vadd.f32 %v2529, %v2487
    %v2531 = vadd.f32 %v2530, %v2495
    %v2532 = vadd.f32 %v2531, %v2503
    %v2533 = vadd.f32 %v2532, %v2511
    %v2534 = vrot.slane %v2533, 4
    %v2535 = vadd.f32 %v2533, %v2534
    %v2536 = vrot.slane %v2535, 2
    %v2537 = vadd.f32 %v2535, %v2536
    %v2538 = vrot.slane %v2537, 1
    %v2539 = vadd.f32 %v2537, %v2538
    %v2540 = vadd.f32 %v2392, %v2400
    %v2541 = vadd.f32 %v2540, %v2408
    %v2542 = vadd.f32 %v2541, %v2416
    %v2543 = vadd.f32 %v2542, %v2424
    %v2544 = vadd.f32 %v2543, %v2432
    %v2545 = vadd.f32 %v2544, %v2440
    %v2546 = vadd.f32 %v2545, %v2448
    %v2547 = vadd.f32 %v2546, %v2456
    %v2548 = vadd.f32 %v2547, %v2464
    %v2549 = vadd.f32 %v2548, %v2472
    %v2550 = vadd.f32 %v2549, %v2480
    %v2551 = vadd.f32 %v2550, %v2488
    %v2552 = vadd.f32 %v2551, %v2496
    %v2553 = vadd.f32 %v2552, %v2504
    %v2554 = vadd.f32 %v2553, %v2512
    %v2555 = vrot.slane %v2554, 4
    %v2556 = vadd.f32 %v2554, %v2555
    %v2557 = vrot.slane %v2556, 2
    %v2558 = vadd.f32 %v2556, %v2557
    %v2559 = vrot.slane %v2558, 1
    %v2560 = vadd.f32 %v2558, %v2559
    %v2561 = vadd.f32 %v2393, %v2401
    %v2562 = vadd.f32 %v2561, %v2409
    %v2563 = vadd.f32 %v2562, %v2417
    %v2564 = vadd.f32 %v2563, %v2425
    %v2565 = vadd.f32 %v2564, %v2433
    %v2566 = vadd.f32 %v2565, %v2441
    %v2567 = vadd.f32 %v2566, %v2449
    %v2568 = vadd.f32 %v2567, %v2457
    %v2569 = vadd.f32 %v2568, %v2465
    %v2570 = vadd.f32 %v2569, %v2473
    %v2571 = vadd.f32 %v2570, %v2481
    %v2572 = vadd.f32 %v2571, %v2489
    %v2573 = vadd.f32 %v2572, %v2497
    %v2574 = vadd.f32 %v2573, %v2505
    %v2575 = vadd.f32 %v2574, %v2513
    %v2576 = vrot.slane %v2575, 4
    %v2577 = vadd.f32 %v2575, %v2576
    %v2578 = vrot.slane %v2577, 2
    %v2579 = vadd.f32 %v2577, %v2578
    %v2580 = vrot.slane %v2579, 1
    %v2581 = vadd.f32 %v2579, %v2580
    %v2582 = vadd.f32 %v2394, %v2402
    %v2583 = vadd.f32 %v2582, %v2410
    %v2584 = vadd.f32 %v2583, %v2418
    %v2585 = vadd.f32 %v2584, %v2426
    %v2586 = vadd.f32 %v2585, %v2434
    %v2587 = vadd.f32 %v2586, %v2442
    %v2588 = vadd.f32 %v2587, %v2450
    %v2589 = vadd.f32 %v2588, %v2458
    %v2590 = vadd.f32 %v2589, %v2466
    %v2591 = vadd.f32 %v2590, %v2474
    %v2592 = vadd.f32 %v2591, %v2482
    %v2593 = vadd.f32 %v2592, %v2490
    %v2594 = vadd.f32 %v2593, %v2498
    %v2595 = vadd.f32 %v2594, %v2506
    %v2596 = vadd.f32 %v2595, %v2514
    %v2597 = vrot.slane %v2596, 4
    %v2598 = vadd.f32 %v2596, %v2597
    %v2599 = vrot.slane %v2598, 2
    %v2600 = vadd.f32 %v2598, %v2599
    %v2601 = vrot.slane %v2600, 1
    %v2602 = vadd.f32 %v2600, %v2601
    %v2603 = vadd.f32 %v2395, %v2403
    %v2604 = vadd.f32 %v2603, %v2411
    %v2605 = vadd.f32 %v2604, %v2419
    %v2606 = vadd.f32 %v2605, %v2427
    %v2607 = vadd.f32 %v2606, %v2435
    %v2608 = vadd.f32 %v2607, %v2443
    %v2609 = vadd.f32 %v2608, %v2451
    %v2610 = vadd.f32 %v2609, %v2459
    %v2611 = vadd.f32 %v2610, %v2467
    %v2612 = vadd.f32 %v2611, %v2475
    %v2613 = vadd.f32 %v2612, %v2483
    %v2614 = vadd.f32 %v2613, %v2491
    %v2615 = vadd.f32 %v2614, %v2499
    %v2616 = vadd.f32 %v2615, %v2507
    %v2617 = vadd.f32 %v2616, %v2515
    %v2618 = vrot.slane %v2617, 4
    %v2619 = vadd.f32 %v2617, %v2618
    %v2620 = vrot.slane %v2619, 2
    %v2621 = vadd.f32 %v2619, %v2620
    %v2622 = vrot.slane %v2621, 1
    %v2623 = vadd.f32 %v2621, %v2622
    %v2624 = vadd.f32 %v2396, %v2404
    %v2625 = vadd.f32 %v2624, %v2412
    %v2626 = vadd.f32 %v2625, %v2420
    %v2627 = vadd.f32 %v2626, %v2428
    %v2628 = vadd.f32 %v2627, %v2436
    %v2629 = vadd.f32 %v2628, %v2444
    %v2630 = vadd.f32 %v2629, %v2452
    %v2631 = vadd.f32 %v2630, %v2460
    %v2632 = vadd.f32 %v2631, %v2468
    %v2633 = vadd.f32 %v2632, %v2476
    %v2634 = vadd.f32 %v2633, %v2484
    %v2635 = vadd.f32 %v2634, %v2492
    %v2636 = vadd.f32 %v2635, %v2500
    %v2637 = vadd.f32 %v2636, %v2508
    %v2638 = vadd.f32 %v2637, %v2516
    %v2639 = vrot.slane %v2638, 4
    %v2640 = vadd.f32 %v2638, %v2639
    %v2641 = vrot.slane %v2640, 2
    %v2642 = vadd.f32 %v2640, %v2641
    %v2643 = vrot.slane %v2642, 1
    %v2644 = vadd.f32 %v2642, %v2643
    %v2645 = vadd.f32 %v2397, %v2405
    %v2646 = vadd.f32 %v2645, %v2413
    %v2647 = vadd.f32 %v2646, %v2421
    %v2648 = vadd.f32 %v2647, %v2429
    %v2649 = vadd.f32 %v2648, %v2437
    %v2650 = vadd.f32 %v2649, %v2445
    %v2651 = vadd.f32 %v2650, %v2453
    %v2652 = vadd.f32 %v2651, %v2461
    %v2653 = vadd.f32 %v2652, %v2469
    %v2654 = vadd.f32 %v2653, %v2477
    %v2655 = vadd.f32 %v2654, %v2485
    %v2656 = vadd.f32 %v2655, %v2493
    %v2657 = vadd.f32 %v2656, %v2501
    %v2658 = vadd.f32 %v2657, %v2509
    %v2659 = vadd.f32 %v2658, %v2517
    %v2660 = vrot.slane %v2659, 4
    %v2661 = vadd.f32 %v2659, %v2660
    %v2662 = vrot.slane %v2661, 2
    %v2663 = vadd.f32 %v2661, %v2662
    %v2664 = vrot.slane %v2663, 1
    %v2665 = vadd.f32 %v2663, %v2664
    %v2666 = vadd.f32 %v2398, %v2406
    %v2667 = vadd.f32 %v2666, %v2414
    %v2668 = vadd.f32 %v2667, %v2422
    %v2669 = vadd.f32 %v2668, %v2430
    %v2670 = vadd.f32 %v2669, %v2438
    %v2671 = vadd.f32 %v2670, %v2446
    %v2672 = vadd.f32 %v2671, %v2454
    %v2673 = vadd.f32 %v2672, %v2462
    %v2674 = vadd.f32 %v2673, %v2470
    %v2675 = vadd.f32 %v2674, %v2478
    %v2676 = vadd.f32 %v2675, %v2486
    %v2677 = vadd.f32 %v2676, %v2494
    %v2678 = vadd.f32 %v2677, %v2502
    %v2679 = vadd.f32 %v2678, %v2510
    %v2680 = vadd.f32 %v2679, %v2518
    %v2681 = vrot.slane %v2680, 4
    %v2682 = vadd.f32 %v2680, %v2681
    %v2683 = vrot.slane %v2682, 2
    %v2684 = vadd.f32 %v2682, %v2683
    %v2685 = vrot.slane %v2684, 1
    %v2686 = vadd.f32 %v2684, %v2685
    %v2687 = vmul.f32 %v2539, %v385
    %v2688 = vmul.f32 %v2560, %v385
    %v2689 = vmul.f32 %v2581, %v385
    %v2690 = vmul.f32 %v2602, %v385
    %v2691 = vmul.f32 %v2623, %v385
    %v2692 = vmul.f32 %v2644, %v385
    %v2693 = vmul.f32 %v2665, %v385
    %v2694 = vmul.f32 %v2686, %v385
    %v2695 = vadd.f32 %v2687, 1e-05
    %v2696 = vadd.f32 %v2688, 1e-05
    %v2697 = vadd.f32 %v2689, 1e-05
    %v2698 = vadd.f32 %v2690, 1e-05
    %v2699 = vadd.f32 %v2691, 1e-05
    %v2700 = vadd.f32 %v2692, 1e-05
    %v2701 = vadd.f32 %v2693, 1e-05
    %v2702 = vadd.f32 %v2694, 1e-05
    %v2703 = vrsqrt.pop %v2695
    %v2704 = vmul.f32 %v2695, %v2703
    %vm2705 = vcmp.eq.f32.partialorder %v2695, inf
    %v2706 = vsel %vm2705, %v2695, %v2704
    %vm2707 = vcmp.eq.f32.partialorder %v2695, 0.0
    %v2708 = vand.u32 %v2695, 2147483648
    %v2709 = vsel %vm2707, %v2708, %v2706
    %v2710 = vrsqrt.pop %v2696
    %v2711 = vmul.f32 %v2696, %v2710
    %vm2712 = vcmp.eq.f32.partialorder %v2696, inf
    %v2713 = vsel %vm2712, %v2696, %v2711
    %vm2714 = vcmp.eq.f32.partialorder %v2696, 0.0
    %v2715 = vand.u32 %v2696, 2147483648
    %v2716 = vsel %vm2714, %v2715, %v2713
    %v2717 = vrsqrt.pop %v2697
    %v2718 = vmul.f32 %v2697, %v2717
    %vm2719 = vcmp.eq.f32.partialorder %v2697, inf
    %v2720 = vsel %vm2719, %v2697, %v2718
    %vm2721 = vcmp.eq.f32.partialorder %v2697, 0.0
    %v2722 = vand.u32 %v2697, 2147483648
    %v2723 = vsel %vm2721, %v2722, %v2720
    %v2724 = vrsqrt.pop %v2698
    %v2725 = vmul.f32 %v2698, %v2724
    %vm2726 = vcmp.eq.f32.partialorder %v2698, inf
    %v2727 = vsel %vm2726, %v2698, %v2725
    %vm2728 = vcmp.eq.f32.partialorder %v2698, 0.0
    %v2729 = vand.u32 %v2698, 2147483648
    %v2730 = vsel %vm2728, %v2729, %v2727
    %v2731 = vrsqrt.pop %v2699
    %v2732 = vmul.f32 %v2699, %v2731
    %vm2733 = vcmp.eq.f32.partialorder %v2699, inf
    %v2734 = vsel %vm2733, %v2699, %v2732
    %vm2735 = vcmp.eq.f32.partialorder %v2699, 0.0
    %v2736 = vand.u32 %v2699, 2147483648
    %v2737 = vsel %vm2735, %v2736, %v2734
    %v2738 = vrsqrt.pop %v2700
    %v2739 = vmul.f32 %v2700, %v2738
    %vm2740 = vcmp.eq.f32.partialorder %v2700, inf
    %v2741 = vsel %vm2740, %v2700, %v2739
    %vm2742 = vcmp.eq.f32.partialorder %v2700, 0.0
    %v2743 = vand.u32 %v2700, 2147483648
    %v2744 = vsel %vm2742, %v2743, %v2741
    %v2745 = vrsqrt.pop %v2701
    %v2746 = vmul.f32 %v2701, %v2745
    %vm2747 = vcmp.eq.f32.partialorder %v2701, inf
    %v2748 = vsel %vm2747, %v2701, %v2746
    %vm2749 = vcmp.eq.f32.partialorder %v2701, 0.0
    %v2750 = vand.u32 %v2701, 2147483648
    %v2751 = vsel %vm2749, %v2750, %v2748
    %v2752 = vrsqrt.pop %v2702
    %v2753 = vmul.f32 %v2702, %v2752
    %vm2754 = vcmp.eq.f32.partialorder %v2702, inf
    %v2755 = vsel %vm2754, %v2702, %v2753
    %vm2756 = vcmp.eq.f32.partialorder %v2702, 0.0
    %v2757 = vand.u32 %v2702, 2147483648
    %v2758 = vsel %vm2756, %v2757, %v2755
    %v2767 = vcombine.low %v2709, %v2716
    %v2768 = vcombine.low %v2723, %v2730
    %v2769 = vcombine.low %v2737, %v2744
    %v2770 = vcombine.low %v2751, %v2758
    %v2772 = vunpack.c.l.s4 1966171168
    %v2773 = vunpack.c.0.s8 %v2772
    %v2774 = vlaneseq
    %v2775 = vshrl.u32 %v2774, 7
    %v2776 = vsub.s32 %v2773, %v2775
    %v2777 = vrot.slane %v2767, %v2776
    %v2779 = vunpack.c.l.s4 1966171168
    %v2780 = vunpack.c.0.s8 %v2779
    %v2781 = vlaneseq
    %v2782 = vshrl.u32 %v2781, 7
    %v2783 = vsub.s32 %v2780, %v2782
    %v2784 = vrot.slane %v2768, %v2783
    %v2786 = vunpack.c.l.s4 1966171168
    %v2787 = vunpack.c.0.s8 %v2786
    %v2788 = vlaneseq
    %v2789 = vshrl.u32 %v2788, 7
    %v2790 = vsub.s32 %v2787, %v2789
    %v2791 = vrot.slane %v2769, %v2790
    %v2793 = vunpack.c.l.s4 1966171168
    %v2794 = vunpack.c.0.s8 %v2793
    %v2795 = vlaneseq
    %v2796 = vshrl.u32 %v2795, 7
    %v2797 = vsub.s32 %v2794, %v2796
    %v2798 = vrot.slane %v2770, %v2797
    %v2799 = vcombine.low %v2777, %v2784
    %v2800 = vcombine.low %v2791, %v2798
    %v2802 = vunpack.c.l.s4 1966171168
    %v2803 = vunpack.c.0.s8 %v2802
    %v2804 = vlaneseq
    %v2805 = vshrl.u32 %v2804, 7
    %v2806 = vsub.s32 %v2803, %v2805
    %v2807 = vrot.slane %v2799, %v2806
    %v2809 = vunpack.c.l.s4 1966171168
    %v2810 = vunpack.c.0.s8 %v2809
    %v2811 = vlaneseq
    %v2812 = vshrl.u32 %v2811, 7
    %v2813 = vsub.s32 %v2810, %v2812
    %v2814 = vrot.slane %v2800, %v2813
    %v2815 = vcombine.low %v2807, %v2814
    %v2817 = vrcp.pop %v2815
    %v2818 = vmul.f32 %v2085, %v2817
    %v2820 = vlaneseq
    %v2821 = vshrl.u32 %v2820, 7
    %v2822 = vsub.s32 0, %v2821
    %v2823 = vrot.slane %v2818, %v2822
    %v2824 = vlaneseq
    %v2825 = vshrl.u32 %v2824, 7
    %v2826 = vsub.s32 1, %v2825
    %v2827 = vrot.slane %v2818, %v2826
    %v2828 = vlaneseq
    %v2829 = vshrl.u32 %v2828, 7
    %v2830 = vsub.s32 2, %v2829
    %v2831 = vrot.slane %v2818, %v2830
    %v2832 = vlaneseq
    %v2833 = vshrl.u32 %v2832, 7
    %v2834 = vsub.s32 3, %v2833
    %v2835 = vrot.slane %v2818, %v2834
    %v2836 = vlaneseq
    %v2837 = vshrl.u32 %v2836, 7
    %v2838 = vsub.s32 4, %v2837
    %v2839 = vrot.slane %v2818, %v2838
    %v2840 = vlaneseq
    %v2841 = vshrl.u32 %v2840, 7
    %v2842 = vsub.s32 5, %v2841
    %v2843 = vrot.slane %v2818, %v2842
    %v2844 = vlaneseq
    %v2845 = vshrl.u32 %v2844, 7
    %v2846 = vsub.s32 6, %v2845
    %v2847 = vrot.slane %v2818, %v2846
    %v2848 = vlaneseq
    %v2849 = vshrl.u32 %v2848, 7
    %v2850 = vsub.s32 7, %v2849
    %v2851 = vrot.slane %v2818, %v2850
    %v2860 = vmul.f32 %v2263, %v2823
    %v2861 = vmul.f32 %v2264, %v2827
    %v2862 = vmul.f32 %v2265, %v2831
    %v2863 = vmul.f32 %v2266, %v2835
    %v2864 = vmul.f32 %v2267, %v2839
    %v2865 = vmul.f32 %v2268, %v2843
    %v2866 = vmul.f32 %v2269, %v2847
    %v2867 = vmul.f32 %v2270, %v2851
    %v2868 = vmul.f32 %v2271, %v2823
    %v2869 = vmul.f32 %v2272, %v2827
    %v2870 = vmul.f32 %v2273, %v2831
    %v2871 = vmul.f32 %v2274, %v2835
    %v2872 = vmul.f32 %v2275, %v2839
    %v2873 = vmul.f32 %v2276, %v2843
    %v2874 = vmul.f32 %v2277, %v2847
    %v2875 = vmul.f32 %v2278, %v2851
    %v2876 = vmul.f32 %v2279, %v2823
    %v2877 = vmul.f32 %v2280, %v2827
    %v2878 = vmul.f32 %v2281, %v2831
    %v2879 = vmul.f32 %v2282, %v2835
    %v2880 = vmul.f32 %v2283, %v2839
    %v2881 = vmul.f32 %v2284, %v2843
    %v2882 = vmul.f32 %v2285, %v2847
    %v2883 = vmul.f32 %v2286, %v2851
    %v2884 = vmul.f32 %v2287, %v2823
    %v2885 = vmul.f32 %v2288, %v2827
    %v2886 = vmul.f32 %v2289, %v2831
    %v2887 = vmul.f32 %v2290, %v2835
    %v2888 = vmul.f32 %v2291, %v2839
    %v2889 = vmul.f32 %v2292, %v2843
    %v2890 = vmul.f32 %v2293, %v2847
    %v2891 = vmul.f32 %v2294, %v2851
    %v2892 = vmul.f32 %v2295, %v2823
    %v2893 = vmul.f32 %v2296, %v2827
    %v2894 = vmul.f32 %v2297, %v2831
    %v2895 = vmul.f32 %v2298, %v2835
    %v2896 = vmul.f32 %v2299, %v2839
    %v2897 = vmul.f32 %v2300, %v2843
    %v2898 = vmul.f32 %v2301, %v2847
    %v2899 = vmul.f32 %v2302, %v2851
    %v2900 = vmul.f32 %v2303, %v2823
    %v2901 = vmul.f32 %v2304, %v2827
    %v2902 = vmul.f32 %v2305, %v2831
    %v2903 = vmul.f32 %v2306, %v2835
    %v2904 = vmul.f32 %v2307, %v2839
    %v2905 = vmul.f32 %v2308, %v2843
    %v2906 = vmul.f32 %v2309, %v2847
    %v2907 = vmul.f32 %v2310, %v2851
    %v2908 = vmul.f32 %v2311, %v2823
    %v2909 = vmul.f32 %v2312, %v2827
    %v2910 = vmul.f32 %v2313, %v2831
    %v2911 = vmul.f32 %v2314, %v2835
    %v2912 = vmul.f32 %v2315, %v2839
    %v2913 = vmul.f32 %v2316, %v2843
    %v2914 = vmul.f32 %v2317, %v2847
    %v2915 = vmul.f32 %v2318, %v2851
    %v2916 = vmul.f32 %v2319, %v2823
    %v2917 = vmul.f32 %v2320, %v2827
    %v2918 = vmul.f32 %v2321, %v2831
    %v2919 = vmul.f32 %v2322, %v2835
    %v2920 = vmul.f32 %v2323, %v2839
    %v2921 = vmul.f32 %v2324, %v2843
    %v2922 = vmul.f32 %v2325, %v2847
    %v2923 = vmul.f32 %v2326, %v2851
    %v2924 = vmul.f32 %v2327, %v2823
    %v2925 = vmul.f32 %v2328, %v2827
    %v2926 = vmul.f32 %v2329, %v2831
    %v2927 = vmul.f32 %v2330, %v2835
    %v2928 = vmul.f32 %v2331, %v2839
    %v2929 = vmul.f32 %v2332, %v2843
    %v2930 = vmul.f32 %v2333, %v2847
    %v2931 = vmul.f32 %v2334, %v2851
    %v2932 = vmul.f32 %v2335, %v2823
    %v2933 = vmul.f32 %v2336, %v2827
    %v2934 = vmul.f32 %v2337, %v2831
    %v2935 = vmul.f32 %v2338, %v2835
    %v2936 = vmul.f32 %v2339, %v2839
    %v2937 = vmul.f32 %v2340, %v2843
    %v2938 = vmul.f32 %v2341, %v2847
    %v2939 = vmul.f32 %v2342, %v2851
    %v2940 = vmul.f32 %v2343, %v2823
    %v2941 = vmul.f32 %v2344, %v2827
    %v2942 = vmul.f32 %v2345, %v2831
    %v2943 = vmul.f32 %v2346, %v2835
    %v2944 = vmul.f32 %v2347, %v2839
    %v2945 = vmul.f32 %v2348, %v2843
    %v2946 = vmul.f32 %v2349, %v2847
    %v2947 = vmul.f32 %v2350, %v2851
    %v2948 = vmul.f32 %v2351, %v2823
    %v2949 = vmul.f32 %v2352, %v2827
    %v2950 = vmul.f32 %v2353, %v2831
    %v2951 = vmul.f32 %v2354, %v2835
    %v2952 = vmul.f32 %v2355, %v2839
    %v2953 = vmul.f32 %v2356, %v2843
    %v2954 = vmul.f32 %v2357, %v2847
    %v2955 = vmul.f32 %v2358, %v2851
    %v2956 = vmul.f32 %v2359, %v2823
    %v2957 = vmul.f32 %v2360, %v2827
    %v2958 = vmul.f32 %v2361, %v2831
    %v2959 = vmul.f32 %v2362, %v2835
    %v2960 = vmul.f32 %v2363, %v2839
    %v2961 = vmul.f32 %v2364, %v2843
    %v2962 = vmul.f32 %v2365, %v2847
    %v2963 = vmul.f32 %v2366, %v2851
    %v2964 = vmul.f32 %v2367, %v2823
    %v2965 = vmul.f32 %v2368, %v2827
    %v2966 = vmul.f32 %v2369, %v2831
    %v2967 = vmul.f32 %v2370, %v2835
    %v2968 = vmul.f32 %v2371, %v2839
    %v2969 = vmul.f32 %v2372, %v2843
    %v2970 = vmul.f32 %v2373, %v2847
    %v2971 = vmul.f32 %v2374, %v2851
    %v2972 = vmul.f32 %v2375, %v2823
    %v2973 = vmul.f32 %v2376, %v2827
    %v2974 = vmul.f32 %v2377, %v2831
    %v2975 = vmul.f32 %v2378, %v2835
    %v2976 = vmul.f32 %v2379, %v2839
    %v2977 = vmul.f32 %v2380, %v2843
    %v2978 = vmul.f32 %v2381, %v2847
    %v2979 = vmul.f32 %v2382, %v2851
    %v2980 = vmul.f32 %v2383, %v2823
    %v2981 = vmul.f32 %v2384, %v2827
    %v2982 = vmul.f32 %v2385, %v2831
    %v2983 = vmul.f32 %v2386, %v2835
    %v2984 = vmul.f32 %v2387, %v2839
    %v2985 = vmul.f32 %v2388, %v2843
    %v2986 = vmul.f32 %v2389, %v2847
    %v2987 = vmul.f32 %v2390, %v2851
    %v2989 = vlaneseq
    %v2990 = vshrl.u32 %v2989, 7
    %v2991 = vsub.s32 0, %v2990
    %v2992 = vrot.slane %v2086, %v2991
    %v2993 = vlaneseq
    %v2994 = vshrl.u32 %v2993, 7
    %v2995 = vsub.s32 1, %v2994
    %v2996 = vrot.slane %v2086, %v2995
    %v2997 = vlaneseq
    %v2998 = vshrl.u32 %v2997, 7
    %v2999 = vsub.s32 2, %v2998
    %v3000 = vrot.slane %v2086, %v2999
    %v3001 = vlaneseq
    %v3002 = vshrl.u32 %v3001, 7
    %v3003 = vsub.s32 3, %v3002
    %v3004 = vrot.slane %v2086, %v3003
    %v3005 = vlaneseq
    %v3006 = vshrl.u32 %v3005, 7
    %v3007 = vsub.s32 4, %v3006
    %v3008 = vrot.slane %v2086, %v3007
    %v3009 = vlaneseq
    %v3010 = vshrl.u32 %v3009, 7
    %v3011 = vsub.s32 5, %v3010
    %v3012 = vrot.slane %v2086, %v3011
    %v3013 = vlaneseq
    %v3014 = vshrl.u32 %v3013, 7
    %v3015 = vsub.s32 6, %v3014
    %v3016 = vrot.slane %v2086, %v3015
    %v3017 = vlaneseq
    %v3018 = vshrl.u32 %v3017, 7
    %v3019 = vsub.s32 7, %v3018
    %v3020 = vrot.slane %v2086, %v3019
    %v3029 = vadd.f32 %v2860, %v2992
    %v3030 = vadd.f32 %v2861, %v2996
    %v3031 = vadd.f32 %v2862, %v3000
    %v3032 = vadd.f32 %v2863, %v3004
    %v3033 = vadd.f32 %v2864, %v3008
    %v3034 = vadd.f32 %v2865, %v3012
    %v3035 = vadd.f32 %v2866, %v3016
    %v3036 = vadd.f32 %v2867, %v3020
    %v3037 = vadd.f32 %v2868, %v2992
    %v3038 = vadd.f32 %v2869, %v2996
    %v3039 = vadd.f32 %v2870, %v3000
    %v3040 = vadd.f32 %v2871, %v3004
    %v3041 = vadd.f32 %v2872, %v3008
    %v3042 = vadd.f32 %v2873, %v3012
    %v3043 = vadd.f32 %v2874, %v3016
    %v3044 = vadd.f32 %v2875, %v3020
    %v3045 = vadd.f32 %v2876, %v2992
    %v3046 = vadd.f32 %v2877, %v2996
    %v3047 = vadd.f32 %v2878, %v3000
    %v3048 = vadd.f32 %v2879, %v3004
    %v3049 = vadd.f32 %v2880, %v3008
    %v3050 = vadd.f32 %v2881, %v3012
    %v3051 = vadd.f32 %v2882, %v3016
    %v3052 = vadd.f32 %v2883, %v3020
    %v3053 = vadd.f32 %v2884, %v2992
    %v3054 = vadd.f32 %v2885, %v2996
    %v3055 = vadd.f32 %v2886, %v3000
    %v3056 = vadd.f32 %v2887, %v3004
    %v3057 = vadd.f32 %v2888, %v3008
    %v3058 = vadd.f32 %v2889, %v3012
    %v3059 = vadd.f32 %v2890, %v3016
    %v3060 = vadd.f32 %v2891, %v3020
    %v3061 = vadd.f32 %v2892, %v2992
    %v3062 = vadd.f32 %v2893, %v2996
    %v3063 = vadd.f32 %v2894, %v3000
    %v3064 = vadd.f32 %v2895, %v3004
    %v3065 = vadd.f32 %v2896, %v3008
    %v3066 = vadd.f32 %v2897, %v3012
    %v3067 = vadd.f32 %v2898, %v3016
    %v3068 = vadd.f32 %v2899, %v3020
    %v3069 = vadd.f32 %v2900, %v2992
    %v3070 = vadd.f32 %v2901, %v2996
    %v3071 = vadd.f32 %v2902, %v3000
    %v3072 = vadd.f32 %v2903, %v3004
    %v3073 = vadd.f32 %v2904, %v3008
    %v3074 = vadd.f32 %v2905, %v3012
    %v3075 = vadd.f32 %v2906, %v3016
    %v3076 = vadd.f32 %v2907, %v3020
    %v3077 = vadd.f32 %v2908, %v2992
    %v3078 = vadd.f32 %v2909, %v2996
    %v3079 = vadd.f32 %v2910, %v3000
    %v3080 = vadd.f32 %v2911, %v3004
    %v3081 = vadd.f32 %v2912, %v3008
    %v3082 = vadd.f32 %v2913, %v3012
    %v3083 = vadd.f32 %v2914, %v3016
    %v3084 = vadd.f32 %v2915, %v3020
    %v3085 = vadd.f32 %v2916, %v2992
    %v3086 = vadd.f32 %v2917, %v2996
    %v3087 = vadd.f32 %v2918, %v3000
    %v3088 = vadd.f32 %v2919, %v3004
    %v3089 = vadd.f32 %v2920, %v3008
    %v3090 = vadd.f32 %v2921, %v3012
    %v3091 = vadd.f32 %v2922, %v3016
    %v3092 = vadd.f32 %v2923, %v3020
    %v3093 = vadd.f32 %v2924, %v2992
    %v3094 = vadd.f32 %v2925, %v2996
    %v3095 = vadd.f32 %v2926, %v3000
    %v3096 = vadd.f32 %v2927, %v3004
    %v3097 = vadd.f32 %v2928, %v3008
    %v3098 = vadd.f32 %v2929, %v3012
    %v3099 = vadd.f32 %v2930, %v3016
    %v3100 = vadd.f32 %v2931, %v3020
    %v3101 = vadd.f32 %v2932, %v2992
    %v3102 = vadd.f32 %v2933, %v2996
    %v3103 = vadd.f32 %v2934, %v3000
    %v3104 = vadd.f32 %v2935, %v3004
    %v3105 = vadd.f32 %v2936, %v3008
    %v3106 = vadd.f32 %v2937, %v3012
    %v3107 = vadd.f32 %v2938, %v3016
    %v3108 = vadd.f32 %v2939, %v3020
    %v3109 = vadd.f32 %v2940, %v2992
    %v3110 = vadd.f32 %v2941, %v2996
    %v3111 = vadd.f32 %v2942, %v3000
    %v3112 = vadd.f32 %v2943, %v3004
    %v3113 = vadd.f32 %v2944, %v3008
    %v3114 = vadd.f32 %v2945, %v3012
    %v3115 = vadd.f32 %v2946, %v3016
    %v3116 = vadd.f32 %v2947, %v3020
    %v3117 = vadd.f32 %v2948, %v2992
    %v3118 = vadd.f32 %v2949, %v2996
    %v3119 = vadd.f32 %v2950, %v3000
    %v3120 = vadd.f32 %v2951, %v3004
    %v3121 = vadd.f32 %v2952, %v3008
    %v3122 = vadd.f32 %v2953, %v3012
    %v3123 = vadd.f32 %v2954, %v3016
    %v3124 = vadd.f32 %v2955, %v3020
    %v3125 = vadd.f32 %v2956, %v2992
    %v3126 = vadd.f32 %v2957, %v2996
    %v3127 = vadd.f32 %v2958, %v3000
    %v3128 = vadd.f32 %v2959, %v3004
    %v3129 = vadd.f32 %v2960, %v3008
    %v3130 = vadd.f32 %v2961, %v3012
    %v3131 = vadd.f32 %v2962, %v3016
    %v3132 = vadd.f32 %v2963, %v3020
    %v3133 = vadd.f32 %v2964, %v2992
    %v3134 = vadd.f32 %v2965, %v2996
    %v3135 = vadd.f32 %v2966, %v3000
    %v3136 = vadd.f32 %v2967, %v3004
    %v3137 = vadd.f32 %v2968, %v3008
    %v3138 = vadd.f32 %v2969, %v3012
    %v3139 = vadd.f32 %v2970, %v3016
    %v3140 = vadd.f32 %v2971, %v3020
    %v3141 = vadd.f32 %v2972, %v2992
    %v3142 = vadd.f32 %v2973, %v2996
    %v3143 = vadd.f32 %v2974, %v3000
    %v3144 = vadd.f32 %v2975, %v3004
    %v3145 = vadd.f32 %v2976, %v3008
    %v3146 = vadd.f32 %v2977, %v3012
    %v3147 = vadd.f32 %v2978, %v3016
    %v3148 = vadd.f32 %v2979, %v3020
    %v3149 = vadd.f32 %v2980, %v2992
    %v3150 = vadd.f32 %v2981, %v2996
    %v3151 = vadd.f32 %v2982, %v3000
    %v3152 = vadd.f32 %v2983, %v3004
    %v3153 = vadd.f32 %v2984, %v3008
    %v3154 = vadd.f32 %v2985, %v3012
    %v3155 = vadd.f32 %v2986, %v3016
    %v3156 = vadd.f32 %v2987, %v3020
    %v3157 = vmax.f32 %v3029, 0.0
    %v3158 = vmax.f32 %v3030, 0.0
    %v3159 = vmax.f32 %v3031, 0.0
    %v3160 = vmax.f32 %v3032, 0.0
    %v3161 = vmax.f32 %v3033, 0.0
    %v3162 = vmax.f32 %v3034, 0.0
    %v3163 = vmax.f32 %v3035, 0.0
    %v3164 = vmax.f32 %v3036, 0.0
    %v3165 = vmax.f32 %v3037, 0.0
    %v3166 = vmax.f32 %v3038, 0.0
    %v3167 = vmax.f32 %v3039, 0.0
    %v3168 = vmax.f32 %v3040, 0.0
    %v3169 = vmax.f32 %v3041, 0.0
    %v3170 = vmax.f32 %v3042, 0.0
    %v3171 = vmax.f32 %v3043, 0.0
    %v3172 = vmax.f32 %v3044, 0.0
    %v3173 = vmax.f32 %v3045, 0.0
    %v3174 = vmax.f32 %v3046, 0.0
    %v3175 = vmax.f32 %v3047, 0.0
    %v3176 = vmax.f32 %v3048, 0.0
    %v3177 = vmax.f32 %v3049, 0.0
    %v3178 = vmax.f32 %v3050, 0.0
    %v3179 = vmax.f32 %v3051, 0.0
    %v3180 = vmax.f32 %v3052, 0.0
    %v3181 = vmax.f32 %v3053, 0.0
    %v3182 = vmax.f32 %v3054, 0.0
    %v3183 = vmax.f32 %v3055, 0.0
    %v3184 = vmax.f32 %v3056, 0.0
    %v3185 = vmax.f32 %v3057, 0.0
    %v3186 = vmax.f32 %v3058, 0.0
    %v3187 = vmax.f32 %v3059, 0.0
    %v3188 = vmax.f32 %v3060, 0.0
    %v3189 = vmax.f32 %v3061, 0.0
    %v3190 = vmax.f32 %v3062, 0.0
    %v3191 = vmax.f32 %v3063, 0.0
    %v3192 = vmax.f32 %v3064, 0.0
    %v3193 = vmax.f32 %v3065, 0.0
    %v3194 = vmax.f32 %v3066, 0.0
    %v3195 = vmax.f32 %v3067, 0.0
    %v3196 = vmax.f32 %v3068, 0.0
    %v3197 = vmax.f32 %v3069, 0.0
    %v3198 = vmax.f32 %v3070, 0.0
    %v3199 = vmax.f32 %v3071, 0.0
    %v3200 = vmax.f32 %v3072, 0.0
    %v3201 = vmax.f32 %v3073, 0.0
    %v3202 = vmax.f32 %v3074, 0.0
    %v3203 = vmax.f32 %v3075, 0.0
    %v3204 = vmax.f32 %v3076, 0.0
    %v3205 = vmax.f32 %v3077, 0.0
    %v3206 = vmax.f32 %v3078, 0.0
    %v3207 = vmax.f32 %v3079, 0.0
    %v3208 = vmax.f32 %v3080, 0.0
    %v3209 = vmax.f32 %v3081, 0.0
    %v3210 = vmax.f32 %v3082, 0.0
    %v3211 = vmax.f32 %v3083, 0.0
    %v3212 = vmax.f32 %v3084, 0.0
    %v3213 = vmax.f32 %v3085, 0.0
    %v3214 = vmax.f32 %v3086, 0.0
    %v3215 = vmax.f32 %v3087, 0.0
    %v3216 = vmax.f32 %v3088, 0.0
    %v3217 = vmax.f32 %v3089, 0.0
    %v3218 = vmax.f32 %v3090, 0.0
    %v3219 = vmax.f32 %v3091, 0.0
    %v3220 = vmax.f32 %v3092, 0.0
    %v3221 = vmax.f32 %v3093, 0.0
    %v3222 = vmax.f32 %v3094, 0.0
    %v3223 = vmax.f32 %v3095, 0.0
    %v3224 = vmax.f32 %v3096, 0.0
    %v3225 = vmax.f32 %v3097, 0.0
    %v3226 = vmax.f32 %v3098, 0.0
    %v3227 = vmax.f32 %v3099, 0.0
    %v3228 = vmax.f32 %v3100, 0.0
    %v3229 = vmax.f32 %v3101, 0.0
    %v3230 = vmax.f32 %v3102, 0.0
    %v3231 = vmax.f32 %v3103, 0.0
    %v3232 = vmax.f32 %v3104, 0.0
    %v3233 = vmax.f32 %v3105, 0.0
    %v3234 = vmax.f32 %v3106, 0.0
    %v3235 = vmax.f32 %v3107, 0.0
    %v3236 = vmax.f32 %v3108, 0.0
    %v3237 = vmax.f32 %v3109, 0.0
    %v3238 = vmax.f32 %v3110, 0.0
    %v3239 = vmax.f32 %v3111, 0.0
    %v3240 = vmax.f32 %v3112, 0.0
    %v3241 = vmax.f32 %v3113, 0.0
    %v3242 = vmax.f32 %v3114, 0.0
    %v3243 = vmax.f32 %v3115, 0.0
    %v3244 = vmax.f32 %v3116, 0.0
    %v3245 = vmax.f32 %v3117, 0.0
    %v3246 = vmax.f32 %v3118, 0.0
    %v3247 = vmax.f32 %v3119, 0.0
    %v3248 = vmax.f32 %v3120, 0.0
    %v3249 = vmax.f32 %v3121, 0.0
    %v3250 = vmax.f32 %v3122, 0.0
    %v3251 = vmax.f32 %v3123, 0.0
    %v3252 = vmax.f32 %v3124, 0.0
    %v3253 = vmax.f32 %v3125, 0.0
    %v3254 = vmax.f32 %v3126, 0.0
    %v3255 = vmax.f32 %v3127, 0.0
    %v3256 = vmax.f32 %v3128, 0.0
    %v3257 = vmax.f32 %v3129, 0.0
    %v3258 = vmax.f32 %v3130, 0.0
    %v3259 = vmax.f32 %v3131, 0.0
    %v3260 = vmax.f32 %v3132, 0.0
    %v3261 = vmax.f32 %v3133, 0.0
    %v3262 = vmax.f32 %v3134, 0.0
    %v3263 = vmax.f32 %v3135, 0.0
    %v3264 = vmax.f32 %v3136, 0.0
    %v3265 = vmax.f32 %v3137, 0.0
    %v3266 = vmax.f32 %v3138, 0.0
    %v3267 = vmax.f32 %v3139, 0.0
    %v3268 = vmax.f32 %v3140, 0.0
    %v3269 = vmax.f32 %v3141, 0.0
    %v3270 = vmax.f32 %v3142, 0.0
    %v3271 = vmax.f32 %v3143, 0.0
    %v3272 = vmax.f32 %v3144, 0.0
    %v3273 = vmax.f32 %v3145, 0.0
    %v3274 = vmax.f32 %v3146, 0.0
    %v3275 = vmax.f32 %v3147, 0.0
    %v3276 = vmax.f32 %v3148, 0.0
    %v3277 = vmax.f32 %v3149, 0.0
    %v3278 = vmax.f32 %v3150, 0.0
    %v3279 = vmax.f32 %v3151, 0.0
    %v3280 = vmax.f32 %v3152, 0.0
    %v3281 = vmax.f32 %v3153, 0.0
    %v3282 = vmax.f32 %v3154, 0.0
    %v3283 = vmax.f32 %v3155, 0.0
    %v3284 = vmax.f32 %v3156, 0.0
    %v3285 = vmax.f32 %v3157, %v3165
    %v3286 = vmax.f32 %v3285, %v3173
    %v3287 = vmax.f32 %v3286, %v3181
    %v3288 = vmax.f32 %v3287, %v3189
    %v3289 = vmax.f32 %v3288, %v3197
    %v3290 = vmax.f32 %v3289, %v3205
    %v3291 = vmax.f32 %v3290, %v3213
    %v3292 = vrot.slane %v3291, 4
    %v3293 = vmax.f32 %v3291, %v3292
    %v3294 = vrot.slane %v3293, 2
    %v3295 = vmax.f32 %v3293, %v3294
    %v3296 = vrot.slane %v3295, 1
    %v3297 = vmax.f32 %v3295, %v3296
    %v3298 = vmax.f32 %v3158, %v3166
    %v3299 = vmax.f32 %v3298, %v3174
    %v3300 = vmax.f32 %v3299, %v3182
    %v3301 = vmax.f32 %v3300, %v3190
    %v3302 = vmax.f32 %v3301, %v3198
    %v3303 = vmax.f32 %v3302, %v3206
    %v3304 = vmax.f32 %v3303, %v3214
    %v3305 = vrot.slane %v3304, 4
    %v3306 = vmax.f32 %v3304, %v3305
    %v3307 = vrot.slane %v3306, 2
    %v3308 = vmax.f32 %v3306, %v3307
    %v3309 = vrot.slane %v3308, 1
    %v3310 = vmax.f32 %v3308, %v3309
    %v3311 = vmax.f32 %v3159, %v3167
    %v3312 = vmax.f32 %v3311, %v3175
    %v3313 = vmax.f32 %v3312, %v3183
    %v3314 = vmax.f32 %v3313, %v3191
    %v3315 = vmax.f32 %v3314, %v3199
    %v3316 = vmax.f32 %v3315, %v3207
    %v3317 = vmax.f32 %v3316, %v3215
    %v3318 = vrot.slane %v3317, 4
    %v3319 = vmax.f32 %v3317, %v3318
    %v3320 = vrot.slane %v3319, 2
    %v3321 = vmax.f32 %v3319, %v3320
    %v3322 = vrot.slane %v3321, 1
    %v3323 = vmax.f32 %v3321, %v3322
    %v3324 = vmax.f32 %v3160, %v3168
    %v3325 = vmax.f32 %v3324, %v3176
    %v3326 = vmax.f32 %v3325, %v3184
    %v3327 = vmax.f32 %v3326, %v3192
    %v3328 = vmax.f32 %v3327, %v3200
    %v3329 = vmax.f32 %v3328, %v3208
    %v3330 = vmax.f32 %v3329, %v3216
    %v3331 = vrot.slane %v3330, 4
    %v3332 = vmax.f32 %v3330, %v3331
    %v3333 = vrot.slane %v3332, 2
    %v3334 = vmax.f32 %v3332, %v3333
    %v3335 = vrot.slane %v3334, 1
    %v3336 = vmax.f32 %v3334, %v3335
    %v3337 = vmax.f32 %v3161, %v3169
    %v3338 = vmax.f32 %v3337, %v3177
    %v3339 = vmax.f32 %v3338, %v3185
    %v3340 = vmax.f32 %v3339, %v3193
    %v3341 = vmax.f32 %v3340, %v3201
    %v3342 = vmax.f32 %v3341, %v3209
    %v3343 = vmax.f32 %v3342, %v3217
    %v3344 = vrot.slane %v3343, 4
    %v3345 = vmax.f32 %v3343, %v3344
    %v3346 = vrot.slane %v3345, 2
    %v3347 = vmax.f32 %v3345, %v3346
    %v3348 = vrot.slane %v3347, 1
    %v3349 = vmax.f32 %v3347, %v3348
    %v3350 = vmax.f32 %v3162, %v3170
    %v3351 = vmax.f32 %v3350, %v3178
    %v3352 = vmax.f32 %v3351, %v3186
    %v3353 = vmax.f32 %v3352, %v3194
    %v3354 = vmax.f32 %v3353, %v3202
    %v3355 = vmax.f32 %v3354, %v3210
    %v3356 = vmax.f32 %v3355, %v3218
    %v3357 = vrot.slane %v3356, 4
    %v3358 = vmax.f32 %v3356, %v3357
    %v3359 = vrot.slane %v3358, 2
    %v3360 = vmax.f32 %v3358, %v3359
    %v3361 = vrot.slane %v3360, 1
    %v3362 = vmax.f32 %v3360, %v3361
    %v3363 = vmax.f32 %v3163, %v3171
    %v3364 = vmax.f32 %v3363, %v3179
    %v3365 = vmax.f32 %v3364, %v3187
    %v3366 = vmax.f32 %v3365, %v3195
    %v3367 = vmax.f32 %v3366, %v3203
    %v3368 = vmax.f32 %v3367, %v3211
    %v3369 = vmax.f32 %v3368, %v3219
    %v3370 = vrot.slane %v3369, 4
    %v3371 = vmax.f32 %v3369, %v3370
    %v3372 = vrot.slane %v3371, 2
    %v3373 = vmax.f32 %v3371, %v3372
    %v3374 = vrot.slane %v3373, 1
    %v3375 = vmax.f32 %v3373, %v3374
    %v3376 = vmax.f32 %v3164, %v3172
    %v3377 = vmax.f32 %v3376, %v3180
    %v3378 = vmax.f32 %v3377, %v3188
    %v3379 = vmax.f32 %v3378, %v3196
    %v3380 = vmax.f32 %v3379, %v3204
    %v3381 = vmax.f32 %v3380, %v3212
    %v3382 = vmax.f32 %v3381, %v3220
    %v3383 = vrot.slane %v3382, 4
    %v3384 = vmax.f32 %v3382, %v3383
    %v3385 = vrot.slane %v3384, 2
    %v3386 = vmax.f32 %v3384, %v3385
    %v3387 = vrot.slane %v3386, 1
    %v3388 = vmax.f32 %v3386, %v3387
    %v3389 = vmax.f32 %v3221, %v3229
    %v3390 = vmax.f32 %v3389, %v3237
    %v3391 = vmax.f32 %v3390, %v3245
    %v3392 = vmax.f32 %v3391, %v3253
    %v3393 = vmax.f32 %v3392, %v3261
    %v3394 = vmax.f32 %v3393, %v3269
    %v3395 = vmax.f32 %v3394, %v3277
    %v3396 = vrot.slane %v3395, 4
    %v3397 = vmax.f32 %v3395, %v3396
    %v3398 = vrot.slane %v3397, 2
    %v3399 = vmax.f32 %v3397, %v3398
    %v3400 = vrot.slane %v3399, 1
    %v3401 = vmax.f32 %v3399, %v3400
    %v3402 = vmax.f32 %v3222, %v3230
    %v3403 = vmax.f32 %v3402, %v3238
    %v3404 = vmax.f32 %v3403, %v3246
    %v3405 = vmax.f32 %v3404, %v3254
    %v3406 = vmax.f32 %v3405, %v3262
    %v3407 = vmax.f32 %v3406, %v3270
    %v3408 = vmax.f32 %v3407, %v3278
    %v3409 = vrot.slane %v3408, 4
    %v3410 = vmax.f32 %v3408, %v3409
    %v3411 = vrot.slane %v3410, 2
    %v3412 = vmax.f32 %v3410, %v3411
    %v3413 = vrot.slane %v3412, 1
    %v3414 = vmax.f32 %v3412, %v3413
    %v3415 = vmax.f32 %v3223, %v3231
    %v3416 = vmax.f32 %v3415, %v3239
    %v3417 = vmax.f32 %v3416, %v3247
    %v3418 = vmax.f32 %v3417, %v3255
    %v3419 = vmax.f32 %v3418, %v3263
    %v3420 = vmax.f32 %v3419, %v3271
    %v3421 = vmax.f32 %v3420, %v3279
    %v3422 = vrot.slane %v3421, 4
    %v3423 = vmax.f32 %v3421, %v3422
    %v3424 = vrot.slane %v3423, 2
    %v3425 = vmax.f32 %v3423, %v3424
    %v3426 = vrot.slane %v3425, 1
    %v3427 = vmax.f32 %v3425, %v3426
    %v3428 = vmax.f32 %v3224, %v3232
    %v3429 = vmax.f32 %v3428, %v3240
    %v3430 = vmax.f32 %v3429, %v3248
    %v3431 = vmax.f32 %v3430, %v3256
    %v3432 = vmax.f32 %v3431, %v3264
    %v3433 = vmax.f32 %v3432, %v3272
    %v3434 = vmax.f32 %v3433, %v3280
    %v3435 = vrot.slane %v3434, 4
    %v3436 = vmax.f32 %v3434, %v3435
    %v3437 = vrot.slane %v3436, 2
    %v3438 = vmax.f32 %v3436, %v3437
    %v3439 = vrot.slane %v3438, 1
    %v3440 = vmax.f32 %v3438, %v3439
    %v3441 = vmax.f32 %v3225, %v3233
    %v3442 = vmax.f32 %v3441, %v3241
    %v3443 = vmax.f32 %v3442, %v3249
    %v3444 = vmax.f32 %v3443, %v3257
    %v3445 = vmax.f32 %v3444, %v3265
    %v3446 = vmax.f32 %v3445, %v3273
    %v3447 = vmax.f32 %v3446, %v3281
    %v3448 = vrot.slane %v3447, 4
    %v3449 = vmax.f32 %v3447, %v3448
    %v3450 = vrot.slane %v3449, 2
    %v3451 = vmax.f32 %v3449, %v3450
    %v3452 = vrot.slane %v3451, 1
    %v3453 = vmax.f32 %v3451, %v3452
    %v3454 = vmax.f32 %v3226, %v3234
    %v3455 = vmax.f32 %v3454, %v3242
    %v3456 = vmax.f32 %v3455, %v3250
    %v3457 = vmax.f32 %v3456, %v3258
    %v3458 = vmax.f32 %v3457, %v3266
    %v3459 = vmax.f32 %v3458, %v3274
    %v3460 = vmax.f32 %v3459, %v3282
    %v3461 = vrot.slane %v3460, 4
    %v3462 = vmax.f32 %v3460, %v3461
    %v3463 = vrot.slane %v3462, 2
    %v3464 = vmax.f32 %v3462, %v3463
    %v3465 = vrot.slane %v3464, 1
    %v3466 = vmax.f32 %v3464, %v3465
    %v3467 = vmax.f32 %v3227, %v3235
    %v3468 = vmax.f32 %v3467, %v3243
    %v3469 = vmax.f32 %v3468, %v3251
    %v3470 = vmax.f32 %v3469, %v3259
    %v3471 = vmax.f32 %v3470, %v3267
    %v3472 = vmax.f32 %v3471, %v3275
    %v3473 = vmax.f32 %v3472, %v3283
    %v3474 = vrot.slane %v3473, 4
    %v3475 = vmax.f32 %v3473, %v3474
    %v3476 = vrot.slane %v3475, 2
    %v3477 = vmax.f32 %v3475, %v3476
    %v3478 = vrot.slane %v3477, 1
    %v3479 = vmax.f32 %v3477, %v3478
    %v3480 = vmax.f32 %v3228, %v3236
    %v3481 = vmax.f32 %v3480, %v3244
    %v3482 = vmax.f32 %v3481, %v3252
    %v3483 = vmax.f32 %v3482, %v3260
    %v3484 = vmax.f32 %v3483, %v3268
    %v3485 = vmax.f32 %v3484, %v3276
    %v3486 = vmax.f32 %v3485, %v3284
    %v3487 = vrot.slane %v3486, 4
    %v3488 = vmax.f32 %v3486, %v3487
    %v3489 = vrot.slane %v3488, 2
    %v3490 = vmax.f32 %v3488, %v3489
    %v3491 = vrot.slane %v3490, 1
    %v3492 = vmax.f32 %v3490, %v3491
    %vm3493 = vcmask 1040384
    %v3494 = vsel %vm3493, %v3297, %v3401
    %v3495 = vsel %vm3493, %v3310, %v3414
    %v3496 = vsel %vm3493, %v3323, %v3427
    %v3497 = vsel %vm3493, %v3336, %v3440
    %v3498 = vsel %vm3493, %v3349, %v3453
    %v3499 = vsel %vm3493, %v3362, %v3466
    %v3500 = vsel %vm3493, %v3375, %v3479
    %v3501 = vsel %vm3493, %v3388, %v3492
    %v3502 = vld [vmem:[%s35] sm:$0xff]
    %v3503 = vld [vmem:[%s35 + $0x8] sm:$0xff]
    %v3504 = vld [vmem:[%s35 + $0x10] sm:$0xff]
    %v3505 = vld [vmem:[%s35 + $0x18] sm:$0xff]
    %v3506 = vld [vmem:[%s35 + $0x20] sm:$0xff]
    %v3507 = vld [vmem:[%s35 + $0x28] sm:$0xff]
    %v3508 = vld [vmem:[%s35 + $0x30] sm:$0xff]
    %v3509 = vld [vmem:[%s35 + $0x38] sm:$0xff]
    %v3510 = vld [vmem:[%s35 + $0x40] sm:$0xff]
    %v3511 = vld [vmem:[%s35 + $0x48] sm:$0xff]
    %v3512 = vld [vmem:[%s35 + $0x50] sm:$0xff]
    %v3513 = vld [vmem:[%s35 + $0x58] sm:$0xff]
    %v3514 = vld [vmem:[%s35 + $0x60] sm:$0xff]
    %v3515 = vld [vmem:[%s35 + $0x68] sm:$0xff]
    %v3516 = vld [vmem:[%s35 + $0x70] sm:$0xff]
    %v3517 = vld [vmem:[%s35 + $0x78] sm:$0xff]
    %v3518 = vld [vmem:[%s35 + $0x80] sm:$0xff]
    %v3519 = vld [vmem:[%s35 + $0x88] sm:$0xff]
    %v3520 = vld [vmem:[%s35 + $0x90] sm:$0xff]
    %v3521 = vld [vmem:[%s35 + $0x98] sm:$0xff]
    %v3522 = vld [vmem:[%s35 + $0xa0] sm:$0xff]
    %v3523 = vld [vmem:[%s35 + $0xa8] sm:$0xff]
    %v3524 = vld [vmem:[%s35 + $0xb0] sm:$0xff]
    %v3525 = vld [vmem:[%s35 + $0xb8] sm:$0xff]
    %v3526 = vld [vmem:[%s35 + $0xc0] sm:$0xff]
    %v3527 = vld [vmem:[%s35 + $0xc8] sm:$0xff]
    %v3528 = vld [vmem:[%s35 + $0xd0] sm:$0xff]
    %v3529 = vld [vmem:[%s35 + $0xd8] sm:$0xff]
    %v3530 = vld [vmem:[%s35 + $0xe0] sm:$0xff]
    %v3531 = vld [vmem:[%s35 + $0xe8] sm:$0xff]
    %v3532 = vld [vmem:[%s35 + $0xf0] sm:$0xff]
    %v3533 = vld [vmem:[%s35 + $0xf8] sm:$0xff]
    %3534 = vmatprep.subr.mxu0 0.0
    %3535 = vmatpush1.msra.mxu0 0.0
    %3536 = vmatprep.subr.mxu0 0.0
    %3537 = vmatpush1.msra.mxu0 0.0
    %3538 = vmatprep.subr.mxu0 0.0
    %3539 = vmatpush1.msra.mxu0 0.0
    %3540 = vmatprep.subr.mxu0 0.0
    %3541 = vmatpush1.msra.mxu0 0.0
    %3542 = vmatprep.subr.mxu0 0.0
    %3543 = vmatpush1.msra.mxu0 0.0
    %3544 = vmatprep.subr.mxu0 0.0
    %3545 = vmatpush1.msra.mxu0 0.0
    %3546 = vmatprep.subr.mxu0 0.0
    %3547 = vmatpush1.msra.mxu0 0.0
    %3548 = vmatprep.subr.mxu0 0.0
    %3549 = vmatpush1.msra.mxu0 0.0
    %3550 = vmatprep.subr.mxu0 %v3531
    %3551 = vmatpush1.msra.mxu0 %v3530
    %3552 = vmatprep.subr.mxu0 %v3527
    %3553 = vmatpush1.msra.mxu0 %v3526
    %3554 = vmatprep.subr.mxu0 %v3523
    %3555 = vmatpush1.msra.mxu0 %v3522
    %3556 = vmatprep.subr.mxu0 %v3519
    %3557 = vmatpush1.msra.mxu0 %v3518
    %3558 = vmatprep.subr.mxu0 %v3515
    %3559 = vmatpush1.msra.mxu0 %v3514
    %3560 = vmatprep.subr.mxu0 %v3511
    %3561 = vmatpush1.msra.mxu0 %v3510
    %3562 = vmatprep.subr.mxu0 %v3507
    %3563 = vmatpush1.msra.mxu0 %v3506
    %3564 = vmatprep.subr.mxu0 %v3503
    %3565 = vmatpush1.msra.mxu0 %v3502
    %3566 = vmatprep.subr.mxu0 0.0
    %3567 = vmatpush2.msra.mxu0 0.0
    %3568 = vmatprep.subr.mxu0 0.0
    %3569 = vmatpush2.msra.mxu0 0.0
    %3570 = vmatprep.subr.mxu0 0.0
    %3571 = vmatpush2.msra.mxu0 0.0
    %3572 = vmatprep.subr.mxu0 0.0
    %3573 = vmatpush2.msra.mxu0 0.0
    %3574 = vmatprep.subr.mxu0 0.0
    %3575 = vmatpush2.msra.mxu0 0.0
    %3576 = vmatprep.subr.mxu0 0.0
    %3577 = vmatpush2.msra.mxu0 0.0
    %3578 = vmatprep.subr.mxu0 0.0
    %3579 = vmatpush2.msra.mxu0 0.0
    %3580 = vmatprep.subr.mxu0 0.0
    %3581 = vmatpush2.msra.mxu0 0.0
    %3582 = vmatprep.subr.mxu0 0.0
    %3583 = vmatpush2.msra.mxu0 0.0
    %3584 = vmatprep.subr.mxu0 0.0
    %3585 = vmatpush2.msra.mxu0 0.0
    %3586 = vmatprep.subr.mxu0 0.0
    %3587 = vmatpush2.msra.mxu0 0.0
    %3588 = vmatprep.subr.mxu0 0.0
    %3589 = vmatpush2.msra.mxu0 0.0
    %3590 = vmatprep.subr.mxu0 0.0
    %3591 = vmatpush2.msra.mxu0 0.0
    %3592 = vmatprep.subr.mxu0 0.0
    %3593 = vmatpush2.msra.mxu0 0.0
    %3594 = vmatprep.subr.mxu0 0.0
    %3595 = vmatpush2.msra.mxu0 0.0
    %3596 = vmatprep.subr.mxu0 0.0
    %3597 = vmatpush2.msra.mxu0 0.0
    %3598 = vmatprep.mubr.f32.mxu0 0.0
    %3599 = vmatmul.mubr.f32.gmra.mxu0 %v931
    %v3600 = vpop.f32.mrf.mxu0
    %v3601 = vadd.f32 0.0, %v3600
    %v3602 = vpop.f32.mrf.mxu0
    %v3603 = vadd.f32 0.0, %v3602
    %3604 = vmatprep.mubr.f32.mxu0 0.0
    %3605 = vmatmul.mubr.f32.gmra.mxu0 %v934
    %v3606 = vpop.f32.mrf.mxu0
    %v3607 = vadd.f32 0.0, %v3606
    %v3608 = vpop.f32.mrf.mxu0
    %v3609 = vadd.f32 0.0, %v3608
    %3610 = vmatprep.mubr.f32.mxu0 0.0
    %3611 = vmatmul.mubr.f32.gmra.mxu0 %v937
    %v3612 = vpop.f32.mrf.mxu0
    %v3613 = vadd.f32 0.0, %v3612
    %v3614 = vpop.f32.mrf.mxu0
    %v3615 = vadd.f32 0.0, %v3614
    %3616 = vmatprep.mubr.f32.mxu0 0.0
    %3617 = vmatmul.mubr.f32.gmra.mxu0 %v940
    %v3618 = vpop.f32.mrf.mxu0
    %v3619 = vadd.f32 0.0, %v3618
    %v3620 = vpop.f32.mrf.mxu0
    %v3621 = vadd.f32 0.0, %v3620
    %3622 = vmatprep.mubr.f32.mxu0 0.0
    %3623 = vmatmul.mubr.f32.gmra.mxu0 %v943
    %v3624 = vpop.f32.mrf.mxu0
    %v3625 = vadd.f32 0.0, %v3624
    %v3626 = vpop.f32.mrf.mxu0
    %v3627 = vadd.f32 0.0, %v3626
    %3628 = vmatprep.mubr.f32.mxu0 0.0
    %3629 = vmatmul.mubr.f32.gmra.mxu0 %v946
    %v3630 = vpop.f32.mrf.mxu0
    %v3631 = vadd.f32 0.0, %v3630
    %v3632 = vpop.f32.mrf.mxu0
    %v3633 = vadd.f32 0.0, %v3632
    %3634 = vmatprep.mubr.f32.mxu0 0.0
    %3635 = vmatmul.mubr.f32.gmra.mxu0 %v949
    %v3636 = vpop.f32.mrf.mxu0
    %v3637 = vadd.f32 0.0, %v3636
    %v3638 = vpop.f32.mrf.mxu0
    %v3639 = vadd.f32 0.0, %v3638
    %3640 = vmatprep.mubr.f32.mxu0 0.0
    %3641 = vmatmul.mubr.f32.gmra.mxu0 %v952
    %v3642 = vpop.f32.mrf.mxu0
    %v3643 = vadd.f32 0.0, %v3642
    %v3644 = vpop.f32.mrf.mxu0
    %v3645 = vadd.f32 0.0, %v3644
    %3646 = vmatprep.mubr.f32.mxu0 0.0
    %3647 = vmatmul.mubr.f32.gmra.mxu0 %v955
    %v3648 = vpop.f32.mrf.mxu0
    %v3649 = vadd.f32 0.0, %v3648
    %v3650 = vpop.f32.mrf.mxu0
    %v3651 = vadd.f32 0.0, %v3650
    %3652 = vmatprep.mubr.f32.mxu0 0.0
    %3653 = vmatmul.mubr.f32.gmra.mxu0 %v958
    %v3654 = vpop.f32.mrf.mxu0
    %v3655 = vadd.f32 0.0, %v3654
    %v3656 = vpop.f32.mrf.mxu0
    %v3657 = vadd.f32 0.0, %v3656
    %3658 = vmatprep.mubr.f32.mxu0 0.0
    %3659 = vmatmul.mubr.f32.gmra.mxu0 %v961
    %v3660 = vpop.f32.mrf.mxu0
    %v3661 = vadd.f32 0.0, %v3660
    %v3662 = vpop.f32.mrf.mxu0
    %v3663 = vadd.f32 0.0, %v3662
    %3664 = vmatprep.mubr.f32.mxu0 0.0
    %3665 = vmatmul.mubr.f32.gmra.mxu0 %v964
    %v3666 = vpop.f32.mrf.mxu0
    %v3667 = vadd.f32 0.0, %v3666
    %v3668 = vpop.f32.mrf.mxu0
    %v3669 = vadd.f32 0.0, %v3668
    %3670 = vmatprep.mubr.f32.mxu0 0.0
    %3671 = vmatmul.mubr.f32.gmra.mxu0 %v967
    %v3672 = vpop.f32.mrf.mxu0
    %v3673 = vadd.f32 0.0, %v3672
    %v3674 = vpop.f32.mrf.mxu0
    %v3675 = vadd.f32 0.0, %v3674
    %3676 = vmatprep.mubr.f32.mxu0 0.0
    %3677 = vmatmul.mubr.f32.gmra.mxu0 %v970
    %v3678 = vpop.f32.mrf.mxu0
    %v3679 = vadd.f32 0.0, %v3678
    %v3680 = vpop.f32.mrf.mxu0
    %v3681 = vadd.f32 0.0, %v3680
    %3682 = vmatprep.mubr.f32.mxu0 0.0
    %3683 = vmatmul.mubr.f32.gmra.mxu0 %v973
    %v3684 = vpop.f32.mrf.mxu0
    %v3685 = vadd.f32 0.0, %v3684
    %v3686 = vpop.f32.mrf.mxu0
    %v3687 = vadd.f32 0.0, %v3686
    %3688 = vmatprep.mubr.f32.mxu0 0.0
    %3689 = vmatmul.mubr.f32.gmra.mxu0 %v976
    %v3690 = vpop.f32.mrf.mxu0
    %v3691 = vadd.f32 0.0, %v3690
    %v3692 = vpop.f32.mrf.mxu0
    %v3693 = vadd.f32 0.0, %v3692
    %3694 = vdwg.mxu0
    %3695 = vmatprep.subr.mxu0 0.0
    %3696 = vmatpush1.msra.mxu0 0.0
    %3697 = vmatprep.subr.mxu0 0.0
    %3698 = vmatpush1.msra.mxu0 0.0
    %3699 = vmatprep.subr.mxu0 0.0
    %3700 = vmatpush1.msra.mxu0 0.0
    %3701 = vmatprep.subr.mxu0 0.0
    %3702 = vmatpush1.msra.mxu0 0.0
    %3703 = vmatprep.subr.mxu0 0.0
    %3704 = vmatpush1.msra.mxu0 0.0
    %3705 = vmatprep.subr.mxu0 0.0
    %3706 = vmatpush1.msra.mxu0 0.0
    %3707 = vmatprep.subr.mxu0 0.0
    %3708 = vmatpush1.msra.mxu0 0.0
    %3709 = vmatprep.subr.mxu0 0.0
    %3710 = vmatpush1.msra.mxu0 0.0
    %3711 = vmatprep.subr.mxu0 %v3533
    %3712 = vmatpush1.msra.mxu0 %v3532
    %3713 = vmatprep.subr.mxu0 %v3529
    %3714 = vmatpush1.msra.mxu0 %v3528
    %3715 = vmatprep.subr.mxu0 %v3525
    %3716 = vmatpush1.msra.mxu0 %v3524
    %3717 = vmatprep.subr.mxu0 %v3521
    %3718 = vmatpush1.msra.mxu0 %v3520
    %3719 = vmatprep.subr.mxu0 %v3517
    %3720 = vmatpush1.msra.mxu0 %v3516
    %3721 = vmatprep.subr.mxu0 %v3513
    %3722 = vmatpush1.msra.mxu0 %v3512
    %3723 = vmatprep.subr.mxu0 %v3509
    %3724 = vmatpush1.msra.mxu0 %v3508
    %3725 = vmatprep.subr.mxu0 %v3505
    %3726 = vmatpush1.msra.mxu0 %v3504
    %3727 = vmatprep.subr.mxu0 0.0
    %3728 = vmatpush2.msra.mxu0 0.0
    %3729 = vmatprep.subr.mxu0 0.0
    %3730 = vmatpush2.msra.mxu0 0.0
    %3731 = vmatprep.subr.mxu0 0.0
    %3732 = vmatpush2.msra.mxu0 0.0
    %3733 = vmatprep.subr.mxu0 0.0
    %3734 = vmatpush2.msra.mxu0 0.0
    %3735 = vmatprep.subr.mxu0 0.0
    %3736 = vmatpush2.msra.mxu0 0.0
    %3737 = vmatprep.subr.mxu0 0.0
    %3738 = vmatpush2.msra.mxu0 0.0
    %3739 = vmatprep.subr.mxu0 0.0
    %3740 = vmatpush2.msra.mxu0 0.0
    %3741 = vmatprep.subr.mxu0 0.0
    %3742 = vmatpush2.msra.mxu0 0.0
    %3743 = vmatprep.subr.mxu0 0.0
    %3744 = vmatpush2.msra.mxu0 0.0
    %3745 = vmatprep.subr.mxu0 0.0
    %3746 = vmatpush2.msra.mxu0 0.0
    %3747 = vmatprep.subr.mxu0 0.0
    %3748 = vmatpush2.msra.mxu0 0.0
    %3749 = vmatprep.subr.mxu0 0.0
    %3750 = vmatpush2.msra.mxu0 0.0
    %3751 = vmatprep.subr.mxu0 0.0
    %3752 = vmatpush2.msra.mxu0 0.0
    %3753 = vmatprep.subr.mxu0 0.0
    %3754 = vmatpush2.msra.mxu0 0.0
    %3755 = vmatprep.subr.mxu0 0.0
    %3756 = vmatpush2.msra.mxu0 0.0
    %3757 = vmatprep.subr.mxu0 0.0
    %3758 = vmatpush2.msra.mxu0 0.0
    %3759 = vmatprep.mubr.f32.mxu0 0.0
    %3760 = vmatmul.mubr.f32.gmra.mxu0 %v931
    %v3761 = vpop.f32.mrf.mxu0
    %v3762 = vadd.f32 0.0, %v3761
    %v3763 = vpop.f32.mrf.mxu0
    %v3764 = vadd.f32 0.0, %v3763
    %3765 = vmatprep.mubr.f32.mxu0 0.0
    %3766 = vmatmul.mubr.f32.gmra.mxu0 %v934
    %v3767 = vpop.f32.mrf.mxu0
    %v3768 = vadd.f32 0.0, %v3767
    %v3769 = vpop.f32.mrf.mxu0
    %v3770 = vadd.f32 0.0, %v3769
    %3771 = vmatprep.mubr.f32.mxu0 0.0
    %3772 = vmatmul.mubr.f32.gmra.mxu0 %v937
    %v3773 = vpop.f32.mrf.mxu0
    %v3774 = vadd.f32 0.0, %v3773
    %v3775 = vpop.f32.mrf.mxu0
    %v3776 = vadd.f32 0.0, %v3775
    %3777 = vmatprep.mubr.f32.mxu0 0.0
    %3778 = vmatmul.mubr.f32.gmra.mxu0 %v940
    %v3779 = vpop.f32.mrf.mxu0
    %v3780 = vadd.f32 0.0, %v3779
    %v3781 = vpop.f32.mrf.mxu0
    %v3782 = vadd.f32 0.0, %v3781
    %3783 = vmatprep.mubr.f32.mxu0 0.0
    %3784 = vmatmul.mubr.f32.gmra.mxu0 %v943
    %v3785 = vpop.f32.mrf.mxu0
    %v3786 = vadd.f32 0.0, %v3785
    %v3787 = vpop.f32.mrf.mxu0
    %v3788 = vadd.f32 0.0, %v3787
    %3789 = vmatprep.mubr.f32.mxu0 0.0
    %3790 = vmatmul.mubr.f32.gmra.mxu0 %v946
    %v3791 = vpop.f32.mrf.mxu0
    %v3792 = vadd.f32 0.0, %v3791
    %v3793 = vpop.f32.mrf.mxu0
    %v3794 = vadd.f32 0.0, %v3793
    %3795 = vmatprep.mubr.f32.mxu0 0.0
    %3796 = vmatmul.mubr.f32.gmra.mxu0 %v949
    %v3797 = vpop.f32.mrf.mxu0
    %v3798 = vadd.f32 0.0, %v3797
    %v3799 = vpop.f32.mrf.mxu0
    %v3800 = vadd.f32 0.0, %v3799
    %3801 = vmatprep.mubr.f32.mxu0 0.0
    %3802 = vmatmul.mubr.f32.gmra.mxu0 %v952
    %v3803 = vpop.f32.mrf.mxu0
    %v3804 = vadd.f32 0.0, %v3803
    %v3805 = vpop.f32.mrf.mxu0
    %v3806 = vadd.f32 0.0, %v3805
    %3807 = vmatprep.mubr.f32.mxu0 0.0
    %3808 = vmatmul.mubr.f32.gmra.mxu0 %v955
    %v3809 = vpop.f32.mrf.mxu0
    %v3810 = vadd.f32 0.0, %v3809
    %v3811 = vpop.f32.mrf.mxu0
    %v3812 = vadd.f32 0.0, %v3811
    %3813 = vmatprep.mubr.f32.mxu0 0.0
    %3814 = vmatmul.mubr.f32.gmra.mxu0 %v958
    %v3815 = vpop.f32.mrf.mxu0
    %v3816 = vadd.f32 0.0, %v3815
    %v3817 = vpop.f32.mrf.mxu0
    %v3818 = vadd.f32 0.0, %v3817
    %3819 = vmatprep.mubr.f32.mxu0 0.0
    %3820 = vmatmul.mubr.f32.gmra.mxu0 %v961
    %v3821 = vpop.f32.mrf.mxu0
    %v3822 = vadd.f32 0.0, %v3821
    %v3823 = vpop.f32.mrf.mxu0
    %v3824 = vadd.f32 0.0, %v3823
    %3825 = vmatprep.mubr.f32.mxu0 0.0
    %3826 = vmatmul.mubr.f32.gmra.mxu0 %v964
    %v3827 = vpop.f32.mrf.mxu0
    %v3828 = vadd.f32 0.0, %v3827
    %v3829 = vpop.f32.mrf.mxu0
    %v3830 = vadd.f32 0.0, %v3829
    %3831 = vmatprep.mubr.f32.mxu0 0.0
    %3832 = vmatmul.mubr.f32.gmra.mxu0 %v967
    %v3833 = vpop.f32.mrf.mxu0
    %v3834 = vadd.f32 0.0, %v3833
    %v3835 = vpop.f32.mrf.mxu0
    %v3836 = vadd.f32 0.0, %v3835
    %3837 = vmatprep.mubr.f32.mxu0 0.0
    %3838 = vmatmul.mubr.f32.gmra.mxu0 %v970
    %v3839 = vpop.f32.mrf.mxu0
    %v3840 = vadd.f32 0.0, %v3839
    %v3841 = vpop.f32.mrf.mxu0
    %v3842 = vadd.f32 0.0, %v3841
    %3843 = vmatprep.mubr.f32.mxu0 0.0
    %3844 = vmatmul.mubr.f32.gmra.mxu0 %v973
    %v3845 = vpop.f32.mrf.mxu0
    %v3846 = vadd.f32 0.0, %v3845
    %v3847 = vpop.f32.mrf.mxu0
    %v3848 = vadd.f32 0.0, %v3847
    %3849 = vmatprep.mubr.f32.mxu0 0.0
    %3850 = vmatmul.mubr.f32.gmra.mxu0 %v976
    %v3851 = vpop.f32.mrf.mxu0
    %v3852 = vadd.f32 0.0, %v3851
    %v3853 = vpop.f32.mrf.mxu0
    %v3854 = vadd.f32 0.0, %v3853
    %3855 = vdwg.mxu0
    %v3856 = vld [vmem:[%s37] sm:$0xff]
    %v3857 = vld [vmem:[%s37 + $0x8] sm:$0xff]
    %v3858 = vld [vmem:[%s37 + $0x10] sm:$0xff]
    %v3859 = vld [vmem:[%s37 + $0x18] sm:$0xff]
    %v3860 = vld [vmem:[%s37 + $0x20] sm:$0xff]
    %v3861 = vld [vmem:[%s37 + $0x28] sm:$0xff]
    %v3862 = vld [vmem:[%s37 + $0x30] sm:$0xff]
    %v3863 = vld [vmem:[%s37 + $0x38] sm:$0xff]
    %v3864 = vld [vmem:[%s37 + $0x40] sm:$0xff]
    %v3865 = vld [vmem:[%s37 + $0x48] sm:$0xff]
    %v3866 = vld [vmem:[%s37 + $0x50] sm:$0xff]
    %v3867 = vld [vmem:[%s37 + $0x58] sm:$0xff]
    %v3868 = vld [vmem:[%s37 + $0x60] sm:$0xff]
    %v3869 = vld [vmem:[%s37 + $0x68] sm:$0xff]
    %v3870 = vld [vmem:[%s37 + $0x70] sm:$0xff]
    %v3871 = vld [vmem:[%s37 + $0x78] sm:$0xff]
    %v3872 = vld [vmem:[%s37 + $0x80] sm:$0xff]
    %v3873 = vld [vmem:[%s37 + $0x88] sm:$0xff]
    %v3874 = vld [vmem:[%s37 + $0x90] sm:$0xff]
    %v3875 = vld [vmem:[%s37 + $0x98] sm:$0xff]
    %v3876 = vld [vmem:[%s37 + $0xa0] sm:$0xff]
    %v3877 = vld [vmem:[%s37 + $0xa8] sm:$0xff]
    %v3878 = vld [vmem:[%s37 + $0xb0] sm:$0xff]
    %v3879 = vld [vmem:[%s37 + $0xb8] sm:$0xff]
    %v3880 = vld [vmem:[%s37 + $0xc0] sm:$0xff]
    %v3881 = vld [vmem:[%s37 + $0xc8] sm:$0xff]
    %v3882 = vld [vmem:[%s37 + $0xd0] sm:$0xff]
    %v3883 = vld [vmem:[%s37 + $0xd8] sm:$0xff]
    %v3884 = vld [vmem:[%s37 + $0xe0] sm:$0xff]
    %v3885 = vld [vmem:[%s37 + $0xe8] sm:$0xff]
    %v3886 = vld [vmem:[%s37 + $0xf0] sm:$0xff]
    %v3887 = vld [vmem:[%s37 + $0xf8] sm:$0xff]
    %v3888 = vld [vmem:[%s37 + $0x100] sm:$0xff]
    %v3889 = vld [vmem:[%s37 + $0x108] sm:$0xff]
    %v3890 = vld [vmem:[%s37 + $0x110] sm:$0xff]
    %v3891 = vld [vmem:[%s37 + $0x118] sm:$0xff]
    %v3892 = vld [vmem:[%s37 + $0x120] sm:$0xff]
    %v3893 = vld [vmem:[%s37 + $0x128] sm:$0xff]
    %v3894 = vld [vmem:[%s37 + $0x130] sm:$0xff]
    %v3895 = vld [vmem:[%s37 + $0x138] sm:$0xff]
    %v3896 = vld [vmem:[%s37 + $0x140] sm:$0xff]
    %v3897 = vld [vmem:[%s37 + $0x148] sm:$0xff]
    %v3898 = vld [vmem:[%s37 + $0x150] sm:$0xff]
    %v3899 = vld [vmem:[%s37 + $0x158] sm:$0xff]
    %v3900 = vld [vmem:[%s37 + $0x160] sm:$0xff]
    %v3901 = vld [vmem:[%s37 + $0x168] sm:$0xff]
    %v3902 = vld [vmem:[%s37 + $0x170] sm:$0xff]
    %v3903 = vld [vmem:[%s37 + $0x178] sm:$0xff]
    %v3904 = vld [vmem:[%s37 + $0x180] sm:$0xff]
    %v3905 = vld [vmem:[%s37 + $0x188] sm:$0xff]
    %v3906 = vld [vmem:[%s37 + $0x190] sm:$0xff]
    %v3907 = vld [vmem:[%s37 + $0x198] sm:$0xff]
    %v3908 = vld [vmem:[%s37 + $0x1a0] sm:$0xff]
    %v3909 = vld [vmem:[%s37 + $0x1a8] sm:$0xff]
    %v3910 = vld [vmem:[%s37 + $0x1b0] sm:$0xff]
    %v3911 = vld [vmem:[%s37 + $0x1b8] sm:$0xff]
    %v3912 = vld [vmem:[%s37 + $0x1c0] sm:$0xff]
    %v3913 = vld [vmem:[%s37 + $0x1c8] sm:$0xff]
    %v3914 = vld [vmem:[%s37 + $0x1d0] sm:$0xff]
    %v3915 = vld [vmem:[%s37 + $0x1d8] sm:$0xff]
    %v3916 = vld [vmem:[%s37 + $0x1e0] sm:$0xff]
    %v3917 = vld [vmem:[%s37 + $0x1e8] sm:$0xff]
    %v3918 = vld [vmem:[%s37 + $0x1f0] sm:$0xff]
    %v3919 = vld [vmem:[%s37 + $0x1f8] sm:$0xff]
    %v3920 = vld [vmem:[%s37 + $0x200] sm:$0xff]
    %v3921 = vld [vmem:[%s37 + $0x208] sm:$0xff]
    %v3922 = vld [vmem:[%s37 + $0x210] sm:$0xff]
    %v3923 = vld [vmem:[%s37 + $0x218] sm:$0xff]
    %v3924 = vld [vmem:[%s37 + $0x220] sm:$0xff]
    %v3925 = vld [vmem:[%s37 + $0x228] sm:$0xff]
    %v3926 = vld [vmem:[%s37 + $0x230] sm:$0xff]
    %v3927 = vld [vmem:[%s37 + $0x238] sm:$0xff]
    %v3928 = vld [vmem:[%s37 + $0x240] sm:$0xff]
    %v3929 = vld [vmem:[%s37 + $0x248] sm:$0xff]
    %v3930 = vld [vmem:[%s37 + $0x250] sm:$0xff]
    %v3931 = vld [vmem:[%s37 + $0x258] sm:$0xff]
    %v3932 = vld [vmem:[%s37 + $0x260] sm:$0xff]
    %v3933 = vld [vmem:[%s37 + $0x268] sm:$0xff]
    %v3934 = vld [vmem:[%s37 + $0x270] sm:$0xff]
    %v3935 = vld [vmem:[%s37 + $0x278] sm:$0xff]
    %v3936 = vld [vmem:[%s37 + $0x280] sm:$0xff]
    %v3937 = vld [vmem:[%s37 + $0x288] sm:$0xff]
    %v3938 = vld [vmem:[%s37 + $0x290] sm:$0xff]
    %v3939 = vld [vmem:[%s37 + $0x298] sm:$0xff]
    %v3940 = vld [vmem:[%s37 + $0x2a0] sm:$0xff]
    %v3941 = vld [vmem:[%s37 + $0x2a8] sm:$0xff]
    %v3942 = vld [vmem:[%s37 + $0x2b0] sm:$0xff]
    %v3943 = vld [vmem:[%s37 + $0x2b8] sm:$0xff]
    %v3944 = vld [vmem:[%s37 + $0x2c0] sm:$0xff]
    %v3945 = vld [vmem:[%s37 + $0x2c8] sm:$0xff]
    %v3946 = vld [vmem:[%s37 + $0x2d0] sm:$0xff]
    %v3947 = vld [vmem:[%s37 + $0x2d8] sm:$0xff]
    %v3948 = vld [vmem:[%s37 + $0x2e0] sm:$0xff]
    %v3949 = vld [vmem:[%s37 + $0x2e8] sm:$0xff]
    %v3950 = vld [vmem:[%s37 + $0x2f0] sm:$0xff]
    %v3951 = vld [vmem:[%s37 + $0x2f8] sm:$0xff]
    %v3952 = vld [vmem:[%s37 + $0x300] sm:$0xff]
    %v3953 = vld [vmem:[%s37 + $0x308] sm:$0xff]
    %v3954 = vld [vmem:[%s37 + $0x310] sm:$0xff]
    %v3955 = vld [vmem:[%s37 + $0x318] sm:$0xff]
    %v3956 = vld [vmem:[%s37 + $0x320] sm:$0xff]
    %v3957 = vld [vmem:[%s37 + $0x328] sm:$0xff]
    %v3958 = vld [vmem:[%s37 + $0x330] sm:$0xff]
    %v3959 = vld [vmem:[%s37 + $0x338] sm:$0xff]
    %v3960 = vld [vmem:[%s37 + $0x340] sm:$0xff]
    %v3961 = vld [vmem:[%s37 + $0x348] sm:$0xff]
    %v3962 = vld [vmem:[%s37 + $0x350] sm:$0xff]
    %v3963 = vld [vmem:[%s37 + $0x358] sm:$0xff]
    %v3964 = vld [vmem:[%s37 + $0x360] sm:$0xff]
    %v3965 = vld [vmem:[%s37 + $0x368] sm:$0xff]
    %v3966 = vld [vmem:[%s37 + $0x370] sm:$0xff]
    %v3967 = vld [vmem:[%s37 + $0x378] sm:$0xff]
    %v3968 = vld [vmem:[%s37 + $0x380] sm:$0xff]
    %v3969 = vld [vmem:[%s37 + $0x388] sm:$0xff]
    %v3970 = vld [vmem:[%s37 + $0x390] sm:$0xff]
    %v3971 = vld [vmem:[%s37 + $0x398] sm:$0xff]
    %v3972 = vld [vmem:[%s37 + $0x3a0] sm:$0xff]
    %v3973 = vld [vmem:[%s37 + $0x3a8] sm:$0xff]
    %v3974 = vld [vmem:[%s37 + $0x3b0] sm:$0xff]
    %v3975 = vld [vmem:[%s37 + $0x3b8] sm:$0xff]
    %v3976 = vld [vmem:[%s37 + $0x3c0] sm:$0xff]
    %v3977 = vld [vmem:[%s37 + $0x3c8] sm:$0xff]
    %v3978 = vld [vmem:[%s37 + $0x3d0] sm:$0xff]
    %v3979 = vld [vmem:[%s37 + $0x3d8] sm:$0xff]
    %v3980 = vld [vmem:[%s37 + $0x3e0] sm:$0xff]
    %v3981 = vld [vmem:[%s37 + $0x3e8] sm:$0xff]
    %v3982 = vld [vmem:[%s37 + $0x3f0] sm:$0xff]
    %v3983 = vld [vmem:[%s37 + $0x3f8] sm:$0xff]
    %v3984 = vld [vmem:[%s37 + $0x400] sm:$0xff]
    %v3985 = vld [vmem:[%s37 + $0x408] sm:$0xff]
    %v3986 = vld [vmem:[%s37 + $0x410] sm:$0xff]
    %v3987 = vld [vmem:[%s37 + $0x418] sm:$0xff]
    %v3988 = vld [vmem:[%s37 + $0x420] sm:$0xff]
    %v3989 = vld [vmem:[%s37 + $0x428] sm:$0xff]
    %v3990 = vld [vmem:[%s37 + $0x430] sm:$0xff]
    %v3991 = vld [vmem:[%s37 + $0x438] sm:$0xff]
    %v3992 = vld [vmem:[%s37 + $0x440] sm:$0xff]
    %v3993 = vld [vmem:[%s37 + $0x448] sm:$0xff]
    %v3994 = vld [vmem:[%s37 + $0x450] sm:$0xff]
    %v3995 = vld [vmem:[%s37 + $0x458] sm:$0xff]
    %v3996 = vld [vmem:[%s37 + $0x460] sm:$0xff]
    %v3997 = vld [vmem:[%s37 + $0x468] sm:$0xff]
    %v3998 = vld [vmem:[%s37 + $0x470] sm:$0xff]
    %v3999 = vld [vmem:[%s37 + $0x478] sm:$0xff]
    %v4000 = vld [vmem:[%s37 + $0x480] sm:$0xff]
    %v4001 = vld [vmem:[%s37 + $0x488] sm:$0xff]
    %v4002 = vld [vmem:[%s37 + $0x490] sm:$0xff]
    %v4003 = vld [vmem:[%s37 + $0x498] sm:$0xff]
    %v4004 = vld [vmem:[%s37 + $0x4a0] sm:$0xff]
    %v4005 = vld [vmem:[%s37 + $0x4a8] sm:$0xff]
    %v4006 = vld [vmem:[%s37 + $0x4b0] sm:$0xff]
    %v4007 = vld [vmem:[%s37 + $0x4b8] sm:$0xff]
    %v4008 = vld [vmem:[%s37 + $0x4c0] sm:$0xff]
    %v4009 = vld [vmem:[%s37 + $0x4c8] sm:$0xff]
    %v4010 = vld [vmem:[%s37 + $0x4d0] sm:$0xff]
    %v4011 = vld [vmem:[%s37 + $0x4d8] sm:$0xff]
    %v4012 = vld [vmem:[%s37 + $0x4e0] sm:$0xff]
    %v4013 = vld [vmem:[%s37 + $0x4e8] sm:$0xff]
    %v4014 = vld [vmem:[%s37 + $0x4f0] sm:$0xff]
    %v4015 = vld [vmem:[%s37 + $0x4f8] sm:$0xff]
    %v4016 = vld [vmem:[%s37 + $0x500] sm:$0xff]
    %v4017 = vld [vmem:[%s37 + $0x508] sm:$0xff]
    %v4018 = vld [vmem:[%s37 + $0x510] sm:$0xff]
    %v4019 = vld [vmem:[%s37 + $0x518] sm:$0xff]
    %v4020 = vld [vmem:[%s37 + $0x520] sm:$0xff]
    %v4021 = vld [vmem:[%s37 + $0x528] sm:$0xff]
    %v4022 = vld [vmem:[%s37 + $0x530] sm:$0xff]
    %v4023 = vld [vmem:[%s37 + $0x538] sm:$0xff]
    %v4024 = vld [vmem:[%s37 + $0x540] sm:$0xff]
    %v4025 = vld [vmem:[%s37 + $0x548] sm:$0xff]
    %v4026 = vld [vmem:[%s37 + $0x550] sm:$0xff]
    %v4027 = vld [vmem:[%s37 + $0x558] sm:$0xff]
    %v4028 = vld [vmem:[%s37 + $0x560] sm:$0xff]
    %v4029 = vld [vmem:[%s37 + $0x568] sm:$0xff]
    %v4030 = vld [vmem:[%s37 + $0x570] sm:$0xff]
    %v4031 = vld [vmem:[%s37 + $0x578] sm:$0xff]
    %v4032 = vld [vmem:[%s37 + $0x580] sm:$0xff]
    %v4033 = vld [vmem:[%s37 + $0x588] sm:$0xff]
    %v4034 = vld [vmem:[%s37 + $0x590] sm:$0xff]
    %v4035 = vld [vmem:[%s37 + $0x598] sm:$0xff]
    %v4036 = vld [vmem:[%s37 + $0x5a0] sm:$0xff]
    %v4037 = vld [vmem:[%s37 + $0x5a8] sm:$0xff]
    %v4038 = vld [vmem:[%s37 + $0x5b0] sm:$0xff]
    %v4039 = vld [vmem:[%s37 + $0x5b8] sm:$0xff]
    %v4040 = vld [vmem:[%s37 + $0x5c0] sm:$0xff]
    %v4041 = vld [vmem:[%s37 + $0x5c8] sm:$0xff]
    %v4042 = vld [vmem:[%s37 + $0x5d0] sm:$0xff]
    %v4043 = vld [vmem:[%s37 + $0x5d8] sm:$0xff]
    %v4044 = vld [vmem:[%s37 + $0x5e0] sm:$0xff]
    %v4045 = vld [vmem:[%s37 + $0x5e8] sm:$0xff]
    %v4046 = vld [vmem:[%s37 + $0x5f0] sm:$0xff]
    %v4047 = vld [vmem:[%s37 + $0x5f8] sm:$0xff]
    %v4048 = vld [vmem:[%s37 + $0x600] sm:$0xff]
    %v4049 = vld [vmem:[%s37 + $0x608] sm:$0xff]
    %v4050 = vld [vmem:[%s37 + $0x610] sm:$0xff]
    %v4051 = vld [vmem:[%s37 + $0x618] sm:$0xff]
    %v4052 = vld [vmem:[%s37 + $0x620] sm:$0xff]
    %v4053 = vld [vmem:[%s37 + $0x628] sm:$0xff]
    %v4054 = vld [vmem:[%s37 + $0x630] sm:$0xff]
    %v4055 = vld [vmem:[%s37 + $0x638] sm:$0xff]
    %v4056 = vld [vmem:[%s37 + $0x640] sm:$0xff]
    %v4057 = vld [vmem:[%s37 + $0x648] sm:$0xff]
    %v4058 = vld [vmem:[%s37 + $0x650] sm:$0xff]
    %v4059 = vld [vmem:[%s37 + $0x658] sm:$0xff]
    %v4060 = vld [vmem:[%s37 + $0x660] sm:$0xff]
    %v4061 = vld [vmem:[%s37 + $0x668] sm:$0xff]
    %v4062 = vld [vmem:[%s37 + $0x670] sm:$0xff]
    %v4063 = vld [vmem:[%s37 + $0x678] sm:$0xff]
    %v4064 = vld [vmem:[%s37 + $0x680] sm:$0xff]
    %v4065 = vld [vmem:[%s37 + $0x688] sm:$0xff]
    %v4066 = vld [vmem:[%s37 + $0x690] sm:$0xff]
    %v4067 = vld [vmem:[%s37 + $0x698] sm:$0xff]
    %v4068 = vld [vmem:[%s37 + $0x6a0] sm:$0xff]
    %v4069 = vld [vmem:[%s37 + $0x6a8] sm:$0xff]
    %v4070 = vld [vmem:[%s37 + $0x6b0] sm:$0xff]
    %v4071 = vld [vmem:[%s37 + $0x6b8] sm:$0xff]
    %v4072 = vld [vmem:[%s37 + $0x6c0] sm:$0xff]
    %v4073 = vld [vmem:[%s37 + $0x6c8] sm:$0xff]
    %v4074 = vld [vmem:[%s37 + $0x6d0] sm:$0xff]
    %v4075 = vld [vmem:[%s37 + $0x6d8] sm:$0xff]
    %v4076 = vld [vmem:[%s37 + $0x6e0] sm:$0xff]
    %v4077 = vld [vmem:[%s37 + $0x6e8] sm:$0xff]
    %v4078 = vld [vmem:[%s37 + $0x6f0] sm:$0xff]
    %v4079 = vld [vmem:[%s37 + $0x6f8] sm:$0xff]
    %v4080 = vld [vmem:[%s37 + $0x700] sm:$0xff]
    %v4081 = vld [vmem:[%s37 + $0x708] sm:$0xff]
    %v4082 = vld [vmem:[%s37 + $0x710] sm:$0xff]
    %v4083 = vld [vmem:[%s37 + $0x718] sm:$0xff]
    %v4084 = vld [vmem:[%s37 + $0x720] sm:$0xff]
    %v4085 = vld [vmem:[%s37 + $0x728] sm:$0xff]
    %v4086 = vld [vmem:[%s37 + $0x730] sm:$0xff]
    %v4087 = vld [vmem:[%s37 + $0x738] sm:$0xff]
    %v4088 = vld [vmem:[%s37 + $0x740] sm:$0xff]
    %v4089 = vld [vmem:[%s37 + $0x748] sm:$0xff]
    %v4090 = vld [vmem:[%s37 + $0x750] sm:$0xff]
    %v4091 = vld [vmem:[%s37 + $0x758] sm:$0xff]
    %v4092 = vld [vmem:[%s37 + $0x760] sm:$0xff]
    %v4093 = vld [vmem:[%s37 + $0x768] sm:$0xff]
    %v4094 = vld [vmem:[%s37 + $0x770] sm:$0xff]
    %v4095 = vld [vmem:[%s37 + $0x778] sm:$0xff]
    %v4096 = vld [vmem:[%s37 + $0x780] sm:$0xff]
    %v4097 = vld [vmem:[%s37 + $0x788] sm:$0xff]
    %v4098 = vld [vmem:[%s37 + $0x790] sm:$0xff]
    %v4099 = vld [vmem:[%s37 + $0x798] sm:$0xff]
    %v4100 = vld [vmem:[%s37 + $0x7a0] sm:$0xff]
    %v4101 = vld [vmem:[%s37 + $0x7a8] sm:$0xff]
    %v4102 = vld [vmem:[%s37 + $0x7b0] sm:$0xff]
    %v4103 = vld [vmem:[%s37 + $0x7b8] sm:$0xff]
    %v4104 = vld [vmem:[%s37 + $0x7c0] sm:$0xff]
    %v4105 = vld [vmem:[%s37 + $0x7c8] sm:$0xff]
    %v4106 = vld [vmem:[%s37 + $0x7d0] sm:$0xff]
    %v4107 = vld [vmem:[%s37 + $0x7d8] sm:$0xff]
    %v4108 = vld [vmem:[%s37 + $0x7e0] sm:$0xff]
    %v4109 = vld [vmem:[%s37 + $0x7e8] sm:$0xff]
    %v4110 = vld [vmem:[%s37 + $0x7f0] sm:$0xff]
    %v4111 = vld [vmem:[%s37 + $0x7f8] sm:$0xff]
    %v4112 = vld [vmem:[%s37 + $0x800] sm:$0xff]
    %v4113 = vld [vmem:[%s37 + $0x808] sm:$0xff]
    %v4114 = vld [vmem:[%s37 + $0x810] sm:$0xff]
    %v4115 = vld [vmem:[%s37 + $0x818] sm:$0xff]
    %v4116 = vld [vmem:[%s37 + $0x820] sm:$0xff]
    %v4117 = vld [vmem:[%s37 + $0x828] sm:$0xff]
    %v4118 = vld [vmem:[%s37 + $0x830] sm:$0xff]
    %v4119 = vld [vmem:[%s37 + $0x838] sm:$0xff]
    %v4120 = vld [vmem:[%s37 + $0x840] sm:$0xff]
    %v4121 = vld [vmem:[%s37 + $0x848] sm:$0xff]
    %v4122 = vld [vmem:[%s37 + $0x850] sm:$0xff]
    %v4123 = vld [vmem:[%s37 + $0x858] sm:$0xff]
    %v4124 = vld [vmem:[%s37 + $0x860] sm:$0xff]
    %v4125 = vld [vmem:[%s37 + $0x868] sm:$0xff]
    %v4126 = vld [vmem:[%s37 + $0x870] sm:$0xff]
    %v4127 = vld [vmem:[%s37 + $0x878] sm:$0xff]
    %v4128 = vld [vmem:[%s37 + $0x880] sm:$0xff]
    %v4129 = vld [vmem:[%s37 + $0x888] sm:$0xff]
    %v4130 = vld [vmem:[%s37 + $0x890] sm:$0xff]
    %v4131 = vld [vmem:[%s37 + $0x898] sm:$0xff]
    %v4132 = vld [vmem:[%s37 + $0x8a0] sm:$0xff]
    %v4133 = vld [vmem:[%s37 + $0x8a8] sm:$0xff]
    %v4134 = vld [vmem:[%s37 + $0x8b0] sm:$0xff]
    %v4135 = vld [vmem:[%s37 + $0x8b8] sm:$0xff]
    %v4136 = vld [vmem:[%s37 + $0x8c0] sm:$0xff]
    %v4137 = vld [vmem:[%s37 + $0x8c8] sm:$0xff]
    %v4138 = vld [vmem:[%s37 + $0x8d0] sm:$0xff]
    %v4139 = vld [vmem:[%s37 + $0x8d8] sm:$0xff]
    %v4140 = vld [vmem:[%s37 + $0x8e0] sm:$0xff]
    %v4141 = vld [vmem:[%s37 + $0x8e8] sm:$0xff]
    %v4142 = vld [vmem:[%s37 + $0x8f0] sm:$0xff]
    %v4143 = vld [vmem:[%s37 + $0x8f8] sm:$0xff]
    %v4144 = vld [vmem:[%s37 + $0x900] sm:$0xff]
    %v4145 = vld [vmem:[%s37 + $0x908] sm:$0xff]
    %v4146 = vld [vmem:[%s37 + $0x910] sm:$0xff]
    %v4147 = vld [vmem:[%s37 + $0x918] sm:$0xff]
    %v4148 = vld [vmem:[%s37 + $0x920] sm:$0xff]
    %v4149 = vld [vmem:[%s37 + $0x928] sm:$0xff]
    %v4150 = vld [vmem:[%s37 + $0x930] sm:$0xff]
    %v4151 = vld [vmem:[%s37 + $0x938] sm:$0xff]
    %v4152 = vld [vmem:[%s37 + $0x940] sm:$0xff]
    %v4153 = vld [vmem:[%s37 + $0x948] sm:$0xff]
    %v4154 = vld [vmem:[%s37 + $0x950] sm:$0xff]
    %v4155 = vld [vmem:[%s37 + $0x958] sm:$0xff]
    %v4156 = vld [vmem:[%s37 + $0x960] sm:$0xff]
    %v4157 = vld [vmem:[%s37 + $0x968] sm:$0xff]
    %v4158 = vld [vmem:[%s37 + $0x970] sm:$0xff]
    %v4159 = vld [vmem:[%s37 + $0x978] sm:$0xff]
    %v4160 = vld [vmem:[%s37 + $0x980] sm:$0xff]
    %v4161 = vld [vmem:[%s37 + $0x988] sm:$0xff]
    %v4162 = vld [vmem:[%s37 + $0x990] sm:$0xff]
    %v4163 = vld [vmem:[%s37 + $0x998] sm:$0xff]
    %v4164 = vld [vmem:[%s37 + $0x9a0] sm:$0xff]
    %v4165 = vld [vmem:[%s37 + $0x9a8] sm:$0xff]
    %v4166 = vld [vmem:[%s37 + $0x9b0] sm:$0xff]
    %v4167 = vld [vmem:[%s37 + $0x9b8] sm:$0xff]
    %v4168 = vld [vmem:[%s37 + $0x9c0] sm:$0xff]
    %v4169 = vld [vmem:[%s37 + $0x9c8] sm:$0xff]
    %v4170 = vld [vmem:[%s37 + $0x9d0] sm:$0xff]
    %v4171 = vld [vmem:[%s37 + $0x9d8] sm:$0xff]
    %v4172 = vld [vmem:[%s37 + $0x9e0] sm:$0xff]
    %v4173 = vld [vmem:[%s37 + $0x9e8] sm:$0xff]
    %v4174 = vld [vmem:[%s37 + $0x9f0] sm:$0xff]
    %v4175 = vld [vmem:[%s37 + $0x9f8] sm:$0xff]
    %v4176 = vld [vmem:[%s37 + $0xa00] sm:$0xff]
    %v4177 = vld [vmem:[%s37 + $0xa08] sm:$0xff]
    %v4178 = vld [vmem:[%s37 + $0xa10] sm:$0xff]
    %v4179 = vld [vmem:[%s37 + $0xa18] sm:$0xff]
    %v4180 = vld [vmem:[%s37 + $0xa20] sm:$0xff]
    %v4181 = vld [vmem:[%s37 + $0xa28] sm:$0xff]
    %v4182 = vld [vmem:[%s37 + $0xa30] sm:$0xff]
    %v4183 = vld [vmem:[%s37 + $0xa38] sm:$0xff]
    %v4184 = vld [vmem:[%s37 + $0xa40] sm:$0xff]
    %v4185 = vld [vmem:[%s37 + $0xa48] sm:$0xff]
    %v4186 = vld [vmem:[%s37 + $0xa50] sm:$0xff]
    %v4187 = vld [vmem:[%s37 + $0xa58] sm:$0xff]
    %v4188 = vld [vmem:[%s37 + $0xa60] sm:$0xff]
    %v4189 = vld [vmem:[%s37 + $0xa68] sm:$0xff]
    %v4190 = vld [vmem:[%s37 + $0xa70] sm:$0xff]
    %v4191 = vld [vmem:[%s37 + $0xa78] sm:$0xff]
    %v4192 = vld [vmem:[%s37 + $0xa80] sm:$0xff]
    %v4193 = vld [vmem:[%s37 + $0xa88] sm:$0xff]
    %v4194 = vld [vmem:[%s37 + $0xa90] sm:$0xff]
    %v4195 = vld [vmem:[%s37 + $0xa98] sm:$0xff]
    %v4196 = vld [vmem:[%s37 + $0xaa0] sm:$0xff]
    %v4197 = vld [vmem:[%s37 + $0xaa8] sm:$0xff]
    %v4198 = vld [vmem:[%s37 + $0xab0] sm:$0xff]
    %v4199 = vld [vmem:[%s37 + $0xab8] sm:$0xff]
    %v4200 = vld [vmem:[%s37 + $0xac0] sm:$0xff]
    %v4201 = vld [vmem:[%s37 + $0xac8] sm:$0xff]
    %v4202 = vld [vmem:[%s37 + $0xad0] sm:$0xff]
    %v4203 = vld [vmem:[%s37 + $0xad8] sm:$0xff]
    %v4204 = vld [vmem:[%s37 + $0xae0] sm:$0xff]
    %v4205 = vld [vmem:[%s37 + $0xae8] sm:$0xff]
    %v4206 = vld [vmem:[%s37 + $0xaf0] sm:$0xff]
    %v4207 = vld [vmem:[%s37 + $0xaf8] sm:$0xff]
    %v4208 = vld [vmem:[%s37 + $0xb00] sm:$0xff]
    %v4209 = vld [vmem:[%s37 + $0xb08] sm:$0xff]
    %v4210 = vld [vmem:[%s37 + $0xb10] sm:$0xff]
    %v4211 = vld [vmem:[%s37 + $0xb18] sm:$0xff]
    %v4212 = vld [vmem:[%s37 + $0xb20] sm:$0xff]
    %v4213 = vld [vmem:[%s37 + $0xb28] sm:$0xff]
    %v4214 = vld [vmem:[%s37 + $0xb30] sm:$0xff]
    %v4215 = vld [vmem:[%s37 + $0xb38] sm:$0xff]
    %v4216 = vld [vmem:[%s37 + $0xb40] sm:$0xff]
    %v4217 = vld [vmem:[%s37 + $0xb48] sm:$0xff]
    %v4218 = vld [vmem:[%s37 + $0xb50] sm:$0xff]
    %v4219 = vld [vmem:[%s37 + $0xb58] sm:$0xff]
    %v4220 = vld [vmem:[%s37 + $0xb60] sm:$0xff]
    %v4221 = vld [vmem:[%s37 + $0xb68] sm:$0xff]
    %v4222 = vld [vmem:[%s37 + $0xb70] sm:$0xff]
    %v4223 = vld [vmem:[%s37 + $0xb78] sm:$0xff]
    %v4224 = vld [vmem:[%s37 + $0xb80] sm:$0xff]
    %v4225 = vld [vmem:[%s37 + $0xb88] sm:$0xff]
    %v4226 = vld [vmem:[%s37 + $0xb90] sm:$0xff]
    %v4227 = vld [vmem:[%s37 + $0xb98] sm:$0xff]
    %v4228 = vld [vmem:[%s37 + $0xba0] sm:$0xff]
    %v4229 = vld [vmem:[%s37 + $0xba8] sm:$0xff]
    %v4230 = vld [vmem:[%s37 + $0xbb0] sm:$0xff]
    %v4231 = vld [vmem:[%s37 + $0xbb8] sm:$0xff]
    %v4232 = vld [vmem:[%s37 + $0xbc0] sm:$0xff]
    %v4233 = vld [vmem:[%s37 + $0xbc8] sm:$0xff]
    %v4234 = vld [vmem:[%s37 + $0xbd0] sm:$0xff]
    %v4235 = vld [vmem:[%s37 + $0xbd8] sm:$0xff]
    %v4236 = vld [vmem:[%s37 + $0xbe0] sm:$0xff]
    %v4237 = vld [vmem:[%s37 + $0xbe8] sm:$0xff]
    %v4238 = vld [vmem:[%s37 + $0xbf0] sm:$0xff]
    %v4239 = vld [vmem:[%s37 + $0xbf8] sm:$0xff]
    %v4240 = vld [vmem:[%s37 + $0xc00] sm:$0xff]
    %v4241 = vld [vmem:[%s37 + $0xc08] sm:$0xff]
    %v4242 = vld [vmem:[%s37 + $0xc10] sm:$0xff]
    %v4243 = vld [vmem:[%s37 + $0xc18] sm:$0xff]
    %v4244 = vld [vmem:[%s37 + $0xc20] sm:$0xff]
    %v4245 = vld [vmem:[%s37 + $0xc28] sm:$0xff]
    %v4246 = vld [vmem:[%s37 + $0xc30] sm:$0xff]
    %v4247 = vld [vmem:[%s37 + $0xc38] sm:$0xff]
    %v4248 = vld [vmem:[%s37 + $0xc40] sm:$0xff]
    %v4249 = vld [vmem:[%s37 + $0xc48] sm:$0xff]
    %v4250 = vld [vmem:[%s37 + $0xc50] sm:$0xff]
    %v4251 = vld [vmem:[%s37 + $0xc58] sm:$0xff]
    %v4252 = vld [vmem:[%s37 + $0xc60] sm:$0xff]
    %v4253 = vld [vmem:[%s37 + $0xc68] sm:$0xff]
    %v4254 = vld [vmem:[%s37 + $0xc70] sm:$0xff]
    %v4255 = vld [vmem:[%s37 + $0xc78] sm:$0xff]
    %v4256 = vld [vmem:[%s37 + $0xc80] sm:$0xff]
    %v4257 = vld [vmem:[%s37 + $0xc88] sm:$0xff]
    %v4258 = vld [vmem:[%s37 + $0xc90] sm:$0xff]
    %v4259 = vld [vmem:[%s37 + $0xc98] sm:$0xff]
    %v4260 = vld [vmem:[%s37 + $0xca0] sm:$0xff]
    %v4261 = vld [vmem:[%s37 + $0xca8] sm:$0xff]
    %v4262 = vld [vmem:[%s37 + $0xcb0] sm:$0xff]
    %v4263 = vld [vmem:[%s37 + $0xcb8] sm:$0xff]
    %v4264 = vld [vmem:[%s37 + $0xcc0] sm:$0xff]
    %v4265 = vld [vmem:[%s37 + $0xcc8] sm:$0xff]
    %v4266 = vld [vmem:[%s37 + $0xcd0] sm:$0xff]
    %v4267 = vld [vmem:[%s37 + $0xcd8] sm:$0xff]
    %v4268 = vld [vmem:[%s37 + $0xce0] sm:$0xff]
    %v4269 = vld [vmem:[%s37 + $0xce8] sm:$0xff]
    %v4270 = vld [vmem:[%s37 + $0xcf0] sm:$0xff]
    %v4271 = vld [vmem:[%s37 + $0xcf8] sm:$0xff]
    %v4272 = vld [vmem:[%s37 + $0xd00] sm:$0xff]
    %v4273 = vld [vmem:[%s37 + $0xd08] sm:$0xff]
    %v4274 = vld [vmem:[%s37 + $0xd10] sm:$0xff]
    %v4275 = vld [vmem:[%s37 + $0xd18] sm:$0xff]
    %v4276 = vld [vmem:[%s37 + $0xd20] sm:$0xff]
    %v4277 = vld [vmem:[%s37 + $0xd28] sm:$0xff]
    %v4278 = vld [vmem:[%s37 + $0xd30] sm:$0xff]
    %v4279 = vld [vmem:[%s37 + $0xd38] sm:$0xff]
    %v4280 = vld [vmem:[%s37 + $0xd40] sm:$0xff]
    %v4281 = vld [vmem:[%s37 + $0xd48] sm:$0xff]
    %v4282 = vld [vmem:[%s37 + $0xd50] sm:$0xff]
    %v4283 = vld [vmem:[%s37 + $0xd58] sm:$0xff]
    %v4284 = vld [vmem:[%s37 + $0xd60] sm:$0xff]
    %v4285 = vld [vmem:[%s37 + $0xd68] sm:$0xff]
    %v4286 = vld [vmem:[%s37 + $0xd70] sm:$0xff]
    %v4287 = vld [vmem:[%s37 + $0xd78] sm:$0xff]
    %v4288 = vld [vmem:[%s37 + $0xd80] sm:$0xff]
    %v4289 = vld [vmem:[%s37 + $0xd88] sm:$0xff]
    %v4290 = vld [vmem:[%s37 + $0xd90] sm:$0xff]
    %v4291 = vld [vmem:[%s37 + $0xd98] sm:$0xff]
    %v4292 = vld [vmem:[%s37 + $0xda0] sm:$0xff]
    %v4293 = vld [vmem:[%s37 + $0xda8] sm:$0xff]
    %v4294 = vld [vmem:[%s37 + $0xdb0] sm:$0xff]
    %v4295 = vld [vmem:[%s37 + $0xdb8] sm:$0xff]
    %v4296 = vld [vmem:[%s37 + $0xdc0] sm:$0xff]
    %v4297 = vld [vmem:[%s37 + $0xdc8] sm:$0xff]
    %v4298 = vld [vmem:[%s37 + $0xdd0] sm:$0xff]
    %v4299 = vld [vmem:[%s37 + $0xdd8] sm:$0xff]
    %v4300 = vld [vmem:[%s37 + $0xde0] sm:$0xff]
    %v4301 = vld [vmem:[%s37 + $0xde8] sm:$0xff]
    %v4302 = vld [vmem:[%s37 + $0xdf0] sm:$0xff]
    %v4303 = vld [vmem:[%s37 + $0xdf8] sm:$0xff]
    %v4304 = vld [vmem:[%s37 + $0xe00] sm:$0xff]
    %v4305 = vld [vmem:[%s37 + $0xe08] sm:$0xff]
    %v4306 = vld [vmem:[%s37 + $0xe10] sm:$0xff]
    %v4307 = vld [vmem:[%s37 + $0xe18] sm:$0xff]
    %v4308 = vld [vmem:[%s37 + $0xe20] sm:$0xff]
    %v4309 = vld [vmem:[%s37 + $0xe28] sm:$0xff]
    %v4310 = vld [vmem:[%s37 + $0xe30] sm:$0xff]
    %v4311 = vld [vmem:[%s37 + $0xe38] sm:$0xff]
    %v4312 = vld [vmem:[%s37 + $0xe40] sm:$0xff]
    %v4313 = vld [vmem:[%s37 + $0xe48] sm:$0xff]
    %v4314 = vld [vmem:[%s37 + $0xe50] sm:$0xff]
    %v4315 = vld [vmem:[%s37 + $0xe58] sm:$0xff]
    %v4316 = vld [vmem:[%s37 + $0xe60] sm:$0xff]
    %v4317 = vld [vmem:[%s37 + $0xe68] sm:$0xff]
    %v4318 = vld [vmem:[%s37 + $0xe70] sm:$0xff]
    %v4319 = vld [vmem:[%s37 + $0xe78] sm:$0xff]
    %v4320 = vld [vmem:[%s37 + $0xe80] sm:$0xff]
    %v4321 = vld [vmem:[%s37 + $0xe88] sm:$0xff]
    %v4322 = vld [vmem:[%s37 + $0xe90] sm:$0xff]
    %v4323 = vld [vmem:[%s37 + $0xe98] sm:$0xff]
    %v4324 = vld [vmem:[%s37 + $0xea0] sm:$0xff]
    %v4325 = vld [vmem:[%s37 + $0xea8] sm:$0xff]
    %v4326 = vld [vmem:[%s37 + $0xeb0] sm:$0xff]
    %v4327 = vld [vmem:[%s37 + $0xeb8] sm:$0xff]
    %v4328 = vld [vmem:[%s37 + $0xec0] sm:$0xff]
    %v4329 = vld [vmem:[%s37 + $0xec8] sm:$0xff]
    %v4330 = vld [vmem:[%s37 + $0xed0] sm:$0xff]
    %v4331 = vld [vmem:[%s37 + $0xed8] sm:$0xff]
    %v4332 = vld [vmem:[%s37 + $0xee0] sm:$0xff]
    %v4333 = vld [vmem:[%s37 + $0xee8] sm:$0xff]
    %v4334 = vld [vmem:[%s37 + $0xef0] sm:$0xff]
    %v4335 = vld [vmem:[%s37 + $0xef8] sm:$0xff]
    %v4336 = vld [vmem:[%s37 + $0xf00] sm:$0xff]
    %v4337 = vld [vmem:[%s37 + $0xf08] sm:$0xff]
    %v4338 = vld [vmem:[%s37 + $0xf10] sm:$0xff]
    %v4339 = vld [vmem:[%s37 + $0xf18] sm:$0xff]
    %v4340 = vld [vmem:[%s37 + $0xf20] sm:$0xff]
    %v4341 = vld [vmem:[%s37 + $0xf28] sm:$0xff]
    %v4342 = vld [vmem:[%s37 + $0xf30] sm:$0xff]
    %v4343 = vld [vmem:[%s37 + $0xf38] sm:$0xff]
    %v4344 = vld [vmem:[%s37 + $0xf40] sm:$0xff]
    %v4345 = vld [vmem:[%s37 + $0xf48] sm:$0xff]
    %v4346 = vld [vmem:[%s37 + $0xf50] sm:$0xff]
    %v4347 = vld [vmem:[%s37 + $0xf58] sm:$0xff]
    %v4348 = vld [vmem:[%s37 + $0xf60] sm:$0xff]
    %v4349 = vld [vmem:[%s37 + $0xf68] sm:$0xff]
    %v4350 = vld [vmem:[%s37 + $0xf70] sm:$0xff]
    %v4351 = vld [vmem:[%s37 + $0xf78] sm:$0xff]
    %v4352 = vld [vmem:[%s37 + $0xf80] sm:$0xff]
    %v4353 = vld [vmem:[%s37 + $0xf88] sm:$0xff]
    %v4354 = vld [vmem:[%s37 + $0xf90] sm:$0xff]
    %v4355 = vld [vmem:[%s37 + $0xf98] sm:$0xff]
    %v4356 = vld [vmem:[%s37 + $0xfa0] sm:$0xff]
    %v4357 = vld [vmem:[%s37 + $0xfa8] sm:$0xff]
    %v4358 = vld [vmem:[%s37 + $0xfb0] sm:$0xff]
    %v4359 = vld [vmem:[%s37 + $0xfb8] sm:$0xff]
    %v4360 = vld [vmem:[%s37 + $0xfc0] sm:$0xff]
    %v4361 = vld [vmem:[%s37 + $0xfc8] sm:$0xff]
    %v4362 = vld [vmem:[%s37 + $0xfd0] sm:$0xff]
    %v4363 = vld [vmem:[%s37 + $0xfd8] sm:$0xff]
    %v4364 = vld [vmem:[%s37 + $0xfe0] sm:$0xff]
    %v4365 = vld [vmem:[%s37 + $0xfe8] sm:$0xff]
    %v4366 = vld [vmem:[%s37 + $0xff0] sm:$0xff]
    %v4367 = vld [vmem:[%s37 + $0xff8] sm:$0xff]
    %4368 = vmatprep.subr.mxu0 %v3917
    %4369 = vmatpush1.msra.mxu0 %v3916
    %4370 = vmatprep.subr.mxu0 %v3913
    %4371 = vmatpush1.msra.mxu0 %v3912
    %4372 = vmatprep.subr.mxu0 %v3909
    %4373 = vmatpush1.msra.mxu0 %v3908
    %4374 = vmatprep.subr.mxu0 %v3905
    %4375 = vmatpush1.msra.mxu0 %v3904
    %4376 = vmatprep.subr.mxu0 %v3901
    %4377 = vmatpush1.msra.mxu0 %v3900
    %4378 = vmatprep.subr.mxu0 %v3897
    %4379 = vmatpush1.msra.mxu0 %v3896
    %4380 = vmatprep.subr.mxu0 %v3893
    %4381 = vmatpush1.msra.mxu0 %v3892
    %4382 = vmatprep.subr.mxu0 %v3889
    %4383 = vmatpush1.msra.mxu0 %v3888
    %4384 = vmatprep.subr.mxu0 %v3885
    %4385 = vmatpush1.msra.mxu0 %v3884
    %4386 = vmatprep.subr.mxu0 %v3881
    %4387 = vmatpush1.msra.mxu0 %v3880
    %4388 = vmatprep.subr.mxu0 %v3877
    %4389 = vmatpush1.msra.mxu0 %v3876
    %4390 = vmatprep.subr.mxu0 %v3873
    %4391 = vmatpush1.msra.mxu0 %v3872
    %4392 = vmatprep.subr.mxu0 %v3869
    %4393 = vmatpush1.msra.mxu0 %v3868
    %4394 = vmatprep.subr.mxu0 %v3865
    %4395 = vmatpush1.msra.mxu0 %v3864
    %4396 = vmatprep.subr.mxu0 %v3861
    %4397 = vmatpush1.msra.mxu0 %v3860
    %4398 = vmatprep.subr.mxu0 %v3857
    %4399 = vmatpush1.msra.mxu0 %v3856
    %4400 = vmatprep.subr.mxu0 %v3981
    %4401 = vmatpush2.msra.mxu0 %v3980
    %4402 = vmatprep.subr.mxu0 %v3977
    %4403 = vmatpush2.msra.mxu0 %v3976
    %4404 = vmatprep.subr.mxu0 %v3973
    %4405 = vmatpush2.msra.mxu0 %v3972
    %4406 = vmatprep.subr.mxu0 %v3969
    %4407 = vmatpush2.msra.mxu0 %v3968
    %4408 = vmatprep.subr.mxu0 %v3965
    %4409 = vmatpush2.msra.mxu0 %v3964
    %4410 = vmatprep.subr.mxu0 %v3961
    %4411 = vmatpush2.msra.mxu0 %v3960
    %4412 = vmatprep.subr.mxu0 %v3957
    %4413 = vmatpush2.msra.mxu0 %v3956
    %4414 = vmatprep.subr.mxu0 %v3953
    %4415 = vmatpush2.msra.mxu0 %v3952
    %4416 = vmatprep.subr.mxu0 %v3949
    %4417 = vmatpush2.msra.mxu0 %v3948
    %4418 = vmatprep.subr.mxu0 %v3945
    %4419 = vmatpush2.msra.mxu0 %v3944
    %4420 = vmatprep.subr.mxu0 %v3941
    %4421 = vmatpush2.msra.mxu0 %v3940
    %4422 = vmatprep.subr.mxu0 %v3937
    %4423 = vmatpush2.msra.mxu0 %v3936
    %4424 = vmatprep.subr.mxu0 %v3933
    %4425 = vmatpush2.msra.mxu0 %v3932
    %4426 = vmatprep.subr.mxu0 %v3929
    %4427 = vmatpush2.msra.mxu0 %v3928
    %4428 = vmatprep.subr.mxu0 %v3925
    %4429 = vmatpush2.msra.mxu0 %v3924
    %4430 = vmatprep.subr.mxu0 %v3921
    %4431 = vmatpush2.msra.mxu0 %v3920
    %4432 = vmatprep.mubr.f32.mxu0 %v3495
    %4433 = vmatmul.mubr.f32.gmra.mxu0 %v3494
    %v4434 = vpop.f32.mrf.mxu0
    %v4435 = vadd.f32 0.0, %v4434
    %v4436 = vpop.f32.mrf.mxu0
    %v4437 = vadd.f32 0.0, %v4436
    %4438 = vdwg.mxu0
    %4439 = vmatprep.subr.mxu0 %v4045
    %4440 = vmatpush1.msra.mxu0 %v4044
    %4441 = vmatprep.subr.mxu0 %v4041
    %4442 = vmatpush1.msra.mxu0 %v4040
    %4443 = vmatprep.subr.mxu0 %v4037
    %4444 = vmatpush1.msra.mxu0 %v4036
    %4445 = vmatprep.subr.mxu0 %v4033
    %4446 = vmatpush1.msra.mxu0 %v4032
    %4447 = vmatprep.subr.mxu0 %v4029
    %4448 = vmatpush1.msra.mxu0 %v4028
    %4449 = vmatprep.subr.mxu0 %v4025
    %4450 = vmatpush1.msra.mxu0 %v4024
    %4451 = vmatprep.subr.mxu0 %v4021
    %4452 = vmatpush1.msra.mxu0 %v4020
    %4453 = vmatprep.subr.mxu0 %v4017
    %4454 = vmatpush1.msra.mxu0 %v4016
    %4455 = vmatprep.subr.mxu0 %v4013
    %4456 = vmatpush1.msra.mxu0 %v4012
    %4457 = vmatprep.subr.mxu0 %v4009
    %4458 = vmatpush1.msra.mxu0 %v4008
    %4459 = vmatprep.subr.mxu0 %v4005
    %4460 = vmatpush1.msra.mxu0 %v4004
    %4461 = vmatprep.subr.mxu0 %v4001
    %4462 = vmatpush1.msra.mxu0 %v4000
    %4463 = vmatprep.subr.mxu0 %v3997
    %4464 = vmatpush1.msra.mxu0 %v3996
    %4465 = vmatprep.subr.mxu0 %v3993
    %4466 = vmatpush1.msra.mxu0 %v3992
    %4467 = vmatprep.subr.mxu0 %v3989
    %4468 = vmatpush1.msra.mxu0 %v3988
    %4469 = vmatprep.subr.mxu0 %v3985
    %4470 = vmatpush1.msra.mxu0 %v3984
    %4471 = vmatprep.subr.mxu0 %v4109
    %4472 = vmatpush2.msra.mxu0 %v4108
    %4473 = vmatprep.subr.mxu0 %v4105
    %4474 = vmatpush2.msra.mxu0 %v4104
    %4475 = vmatprep.subr.mxu0 %v4101
    %4476 = vmatpush2.msra.mxu0 %v4100
    %4477 = vmatprep.subr.mxu0 %v4097
    %4478 = vmatpush2.msra.mxu0 %v4096
    %4479 = vmatprep.subr.mxu0 %v4093
    %4480 = vmatpush2.msra.mxu0 %v4092
    %4481 = vmatprep.subr.mxu0 %v4089
    %4482 = vmatpush2.msra.mxu0 %v4088
    %4483 = vmatprep.subr.mxu0 %v4085
    %4484 = vmatpush2.msra.mxu0 %v4084
    %4485 = vmatprep.subr.mxu0 %v4081
    %4486 = vmatpush2.msra.mxu0 %v4080
    %4487 = vmatprep.subr.mxu0 %v4077
    %4488 = vmatpush2.msra.mxu0 %v4076
    %4489 = vmatprep.subr.mxu0 %v4073
    %4490 = vmatpush2.msra.mxu0 %v4072
    %4491 = vmatprep.subr.mxu0 %v4069
    %4492 = vmatpush2.msra.mxu0 %v4068
    %4493 = vmatprep.subr.mxu0 %v4065
    %4494 = vmatpush2.msra.mxu0 %v4064
    %4495 = vmatprep.subr.mxu0 %v4061
    %4496 = vmatpush2.msra.mxu0 %v4060
    %4497 = vmatprep.subr.mxu0 %v4057
    %4498 = vmatpush2.msra.mxu0 %v4056
    %4499 = vmatprep.subr.mxu0 %v4053
    %4500 = vmatpush2.msra.mxu0 %v4052
    %4501 = vmatprep.subr.mxu0 %v4049
    %4502 = vmatpush2.msra.mxu0 %v4048
    %4503 = vmatprep.mubr.f32.mxu0 %v3497
    %4504 = vmatmul.mubr.f32.gmra.mxu0 %v3496
    %v4505 = vpop.f32.mrf.mxu0
    %v4506 = vadd.f32 %v4435, %v4505
    %v4507 = vpop.f32.mrf.mxu0
    %v4508 = vadd.f32 %v4437, %v4507
    %4509 = vdwg.mxu0
    %4510 = vmatprep.subr.mxu0 %v4173
    %4511 = vmatpush1.msra.mxu0 %v4172
    %4512 = vmatprep.subr.mxu0 %v4169
    %4513 = vmatpush1.msra.mxu0 %v4168
    %4514 = vmatprep.subr.mxu0 %v4165
    %4515 = vmatpush1.msra.mxu0 %v4164
    %4516 = vmatprep.subr.mxu0 %v4161
    %4517 = vmatpush1.msra.mxu0 %v4160
    %4518 = vmatprep.subr.mxu0 %v4157
    %4519 = vmatpush1.msra.mxu0 %v4156
    %4520 = vmatprep.subr.mxu0 %v4153
    %4521 = vmatpush1.msra.mxu0 %v4152
    %4522 = vmatprep.subr.mxu0 %v4149
    %4523 = vmatpush1.msra.mxu0 %v4148
    %4524 = vmatprep.subr.mxu0 %v4145
    %4525 = vmatpush1.msra.mxu0 %v4144
    %4526 = vmatprep.subr.mxu0 %v4141
    %4527 = vmatpush1.msra.mxu0 %v4140
    %4528 = vmatprep.subr.mxu0 %v4137
    %4529 = vmatpush1.msra.mxu0 %v4136
    %4530 = vmatprep.subr.mxu0 %v4133
    %4531 = vmatpush1.msra.mxu0 %v4132
    %4532 = vmatprep.subr.mxu0 %v4129
    %4533 = vmatpush1.msra.mxu0 %v4128
    %4534 = vmatprep.subr.mxu0 %v4125
    %4535 = vmatpush1.msra.mxu0 %v4124
    %4536 = vmatprep.subr.mxu0 %v4121
    %4537 = vmatpush1.msra.mxu0 %v4120
    %4538 = vmatprep.subr.mxu0 %v4117
    %4539 = vmatpush1.msra.mxu0 %v4116
    %4540 = vmatprep.subr.mxu0 %v4113
    %4541 = vmatpush1.msra.mxu0 %v4112
    %4542 = vmatprep.subr.mxu0 %v4237
    %4543 = vmatpush2.msra.mxu0 %v4236
    %4544 = vmatprep.subr.mxu0 %v4233
    %4545 = vmatpush2.msra.mxu0 %v4232
    %4546 = vmatprep.subr.mxu0 %v4229
    %4547 = vmatpush2.msra.mxu0 %v4228
    %4548 = vmatprep.subr.mxu0 %v4225
    %4549 = vmatpush2.msra.mxu0 %v4224
    %4550 = vmatprep.subr.mxu0 %v4221
    %4551 = vmatpush2.msra.mxu0 %v4220
    %4552 = vmatprep.subr.mxu0 %v4217
    %4553 = vmatpush2.msra.mxu0 %v4216
    %4554 = vmatprep.subr.mxu0 %v4213
    %4555 = vmatpush2.msra.mxu0 %v4212
    %4556 = vmatprep.subr.mxu0 %v4209
    %4557 = vmatpush2.msra.mxu0 %v4208
    %4558 = vmatprep.subr.mxu0 %v4205
    %4559 = vmatpush2.msra.mxu0 %v4204
    %4560 = vmatprep.subr.mxu0 %v4201
    %4561 = vmatpush2.msra.mxu0 %v4200
    %4562 = vmatprep.subr.mxu0 %v4197
    %4563 = vmatpush2.msra.mxu0 %v4196
    %4564 = vmatprep.subr.mxu0 %v4193
    %4565 = vmatpush2.msra.mxu0 %v4192
    %4566 = vmatprep.subr.mxu0 %v4189
    %4567 = vmatpush2.msra.mxu0 %v4188
    %4568 = vmatprep.subr.mxu0 %v4185
    %4569 = vmatpush2.msra.mxu0 %v4184
    %4570 = vmatprep.subr.mxu0 %v4181
    %4571 = vmatpush2.msra.mxu0 %v4180
    %4572 = vmatprep.subr.mxu0 %v4177
    %4573 = vmatpush2.msra.mxu0 %v4176
    %4574 = vmatprep.mubr.f32.mxu0 %v3499
    %4575 = vmatmul.mubr.f32.gmra.mxu0 %v3498
    %v4576 = vpop.f32.mrf.mxu0
    %v4577 = vadd.f32 %v4506, %v4576
    %v4578 = vpop.f32.mrf.mxu0
    %v4579 = vadd.f32 %v4508, %v4578
    %4580 = vdwg.mxu0
    %4581 = vmatprep.subr.mxu0 %v4301
    %4582 = vmatpush1.msra.mxu0 %v4300
    %4583 = vmatprep.subr.mxu0 %v4297
    %4584 = vmatpush1.msra.mxu0 %v4296
    %4585 = vmatprep.subr.mxu0 %v4293
    %4586 = vmatpush1.msra.mxu0 %v4292
    %4587 = vmatprep.subr.mxu0 %v4289
    %4588 = vmatpush1.msra.mxu0 %v4288
    %4589 = vmatprep.subr.mxu0 %v4285
    %4590 = vmatpush1.msra.mxu0 %v4284
    %4591 = vmatprep.subr.mxu0 %v4281
    %4592 = vmatpush1.msra.mxu0 %v4280
    %4593 = vmatprep.subr.mxu0 %v4277
    %4594 = vmatpush1.msra.mxu0 %v4276
    %4595 = vmatprep.subr.mxu0 %v4273
    %4596 = vmatpush1.msra.mxu0 %v4272
    %4597 = vmatprep.subr.mxu0 %v4269
    %4598 = vmatpush1.msra.mxu0 %v4268
    %4599 = vmatprep.subr.mxu0 %v4265
    %4600 = vmatpush1.msra.mxu0 %v4264
    %4601 = vmatprep.subr.mxu0 %v4261
    %4602 = vmatpush1.msra.mxu0 %v4260
    %4603 = vmatprep.subr.mxu0 %v4257
    %4604 = vmatpush1.msra.mxu0 %v4256
    %4605 = vmatprep.subr.mxu0 %v4253
    %4606 = vmatpush1.msra.mxu0 %v4252
    %4607 = vmatprep.subr.mxu0 %v4249
    %4608 = vmatpush1.msra.mxu0 %v4248
    %4609 = vmatprep.subr.mxu0 %v4245
    %4610 = vmatpush1.msra.mxu0 %v4244
    %4611 = vmatprep.subr.mxu0 %v4241
    %4612 = vmatpush1.msra.mxu0 %v4240
    %4613 = vmatprep.subr.mxu0 %v4365
    %4614 = vmatpush2.msra.mxu0 %v4364
    %4615 = vmatprep.subr.mxu0 %v4361
    %4616 = vmatpush2.msra.mxu0 %v4360
    %4617 = vmatprep.subr.mxu0 %v4357
    %4618 = vmatpush2.msra.mxu0 %v4356
    %4619 = vmatprep.subr.mxu0 %v4353
    %4620 = vmatpush2.msra.mxu0 %v4352
    %4621 = vmatprep.subr.mxu0 %v4349
    %4622 = vmatpush2.msra.mxu0 %v4348
    %4623 = vmatprep.subr.mxu0 %v4345
    %4624 = vmatpush2.msra.mxu0 %v4344
    %4625 = vmatprep.subr.mxu0 %v4341
    %4626 = vmatpush2.msra.mxu0 %v4340
    %4627 = vmatprep.subr.mxu0 %v4337
    %4628 = vmatpush2.msra.mxu0 %v4336
    %4629 = vmatprep.subr.mxu0 %v4333
    %4630 = vmatpush2.msra.mxu0 %v4332
    %4631 = vmatprep.subr.mxu0 %v4329
    %4632 = vmatpush2.msra.mxu0 %v4328
    %4633 = vmatprep.subr.mxu0 %v4325
    %4634 = vmatpush2.msra.mxu0 %v4324
    %4635 = vmatprep.subr.mxu0 %v4321
    %4636 = vmatpush2.msra.mxu0 %v4320
    %4637 = vmatprep.subr.mxu0 %v4317
    %4638 = vmatpush2.msra.mxu0 %v4316
    %4639 = vmatprep.subr.mxu0 %v4313
    %4640 = vmatpush2.msra.mxu0 %v4312
    %4641 = vmatprep.subr.mxu0 %v4309
    %4642 = vmatpush2.msra.mxu0 %v4308
    %4643 = vmatprep.subr.mxu0 %v4305
    %4644 = vmatpush2.msra.mxu0 %v4304
    %4645 = vmatprep.mubr.f32.mxu0 %v3501
    %4646 = vmatmul.mubr.f32.gmra.mxu0 %v3500
    %v4647 = vpop.f32.mrf.mxu0
    %v4648 = vadd.f32 %v4577, %v4647
    %v4649 = vpop.f32.mrf.mxu0
    %v4650 = vadd.f32 %v4579, %v4649
    %4651 = vdwg.mxu0
    %4652 = vmatprep.subr.mxu0 %v3919
    %4653 = vmatpush1.msra.mxu0 %v3918
    %4654 = vmatprep.subr.mxu0 %v3915
    %4655 = vmatpush1.msra.mxu0 %v3914
    %4656 = vmatprep.subr.mxu0 %v3911
    %4657 = vmatpush1.msra.mxu0 %v3910
    %4658 = vmatprep.subr.mxu0 %v3907
    %4659 = vmatpush1.msra.mxu0 %v3906
    %4660 = vmatprep.subr.mxu0 %v3903
    %4661 = vmatpush1.msra.mxu0 %v3902
    %4662 = vmatprep.subr.mxu0 %v3899
    %4663 = vmatpush1.msra.mxu0 %v3898
    %4664 = vmatprep.subr.mxu0 %v3895
    %4665 = vmatpush1.msra.mxu0 %v3894
    %4666 = vmatprep.subr.mxu0 %v3891
    %4667 = vmatpush1.msra.mxu0 %v3890
    %4668 = vmatprep.subr.mxu0 %v3887
    %4669 = vmatpush1.msra.mxu0 %v3886
    %4670 = vmatprep.subr.mxu0 %v3883
    %4671 = vmatpush1.msra.mxu0 %v3882
    %4672 = vmatprep.subr.mxu0 %v3879
    %4673 = vmatpush1.msra.mxu0 %v3878
    %4674 = vmatprep.subr.mxu0 %v3875
    %4675 = vmatpush1.msra.mxu0 %v3874
    %4676 = vmatprep.subr.mxu0 %v3871
    %4677 = vmatpush1.msra.mxu0 %v3870
    %4678 = vmatprep.subr.mxu0 %v3867
    %4679 = vmatpush1.msra.mxu0 %v3866
    %4680 = vmatprep.subr.mxu0 %v3863
    %4681 = vmatpush1.msra.mxu0 %v3862
    %4682 = vmatprep.subr.mxu0 %v3859
    %4683 = vmatpush1.msra.mxu0 %v3858
    %4684 = vmatprep.subr.mxu0 %v3983
    %4685 = vmatpush2.msra.mxu0 %v3982
    %4686 = vmatprep.subr.mxu0 %v3979
    %4687 = vmatpush2.msra.mxu0 %v3978
    %4688 = vmatprep.subr.mxu0 %v3975
    %4689 = vmatpush2.msra.mxu0 %v3974
    %4690 = vmatprep.subr.mxu0 %v3971
    %4691 = vmatpush2.msra.mxu0 %v3970
    %4692 = vmatprep.subr.mxu0 %v3967
    %4693 = vmatpush2.msra.mxu0 %v3966
    %4694 = vmatprep.subr.mxu0 %v3963
    %4695 = vmatpush2.msra.mxu0 %v3962
    %4696 = vmatprep.subr.mxu0 %v3959
    %4697 = vmatpush2.msra.mxu0 %v3958
    %4698 = vmatprep.subr.mxu0 %v3955
    %4699 = vmatpush2.msra.mxu0 %v3954
    %4700 = vmatprep.subr.mxu0 %v3951
    %4701 = vmatpush2.msra.mxu0 %v3950
    %4702 = vmatprep.subr.mxu0 %v3947
    %4703 = vmatpush2.msra.mxu0 %v3946
    %4704 = vmatprep.subr.mxu0 %v3943
    %4705 = vmatpush2.msra.mxu0 %v3942
    %4706 = vmatprep.subr.mxu0 %v3939
    %4707 = vmatpush2.msra.mxu0 %v3938
    %4708 = vmatprep.subr.mxu0 %v3935
    %4709 = vmatpush2.msra.mxu0 %v3934
    %4710 = vmatprep.subr.mxu0 %v3931
    %4711 = vmatpush2.msra.mxu0 %v3930
    %4712 = vmatprep.subr.mxu0 %v3927
    %4713 = vmatpush2.msra.mxu0 %v3926
    %4714 = vmatprep.subr.mxu0 %v3923
    %4715 = vmatpush2.msra.mxu0 %v3922
    %4716 = vmatprep.mubr.f32.mxu0 %v3495
    %4717 = vmatmul.mubr.f32.gmra.mxu0 %v3494
    %v4718 = vpop.f32.mrf.mxu0
    %v4719 = vadd.f32 0.0, %v4718
    %v4720 = vpop.f32.mrf.mxu0
    %v4721 = vadd.f32 0.0, %v4720
    %4722 = vdwg.mxu0
    %4723 = vmatprep.subr.mxu0 %v4047
    %4724 = vmatpush1.msra.mxu0 %v4046
    %4725 = vmatprep.subr.mxu0 %v4043
    %4726 = vmatpush1.msra.mxu0 %v4042
    %4727 = vmatprep.subr.mxu0 %v4039
    %4728 = vmatpush1.msra.mxu0 %v4038
    %4729 = vmatprep.subr.mxu0 %v4035
    %4730 = vmatpush1.msra.mxu0 %v4034
    %4731 = vmatprep.subr.mxu0 %v4031
    %4732 = vmatpush1.msra.mxu0 %v4030
    %4733 = vmatprep.subr.mxu0 %v4027
    %4734 = vmatpush1.msra.mxu0 %v4026
    %4735 = vmatprep.subr.mxu0 %v4023
    %4736 = vmatpush1.msra.mxu0 %v4022
    %4737 = vmatprep.subr.mxu0 %v4019
    %4738 = vmatpush1.msra.mxu0 %v4018
    %4739 = vmatprep.subr.mxu0 %v4015
    %4740 = vmatpush1.msra.mxu0 %v4014
    %4741 = vmatprep.subr.mxu0 %v4011
    %4742 = vmatpush1.msra.mxu0 %v4010
    %4743 = vmatprep.subr.mxu0 %v4007
    %4744 = vmatpush1.msra.mxu0 %v4006
    %4745 = vmatprep.subr.mxu0 %v4003
    %4746 = vmatpush1.msra.mxu0 %v4002
    %4747 = vmatprep.subr.mxu0 %v3999
    %4748 = vmatpush1.msra.mxu0 %v3998
    %4749 = vmatprep.subr.mxu0 %v3995
    %4750 = vmatpush1.msra.mxu0 %v3994
    %4751 = vmatprep.subr.mxu0 %v3991
    %4752 = vmatpush1.msra.mxu0 %v3990
    %4753 = vmatprep.subr.mxu0 %v3987
    %4754 = vmatpush1.msra.mxu0 %v3986
    %4755 = vmatprep.subr.mxu0 %v4111
    %4756 = vmatpush2.msra.mxu0 %v4110
    %4757 = vmatprep.subr.mxu0 %v4107
    %4758 = vmatpush2.msra.mxu0 %v4106
    %4759 = vmatprep.subr.mxu0 %v4103
    %4760 = vmatpush2.msra.mxu0 %v4102
    %4761 = vmatprep.subr.mxu0 %v4099
    %4762 = vmatpush2.msra.mxu0 %v4098
    %4763 = vmatprep.subr.mxu0 %v4095
    %4764 = vmatpush2.msra.mxu0 %v4094
    %4765 = vmatprep.subr.mxu0 %v4091
    %4766 = vmatpush2.msra.mxu0 %v4090
    %4767 = vmatprep.subr.mxu0 %v4087
    %4768 = vmatpush2.msra.mxu0 %v4086
    %4769 = vmatprep.subr.mxu0 %v4083
    %4770 = vmatpush2.msra.mxu0 %v4082
    %4771 = vmatprep.subr.mxu0 %v4079
    %4772 = vmatpush2.msra.mxu0 %v4078
    %4773 = vmatprep.subr.mxu0 %v4075
    %4774 = vmatpush2.msra.mxu0 %v4074
    %4775 = vmatprep.subr.mxu0 %v4071
    %4776 = vmatpush2.msra.mxu0 %v4070
    %4777 = vmatprep.subr.mxu0 %v4067
    %4778 = vmatpush2.msra.mxu0 %v4066
    %4779 = vmatprep.subr.mxu0 %v4063
    %4780 = vmatpush2.msra.mxu0 %v4062
    %4781 = vmatprep.subr.mxu0 %v4059
    %4782 = vmatpush2.msra.mxu0 %v4058
    %4783 = vmatprep.subr.mxu0 %v4055
    %4784 = vmatpush2.msra.mxu0 %v4054
    %4785 = vmatprep.subr.mxu0 %v4051
    %4786 = vmatpush2.msra.mxu0 %v4050
    %4787 = vmatprep.mubr.f32.mxu0 %v3497
    %4788 = vmatmul.mubr.f32.gmra.mxu0 %v3496
    %v4789 = vpop.f32.mrf.mxu0
    %v4790 = vadd.f32 %v4719, %v4789
    %v4791 = vpop.f32.mrf.mxu0
    %v4792 = vadd.f32 %v4721, %v4791
    %4793 = vdwg.mxu0
    %4794 = vmatprep.subr.mxu0 %v4175
    %4795 = vmatpush1.msra.mxu0 %v4174
    %4796 = vmatprep.subr.mxu0 %v4171
    %4797 = vmatpush1.msra.mxu0 %v4170
    %4798 = vmatprep.subr.mxu0 %v4167
    %4799 = vmatpush1.msra.mxu0 %v4166
    %4800 = vmatprep.subr.mxu0 %v4163
    %4801 = vmatpush1.msra.mxu0 %v4162
    %4802 = vmatprep.subr.mxu0 %v4159
    %4803 = vmatpush1.msra.mxu0 %v4158
    %4804 = vmatprep.subr.mxu0 %v4155
    %4805 = vmatpush1.msra.mxu0 %v4154
    %4806 = vmatprep.subr.mxu0 %v4151
    %4807 = vmatpush1.msra.mxu0 %v4150
    %4808 = vmatprep.subr.mxu0 %v4147
    %4809 = vmatpush1.msra.mxu0 %v4146
    %4810 = vmatprep.subr.mxu0 %v4143
    %4811 = vmatpush1.msra.mxu0 %v4142
    %4812 = vmatprep.subr.mxu0 %v4139
    %4813 = vmatpush1.msra.mxu0 %v4138
    %4814 = vmatprep.subr.mxu0 %v4135
    %4815 = vmatpush1.msra.mxu0 %v4134
    %4816 = vmatprep.subr.mxu0 %v4131
    %4817 = vmatpush1.msra.mxu0 %v4130
    %4818 = vmatprep.subr.mxu0 %v4127
    %4819 = vmatpush1.msra.mxu0 %v4126
    %4820 = vmatprep.subr.mxu0 %v4123
    %4821 = vmatpush1.msra.mxu0 %v4122
    %4822 = vmatprep.subr.mxu0 %v4119
    %4823 = vmatpush1.msra.mxu0 %v4118
    %4824 = vmatprep.subr.mxu0 %v4115
    %4825 = vmatpush1.msra.mxu0 %v4114
    %4826 = vmatprep.subr.mxu0 %v4239
    %4827 = vmatpush2.msra.mxu0 %v4238
    %4828 = vmatprep.subr.mxu0 %v4235
    %4829 = vmatpush2.msra.mxu0 %v4234
    %4830 = vmatprep.subr.mxu0 %v4231
    %4831 = vmatpush2.msra.mxu0 %v4230
    %4832 = vmatprep.subr.mxu0 %v4227
    %4833 = vmatpush2.msra.mxu0 %v4226
    %4834 = vmatprep.subr.mxu0 %v4223
    %4835 = vmatpush2.msra.mxu0 %v4222
    %4836 = vmatprep.subr.mxu0 %v4219
    %4837 = vmatpush2.msra.mxu0 %v4218
    %4838 = vmatprep.subr.mxu0 %v4215
    %4839 = vmatpush2.msra.mxu0 %v4214
    %4840 = vmatprep.subr.mxu0 %v4211
    %4841 = vmatpush2.msra.mxu0 %v4210
    %4842 = vmatprep.subr.mxu0 %v4207
    %4843 = vmatpush2.msra.mxu0 %v4206
    %4844 = vmatprep.subr.mxu0 %v4203
    %4845 = vmatpush2.msra.mxu0 %v4202
    %4846 = vmatprep.subr.mxu0 %v4199
    %4847 = vmatpush2.msra.mxu0 %v4198
    %4848 = vmatprep.subr.mxu0 %v4195
    %4849 = vmatpush2.msra.mxu0 %v4194
    %4850 = vmatprep.subr.mxu0 %v4191
    %4851 = vmatpush2.msra.mxu0 %v4190
    %4852 = vmatprep.subr.mxu0 %v4187
    %4853 = vmatpush2.msra.mxu0 %v4186
    %4854 = vmatprep.subr.mxu0 %v4183
    %4855 = vmatpush2.msra.mxu0 %v4182
    %4856 = vmatprep.subr.mxu0 %v4179
    %4857 = vmatpush2.msra.mxu0 %v4178
    %4858 = vmatprep.mubr.f32.mxu0 %v3499
    %4859 = vmatmul.mubr.f32.gmra.mxu0 %v3498
    %v4860 = vpop.f32.mrf.mxu0
    %v4861 = vadd.f32 %v4790, %v4860
    %v4862 = vpop.f32.mrf.mxu0
    %v4863 = vadd.f32 %v4792, %v4862
    %4864 = vdwg.mxu0
    %4865 = vmatprep.subr.mxu0 %v4303
    %4866 = vmatpush1.msra.mxu0 %v4302
    %4867 = vmatprep.subr.mxu0 %v4299
    %4868 = vmatpush1.msra.mxu0 %v4298
    %4869 = vmatprep.subr.mxu0 %v4295
    %4870 = vmatpush1.msra.mxu0 %v4294
    %4871 = vmatprep.subr.mxu0 %v4291
    %4872 = vmatpush1.msra.mxu0 %v4290
    %4873 = vmatprep.subr.mxu0 %v4287
    %4874 = vmatpush1.msra.mxu0 %v4286
    %4875 = vmatprep.subr.mxu0 %v4283
    %4876 = vmatpush1.msra.mxu0 %v4282
    %4877 = vmatprep.subr.mxu0 %v4279
    %4878 = vmatpush1.msra.mxu0 %v4278
    %4879 = vmatprep.subr.mxu0 %v4275
    %4880 = vmatpush1.msra.mxu0 %v4274
    %4881 = vmatprep.subr.mxu0 %v4271
    %4882 = vmatpush1.msra.mxu0 %v4270
    %4883 = vmatprep.subr.mxu0 %v4267
    %4884 = vmatpush1.msra.mxu0 %v4266
    %4885 = vmatprep.subr.mxu0 %v4263
    %4886 = vmatpush1.msra.mxu0 %v4262
    %4887 = vmatprep.subr.mxu0 %v4259
    %4888 = vmatpush1.msra.mxu0 %v4258
    %4889 = vmatprep.subr.mxu0 %v4255
    %4890 = vmatpush1.msra.mxu0 %v4254
    %4891 = vmatprep.subr.mxu0 %v4251
    %4892 = vmatpush1.msra.mxu0 %v4250
    %4893 = vmatprep.subr.mxu0 %v4247
    %4894 = vmatpush1.msra.mxu0 %v4246
    %4895 = vmatprep.subr.mxu0 %v4243
    %4896 = vmatpush1.msra.mxu0 %v4242
    %4897 = vmatprep.subr.mxu0 %v4367
    %4898 = vmatpush2.msra.mxu0 %v4366
    %4899 = vmatprep.subr.mxu0 %v4363
    %4900 = vmatpush2.msra.mxu0 %v4362
    %4901 = vmatprep.subr.mxu0 %v4359
    %4902 = vmatpush2.msra.mxu0 %v4358
    %4903 = vmatprep.subr.mxu0 %v4355
    %4904 = vmatpush2.msra.mxu0 %v4354
    %4905 = vmatprep.subr.mxu0 %v4351
    %4906 = vmatpush2.msra.mxu0 %v4350
    %4907 = vmatprep.subr.mxu0 %v4347
    %4908 = vmatpush2.msra.mxu0 %v4346
    %4909 = vmatprep.subr.mxu0 %v4343
    %4910 = vmatpush2.msra.mxu0 %v4342
    %4911 = vmatprep.subr.mxu0 %v4339
    %4912 = vmatpush2.msra.mxu0 %v4338
    %4913 = vmatprep.subr.mxu0 %v4335
    %4914 = vmatpush2.msra.mxu0 %v4334
    %4915 = vmatprep.subr.mxu0 %v4331
    %4916 = vmatpush2.msra.mxu0 %v4330
    %4917 = vmatprep.subr.mxu0 %v4327
    %4918 = vmatpush2.msra.mxu0 %v4326
    %4919 = vmatprep.subr.mxu0 %v4323
    %4920 = vmatpush2.msra.mxu0 %v4322
    %4921 = vmatprep.subr.mxu0 %v4319
    %4922 = vmatpush2.msra.mxu0 %v4318
    %4923 = vmatprep.subr.mxu0 %v4315
    %4924 = vmatpush2.msra.mxu0 %v4314
    %4925 = vmatprep.subr.mxu0 %v4311
    %4926 = vmatpush2.msra.mxu0 %v4310
    %4927 = vmatprep.subr.mxu0 %v4307
    %4928 = vmatpush2.msra.mxu0 %v4306
    %4929 = vmatprep.mubr.f32.mxu0 %v3501
    %4930 = vmatmul.mubr.f32.gmra.mxu0 %v3500
    %v4931 = vpop.f32.mrf.mxu0
    %v4932 = vadd.f32 %v4861, %v4931
    %v4933 = vpop.f32.mrf.mxu0
    %v4934 = vadd.f32 %v4863, %v4933
    %4935 = vdwg.mxu0
    %v4936 = vlaneseq
    %v4937 = vshrl.u32 %v4936, 7
    %v4938 = vsub.s32 0, %v4937
    %v4939 = vrot.slane %v4648, %v4938
    %v4940 = vlaneseq
    %v4941 = vshrl.u32 %v4940, 7
    %v4942 = vsub.s32 0, %v4941
    %v4943 = vrot.slane %v4650, %v4942
    %v4944 = vlaneseq
    %v4945 = vshrl.u32 %v4944, 7
    %v4946 = vsub.s32 0, %v4945
    %v4947 = vrot.slane %v4932, %v4946
    %v4948 = vlaneseq
    %v4949 = vshrl.u32 %v4948, 7
    %v4950 = vsub.s32 0, %v4949
    %v4951 = vrot.slane %v4934, %v4950
    %v4952 = vadd.f32 %v3601, %v4939
    %v4953 = vadd.f32 %v3603, %v4943
    %v4954 = vadd.f32 %v3762, %v4947
    %v4955 = vadd.f32 %v3764, %v4951
    %v4956 = vadd.f32 %v3607, %v4939
    %v4957 = vadd.f32 %v3609, %v4943
    %v4958 = vadd.f32 %v3768, %v4947
    %v4959 = vadd.f32 %v3770, %v4951
    %v4960 = vadd.f32 %v3613, %v4939
    %v4961 = vadd.f32 %v3615, %v4943
    %v4962 = vadd.f32 %v3774, %v4947
    %v4963 = vadd.f32 %v3776, %v4951
    %v4964 = vadd.f32 %v3619, %v4939
    %v4965 = vadd.f32 %v3621, %v4943
    %v4966 = vadd.f32 %v3780, %v4947
    %v4967 = vadd.f32 %v3782, %v4951
    %v4968 = vadd.f32 %v3625, %v4939
    %v4969 = vadd.f32 %v3627, %v4943
    %v4970 = vadd.f32 %v3786, %v4947
    %v4971 = vadd.f32 %v3788, %v4951
    %v4972 = vadd.f32 %v3631, %v4939
    %v4973 = vadd.f32 %v3633, %v4943
    %v4974 = vadd.f32 %v3792, %v4947
    %v4975 = vadd.f32 %v3794, %v4951
    %v4976 = vadd.f32 %v3637, %v4939
    %v4977 = vadd.f32 %v3639, %v4943
    %v4978 = vadd.f32 %v3798, %v4947
    %v4979 = vadd.f32 %v3800, %v4951
    %v4980 = vadd.f32 %v3643, %v4939
    %v4981 = vadd.f32 %v3645, %v4943
    %v4982 = vadd.f32 %v3804, %v4947
    %v4983 = vadd.f32 %v3806, %v4951
    %v4984 = vlaneseq
    %v4985 = vshrl.u32 %v4984, 7
    %v4986 = vsub.s32 1, %v4985
    %v4987 = vrot.slane %v4648, %v4986
    %v4988 = vlaneseq
    %v4989 = vshrl.u32 %v4988, 7
    %v4990 = vsub.s32 1, %v4989
    %v4991 = vrot.slane %v4650, %v4990
    %v4992 = vlaneseq
    %v4993 = vshrl.u32 %v4992, 7
    %v4994 = vsub.s32 1, %v4993
    %v4995 = vrot.slane %v4932, %v4994
    %v4996 = vlaneseq
    %v4997 = vshrl.u32 %v4996, 7
    %v4998 = vsub.s32 1, %v4997
    %v4999 = vrot.slane %v4934, %v4998
    %v5000 = vadd.f32 %v3649, %v4987
    %v5001 = vadd.f32 %v3651, %v4991
    %v5002 = vadd.f32 %v3810, %v4995
    %v5003 = vadd.f32 %v3812, %v4999
    %v5004 = vadd.f32 %v3655, %v4987
    %v5005 = vadd.f32 %v3657, %v4991
    %v5006 = vadd.f32 %v3816, %v4995
    %v5007 = vadd.f32 %v3818, %v4999
    %v5008 = vadd.f32 %v3661, %v4987
    %v5009 = vadd.f32 %v3663, %v4991
    %v5010 = vadd.f32 %v3822, %v4995
    %v5011 = vadd.f32 %v3824, %v4999
    %v5012 = vadd.f32 %v3667, %v4987
    %v5013 = vadd.f32 %v3669, %v4991
    %v5014 = vadd.f32 %v3828, %v4995
    %v5015 = vadd.f32 %v3830, %v4999
    %v5016 = vadd.f32 %v3673, %v4987
    %v5017 = vadd.f32 %v3675, %v4991
    %v5018 = vadd.f32 %v3834, %v4995
    %v5019 = vadd.f32 %v3836, %v4999
    %v5020 = vadd.f32 %v3679, %v4987
    %v5021 = vadd.f32 %v3681, %v4991
    %v5022 = vadd.f32 %v3840, %v4995
    %v5023 = vadd.f32 %v3842, %v4999
    %v5024 = vadd.f32 %v3685, %v4987
    %v5025 = vadd.f32 %v3687, %v4991
    %v5026 = vadd.f32 %v3846, %v4995
    %v5027 = vadd.f32 %v3848, %v4999
    %v5028 = vadd.f32 %v3691, %v4987
    %v5029 = vadd.f32 %v3693, %v4991
    %v5030 = vadd.f32 %v3852, %v4995
    %v5031 = vadd.f32 %v3854, %v4999
    %v5032 = vld [vmem:[%s39] sm:$0xf]
    %v5034 = vlaneseq
    %v5035 = vshrl.u32 %v5034, 7
    %v5036 = vsub.s32 0, %v5035
    %v5037 = vrot.slane %v5032, %v5036
    %v5038 = vlaneseq
    %v5039 = vshrl.u32 %v5038, 7
    %v5040 = vsub.s32 1, %v5039
    %v5041 = vrot.slane %v5032, %v5040
    %v5042 = vlaneseq
    %v5043 = vshrl.u32 %v5042, 7
    %v5044 = vsub.s32 2, %v5043
    %v5045 = vrot.slane %v5032, %v5044
    %v5046 = vlaneseq
    %v5047 = vshrl.u32 %v5046, 7
    %v5048 = vsub.s32 3, %v5047
    %v5049 = vrot.slane %v5032, %v5048
    %v5054 = vadd.f32 %v4952, %v5037
    %v5055 = vadd.f32 %v4953, %v5041
    %v5056 = vadd.f32 %v4954, %v5045
    %v5057 = vadd.f32 %v4955, %v5049
    %v5058 = vadd.f32 %v4956, %v5037
    %v5059 = vadd.f32 %v4957, %v5041
    %v5060 = vadd.f32 %v4958, %v5045
    %v5061 = vadd.f32 %v4959, %v5049
    %v5062 = vadd.f32 %v4960, %v5037
    %v5063 = vadd.f32 %v4961, %v5041
    %v5064 = vadd.f32 %v4962, %v5045
    %v5065 = vadd.f32 %v4963, %v5049
    %v5066 = vadd.f32 %v4964, %v5037
    %v5067 = vadd.f32 %v4965, %v5041
    %v5068 = vadd.f32 %v4966, %v5045
    %v5069 = vadd.f32 %v4967, %v5049
    %v5070 = vadd.f32 %v4968, %v5037
    %v5071 = vadd.f32 %v4969, %v5041
    %v5072 = vadd.f32 %v4970, %v5045
    %v5073 = vadd.f32 %v4971, %v5049
    %v5074 = vadd.f32 %v4972, %v5037
    %v5075 = vadd.f32 %v4973, %v5041
    %v5076 = vadd.f32 %v4974, %v5045
    %v5077 = vadd.f32 %v4975, %v5049
    %v5078 = vadd.f32 %v4976, %v5037
    %v5079 = vadd.f32 %v4977, %v5041
    %v5080 = vadd.f32 %v4978, %v5045
    %v5081 = vadd.f32 %v4979, %v5049
    %v5082 = vadd.f32 %v4980, %v5037
    %v5083 = vadd.f32 %v4981, %v5041
    %v5084 = vadd.f32 %v4982, %v5045
    %v5085 = vadd.f32 %v4983, %v5049
    %v5086 = vadd.f32 %v5000, %v5037
    %v5087 = vadd.f32 %v5001, %v5041
    %v5088 = vadd.f32 %v5002, %v5045
    %v5089 = vadd.f32 %v5003, %v5049
    %v5090 = vadd.f32 %v5004, %v5037
    %v5091 = vadd.f32 %v5005, %v5041
    %v5092 = vadd.f32 %v5006, %v5045
    %v5093 = vadd.f32 %v5007, %v5049
    %v5094 = vadd.f32 %v5008, %v5037
    %v5095 = vadd.f32 %v5009, %v5041
    %v5096 = vadd.f32 %v5010, %v5045
    %v5097 = vadd.f32 %v5011, %v5049
    %v5098 = vadd.f32 %v5012, %v5037
    %v5099 = vadd.f32 %v5013, %v5041
    %v5100 = vadd.f32 %v5014, %v5045
    %v5101 = vadd.f32 %v5015, %v5049
    %v5102 = vadd.f32 %v5016, %v5037
    %v5103 = vadd.f32 %v5017, %v5041
    %v5104 = vadd.f32 %v5018, %v5045
    %v5105 = vadd.f32 %v5019, %v5049
    %v5106 = vadd.f32 %v5020, %v5037
    %v5107 = vadd.f32 %v5021, %v5041
    %v5108 = vadd.f32 %v5022, %v5045
    %v5109 = vadd.f32 %v5023, %v5049
    %v5110 = vadd.f32 %v5024, %v5037
    %v5111 = vadd.f32 %v5025, %v5041
    %v5112 = vadd.f32 %v5026, %v5045
    %v5113 = vadd.f32 %v5027, %v5049
    %v5114 = vadd.f32 %v5028, %v5037
    %v5115 = vadd.f32 %v5029, %v5041
    %v5116 = vadd.f32 %v5030, %v5045
    %v5117 = vadd.f32 %v5031, %v5049
    %v5118 = vld [vmem:[%s41] sm:$0xf]
    %v5119 = vld [vmem:[%s43] sm:$0xf]
    %v5120 = vadd.f32 %v5054, %v5058
    %v5121 = vadd.f32 %v5120, %v5062
    %v5122 = vadd.f32 %v5121, %v5066
    %v5123 = vadd.f32 %v5122, %v5070
    %v5124 = vadd.f32 %v5123, %v5074
    %v5125 = vadd.f32 %v5124, %v5078
    %v5126 = vadd.f32 %v5125, %v5082
    %v5127 = vadd.f32 %v5126, %v5086
    %v5128 = vadd.f32 %v5127, %v5090
    %v5129 = vadd.f32 %v5128, %v5094
    %v5130 = vadd.f32 %v5129, %v5098
    %v5131 = vadd.f32 %v5130, %v5102
    %v5132 = vadd.f32 %v5131, %v5106
    %v5133 = vadd.f32 %v5132, %v5110
    %v5134 = vadd.f32 %v5133, %v5114
    %v5135 = vrot.slane %v5134, 4
    %v5136 = vadd.f32 %v5134, %v5135
    %v5137 = vrot.slane %v5136, 2
    %v5138 = vadd.f32 %v5136, %v5137
    %v5139 = vrot.slane %v5138, 1
    %v5140 = vadd.f32 %v5138, %v5139
    %v5141 = vadd.f32 %v5055, %v5059
    %v5142 = vadd.f32 %v5141, %v5063
    %v5143 = vadd.f32 %v5142, %v5067
    %v5144 = vadd.f32 %v5143, %v5071
    %v5145 = vadd.f32 %v5144, %v5075
    %v5146 = vadd.f32 %v5145, %v5079
    %v5147 = vadd.f32 %v5146, %v5083
    %v5148 = vadd.f32 %v5147, %v5087
    %v5149 = vadd.f32 %v5148, %v5091
    %v5150 = vadd.f32 %v5149, %v5095
    %v5151 = vadd.f32 %v5150, %v5099
    %v5152 = vadd.f32 %v5151, %v5103
    %v5153 = vadd.f32 %v5152, %v5107
    %v5154 = vadd.f32 %v5153, %v5111
    %v5155 = vadd.f32 %v5154, %v5115
    %v5156 = vrot.slane %v5155, 4
    %v5157 = vadd.f32 %v5155, %v5156
    %v5158 = vrot.slane %v5157, 2
    %v5159 = vadd.f32 %v5157, %v5158
    %v5160 = vrot.slane %v5159, 1
    %v5161 = vadd.f32 %v5159, %v5160
    %v5162 = vadd.f32 %v5056, %v5060
    %v5163 = vadd.f32 %v5162, %v5064
    %v5164 = vadd.f32 %v5163, %v5068
    %v5165 = vadd.f32 %v5164, %v5072
    %v5166 = vadd.f32 %v5165, %v5076
    %v5167 = vadd.f32 %v5166, %v5080
    %v5168 = vadd.f32 %v5167, %v5084
    %v5169 = vadd.f32 %v5168, %v5088
    %v5170 = vadd.f32 %v5169, %v5092
    %v5171 = vadd.f32 %v5170, %v5096
    %v5172 = vadd.f32 %v5171, %v5100
    %v5173 = vadd.f32 %v5172, %v5104
    %v5174 = vadd.f32 %v5173, %v5108
    %v5175 = vadd.f32 %v5174, %v5112
    %v5176 = vadd.f32 %v5175, %v5116
    %v5177 = vrot.slane %v5176, 4
    %v5178 = vadd.f32 %v5176, %v5177
    %v5179 = vrot.slane %v5178, 2
    %v5180 = vadd.f32 %v5178, %v5179
    %v5181 = vrot.slane %v5180, 1
    %v5182 = vadd.f32 %v5180, %v5181
    %v5183 = vadd.f32 %v5057, %v5061
    %v5184 = vadd.f32 %v5183, %v5065
    %v5185 = vadd.f32 %v5184, %v5069
    %v5186 = vadd.f32 %v5185, %v5073
    %v5187 = vadd.f32 %v5186, %v5077
    %v5188 = vadd.f32 %v5187, %v5081
    %v5189 = vadd.f32 %v5188, %v5085
    %v5190 = vadd.f32 %v5189, %v5089
    %v5191 = vadd.f32 %v5190, %v5093
    %v5192 = vadd.f32 %v5191, %v5097
    %v5193 = vadd.f32 %v5192, %v5101
    %v5194 = vadd.f32 %v5193, %v5105
    %v5195 = vadd.f32 %v5194, %v5109
    %v5196 = vadd.f32 %v5195, %v5113
    %v5197 = vadd.f32 %v5196, %v5117
    %v5198 = vrot.slane %v5197, 4
    %v5199 = vadd.f32 %v5197, %v5198
    %v5200 = vrot.slane %v5199, 2
    %v5201 = vadd.f32 %v5199, %v5200
    %v5202 = vrot.slane %v5201, 1
    %v5203 = vadd.f32 %v5201, %v5202
    %v5204 = vmul.f32 %v5140, %v385
    %v5205 = vmul.f32 %v5161, %v385
    %v5206 = vmul.f32 %v5182, %v385
    %v5207 = vmul.f32 %v5203, %v385
    %v5208 = vsub.f32 %v5054, %v5204
    %v5209 = vsub.f32 %v5055, %v5205
    %v5210 = vsub.f32 %v5056, %v5206
    %v5211 = vsub.f32 %v5057, %v5207
    %v5212 = vsub.f32 %v5058, %v5204
    %v5213 = vsub.f32 %v5059, %v5205
    %v5214 = vsub.f32 %v5060, %v5206
    %v5215 = vsub.f32 %v5061, %v5207
    %v5216 = vsub.f32 %v5062, %v5204
    %v5217 = vsub.f32 %v5063, %v5205
    %v5218 = vsub.f32 %v5064, %v5206
    %v5219 = vsub.f32 %v5065, %v5207
    %v5220 = vsub.f32 %v5066, %v5204
    %v5221 = vsub.f32 %v5067, %v5205
    %v5222 = vsub.f32 %v5068, %v5206
    %v5223 = vsub.f32 %v5069, %v5207
    %v5224 = vsub.f32 %v5070, %v5204
    %v5225 = vsub.f32 %v5071, %v5205
    %v5226 = vsub.f32 %v5072, %v5206
    %v5227 = vsub.f32 %v5073, %v5207
    %v5228 = vsub.f32 %v5074, %v5204
    %v5229 = vsub.f32 %v5075, %v5205
    %v5230 = vsub.f32 %v5076, %v5206
    %v5231 = vsub.f32 %v5077, %v5207
    %v5232 = vsub.f32 %v5078, %v5204
    %v5233 = vsub.f32 %v5079, %v5205
    %v5234 = vsub.f32 %v5080, %v5206
    %v5235 = vsub.f32 %v5081, %v5207
    %v5236 = vsub.f32 %v5082, %v5204
    %v5237 = vsub.f32 %v5083, %v5205
    %v5238 = vsub.f32 %v5084, %v5206
    %v5239 = vsub.f32 %v5085, %v5207
    %v5240 = vsub.f32 %v5086, %v5204
    %v5241 = vsub.f32 %v5087, %v5205
    %v5242 = vsub.f32 %v5088, %v5206
    %v5243 = vsub.f32 %v5089, %v5207
    %v5244 = vsub.f32 %v5090, %v5204
    %v5245 = vsub.f32 %v5091, %v5205
    %v5246 = vsub.f32 %v5092, %v5206
    %v5247 = vsub.f32 %v5093, %v5207
    %v5248 = vsub.f32 %v5094, %v5204
    %v5249 = vsub.f32 %v5095, %v5205
    %v5250 = vsub.f32 %v5096, %v5206
    %v5251 = vsub.f32 %v5097, %v5207
    %v5252 = vsub.f32 %v5098, %v5204
    %v5253 = vsub.f32 %v5099, %v5205
    %v5254 = vsub.f32 %v5100, %v5206
    %v5255 = vsub.f32 %v5101, %v5207
    %v5256 = vsub.f32 %v5102, %v5204
    %v5257 = vsub.f32 %v5103, %v5205
    %v5258 = vsub.f32 %v5104, %v5206
    %v5259 = vsub.f32 %v5105, %v5207
    %v5260 = vsub.f32 %v5106, %v5204
    %v5261 = vsub.f32 %v5107, %v5205
    %v5262 = vsub.f32 %v5108, %v5206
    %v5263 = vsub.f32 %v5109, %v5207
    %v5264 = vsub.f32 %v5110, %v5204
    %v5265 = vsub.f32 %v5111, %v5205
    %v5266 = vsub.f32 %v5112, %v5206
    %v5267 = vsub.f32 %v5113, %v5207
    %v5268 = vsub.f32 %v5114, %v5204
    %v5269 = vsub.f32 %v5115, %v5205
    %v5270 = vsub.f32 %v5116, %v5206
    %v5271 = vsub.f32 %v5117, %v5207
    %v5272 = vmul.f32 %v5208, %v5208
    %v5273 = vmul.f32 %v5209, %v5209
    %v5274 = vmul.f32 %v5210, %v5210
    %v5275 = vmul.f32 %v5211, %v5211
    %v5276 = vmul.f32 %v5212, %v5212
    %v5277 = vmul.f32 %v5213, %v5213
    %v5278 = vmul.f32 %v5214, %v5214
    %v5279 = vmul.f32 %v5215, %v5215
    %v5280 = vmul.f32 %v5216, %v5216
    %v5281 = vmul.f32 %v5217, %v5217
    %v5282 = vmul.f32 %v5218, %v5218
    %v5283 = vmul.f32 %v5219, %v5219
    %v5284 = vmul.f32 %v5220, %v5220
    %v5285 = vmul.f32 %v5221, %v5221
    %v5286 = vmul.f32 %v5222, %v5222
    %v5287 = vmul.f32 %v5223, %v5223
    %v5288 = vmul.f32 %v5224, %v5224
    %v5289 = vmul.f32 %v5225, %v5225
    %v5290 = vmul.f32 %v5226, %v5226
    %v5291 = vmul.f32 %v5227, %v5227
    %v5292 = vmul.f32 %v5228, %v5228
    %v5293 = vmul.f32 %v5229, %v5229
    %v5294 = vmul.f32 %v5230, %v5230
    %v5295 = vmul.f32 %v5231, %v5231
    %v5296 = vmul.f32 %v5232, %v5232
    %v5297 = vmul.f32 %v5233, %v5233
    %v5298 = vmul.f32 %v5234, %v5234
    %v5299 = vmul.f32 %v5235, %v5235
    %v5300 = vmul.f32 %v5236, %v5236
    %v5301 = vmul.f32 %v5237, %v5237
    %v5302 = vmul.f32 %v5238, %v5238
    %v5303 = vmul.f32 %v5239, %v5239
    %v5304 = vmul.f32 %v5240, %v5240
    %v5305 = vmul.f32 %v5241, %v5241
    %v5306 = vmul.f32 %v5242, %v5242
    %v5307 = vmul.f32 %v5243, %v5243
    %v5308 = vmul.f32 %v5244, %v5244
    %v5309 = vmul.f32 %v5245, %v5245
    %v5310 = vmul.f32 %v5246, %v5246
    %v5311 = vmul.f32 %v5247, %v5247
    %v5312 = vmul.f32 %v5248, %v5248
    %v5313 = vmul.f32 %v5249, %v5249
    %v5314 = vmul.f32 %v5250, %v5250
    %v5315 = vmul.f32 %v5251, %v5251
    %v5316 = vmul.f32 %v5252, %v5252
    %v5317 = vmul.f32 %v5253, %v5253
    %v5318 = vmul.f32 %v5254, %v5254
    %v5319 = vmul.f32 %v5255, %v5255
    %v5320 = vmul.f32 %v5256, %v5256
    %v5321 = vmul.f32 %v5257, %v5257
    %v5322 = vmul.f32 %v5258, %v5258
    %v5323 = vmul.f32 %v5259, %v5259
    %v5324 = vmul.f32 %v5260, %v5260
    %v5325 = vmul.f32 %v5261, %v5261
    %v5326 = vmul.f32 %v5262, %v5262
    %v5327 = vmul.f32 %v5263, %v5263
    %v5328 = vmul.f32 %v5264, %v5264
    %v5329 = vmul.f32 %v5265, %v5265
    %v5330 = vmul.f32 %v5266, %v5266
    %v5331 = vmul.f32 %v5267, %v5267
    %v5332 = vmul.f32 %v5268, %v5268
    %v5333 = vmul.f32 %v5269, %v5269
    %v5334 = vmul.f32 %v5270, %v5270
    %v5335 = vmul.f32 %v5271, %v5271
    %v5336 = vadd.f32 %v5272, %v5276
    %v5337 = vadd.f32 %v5336, %v5280
    %v5338 = vadd.f32 %v5337, %v5284
    %v5339 = vadd.f32 %v5338, %v5288
    %v5340 = vadd.f32 %v5339, %v5292
    %v5341 = vadd.f32 %v5340, %v5296
    %v5342 = vadd.f32 %v5341, %v5300
    %v5343 = vadd.f32 %v5342, %v5304
    %v5344 = vadd.f32 %v5343, %v5308
    %v5345 = vadd.f32 %v5344, %v5312
    %v5346 = vadd.f32 %v5345, %v5316
    %v5347 = vadd.f32 %v5346, %v5320
    %v5348 = vadd.f32 %v5347, %v5324
    %v5349 = vadd.f32 %v5348, %v5328
    %v5350 = vadd.f32 %v5349, %v5332
    %v5351 = vrot.slane %v5350, 4
    %v5352 = vadd.f32 %v5350, %v5351
    %v5353 = vrot.slane %v5352, 2
    %v5354 = vadd.f32 %v5352, %v5353
    %v5355 = vrot.slane %v5354, 1
    %v5356 = vadd.f32 %v5354, %v5355
    %v5357 = vadd.f32 %v5273, %v5277
    %v5358 = vadd.f32 %v5357, %v5281
    %v5359 = vadd.f32 %v5358, %v5285
    %v5360 = vadd.f32 %v5359, %v5289
    %v5361 = vadd.f32 %v5360, %v5293
    %v5362 = vadd.f32 %v5361, %v5297
    %v5363 = vadd.f32 %v5362, %v5301
    %v5364 = vadd.f32 %v5363, %v5305
    %v5365 = vadd.f32 %v5364, %v5309
    %v5366 = vadd.f32 %v5365, %v5313
    %v5367 = vadd.f32 %v5366, %v5317
    %v5368 = vadd.f32 %v5367, %v5321
    %v5369 = vadd.f32 %v5368, %v5325
    %v5370 = vadd.f32 %v5369, %v5329
    %v5371 = vadd.f32 %v5370, %v5333
    %v5372 = vrot.slane %v5371, 4
    %v5373 = vadd.f32 %v5371, %v5372
    %v5374 = vrot.slane %v5373, 2
    %v5375 = vadd.f32 %v5373, %v5374
    %v5376 = vrot.slane %v5375, 1
    %v5377 = vadd.f32 %v5375, %v5376
    %v5378 = vadd.f32 %v5274, %v5278
    %v5379 = vadd.f32 %v5378, %v5282
    %v5380 = vadd.f32 %v5379, %v5286
    %v5381 = vadd.f32 %v5380, %v5290
    %v5382 = vadd.f32 %v5381, %v5294
    %v5383 = vadd.f32 %v5382, %v5298
    %v5384 = vadd.f32 %v5383, %v5302
    %v5385 = vadd.f32 %v5384, %v5306
    %v5386 = vadd.f32 %v5385, %v5310
    %v5387 = vadd.f32 %v5386, %v5314
    %v5388 = vadd.f32 %v5387, %v5318
    %v5389 = vadd.f32 %v5388, %v5322
    %v5390 = vadd.f32 %v5389, %v5326
    %v5391 = vadd.f32 %v5390, %v5330
    %v5392 = vadd.f32 %v5391, %v5334
    %v5393 = vrot.slane %v5392, 4
    %v5394 = vadd.f32 %v5392, %v5393
    %v5395 = vrot.slane %v5394, 2
    %v5396 = vadd.f32 %v5394, %v5395
    %v5397 = vrot.slane %v5396, 1
    %v5398 = vadd.f32 %v5396, %v5397
    %v5399 = vadd.f32 %v5275, %v5279
    %v5400 = vadd.f32 %v5399, %v5283
    %v5401 = vadd.f32 %v5400, %v5287
    %v5402 = vadd.f32 %v5401, %v5291
    %v5403 = vadd.f32 %v5402, %v5295
    %v5404 = vadd.f32 %v5403, %v5299
    %v5405 = vadd.f32 %v5404, %v5303
    %v5406 = vadd.f32 %v5405, %v5307
    %v5407 = vadd.f32 %v5406, %v5311
    %v5408 = vadd.f32 %v5407, %v5315
    %v5409 = vadd.f32 %v5408, %v5319
    %v5410 = vadd.f32 %v5409, %v5323
    %v5411 = vadd.f32 %v5410, %v5327
    %v5412 = vadd.f32 %v5411, %v5331
    %v5413 = vadd.f32 %v5412, %v5335
    %v5414 = vrot.slane %v5413, 4
    %v5415 = vadd.f32 %v5413, %v5414
    %v5416 = vrot.slane %v5415, 2
    %v5417 = vadd.f32 %v5415, %v5416
    %v5418 = vrot.slane %v5417, 1
    %v5419 = vadd.f32 %v5417, %v5418
    %v5420 = vmul.f32 %v5356, %v385
    %v5421 = vmul.f32 %v5377, %v385
    %v5422 = vmul.f32 %v5398, %v385
    %v5423 = vmul.f32 %v5419, %v385
    %v5424 = vadd.f32 %v5420, 1e-05
    %v5425 = vadd.f32 %v5421, 1e-05
    %v5426 = vadd.f32 %v5422, 1e-05
    %v5427 = vadd.f32 %v5423, 1e-05
    %v5428 = vrsqrt.pop %v5424
    %v5429 = vmul.f32 %v5424, %v5428
    %vm5430 = vcmp.eq.f32.partialorder %v5424, inf
    %v5431 = vsel %vm5430, %v5424, %v5429
    %vm5432 = vcmp.eq.f32.partialorder %v5424, 0.0
    %v5433 = vand.u32 %v5424, 2147483648
    %v5434 = vsel %vm5432, %v5433, %v5431
    %v5435 = vrsqrt.pop %v5425
    %v5436 = vmul.f32 %v5425, %v5435
    %vm5437 = vcmp.eq.f32.partialorder %v5425, inf
    %v5438 = vsel %vm5437, %v5425, %v5436
    %vm5439 = vcmp.eq.f32.partialorder %v5425, 0.0
    %v5440 = vand.u32 %v5425, 2147483648
    %v5441 = vsel %vm5439, %v5440, %v5438
    %v5442 = vrsqrt.pop %v5426
    %v5443 = vmul.f32 %v5426, %v5442
    %vm5444 = vcmp.eq.f32.partialorder %v5426, inf
    %v5445 = vsel %vm5444, %v5426, %v5443
    %vm5446 = vcmp.eq.f32.partialorder %v5426, 0.0
    %v5447 = vand.u32 %v5426, 2147483648
    %v5448 = vsel %vm5446, %v5447, %v5445
    %v5449 = vrsqrt.pop %v5427
    %v5450 = vmul.f32 %v5427, %v5449
    %vm5451 = vcmp.eq.f32.partialorder %v5427, inf
    %v5452 = vsel %vm5451, %v5427, %v5450
    %vm5453 = vcmp.eq.f32.partialorder %v5427, 0.0
    %v5454 = vand.u32 %v5427, 2147483648
    %v5455 = vsel %vm5453, %v5454, %v5452
    %v5460 = vcombine.low %v5434, %v5441
    %v5461 = vcombine.low %v5448, %v5455
    %v5463 = vunpack.c.l.s4 1966171168
    %v5464 = vunpack.c.0.s8 %v5463
    %v5465 = vlaneseq
    %v5466 = vshrl.u32 %v5465, 7
    %v5467 = vsub.s32 %v5464, %v5466
    %v5468 = vrot.slane %v5460, %v5467
    %v5470 = vunpack.c.l.s4 1966171168
    %v5471 = vunpack.c.0.s8 %v5470
    %v5472 = vlaneseq
    %v5473 = vshrl.u32 %v5472, 7
    %v5474 = vsub.s32 %v5471, %v5473
    %v5475 = vrot.slane %v5461, %v5474
    %v5476 = vcombine.low %v5468, %v5475
    %v5478 = vunpack.c.l.s4 1966171168
    %v5479 = vunpack.c.0.s8 %v5478
    %v5480 = vlaneseq
    %v5481 = vshrl.u32 %v5480, 7
    %v5482 = vsub.s32 %v5479, %v5481
    %v5483 = vrot.slane %v5476, %v5482
    %v5485 = vrcp.pop %v5483
    %v5486 = vmul.f32 %v5118, %v5485
    %v5488 = vlaneseq
    %v5489 = vshrl.u32 %v5488, 7
    %v5490 = vsub.s32 0, %v5489
    %v5491 = vrot.slane %v5486, %v5490
    %v5492 = vlaneseq
    %v5493 = vshrl.u32 %v5492, 7
    %v5494 = vsub.s32 1, %v5493
    %v5495 = vrot.slane %v5486, %v5494
    %v5496 = vlaneseq
    %v5497 = vshrl.u32 %v5496, 7
    %v5498 = vsub.s32 2, %v5497
    %v5499 = vrot.slane %v5486, %v5498
    %v5500 = vlaneseq
    %v5501 = vshrl.u32 %v5500, 7
    %v5502 = vsub.s32 3, %v5501
    %v5503 = vrot.slane %v5486, %v5502
    %v5508 = vmul.f32 %v5208, %v5491
    %v5509 = vmul.f32 %v5209, %v5495
    %v5510 = vmul.f32 %v5210, %v5499
    %v5511 = vmul.f32 %v5211, %v5503
    %v5512 = vmul.f32 %v5212, %v5491
    %v5513 = vmul.f32 %v5213, %v5495
    %v5514 = vmul.f32 %v5214, %v5499
    %v5515 = vmul.f32 %v5215, %v5503
    %v5516 = vmul.f32 %v5216, %v5491
    %v5517 = vmul.f32 %v5217, %v5495
    %v5518 = vmul.f32 %v5218, %v5499
    %v5519 = vmul.f32 %v5219, %v5503
    %v5520 = vmul.f32 %v5220, %v5491
    %v5521 = vmul.f32 %v5221, %v5495
    %v5522 = vmul.f32 %v5222, %v5499
    %v5523 = vmul.f32 %v5223, %v5503
    %v5524 = vmul.f32 %v5224, %v5491
    %v5525 = vmul.f32 %v5225, %v5495
    %v5526 = vmul.f32 %v5226, %v5499
    %v5527 = vmul.f32 %v5227, %v5503
    %v5528 = vmul.f32 %v5228, %v5491
    %v5529 = vmul.f32 %v5229, %v5495
    %v5530 = vmul.f32 %v5230, %v5499
    %v5531 = vmul.f32 %v5231, %v5503
    %v5532 = vmul.f32 %v5232, %v5491
    %v5533 = vmul.f32 %v5233, %v5495
    %v5534 = vmul.f32 %v5234, %v5499
    %v5535 = vmul.f32 %v5235, %v5503
    %v5536 = vmul.f32 %v5236, %v5491
    %v5537 = vmul.f32 %v5237, %v5495
    %v5538 = vmul.f32 %v5238, %v5499
    %v5539 = vmul.f32 %v5239, %v5503
    %v5540 = vmul.f32 %v5240, %v5491
    %v5541 = vmul.f32 %v5241, %v5495
    %v5542 = vmul.f32 %v5242, %v5499
    %v5543 = vmul.f32 %v5243, %v5503
    %v5544 = vmul.f32 %v5244, %v5491
    %v5545 = vmul.f32 %v5245, %v5495
    %v5546 = vmul.f32 %v5246, %v5499
    %v5547 = vmul.f32 %v5247, %v5503
    %v5548 = vmul.f32 %v5248, %v5491
    %v5549 = vmul.f32 %v5249, %v5495
    %v5550 = vmul.f32 %v5250, %v5499
    %v5551 = vmul.f32 %v5251, %v5503
    %v5552 = vmul.f32 %v5252, %v5491
    %v5553 = vmul.f32 %v5253, %v5495
    %v5554 = vmul.f32 %v5254, %v5499
    %v5555 = vmul.f32 %v5255, %v5503
    %v5556 = vmul.f32 %v5256, %v5491
    %v5557 = vmul.f32 %v5257, %v5495
    %v5558 = vmul.f32 %v5258, %v5499
    %v5559 = vmul.f32 %v5259, %v5503
    %v5560 = vmul.f32 %v5260, %v5491
    %v5561 = vmul.f32 %v5261, %v5495
    %v5562 = vmul.f32 %v5262, %v5499
    %v5563 = vmul.f32 %v5263, %v5503
    %v5564 = vmul.f32 %v5264, %v5491
    %v5565 = vmul.f32 %v5265, %v5495
    %v5566 = vmul.f32 %v5266, %v5499
    %v5567 = vmul.f32 %v5267, %v5503
    %v5568 = vmul.f32 %v5268, %v5491
    %v5569 = vmul.f32 %v5269, %v5495
    %v5570 = vmul.f32 %v5270, %v5499
    %v5571 = vmul.f32 %v5271, %v5503
    %v5573 = vlaneseq
    %v5574 = vshrl.u32 %v5573, 7
    %v5575 = vsub.s32 0, %v5574
    %v5576 = vrot.slane %v5119, %v5575
    %v5577 = vlaneseq
    %v5578 = vshrl.u32 %v5577, 7
    %v5579 = vsub.s32 1, %v5578
    %v5580 = vrot.slane %v5119, %v5579
    %v5581 = vlaneseq
    %v5582 = vshrl.u32 %v5581, 7
    %v5583 = vsub.s32 2, %v5582
    %v5584 = vrot.slane %v5119, %v5583
    %v5585 = vlaneseq
    %v5586 = vshrl.u32 %v5585, 7
    %v5587 = vsub.s32 3, %v5586
    %v5588 = vrot.slane %v5119, %v5587
    %v5593 = vadd.f32 %v5508, %v5576
    %v5594 = vadd.f32 %v5509, %v5580
    %v5595 = vadd.f32 %v5510, %v5584
    %v5596 = vadd.f32 %v5511, %v5588
    %v5597 = vadd.f32 %v5512, %v5576
    %v5598 = vadd.f32 %v5513, %v5580
    %v5599 = vadd.f32 %v5514, %v5584
    %v5600 = vadd.f32 %v5515, %v5588
    %v5601 = vadd.f32 %v5516, %v5576
    %v5602 = vadd.f32 %v5517, %v5580
    %v5603 = vadd.f32 %v5518, %v5584
    %v5604 = vadd.f32 %v5519, %v5588
    %v5605 = vadd.f32 %v5520, %v5576
    %v5606 = vadd.f32 %v5521, %v5580
    %v5607 = vadd.f32 %v5522, %v5584
    %v5608 = vadd.f32 %v5523, %v5588
    %v5609 = vadd.f32 %v5524, %v5576
    %v5610 = vadd.f32 %v5525, %v5580
    %v5611 = vadd.f32 %v5526, %v5584
    %v5612 = vadd.f32 %v5527, %v5588
    %v5613 = vadd.f32 %v5528, %v5576
    %v5614 = vadd.f32 %v5529, %v5580
    %v5615 = vadd.f32 %v5530, %v5584
    %v5616 = vadd.f32 %v5531, %v5588
    %v5617 = vadd.f32 %v5532, %v5576
    %v5618 = vadd.f32 %v5533, %v5580
    %v5619 = vadd.f32 %v5534, %v5584
    %v5620 = vadd.f32 %v5535, %v5588
    %v5621 = vadd.f32 %v5536, %v5576
    %v5622 = vadd.f32 %v5537, %v5580
    %v5623 = vadd.f32 %v5538, %v5584
    %v5624 = vadd.f32 %v5539, %v5588
    %v5625 = vadd.f32 %v5540, %v5576
    %v5626 = vadd.f32 %v5541, %v5580
    %v5627 = vadd.f32 %v5542, %v5584
    %v5628 = vadd.f32 %v5543, %v5588
    %v5629 = vadd.f32 %v5544, %v5576
    %v5630 = vadd.f32 %v5545, %v5580
    %v5631 = vadd.f32 %v5546, %v5584
    %v5632 = vadd.f32 %v5547, %v5588
    %v5633 = vadd.f32 %v5548, %v5576
    %v5634 = vadd.f32 %v5549, %v5580
    %v5635 = vadd.f32 %v5550, %v5584
    %v5636 = vadd.f32 %v5551, %v5588
    %v5637 = vadd.f32 %v5552, %v5576
    %v5638 = vadd.f32 %v5553, %v5580
    %v5639 = vadd.f32 %v5554, %v5584
    %v5640 = vadd.f32 %v5555, %v5588
    %v5641 = vadd.f32 %v5556, %v5576
    %v5642 = vadd.f32 %v5557, %v5580
    %v5643 = vadd.f32 %v5558, %v5584
    %v5644 = vadd.f32 %v5559, %v5588
    %v5645 = vadd.f32 %v5560, %v5576
    %v5646 = vadd.f32 %v5561, %v5580
    %v5647 = vadd.f32 %v5562, %v5584
    %v5648 = vadd.f32 %v5563, %v5588
    %v5649 = vadd.f32 %v5564, %v5576
    %v5650 = vadd.f32 %v5565, %v5580
    %v5651 = vadd.f32 %v5566, %v5584
    %v5652 = vadd.f32 %v5567, %v5588
    %v5653 = vadd.f32 %v5568, %v5576
    %v5654 = vadd.f32 %v5569, %v5580
    %v5655 = vadd.f32 %v5570, %v5584
    %v5656 = vadd.f32 %v5571, %v5588
    %v5657 = vmax.f32 %v5593, 0.0
    %v5658 = vmax.f32 %v5594, 0.0
    %v5659 = vmax.f32 %v5595, 0.0
    %v5660 = vmax.f32 %v5596, 0.0
    %v5661 = vmax.f32 %v5597, 0.0
    %v5662 = vmax.f32 %v5598, 0.0
    %v5663 = vmax.f32 %v5599, 0.0
    %v5664 = vmax.f32 %v5600, 0.0
    %v5665 = vmax.f32 %v5601, 0.0
    %v5666 = vmax.f32 %v5602, 0.0
    %v5667 = vmax.f32 %v5603, 0.0
    %v5668 = vmax.f32 %v5604, 0.0
    %v5669 = vmax.f32 %v5605, 0.0
    %v5670 = vmax.f32 %v5606, 0.0
    %v5671 = vmax.f32 %v5607, 0.0
    %v5672 = vmax.f32 %v5608, 0.0
    %v5673 = vmax.f32 %v5609, 0.0
    %v5674 = vmax.f32 %v5610, 0.0
    %v5675 = vmax.f32 %v5611, 0.0
    %v5676 = vmax.f32 %v5612, 0.0
    %v5677 = vmax.f32 %v5613, 0.0
    %v5678 = vmax.f32 %v5614, 0.0
    %v5679 = vmax.f32 %v5615, 0.0
    %v5680 = vmax.f32 %v5616, 0.0
    %v5681 = vmax.f32 %v5617, 0.0
    %v5682 = vmax.f32 %v5618, 0.0
    %v5683 = vmax.f32 %v5619, 0.0
    %v5684 = vmax.f32 %v5620, 0.0
    %v5685 = vmax.f32 %v5621, 0.0
    %v5686 = vmax.f32 %v5622, 0.0
    %v5687 = vmax.f32 %v5623, 0.0
    %v5688 = vmax.f32 %v5624, 0.0
    %v5689 = vmax.f32 %v5625, 0.0
    %v5690 = vmax.f32 %v5626, 0.0
    %v5691 = vmax.f32 %v5627, 0.0
    %v5692 = vmax.f32 %v5628, 0.0
    %v5693 = vmax.f32 %v5629, 0.0
    %v5694 = vmax.f32 %v5630, 0.0
    %v5695 = vmax.f32 %v5631, 0.0
    %v5696 = vmax.f32 %v5632, 0.0
    %v5697 = vmax.f32 %v5633, 0.0
    %v5698 = vmax.f32 %v5634, 0.0
    %v5699 = vmax.f32 %v5635, 0.0
    %v5700 = vmax.f32 %v5636, 0.0
    %v5701 = vmax.f32 %v5637, 0.0
    %v5702 = vmax.f32 %v5638, 0.0
    %v5703 = vmax.f32 %v5639, 0.0
    %v5704 = vmax.f32 %v5640, 0.0
    %v5705 = vmax.f32 %v5641, 0.0
    %v5706 = vmax.f32 %v5642, 0.0
    %v5707 = vmax.f32 %v5643, 0.0
    %v5708 = vmax.f32 %v5644, 0.0
    %v5709 = vmax.f32 %v5645, 0.0
    %v5710 = vmax.f32 %v5646, 0.0
    %v5711 = vmax.f32 %v5647, 0.0
    %v5712 = vmax.f32 %v5648, 0.0
    %v5713 = vmax.f32 %v5649, 0.0
    %v5714 = vmax.f32 %v5650, 0.0
    %v5715 = vmax.f32 %v5651, 0.0
    %v5716 = vmax.f32 %v5652, 0.0
    %v5717 = vmax.f32 %v5653, 0.0
    %v5718 = vmax.f32 %v5654, 0.0
    %v5719 = vmax.f32 %v5655, 0.0
    %v5720 = vmax.f32 %v5656, 0.0
    %v5721 = vld [vmem:[%s45] sm:$0xff]
    %v5722 = vld [vmem:[%s45 + $0x8] sm:$0xff]
    %v5723 = vld [vmem:[%s45 + $0x10] sm:$0xff]
    %v5724 = vld [vmem:[%s45 + $0x18] sm:$0xff]
    %v5725 = vld [vmem:[%s45 + $0x20] sm:$0xff]
    %v5726 = vld [vmem:[%s45 + $0x28] sm:$0xff]
    %v5727 = vld [vmem:[%s45 + $0x30] sm:$0xff]
    %v5728 = vld [vmem:[%s45 + $0x38] sm:$0xff]
    %v5729 = vld [vmem:[%s45 + $0x40] sm:$0xff]
    %v5730 = vld [vmem:[%s45 + $0x48] sm:$0xff]
    %v5731 = vld [vmem:[%s45 + $0x50] sm:$0xff]
    %v5732 = vld [vmem:[%s45 + $0x58] sm:$0xff]
    %v5733 = vld [vmem:[%s45 + $0x60] sm:$0xff]
    %v5734 = vld [vmem:[%s45 + $0x68] sm:$0xff]
    %v5735 = vld [vmem:[%s45 + $0x70] sm:$0xff]
    %v5736 = vld [vmem:[%s45 + $0x78] sm:$0xff]
    %v5737 = vld [vmem:[%s45 + $0x80] sm:$0xff]
    %v5738 = vld [vmem:[%s45 + $0x88] sm:$0xff]
    %v5739 = vld [vmem:[%s45 + $0x90] sm:$0xff]
    %v5740 = vld [vmem:[%s45 + $0x98] sm:$0xff]
    %v5741 = vld [vmem:[%s45 + $0xa0] sm:$0xff]
    %v5742 = vld [vmem:[%s45 + $0xa8] sm:$0xff]
    %v5743 = vld [vmem:[%s45 + $0xb0] sm:$0xff]
    %v5744 = vld [vmem:[%s45 + $0xb8] sm:$0xff]
    %v5745 = vld [vmem:[%s45 + $0xc0] sm:$0xff]
    %v5746 = vld [vmem:[%s45 + $0xc8] sm:$0xff]
    %v5747 = vld [vmem:[%s45 + $0xd0] sm:$0xff]
    %v5748 = vld [vmem:[%s45 + $0xd8] sm:$0xff]
    %v5749 = vld [vmem:[%s45 + $0xe0] sm:$0xff]
    %v5750 = vld [vmem:[%s45 + $0xe8] sm:$0xff]
    %v5751 = vld [vmem:[%s45 + $0xf0] sm:$0xff]
    %v5752 = vld [vmem:[%s45 + $0xf8] sm:$0xff]
    %v5753 = vld [vmem:[%s45 + $0x100] sm:$0xff]
    %v5754 = vld [vmem:[%s45 + $0x108] sm:$0xff]
    %v5755 = vld [vmem:[%s45 + $0x110] sm:$0xff]
    %v5756 = vld [vmem:[%s45 + $0x118] sm:$0xff]
    %v5757 = vld [vmem:[%s45 + $0x120] sm:$0xff]
    %v5758 = vld [vmem:[%s45 + $0x128] sm:$0xff]
    %v5759 = vld [vmem:[%s45 + $0x130] sm:$0xff]
    %v5760 = vld [vmem:[%s45 + $0x138] sm:$0xff]
    %v5761 = vld [vmem:[%s45 + $0x140] sm:$0xff]
    %v5762 = vld [vmem:[%s45 + $0x148] sm:$0xff]
    %v5763 = vld [vmem:[%s45 + $0x150] sm:$0xff]
    %v5764 = vld [vmem:[%s45 + $0x158] sm:$0xff]
    %v5765 = vld [vmem:[%s45 + $0x160] sm:$0xff]
    %v5766 = vld [vmem:[%s45 + $0x168] sm:$0xff]
    %v5767 = vld [vmem:[%s45 + $0x170] sm:$0xff]
    %v5768 = vld [vmem:[%s45 + $0x178] sm:$0xff]
    %v5769 = vld [vmem:[%s45 + $0x180] sm:$0xff]
    %v5770 = vld [vmem:[%s45 + $0x188] sm:$0xff]
    %v5771 = vld [vmem:[%s45 + $0x190] sm:$0xff]
    %v5772 = vld [vmem:[%s45 + $0x198] sm:$0xff]
    %v5773 = vld [vmem:[%s45 + $0x1a0] sm:$0xff]
    %v5774 = vld [vmem:[%s45 + $0x1a8] sm:$0xff]
    %v5775 = vld [vmem:[%s45 + $0x1b0] sm:$0xff]
    %v5776 = vld [vmem:[%s45 + $0x1b8] sm:$0xff]
    %v5777 = vld [vmem:[%s45 + $0x1c0] sm:$0xff]
    %v5778 = vld [vmem:[%s45 + $0x1c8] sm:$0xff]
    %v5779 = vld [vmem:[%s45 + $0x1d0] sm:$0xff]
    %v5780 = vld [vmem:[%s45 + $0x1d8] sm:$0xff]
    %v5781 = vld [vmem:[%s45 + $0x1e0] sm:$0xff]
    %v5782 = vld [vmem:[%s45 + $0x1e8] sm:$0xff]
    %v5783 = vld [vmem:[%s45 + $0x1f0] sm:$0xff]
    %v5784 = vld [vmem:[%s45 + $0x1f8] sm:$0xff]
    %v5785 = vld [vmem:[%s45 + $0x200] sm:$0xff]
    %v5786 = vld [vmem:[%s45 + $0x208] sm:$0xff]
    %v5787 = vld [vmem:[%s45 + $0x210] sm:$0xff]
    %v5788 = vld [vmem:[%s45 + $0x218] sm:$0xff]
    %v5789 = vld [vmem:[%s45 + $0x220] sm:$0xff]
    %v5790 = vld [vmem:[%s45 + $0x228] sm:$0xff]
    %v5791 = vld [vmem:[%s45 + $0x230] sm:$0xff]
    %v5792 = vld [vmem:[%s45 + $0x238] sm:$0xff]
    %v5793 = vld [vmem:[%s45 + $0x240] sm:$0xff]
    %v5794 = vld [vmem:[%s45 + $0x248] sm:$0xff]
    %v5795 = vld [vmem:[%s45 + $0x250] sm:$0xff]
    %v5796 = vld [vmem:[%s45 + $0x258] sm:$0xff]
    %v5797 = vld [vmem:[%s45 + $0x260] sm:$0xff]
    %v5798 = vld [vmem:[%s45 + $0x268] sm:$0xff]
    %v5799 = vld [vmem:[%s45 + $0x270] sm:$0xff]
    %v5800 = vld [vmem:[%s45 + $0x278] sm:$0xff]
    %v5801 = vld [vmem:[%s45 + $0x280] sm:$0xff]
    %v5802 = vld [vmem:[%s45 + $0x288] sm:$0xff]
    %v5803 = vld [vmem:[%s45 + $0x290] sm:$0xff]
    %v5804 = vld [vmem:[%s45 + $0x298] sm:$0xff]
    %v5805 = vld [vmem:[%s45 + $0x2a0] sm:$0xff]
    %v5806 = vld [vmem:[%s45 + $0x2a8] sm:$0xff]
    %v5807 = vld [vmem:[%s45 + $0x2b0] sm:$0xff]
    %v5808 = vld [vmem:[%s45 + $0x2b8] sm:$0xff]
    %v5809 = vld [vmem:[%s45 + $0x2c0] sm:$0xff]
    %v5810 = vld [vmem:[%s45 + $0x2c8] sm:$0xff]
    %v5811 = vld [vmem:[%s45 + $0x2d0] sm:$0xff]
    %v5812 = vld [vmem:[%s45 + $0x2d8] sm:$0xff]
    %v5813 = vld [vmem:[%s45 + $0x2e0] sm:$0xff]
    %v5814 = vld [vmem:[%s45 + $0x2e8] sm:$0xff]
    %v5815 = vld [vmem:[%s45 + $0x2f0] sm:$0xff]
    %v5816 = vld [vmem:[%s45 + $0x2f8] sm:$0xff]
    %v5817 = vld [vmem:[%s45 + $0x300] sm:$0xff]
    %v5818 = vld [vmem:[%s45 + $0x308] sm:$0xff]
    %v5819 = vld [vmem:[%s45 + $0x310] sm:$0xff]
    %v5820 = vld [vmem:[%s45 + $0x318] sm:$0xff]
    %v5821 = vld [vmem:[%s45 + $0x320] sm:$0xff]
    %v5822 = vld [vmem:[%s45 + $0x328] sm:$0xff]
    %v5823 = vld [vmem:[%s45 + $0x330] sm:$0xff]
    %v5824 = vld [vmem:[%s45 + $0x338] sm:$0xff]
    %v5825 = vld [vmem:[%s45 + $0x340] sm:$0xff]
    %v5826 = vld [vmem:[%s45 + $0x348] sm:$0xff]
    %v5827 = vld [vmem:[%s45 + $0x350] sm:$0xff]
    %v5828 = vld [vmem:[%s45 + $0x358] sm:$0xff]
    %v5829 = vld [vmem:[%s45 + $0x360] sm:$0xff]
    %v5830 = vld [vmem:[%s45 + $0x368] sm:$0xff]
    %v5831 = vld [vmem:[%s45 + $0x370] sm:$0xff]
    %v5832 = vld [vmem:[%s45 + $0x378] sm:$0xff]
    %v5833 = vld [vmem:[%s45 + $0x380] sm:$0xff]
    %v5834 = vld [vmem:[%s45 + $0x388] sm:$0xff]
    %v5835 = vld [vmem:[%s45 + $0x390] sm:$0xff]
    %v5836 = vld [vmem:[%s45 + $0x398] sm:$0xff]
    %v5837 = vld [vmem:[%s45 + $0x3a0] sm:$0xff]
    %v5838 = vld [vmem:[%s45 + $0x3a8] sm:$0xff]
    %v5839 = vld [vmem:[%s45 + $0x3b0] sm:$0xff]
    %v5840 = vld [vmem:[%s45 + $0x3b8] sm:$0xff]
    %v5841 = vld [vmem:[%s45 + $0x3c0] sm:$0xff]
    %v5842 = vld [vmem:[%s45 + $0x3c8] sm:$0xff]
    %v5843 = vld [vmem:[%s45 + $0x3d0] sm:$0xff]
    %v5844 = vld [vmem:[%s45 + $0x3d8] sm:$0xff]
    %v5845 = vld [vmem:[%s45 + $0x3e0] sm:$0xff]
    %v5846 = vld [vmem:[%s45 + $0x3e8] sm:$0xff]
    %v5847 = vld [vmem:[%s45 + $0x3f0] sm:$0xff]
    %v5848 = vld [vmem:[%s45 + $0x3f8] sm:$0xff]
    %v5849 = vld [vmem:[%s47] sm:$0x3]
    %v5851 = vlaneseq
    %v5852 = vshrl.u32 %v5851, 7
    %v5853 = vsub.s32 0, %v5852
    %v5854 = vrot.slane %v5849, %v5853
    %v5855 = vlaneseq
    %v5856 = vshrl.u32 %v5855, 7
    %v5857 = vsub.s32 1, %v5856
    %v5858 = vrot.slane %v5849, %v5857
    %5861 = vmatprep.subr.mxu0 %v5752
    %5862 = vmatpush1.msra.mxu0 %v5751
    %5863 = vmatprep.subr.mxu0 %v5750
    %5864 = vmatpush1.msra.mxu0 %v5749
    %5865 = vmatprep.subr.mxu0 %v5748
    %5866 = vmatpush1.msra.mxu0 %v5747
    %5867 = vmatprep.subr.mxu0 %v5746
    %5868 = vmatpush1.msra.mxu0 %v5745
    %5869 = vmatprep.subr.mxu0 %v5744
    %5870 = vmatpush1.msra.mxu0 %v5743
    %5871 = vmatprep.subr.mxu0 %v5742
    %5872 = vmatpush1.msra.mxu0 %v5741
    %5873 = vmatprep.subr.mxu0 %v5740
    %5874 = vmatpush1.msra.mxu0 %v5739
    %5875 = vmatprep.subr.mxu0 %v5738
    %5876 = vmatpush1.msra.mxu0 %v5737
    %5877 = vmatprep.subr.mxu0 %v5736
    %5878 = vmatpush1.msra.mxu0 %v5735
    %5879 = vmatprep.subr.mxu0 %v5734
    %5880 = vmatpush1.msra.mxu0 %v5733
    %5881 = vmatprep.subr.mxu0 %v5732
    %5882 = vmatpush1.msra.mxu0 %v5731
    %5883 = vmatprep.subr.mxu0 %v5730
    %5884 = vmatpush1.msra.mxu0 %v5729
    %5885 = vmatprep.subr.mxu0 %v5728
    %5886 = vmatpush1.msra.mxu0 %v5727
    %5887 = vmatprep.subr.mxu0 %v5726
    %5888 = vmatpush1.msra.mxu0 %v5725
    %5889 = vmatprep.subr.mxu0 %v5724
    %5890 = vmatpush1.msra.mxu0 %v5723
    %5891 = vmatprep.subr.mxu0 %v5722
    %5892 = vmatpush1.msra.mxu0 %v5721
    %5893 = vmatprep.subr.mxu0 %v5784
    %5894 = vmatpush2.msra.mxu0 %v5783
    %5895 = vmatprep.subr.mxu0 %v5782
    %5896 = vmatpush2.msra.mxu0 %v5781
    %5897 = vmatprep.subr.mxu0 %v5780
    %5898 = vmatpush2.msra.mxu0 %v5779
    %5899 = vmatprep.subr.mxu0 %v5778
    %5900 = vmatpush2.msra.mxu0 %v5777
    %5901 = vmatprep.subr.mxu0 %v5776
    %5902 = vmatpush2.msra.mxu0 %v5775
    %5903 = vmatprep.subr.mxu0 %v5774
    %5904 = vmatpush2.msra.mxu0 %v5773
    %5905 = vmatprep.subr.mxu0 %v5772
    %5906 = vmatpush2.msra.mxu0 %v5771
    %5907 = vmatprep.subr.mxu0 %v5770
    %5908 = vmatpush2.msra.mxu0 %v5769
    %5909 = vmatprep.subr.mxu0 %v5768
    %5910 = vmatpush2.msra.mxu0 %v5767
    %5911 = vmatprep.subr.mxu0 %v5766
    %5912 = vmatpush2.msra.mxu0 %v5765
    %5913 = vmatprep.subr.mxu0 %v5764
    %5914 = vmatpush2.msra.mxu0 %v5763
    %5915 = vmatprep.subr.mxu0 %v5762
    %5916 = vmatpush2.msra.mxu0 %v5761
    %5917 = vmatprep.subr.mxu0 %v5760
    %5918 = vmatpush2.msra.mxu0 %v5759
    %5919 = vmatprep.subr.mxu0 %v5758
    %5920 = vmatpush2.msra.mxu0 %v5757
    %5921 = vmatprep.subr.mxu0 %v5756
    %5922 = vmatpush2.msra.mxu0 %v5755
    %5923 = vmatprep.subr.mxu0 %v5754
    %5924 = vmatpush2.msra.mxu0 %v5753
    %5925 = vmatprep.mubr.f32.mxu0 %v5658
    %5926 = vmatmul.mubr.f32.gmra.mxu0 %v5657
    %v5927 = vpop.f32.mrf.mxu0
    %v5928 = vadd.f32 %v5854, %v5927
    %v5929 = vpop.f32.mrf.mxu0
    %v5930 = vadd.f32 %v5858, %v5929
    %5931 = vmatprep.mubr.f32.mxu0 %v5662
    %5932 = vmatmul.mubr.f32.gmra.mxu0 %v5661
    %v5933 = vpop.f32.mrf.mxu0
    %v5934 = vadd.f32 %v5854, %v5933
    %v5935 = vpop.f32.mrf.mxu0
    %v5936 = vadd.f32 %v5858, %v5935
    %5937 = vmatprep.mubr.f32.mxu0 %v5666
    %5938 = vmatmul.mubr.f32.gmra.mxu0 %v5665
    %v5939 = vpop.f32.mrf.mxu0
    %v5940 = vadd.f32 %v5854, %v5939
    %v5941 = vpop.f32.mrf.mxu0
    %v5942 = vadd.f32 %v5858, %v5941
    %5943 = vmatprep.mubr.f32.mxu0 %v5670
    %5944 = vmatmul.mubr.f32.gmra.mxu0 %v5669
    %v5945 = vpop.f32.mrf.mxu0
    %v5946 = vadd.f32 %v5854, %v5945
    %v5947 = vpop.f32.mrf.mxu0
    %v5948 = vadd.f32 %v5858, %v5947
    %5949 = vmatprep.mubr.f32.mxu0 %v5674
    %5950 = vmatmul.mubr.f32.gmra.mxu0 %v5673
    %v5951 = vpop.f32.mrf.mxu0
    %v5952 = vadd.f32 %v5854, %v5951
    %v5953 = vpop.f32.mrf.mxu0
    %v5954 = vadd.f32 %v5858, %v5953
    %5955 = vmatprep.mubr.f32.mxu0 %v5678
    %5956 = vmatmul.mubr.f32.gmra.mxu0 %v5677
    %v5957 = vpop.f32.mrf.mxu0
    %v5958 = vadd.f32 %v5854, %v5957
    %v5959 = vpop.f32.mrf.mxu0
    %v5960 = vadd.f32 %v5858, %v5959
    %5961 = vmatprep.mubr.f32.mxu0 %v5682
    %5962 = vmatmul.mubr.f32.gmra.mxu0 %v5681
    %v5963 = vpop.f32.mrf.mxu0
    %v5964 = vadd.f32 %v5854, %v5963
    %v5965 = vpop.f32.mrf.mxu0
    %v5966 = vadd.f32 %v5858, %v5965
    %5967 = vmatprep.mubr.f32.mxu0 %v5686
    %5968 = vmatmul.mubr.f32.gmra.mxu0 %v5685
    %v5969 = vpop.f32.mrf.mxu0
    %v5970 = vadd.f32 %v5854, %v5969
    %v5971 = vpop.f32.mrf.mxu0
    %v5972 = vadd.f32 %v5858, %v5971
    %5973 = vmatprep.mubr.f32.mxu0 %v5690
    %5974 = vmatmul.mubr.f32.gmra.mxu0 %v5689
    %v5975 = vpop.f32.mrf.mxu0
    %v5976 = vadd.f32 %v5854, %v5975
    %v5977 = vpop.f32.mrf.mxu0
    %v5978 = vadd.f32 %v5858, %v5977
    %5979 = vmatprep.mubr.f32.mxu0 %v5694
    %5980 = vmatmul.mubr.f32.gmra.mxu0 %v5693
    %v5981 = vpop.f32.mrf.mxu0
    %v5982 = vadd.f32 %v5854, %v5981
    %v5983 = vpop.f32.mrf.mxu0
    %v5984 = vadd.f32 %v5858, %v5983
    %5985 = vmatprep.mubr.f32.mxu0 %v5698
    %5986 = vmatmul.mubr.f32.gmra.mxu0 %v5697
    %v5987 = vpop.f32.mrf.mxu0
    %v5988 = vadd.f32 %v5854, %v5987
    %v5989 = vpop.f32.mrf.mxu0
    %v5990 = vadd.f32 %v5858, %v5989
    %5991 = vmatprep.mubr.f32.mxu0 %v5702
    %5992 = vmatmul.mubr.f32.gmra.mxu0 %v5701
    %v5993 = vpop.f32.mrf.mxu0
    %v5994 = vadd.f32 %v5854, %v5993
    %v5995 = vpop.f32.mrf.mxu0
    %v5996 = vadd.f32 %v5858, %v5995
    %5997 = vmatprep.mubr.f32.mxu0 %v5706
    %5998 = vmatmul.mubr.f32.gmra.mxu0 %v5705
    %v5999 = vpop.f32.mrf.mxu0
    %v6000 = vadd.f32 %v5854, %v5999
    %v6001 = vpop.f32.mrf.mxu0
    %v6002 = vadd.f32 %v5858, %v6001
    %6003 = vmatprep.mubr.f32.mxu0 %v5710
    %6004 = vmatmul.mubr.f32.gmra.mxu0 %v5709
    %v6005 = vpop.f32.mrf.mxu0
    %v6006 = vadd.f32 %v5854, %v6005
    %v6007 = vpop.f32.mrf.mxu0
    %v6008 = vadd.f32 %v5858, %v6007
    %6009 = vmatprep.mubr.f32.mxu0 %v5714
    %6010 = vmatmul.mubr.f32.gmra.mxu0 %v5713
    %v6011 = vpop.f32.mrf.mxu0
    %v6012 = vadd.f32 %v5854, %v6011
    %v6013 = vpop.f32.mrf.mxu0
    %v6014 = vadd.f32 %v5858, %v6013
    %6015 = vmatprep.mubr.f32.mxu0 %v5718
    %6016 = vmatmul.mubr.f32.gmra.mxu0 %v5717
    %v6017 = vpop.f32.mrf.mxu0
    %v6018 = vadd.f32 %v5854, %v6017
    %v6019 = vpop.f32.mrf.mxu0
    %v6020 = vadd.f32 %v5858, %v6019
    %6021 = vdwg.mxu0
    %6022 = vmatprep.subr.mxu0 %v5816
    %6023 = vmatpush1.msra.mxu0 %v5815
    %6024 = vmatprep.subr.mxu0 %v5814
    %6025 = vmatpush1.msra.mxu0 %v5813
    %6026 = vmatprep.subr.mxu0 %v5812
    %6027 = vmatpush1.msra.mxu0 %v5811
    %6028 = vmatprep.subr.mxu0 %v5810
    %6029 = vmatpush1.msra.mxu0 %v5809
    %6030 = vmatprep.subr.mxu0 %v5808
    %6031 = vmatpush1.msra.mxu0 %v5807
    %6032 = vmatprep.subr.mxu0 %v5806
    %6033 = vmatpush1.msra.mxu0 %v5805
    %6034 = vmatprep.subr.mxu0 %v5804
    %6035 = vmatpush1.msra.mxu0 %v5803
    %6036 = vmatprep.subr.mxu0 %v5802
    %6037 = vmatpush1.msra.mxu0 %v5801
    %6038 = vmatprep.subr.mxu0 %v5800
    %6039 = vmatpush1.msra.mxu0 %v5799
    %6040 = vmatprep.subr.mxu0 %v5798
    %6041 = vmatpush1.msra.mxu0 %v5797
    %6042 = vmatprep.subr.mxu0 %v5796
    %6043 = vmatpush1.msra.mxu0 %v5795
    %6044 = vmatprep.subr.mxu0 %v5794
    %6045 = vmatpush1.msra.mxu0 %v5793
    %6046 = vmatprep.subr.mxu0 %v5792
    %6047 = vmatpush1.msra.mxu0 %v5791
    %6048 = vmatprep.subr.mxu0 %v5790
    %6049 = vmatpush1.msra.mxu0 %v5789
    %6050 = vmatprep.subr.mxu0 %v5788
    %6051 = vmatpush1.msra.mxu0 %v5787
    %6052 = vmatprep.subr.mxu0 %v5786
    %6053 = vmatpush1.msra.mxu0 %v5785
    %6054 = vmatprep.subr.mxu0 %v5848
    %6055 = vmatpush2.msra.mxu0 %v5847
    %6056 = vmatprep.subr.mxu0 %v5846
    %6057 = vmatpush2.msra.mxu0 %v5845
    %6058 = vmatprep.subr.mxu0 %v5844
    %6059 = vmatpush2.msra.mxu0 %v5843
    %6060 = vmatprep.subr.mxu0 %v5842
    %6061 = vmatpush2.msra.mxu0 %v5841
    %6062 = vmatprep.subr.mxu0 %v5840
    %6063 = vmatpush2.msra.mxu0 %v5839
    %6064 = vmatprep.subr.mxu0 %v5838
    %6065 = vmatpush2.msra.mxu0 %v5837
    %6066 = vmatprep.subr.mxu0 %v5836
    %6067 = vmatpush2.msra.mxu0 %v5835
    %6068 = vmatprep.subr.mxu0 %v5834
    %6069 = vmatpush2.msra.mxu0 %v5833
    %6070 = vmatprep.subr.mxu0 %v5832
    %6071 = vmatpush2.msra.mxu0 %v5831
    %6072 = vmatprep.subr.mxu0 %v5830
    %6073 = vmatpush2.msra.mxu0 %v5829
    %6074 = vmatprep.subr.mxu0 %v5828
    %6075 = vmatpush2.msra.mxu0 %v5827
    %6076 = vmatprep.subr.mxu0 %v5826
    %6077 = vmatpush2.msra.mxu0 %v5825
    %6078 = vmatprep.subr.mxu0 %v5824
    %6079 = vmatpush2.msra.mxu0 %v5823
    %6080 = vmatprep.subr.mxu0 %v5822
    %6081 = vmatpush2.msra.mxu0 %v5821
    %6082 = vmatprep.subr.mxu0 %v5820
    %6083 = vmatpush2.msra.mxu0 %v5819
    %6084 = vmatprep.subr.mxu0 %v5818
    %6085 = vmatpush2.msra.mxu0 %v5817
    %6086 = vmatprep.mubr.f32.mxu0 %v5660
    %6087 = vmatmul.mubr.f32.gmra.mxu0 %v5659
    %v6088 = vpop.f32.mrf.mxu0
    %v6089 = vadd.f32 %v5928, %v6088
    %v6090 = vpop.f32.mrf.mxu0
    %v6091 = vadd.f32 %v5930, %v6090
    %6092 = vmatprep.mubr.f32.mxu0 %v5664
    %6093 = vmatmul.mubr.f32.gmra.mxu0 %v5663
    %v6094 = vpop.f32.mrf.mxu0
    %v6095 = vadd.f32 %v5934, %v6094
    %v6096 = vpop.f32.mrf.mxu0
    %v6097 = vadd.f32 %v5936, %v6096
    %6098 = vmatprep.mubr.f32.mxu0 %v5668
    %6099 = vmatmul.mubr.f32.gmra.mxu0 %v5667
    %v6100 = vpop.f32.mrf.mxu0
    %v6101 = vadd.f32 %v5940, %v6100
    %v6102 = vpop.f32.mrf.mxu0
    %v6103 = vadd.f32 %v5942, %v6102
    %6104 = vmatprep.mubr.f32.mxu0 %v5672
    %6105 = vmatmul.mubr.f32.gmra.mxu0 %v5671
    %v6106 = vpop.f32.mrf.mxu0
    %v6107 = vadd.f32 %v5946, %v6106
    %v6108 = vpop.f32.mrf.mxu0
    %v6109 = vadd.f32 %v5948, %v6108
    %6110 = vmatprep.mubr.f32.mxu0 %v5676
    %6111 = vmatmul.mubr.f32.gmra.mxu0 %v5675
    %v6112 = vpop.f32.mrf.mxu0
    %v6113 = vadd.f32 %v5952, %v6112
    %v6114 = vpop.f32.mrf.mxu0
    %v6115 = vadd.f32 %v5954, %v6114
    %6116 = vmatprep.mubr.f32.mxu0 %v5680
    %6117 = vmatmul.mubr.f32.gmra.mxu0 %v5679
    %v6118 = vpop.f32.mrf.mxu0
    %v6119 = vadd.f32 %v5958, %v6118
    %v6120 = vpop.f32.mrf.mxu0
    %v6121 = vadd.f32 %v5960, %v6120
    %6122 = vmatprep.mubr.f32.mxu0 %v5684
    %6123 = vmatmul.mubr.f32.gmra.mxu0 %v5683
    %v6124 = vpop.f32.mrf.mxu0
    %v6125 = vadd.f32 %v5964, %v6124
    %v6126 = vpop.f32.mrf.mxu0
    %v6127 = vadd.f32 %v5966, %v6126
    %6128 = vmatprep.mubr.f32.mxu0 %v5688
    %6129 = vmatmul.mubr.f32.gmra.mxu0 %v5687
    %v6130 = vpop.f32.mrf.mxu0
    %v6131 = vadd.f32 %v5970, %v6130
    %v6132 = vpop.f32.mrf.mxu0
    %v6133 = vadd.f32 %v5972, %v6132
    %6134 = vmatprep.mubr.f32.mxu0 %v5692
    %6135 = vmatmul.mubr.f32.gmra.mxu0 %v5691
    %v6136 = vpop.f32.mrf.mxu0
    %v6137 = vadd.f32 %v5976, %v6136
    %v6138 = vpop.f32.mrf.mxu0
    %v6139 = vadd.f32 %v5978, %v6138
    %6140 = vmatprep.mubr.f32.mxu0 %v5696
    %6141 = vmatmul.mubr.f32.gmra.mxu0 %v5695
    %v6142 = vpop.f32.mrf.mxu0
    %v6143 = vadd.f32 %v5982, %v6142
    %v6144 = vpop.f32.mrf.mxu0
    %v6145 = vadd.f32 %v5984, %v6144
    %6146 = vmatprep.mubr.f32.mxu0 %v5700
    %6147 = vmatmul.mubr.f32.gmra.mxu0 %v5699
    %v6148 = vpop.f32.mrf.mxu0
    %v6149 = vadd.f32 %v5988, %v6148
    %v6150 = vpop.f32.mrf.mxu0
    %v6151 = vadd.f32 %v5990, %v6150
    %6152 = vmatprep.mubr.f32.mxu0 %v5704
    %6153 = vmatmul.mubr.f32.gmra.mxu0 %v5703
    %v6154 = vpop.f32.mrf.mxu0
    %v6155 = vadd.f32 %v5994, %v6154
    %v6156 = vpop.f32.mrf.mxu0
    %v6157 = vadd.f32 %v5996, %v6156
    %6158 = vmatprep.mubr.f32.mxu0 %v5708
    %6159 = vmatmul.mubr.f32.gmra.mxu0 %v5707
    %v6160 = vpop.f32.mrf.mxu0
    %v6161 = vadd.f32 %v6000, %v6160
    %v6162 = vpop.f32.mrf.mxu0
    %v6163 = vadd.f32 %v6002, %v6162
    %6164 = vmatprep.mubr.f32.mxu0 %v5712
    %6165 = vmatmul.mubr.f32.gmra.mxu0 %v5711
    %v6166 = vpop.f32.mrf.mxu0
    %v6167 = vadd.f32 %v6006, %v6166
    %v6168 = vpop.f32.mrf.mxu0
    %v6169 = vadd.f32 %v6008, %v6168
    %6170 = vmatprep.mubr.f32.mxu0 %v5716
    %6171 = vmatmul.mubr.f32.gmra.mxu0 %v5715
    %v6172 = vpop.f32.mrf.mxu0
    %v6173 = vadd.f32 %v6012, %v6172
    %v6174 = vpop.f32.mrf.mxu0
    %v6175 = vadd.f32 %v6014, %v6174
    %6176 = vmatprep.mubr.f32.mxu0 %v5720
    %6177 = vmatmul.mubr.f32.gmra.mxu0 %v5719
    %v6178 = vpop.f32.mrf.mxu0
    %v6179 = vadd.f32 %v6018, %v6178
    %v6180 = vpop.f32.mrf.mxu0
    %v6181 = vadd.f32 %v6020, %v6180
    %6182 = vdwg.mxu0
    %v6183 = vld [vmem:[%s49] sm:$0x3]
    %v6184 = vld [vmem:[%s51] sm:$0x3]
    %v6185 = vadd.f32 %v6089, %v6095
    %v6186 = vadd.f32 %v6185, %v6101
    %v6187 = vadd.f32 %v6186, %v6107
    %v6188 = vadd.f32 %v6187, %v6113
    %v6189 = vadd.f32 %v6188, %v6119
    %v6190 = vadd.f32 %v6189, %v6125
    %v6191 = vadd.f32 %v6190, %v6131
    %v6192 = vadd.f32 %v6191, %v6137
    %v6193 = vadd.f32 %v6192, %v6143
    %v6194 = vadd.f32 %v6193, %v6149
    %v6195 = vadd.f32 %v6194, %v6155
    %v6196 = vadd.f32 %v6195, %v6161
    %v6197 = vadd.f32 %v6196, %v6167
    %v6198 = vadd.f32 %v6197, %v6173
    %v6199 = vadd.f32 %v6198, %v6179
    %v6200 = vrot.slane %v6199, 4
    %v6201 = vadd.f32 %v6199, %v6200
    %v6202 = vrot.slane %v6201, 2
    %v6203 = vadd.f32 %v6201, %v6202
    %v6204 = vrot.slane %v6203, 1
    %v6205 = vadd.f32 %v6203, %v6204
    %v6206 = vadd.f32 %v6091, %v6097
    %v6207 = vadd.f32 %v6206, %v6103
    %v6208 = vadd.f32 %v6207, %v6109
    %v6209 = vadd.f32 %v6208, %v6115
    %v6210 = vadd.f32 %v6209, %v6121
    %v6211 = vadd.f32 %v6210, %v6127
    %v6212 = vadd.f32 %v6211, %v6133
    %v6213 = vadd.f32 %v6212, %v6139
    %v6214 = vadd.f32 %v6213, %v6145
    %v6215 = vadd.f32 %v6214, %v6151
    %v6216 = vadd.f32 %v6215, %v6157
    %v6217 = vadd.f32 %v6216, %v6163
    %v6218 = vadd.f32 %v6217, %v6169
    %v6219 = vadd.f32 %v6218, %v6175
    %v6220 = vadd.f32 %v6219, %v6181
    %v6221 = vrot.slane %v6220, 4
    %v6222 = vadd.f32 %v6220, %v6221
    %v6223 = vrot.slane %v6222, 2
    %v6224 = vadd.f32 %v6222, %v6223
    %v6225 = vrot.slane %v6224, 1
    %v6226 = vadd.f32 %v6224, %v6225
    %v6227 = vmul.f32 %v6205, %v385
    %v6228 = vmul.f32 %v6226, %v385
    %v6229 = vsub.f32 %v6089, %v6227
    %v6230 = vsub.f32 %v6091, %v6228
    %v6231 = vsub.f32 %v6095, %v6227
    %v6232 = vsub.f32 %v6097, %v6228
    %v6233 = vsub.f32 %v6101, %v6227
    %v6234 = vsub.f32 %v6103, %v6228
    %v6235 = vsub.f32 %v6107, %v6227
    %v6236 = vsub.f32 %v6109, %v6228
    %v6237 = vsub.f32 %v6113, %v6227
    %v6238 = vsub.f32 %v6115, %v6228
    %v6239 = vsub.f32 %v6119, %v6227
    %v6240 = vsub.f32 %v6121, %v6228
    %v6241 = vsub.f32 %v6125, %v6227
    %v6242 = vsub.f32 %v6127, %v6228
    %v6243 = vsub.f32 %v6131, %v6227
    %v6244 = vsub.f32 %v6133, %v6228
    %v6245 = vsub.f32 %v6137, %v6227
    %v6246 = vsub.f32 %v6139, %v6228
    %v6247 = vsub.f32 %v6143, %v6227
    %v6248 = vsub.f32 %v6145, %v6228
    %v6249 = vsub.f32 %v6149, %v6227
    %v6250 = vsub.f32 %v6151, %v6228
    %v6251 = vsub.f32 %v6155, %v6227
    %v6252 = vsub.f32 %v6157, %v6228
    %v6253 = vsub.f32 %v6161, %v6227
    %v6254 = vsub.f32 %v6163, %v6228
    %v6255 = vsub.f32 %v6167, %v6227
    %v6256 = vsub.f32 %v6169, %v6228
    %v6257 = vsub.f32 %v6173, %v6227
    %v6258 = vsub.f32 %v6175, %v6228
    %v6259 = vsub.f32 %v6179, %v6227
    %v6260 = vsub.f32 %v6181, %v6228
    %v6261 = vmul.f32 %v6229, %v6229
    %v6262 = vmul.f32 %v6230, %v6230
    %v6263 = vmul.f32 %v6231, %v6231
    %v6264 = vmul.f32 %v6232, %v6232
    %v6265 = vmul.f32 %v6233, %v6233
    %v6266 = vmul.f32 %v6234, %v6234
    %v6267 = vmul.f32 %v6235, %v6235
    %v6268 = vmul.f32 %v6236, %v6236
    %v6269 = vmul.f32 %v6237, %v6237
    %v6270 = vmul.f32 %v6238, %v6238
    %v6271 = vmul.f32 %v6239, %v6239
    %v6272 = vmul.f32 %v6240, %v6240
    %v6273 = vmul.f32 %v6241, %v6241
    %v6274 = vmul.f32 %v6242, %v6242
    %v6275 = vmul.f32 %v6243, %v6243
    %v6276 = vmul.f32 %v6244, %v6244
    %v6277 = vmul.f32 %v6245, %v6245
    %v6278 = vmul.f32 %v6246, %v6246
    %v6279 = vmul.f32 %v6247, %v6247
    %v6280 = vmul.f32 %v6248, %v6248
    %v6281 = vmul.f32 %v6249, %v6249
    %v6282 = vmul.f32 %v6250, %v6250
    %v6283 = vmul.f32 %v6251, %v6251
    %v6284 = vmul.f32 %v6252, %v6252
    %v6285 = vmul.f32 %v6253, %v6253
    %v6286 = vmul.f32 %v6254, %v6254
    %v6287 = vmul.f32 %v6255, %v6255
    %v6288 = vmul.f32 %v6256, %v6256
    %v6289 = vmul.f32 %v6257, %v6257
    %v6290 = vmul.f32 %v6258, %v6258
    %v6291 = vmul.f32 %v6259, %v6259
    %v6292 = vmul.f32 %v6260, %v6260
    %v6293 = vadd.f32 %v6261, %v6263
    %v6294 = vadd.f32 %v6293, %v6265
    %v6295 = vadd.f32 %v6294, %v6267
    %v6296 = vadd.f32 %v6295, %v6269
    %v6297 = vadd.f32 %v6296, %v6271
    %v6298 = vadd.f32 %v6297, %v6273
    %v6299 = vadd.f32 %v6298, %v6275
    %v6300 = vadd.f32 %v6299, %v6277
    %v6301 = vadd.f32 %v6300, %v6279
    %v6302 = vadd.f32 %v6301, %v6281
    %v6303 = vadd.f32 %v6302, %v6283
    %v6304 = vadd.f32 %v6303, %v6285
    %v6305 = vadd.f32 %v6304, %v6287
    %v6306 = vadd.f32 %v6305, %v6289
    %v6307 = vadd.f32 %v6306, %v6291
    %v6308 = vrot.slane %v6307, 4
    %v6309 = vadd.f32 %v6307, %v6308
    %v6310 = vrot.slane %v6309, 2
    %v6311 = vadd.f32 %v6309, %v6310
    %v6312 = vrot.slane %v6311, 1
    %v6313 = vadd.f32 %v6311, %v6312
    %v6314 = vadd.f32 %v6262, %v6264
    %v6315 = vadd.f32 %v6314, %v6266
    %v6316 = vadd.f32 %v6315, %v6268
    %v6317 = vadd.f32 %v6316, %v6270
    %v6318 = vadd.f32 %v6317, %v6272
    %v6319 = vadd.f32 %v6318, %v6274
    %v6320 = vadd.f32 %v6319, %v6276
    %v6321 = vadd.f32 %v6320, %v6278
    %v6322 = vadd.f32 %v6321, %v6280
    %v6323 = vadd.f32 %v6322, %v6282
    %v6324 = vadd.f32 %v6323, %v6284
    %v6325 = vadd.f32 %v6324, %v6286
    %v6326 = vadd.f32 %v6325, %v6288
    %v6327 = vadd.f32 %v6326, %v6290
    %v6328 = vadd.f32 %v6327, %v6292
    %v6329 = vrot.slane %v6328, 4
    %v6330 = vadd.f32 %v6328, %v6329
    %v6331 = vrot.slane %v6330, 2
    %v6332 = vadd.f32 %v6330, %v6331
    %v6333 = vrot.slane %v6332, 1
    %v6334 = vadd.f32 %v6332, %v6333
    %v6335 = vmul.f32 %v6313, %v385
    %v6336 = vmul.f32 %v6334, %v385
    %v6337 = vadd.f32 %v6335, 1e-05
    %v6338 = vadd.f32 %v6336, 1e-05
    %v6339 = vrsqrt.pop %v6337
    %v6340 = vmul.f32 %v6337, %v6339
    %vm6341 = vcmp.eq.f32.partialorder %v6337, inf
    %v6342 = vsel %vm6341, %v6337, %v6340
    %vm6343 = vcmp.eq.f32.partialorder %v6337, 0.0
    %v6344 = vand.u32 %v6337, 2147483648
    %v6345 = vsel %vm6343, %v6344, %v6342
    %v6346 = vrsqrt.pop %v6338
    %v6347 = vmul.f32 %v6338, %v6346
    %vm6348 = vcmp.eq.f32.partialorder %v6338, inf
    %v6349 = vsel %vm6348, %v6338, %v6347
    %vm6350 = vcmp.eq.f32.partialorder %v6338, 0.0
    %v6351 = vand.u32 %v6338, 2147483648
    %v6352 = vsel %vm6350, %v6351, %v6349
    %v6355 = vcombine.low %v6345, %v6352
    %v6357 = vunpack.c.l.s4 1966171168
    %v6358 = vunpack.c.0.s8 %v6357
    %v6359 = vlaneseq
    %v6360 = vshrl.u32 %v6359, 7
    %v6361 = vsub.s32 %v6358, %v6360
    %v6362 = vrot.slane %v6355, %v6361
    %v6364 = vunpack.c.l.s4 1966171168
    %v6365 = vunpack.c.0.s8 %v6364
    %v6366 = vlaneseq
    %v6367 = vshrl.u32 %v6366, 7
    %v6368 = vsub.s32 %v6365, %v6367
    %v6369 = vrot.slane %v6362, %v6368
    %v6371 = vrcp.pop %v6369
    %v6372 = vmul.f32 %v6183, %v6371
    %v6374 = vlaneseq
    %v6375 = vshrl.u32 %v6374, 7
    %v6376 = vsub.s32 0, %v6375
    %v6377 = vrot.slane %v6372, %v6376
    %v6378 = vlaneseq
    %v6379 = vshrl.u32 %v6378, 7
    %v6380 = vsub.s32 1, %v6379
    %v6381 = vrot.slane %v6372, %v6380
    %v6384 = vmul.f32 %v6229, %v6377
    %v6385 = vmul.f32 %v6230, %v6381
    %v6386 = vmul.f32 %v6231, %v6377
    %v6387 = vmul.f32 %v6232, %v6381
    %v6388 = vmul.f32 %v6233, %v6377
    %v6389 = vmul.f32 %v6234, %v6381
    %v6390 = vmul.f32 %v6235, %v6377
    %v6391 = vmul.f32 %v6236, %v6381
    %v6392 = vmul.f32 %v6237, %v6377
    %v6393 = vmul.f32 %v6238, %v6381
    %v6394 = vmul.f32 %v6239, %v6377
    %v6395 = vmul.f32 %v6240, %v6381
    %v6396 = vmul.f32 %v6241, %v6377
    %v6397 = vmul.f32 %v6242, %v6381
    %v6398 = vmul.f32 %v6243, %v6377
    %v6399 = vmul.f32 %v6244, %v6381
    %v6400 = vmul.f32 %v6245, %v6377
    %v6401 = vmul.f32 %v6246, %v6381
    %v6402 = vmul.f32 %v6247, %v6377
    %v6403 = vmul.f32 %v6248, %v6381
    %v6404 = vmul.f32 %v6249, %v6377
    %v6405 = vmul.f32 %v6250, %v6381
    %v6406 = vmul.f32 %v6251, %v6377
    %v6407 = vmul.f32 %v6252, %v6381
    %v6408 = vmul.f32 %v6253, %v6377
    %v6409 = vmul.f32 %v6254, %v6381
    %v6410 = vmul.f32 %v6255, %v6377
    %v6411 = vmul.f32 %v6256, %v6381
    %v6412 = vmul.f32 %v6257, %v6377
    %v6413 = vmul.f32 %v6258, %v6381
    %v6414 = vmul.f32 %v6259, %v6377
    %v6415 = vmul.f32 %v6260, %v6381
    %v6417 = vlaneseq
    %v6418 = vshrl.u32 %v6417, 7
    %v6419 = vsub.s32 0, %v6418
    %v6420 = vrot.slane %v6184, %v6419
    %v6421 = vlaneseq
    %v6422 = vshrl.u32 %v6421, 7
    %v6423 = vsub.s32 1, %v6422
    %v6424 = vrot.slane %v6184, %v6423
    %v6427 = vadd.f32 %v6384, %v6420
    %v6428 = vadd.f32 %v6385, %v6424
    %v6429 = vadd.f32 %v6386, %v6420
    %v6430 = vadd.f32 %v6387, %v6424
    %v6431 = vadd.f32 %v6388, %v6420
    %v6432 = vadd.f32 %v6389, %v6424
    %v6433 = vadd.f32 %v6390, %v6420
    %v6434 = vadd.f32 %v6391, %v6424
    %v6435 = vadd.f32 %v6392, %v6420
    %v6436 = vadd.f32 %v6393, %v6424
    %v6437 = vadd.f32 %v6394, %v6420
    %v6438 = vadd.f32 %v6395, %v6424
    %v6439 = vadd.f32 %v6396, %v6420
    %v6440 = vadd.f32 %v6397, %v6424
    %v6441 = vadd.f32 %v6398, %v6420
    %v6442 = vadd.f32 %v6399, %v6424
    %v6443 = vadd.f32 %v6400, %v6420
    %v6444 = vadd.f32 %v6401, %v6424
    %v6445 = vadd.f32 %v6402, %v6420
    %v6446 = vadd.f32 %v6403, %v6424
    %v6447 = vadd.f32 %v6404, %v6420
    %v6448 = vadd.f32 %v6405, %v6424
    %v6449 = vadd.f32 %v6406, %v6420
    %v6450 = vadd.f32 %v6407, %v6424
    %v6451 = vadd.f32 %v6408, %v6420
    %v6452 = vadd.f32 %v6409, %v6424
    %v6453 = vadd.f32 %v6410, %v6420
    %v6454 = vadd.f32 %v6411, %v6424
    %v6455 = vadd.f32 %v6412, %v6420
    %v6456 = vadd.f32 %v6413, %v6424
    %v6457 = vadd.f32 %v6414, %v6420
    %v6458 = vadd.f32 %v6415, %v6424
    %v6459 = vmax.f32 %v6427, 0.0
    %v6460 = vmax.f32 %v6428, 0.0
    %v6461 = vmax.f32 %v6429, 0.0
    %v6462 = vmax.f32 %v6430, 0.0
    %v6463 = vmax.f32 %v6431, 0.0
    %v6464 = vmax.f32 %v6432, 0.0
    %v6465 = vmax.f32 %v6433, 0.0
    %v6466 = vmax.f32 %v6434, 0.0
    %v6467 = vmax.f32 %v6435, 0.0
    %v6468 = vmax.f32 %v6436, 0.0
    %v6469 = vmax.f32 %v6437, 0.0
    %v6470 = vmax.f32 %v6438, 0.0
    %v6471 = vmax.f32 %v6439, 0.0
    %v6472 = vmax.f32 %v6440, 0.0
    %v6473 = vmax.f32 %v6441, 0.0
    %v6474 = vmax.f32 %v6442, 0.0
    %v6475 = vmax.f32 %v6443, 0.0
    %v6476 = vmax.f32 %v6444, 0.0
    %v6477 = vmax.f32 %v6445, 0.0
    %v6478 = vmax.f32 %v6446, 0.0
    %v6479 = vmax.f32 %v6447, 0.0
    %v6480 = vmax.f32 %v6448, 0.0
    %v6481 = vmax.f32 %v6449, 0.0
    %v6482 = vmax.f32 %v6450, 0.0
    %v6483 = vmax.f32 %v6451, 0.0
    %v6484 = vmax.f32 %v6452, 0.0
    %v6485 = vmax.f32 %v6453, 0.0
    %v6486 = vmax.f32 %v6454, 0.0
    %v6487 = vmax.f32 %v6455, 0.0
    %v6488 = vmax.f32 %v6456, 0.0
    %v6489 = vmax.f32 %v6457, 0.0
    %v6490 = vmax.f32 %v6458, 0.0
    %v6491 = vld [vmem:[%s53] sm:$0xff]
    %v6492 = vld [vmem:[%s53 + $0x8] sm:$0xff]
    %v6493 = vld [vmem:[%s53 + $0x10] sm:$0xff]
    %v6494 = vld [vmem:[%s53 + $0x18] sm:$0xff]
    %v6495 = vld [vmem:[%s53 + $0x20] sm:$0xff]
    %v6496 = vld [vmem:[%s53 + $0x28] sm:$0xff]
    %v6497 = vld [vmem:[%s53 + $0x30] sm:$0xff]
    %v6498 = vld [vmem:[%s53 + $0x38] sm:$0xff]
    %v6499 = vld [vmem:[%s53 + $0x40] sm:$0xff]
    %v6500 = vld [vmem:[%s53 + $0x48] sm:$0xff]
    %v6501 = vld [vmem:[%s53 + $0x50] sm:$0xff]
    %v6502 = vld [vmem:[%s53 + $0x58] sm:$0xff]
    %v6503 = vld [vmem:[%s53 + $0x60] sm:$0xff]
    %v6504 = vld [vmem:[%s53 + $0x68] sm:$0xff]
    %v6505 = vld [vmem:[%s53 + $0x70] sm:$0xff]
    %v6506 = vld [vmem:[%s53 + $0x78] sm:$0xff]
    %v6507 = vld [vmem:[%s53 + $0x80] sm:$0xff]
    %v6508 = vld [vmem:[%s53 + $0x88] sm:$0xff]
    %v6509 = vld [vmem:[%s53 + $0x90] sm:$0xff]
    %v6510 = vld [vmem:[%s53 + $0x98] sm:$0xff]
    %v6511 = vld [vmem:[%s53 + $0xa0] sm:$0xff]
    %v6512 = vld [vmem:[%s53 + $0xa8] sm:$0xff]
    %v6513 = vld [vmem:[%s53 + $0xb0] sm:$0xff]
    %v6514 = vld [vmem:[%s53 + $0xb8] sm:$0xff]
    %v6515 = vld [vmem:[%s53 + $0xc0] sm:$0xff]
    %v6516 = vld [vmem:[%s53 + $0xc8] sm:$0xff]
    %v6517 = vld [vmem:[%s53 + $0xd0] sm:$0xff]
    %v6518 = vld [vmem:[%s53 + $0xd8] sm:$0xff]
    %v6519 = vld [vmem:[%s53 + $0xe0] sm:$0xff]
    %v6520 = vld [vmem:[%s53 + $0xe8] sm:$0xff]
    %v6521 = vld [vmem:[%s53 + $0xf0] sm:$0xff]
    %v6522 = vld [vmem:[%s53 + $0xf8] sm:$0xff]
    %v6523 = vld [vmem:[%s55] sm:$0x1]
    %v6525 = vlaneseq
    %v6526 = vshrl.u32 %v6525, 7
    %v6527 = vsub.s32 0, %v6526
    %v6528 = vrot.slane %v6523, %v6527
    %6530 = vmatprep.subr.mxu0 0.0
    %6531 = vmatpush1.msra.mxu0 %v6506
    %6532 = vmatprep.subr.mxu0 0.0
    %6533 = vmatpush1.msra.mxu0 %v6505
    %6534 = vmatprep.subr.mxu0 0.0
    %6535 = vmatpush1.msra.mxu0 %v6504
    %6536 = vmatprep.subr.mxu0 0.0
    %6537 = vmatpush1.msra.mxu0 %v6503
    %6538 = vmatprep.subr.mxu0 0.0
    %6539 = vmatpush1.msra.mxu0 %v6502
    %6540 = vmatprep.subr.mxu0 0.0
    %6541 = vmatpush1.msra.mxu0 %v6501
    %6542 = vmatprep.subr.mxu0 0.0
    %6543 = vmatpush1.msra.mxu0 %v6500
    %6544 = vmatprep.subr.mxu0 0.0
    %6545 = vmatpush1.msra.mxu0 %v6499
    %6546 = vmatprep.subr.mxu0 0.0
    %6547 = vmatpush1.msra.mxu0 %v6498
    %6548 = vmatprep.subr.mxu0 0.0
    %6549 = vmatpush1.msra.mxu0 %v6497
    %6550 = vmatprep.subr.mxu0 0.0
    %6551 = vmatpush1.msra.mxu0 %v6496
    %6552 = vmatprep.subr.mxu0 0.0
    %6553 = vmatpush1.msra.mxu0 %v6495
    %6554 = vmatprep.subr.mxu0 0.0
    %6555 = vmatpush1.msra.mxu0 %v6494
    %6556 = vmatprep.subr.mxu0 0.0
    %6557 = vmatpush1.msra.mxu0 %v6493
    %6558 = vmatprep.subr.mxu0 0.0
    %6559 = vmatpush1.msra.mxu0 %v6492
    %6560 = vmatprep.subr.mxu0 0.0
    %6561 = vmatpush1.msra.mxu0 %v6491
    %6562 = vmatprep.subr.mxu0 0.0
    %6563 = vmatpush2.msra.mxu0 %v6522
    %6564 = vmatprep.subr.mxu0 0.0
    %6565 = vmatpush2.msra.mxu0 %v6521
    %6566 = vmatprep.subr.mxu0 0.0
    %6567 = vmatpush2.msra.mxu0 %v6520
    %6568 = vmatprep.subr.mxu0 0.0
    %6569 = vmatpush2.msra.mxu0 %v6519
    %6570 = vmatprep.subr.mxu0 0.0
    %6571 = vmatpush2.msra.mxu0 %v6518
    %6572 = vmatprep.subr.mxu0 0.0
    %6573 = vmatpush2.msra.mxu0 %v6517
    %6574 = vmatprep.subr.mxu0 0.0
    %6575 = vmatpush2.msra.mxu0 %v6516
    %6576 = vmatprep.subr.mxu0 0.0
    %6577 = vmatpush2.msra.mxu0 %v6515
    %6578 = vmatprep.subr.mxu0 0.0
    %6579 = vmatpush2.msra.mxu0 %v6514
    %6580 = vmatprep.subr.mxu0 0.0
    %6581 = vmatpush2.msra.mxu0 %v6513
    %6582 = vmatprep.subr.mxu0 0.0
    %6583 = vmatpush2.msra.mxu0 %v6512
    %6584 = vmatprep.subr.mxu0 0.0
    %6585 = vmatpush2.msra.mxu0 %v6511
    %6586 = vmatprep.subr.mxu0 0.0
    %6587 = vmatpush2.msra.mxu0 %v6510
    %6588 = vmatprep.subr.mxu0 0.0
    %6589 = vmatpush2.msra.mxu0 %v6509
    %6590 = vmatprep.subr.mxu0 0.0
    %6591 = vmatpush2.msra.mxu0 %v6508
    %6592 = vmatprep.subr.mxu0 0.0
    %6593 = vmatpush2.msra.mxu0 %v6507
    %6594 = vmatprep.mubr.f32.mxu0 %v6460
    %6595 = vmatmul.mubr.f32.gmra.mxu0 %v6459
    %v6596 = vpop.f32.mrf.mxu0
    %v6597 = vadd.f32 %v6528, %v6596
    %v6598 = vpop.f32.mrf.mxu0
    %6599 = vmatprep.mubr.f32.mxu0 %v6462
    %6600 = vmatmul.mubr.f32.gmra.mxu0 %v6461
    %v6601 = vpop.f32.mrf.mxu0
    %v6602 = vadd.f32 %v6528, %v6601
    %v6603 = vpop.f32.mrf.mxu0
    %6604 = vmatprep.mubr.f32.mxu0 %v6464
    %6605 = vmatmul.mubr.f32.gmra.mxu0 %v6463
    %v6606 = vpop.f32.mrf.mxu0
    %v6607 = vadd.f32 %v6528, %v6606
    %v6608 = vpop.f32.mrf.mxu0
    %6609 = vmatprep.mubr.f32.mxu0 %v6466
    %6610 = vmatmul.mubr.f32.gmra.mxu0 %v6465
    %v6611 = vpop.f32.mrf.mxu0
    %v6612 = vadd.f32 %v6528, %v6611
    %v6613 = vpop.f32.mrf.mxu0
    %6614 = vmatprep.mubr.f32.mxu0 %v6468
    %6615 = vmatmul.mubr.f32.gmra.mxu0 %v6467
    %v6616 = vpop.f32.mrf.mxu0
    %v6617 = vadd.f32 %v6528, %v6616
    %v6618 = vpop.f32.mrf.mxu0
    %6619 = vmatprep.mubr.f32.mxu0 %v6470
    %6620 = vmatmul.mubr.f32.gmra.mxu0 %v6469
    %v6621 = vpop.f32.mrf.mxu0
    %v6622 = vadd.f32 %v6528, %v6621
    %v6623 = vpop.f32.mrf.mxu0
    %6624 = vmatprep.mubr.f32.mxu0 %v6472
    %6625 = vmatmul.mubr.f32.gmra.mxu0 %v6471
    %v6626 = vpop.f32.mrf.mxu0
    %v6627 = vadd.f32 %v6528, %v6626
    %v6628 = vpop.f32.mrf.mxu0
    %6629 = vmatprep.mubr.f32.mxu0 %v6474
    %6630 = vmatmul.mubr.f32.gmra.mxu0 %v6473
    %v6631 = vpop.f32.mrf.mxu0
    %v6632 = vadd.f32 %v6528, %v6631
    %v6633 = vpop.f32.mrf.mxu0
    %6634 = vmatprep.mubr.f32.mxu0 %v6476
    %6635 = vmatmul.mubr.f32.gmra.mxu0 %v6475
    %v6636 = vpop.f32.mrf.mxu0
    %v6637 = vadd.f32 %v6528, %v6636
    %v6638 = vpop.f32.mrf.mxu0
    %6639 = vmatprep.mubr.f32.mxu0 %v6478
    %6640 = vmatmul.mubr.f32.gmra.mxu0 %v6477
    %v6641 = vpop.f32.mrf.mxu0
    %v6642 = vadd.f32 %v6528, %v6641
    %v6643 = vpop.f32.mrf.mxu0
    %6644 = vmatprep.mubr.f32.mxu0 %v6480
    %6645 = vmatmul.mubr.f32.gmra.mxu0 %v6479
    %v6646 = vpop.f32.mrf.mxu0
    %v6647 = vadd.f32 %v6528, %v6646
    %v6648 = vpop.f32.mrf.mxu0
    %6649 = vmatprep.mubr.f32.mxu0 %v6482
    %6650 = vmatmul.mubr.f32.gmra.mxu0 %v6481
    %v6651 = vpop.f32.mrf.mxu0
    %v6652 = vadd.f32 %v6528, %v6651
    %v6653 = vpop.f32.mrf.mxu0
    %6654 = vmatprep.mubr.f32.mxu0 %v6484
    %6655 = vmatmul.mubr.f32.gmra.mxu0 %v6483
    %v6656 = vpop.f32.mrf.mxu0
    %v6657 = vadd.f32 %v6528, %v6656
    %v6658 = vpop.f32.mrf.mxu0
    %6659 = vmatprep.mubr.f32.mxu0 %v6486
    %6660 = vmatmul.mubr.f32.gmra.mxu0 %v6485
    %v6661 = vpop.f32.mrf.mxu0
    %v6662 = vadd.f32 %v6528, %v6661
    %v6663 = vpop.f32.mrf.mxu0
    %6664 = vmatprep.mubr.f32.mxu0 %v6488
    %6665 = vmatmul.mubr.f32.gmra.mxu0 %v6487
    %v6666 = vpop.f32.mrf.mxu0
    %v6667 = vadd.f32 %v6528, %v6666
    %v6668 = vpop.f32.mrf.mxu0
    %6669 = vmatprep.mubr.f32.mxu0 %v6490
    %6670 = vmatmul.mubr.f32.gmra.mxu0 %v6489
    %v6671 = vpop.f32.mrf.mxu0
    %v6672 = vadd.f32 %v6528, %v6671
    %v6673 = vpop.f32.mrf.mxu0
    %6674 = vdwg.mxu0
    %v6675 = vld [vmem:[%s57] sm:$0x1]
    %v6676 = vld [vmem:[%s59] sm:$0x1]
    %v6677 = vsel %vm347, %v6597, 0.0
    %v6678 = vsel %vm347, %v6602, 0.0
    %v6679 = vadd.f32 %v6677, %v6678
    %v6680 = vsel %vm347, %v6607, 0.0
    %v6681 = vadd.f32 %v6679, %v6680
    %v6682 = vsel %vm347, %v6612, 0.0
    %v6683 = vadd.f32 %v6681, %v6682
    %v6684 = vsel %vm347, %v6617, 0.0
    %v6685 = vadd.f32 %v6683, %v6684
    %v6686 = vsel %vm347, %v6622, 0.0
    %v6687 = vadd.f32 %v6685, %v6686
    %v6688 = vsel %vm347, %v6627, 0.0
    %v6689 = vadd.f32 %v6687, %v6688
    %v6690 = vsel %vm347, %v6632, 0.0
    %v6691 = vadd.f32 %v6689, %v6690
    %v6692 = vsel %vm347, %v6637, 0.0
    %v6693 = vadd.f32 %v6691, %v6692
    %v6694 = vsel %vm347, %v6642, 0.0
    %v6695 = vadd.f32 %v6693, %v6694
    %v6696 = vsel %vm347, %v6647, 0.0
    %v6697 = vadd.f32 %v6695, %v6696
    %v6698 = vsel %vm347, %v6652, 0.0
    %v6699 = vadd.f32 %v6697, %v6698
    %v6700 = vsel %vm347, %v6657, 0.0
    %v6701 = vadd.f32 %v6699, %v6700
    %v6702 = vsel %vm347, %v6662, 0.0
    %v6703 = vadd.f32 %v6701, %v6702
    %v6704 = vsel %vm347, %v6667, 0.0
    %v6705 = vadd.f32 %v6703, %v6704
    %v6706 = vsel %vm347, %v6672, 0.0
    %v6707 = vadd.f32 %v6705, %v6706
    %v6708 = vrot.slane %v6707, 4
    %v6709 = vadd.f32 %v6707, %v6708
    %v6710 = vrot.slane %v6709, 2
    %v6711 = vadd.f32 %v6709, %v6710
    %v6712 = vrot.slane %v6711, 1
    %v6713 = vadd.f32 %v6711, %v6712
    %v6714 = vmul.f32 %v6713, %v385
    %v6715 = vsub.f32 %v6597, %v6714
    %v6716 = vsub.f32 %v6602, %v6714
    %v6717 = vsub.f32 %v6607, %v6714
    %v6718 = vsub.f32 %v6612, %v6714
    %v6719 = vsub.f32 %v6617, %v6714
    %v6720 = vsub.f32 %v6622, %v6714
    %v6721 = vsub.f32 %v6627, %v6714
    %v6722 = vsub.f32 %v6632, %v6714
    %v6723 = vsub.f32 %v6637, %v6714
    %v6724 = vsub.f32 %v6642, %v6714
    %v6725 = vsub.f32 %v6647, %v6714
    %v6726 = vsub.f32 %v6652, %v6714
    %v6727 = vsub.f32 %v6657, %v6714
    %v6728 = vsub.f32 %v6662, %v6714
    %v6729 = vsub.f32 %v6667, %v6714
    %v6730 = vsub.f32 %v6672, %v6714
    %v6731 = vmul.f32 %v6715, %v6715
    %v6732 = vmul.f32 %v6716, %v6716
    %v6733 = vmul.f32 %v6717, %v6717
    %v6734 = vmul.f32 %v6718, %v6718
    %v6735 = vmul.f32 %v6719, %v6719
    %v6736 = vmul.f32 %v6720, %v6720
    %v6737 = vmul.f32 %v6721, %v6721
    %v6738 = vmul.f32 %v6722, %v6722
    %v6739 = vmul.f32 %v6723, %v6723
    %v6740 = vmul.f32 %v6724, %v6724
    %v6741 = vmul.f32 %v6725, %v6725
    %v6742 = vmul.f32 %v6726, %v6726
    %v6743 = vmul.f32 %v6727, %v6727
    %v6744 = vmul.f32 %v6728, %v6728
    %v6745 = vmul.f32 %v6729, %v6729
    %v6746 = vmul.f32 %v6730, %v6730
    %v6747 = vsel %vm347, %v6731, 0.0
    %v6748 = vsel %vm347, %v6732, 0.0
    %v6749 = vadd.f32 %v6747, %v6748
    %v6750 = vsel %vm347, %v6733, 0.0
    %v6751 = vadd.f32 %v6749, %v6750
    %v6752 = vsel %vm347, %v6734, 0.0
    %v6753 = vadd.f32 %v6751, %v6752
    %v6754 = vsel %vm347, %v6735, 0.0
    %v6755 = vadd.f32 %v6753, %v6754
    %v6756 = vsel %vm347, %v6736, 0.0
    %v6757 = vadd.f32 %v6755, %v6756
    %v6758 = vsel %vm347, %v6737, 0.0
    %v6759 = vadd.f32 %v6757, %v6758
    %v6760 = vsel %vm347, %v6738, 0.0
    %v6761 = vadd.f32 %v6759, %v6760
    %v6762 = vsel %vm347, %v6739, 0.0
    %v6763 = vadd.f32 %v6761, %v6762
    %v6764 = vsel %vm347, %v6740, 0.0
    %v6765 = vadd.f32 %v6763, %v6764
    %v6766 = vsel %vm347, %v6741, 0.0
    %v6767 = vadd.f32 %v6765, %v6766
    %v6768 = vsel %vm347, %v6742, 0.0
    %v6769 = vadd.f32 %v6767, %v6768
    %v6770 = vsel %vm347, %v6743, 0.0
    %v6771 = vadd.f32 %v6769, %v6770
    %v6772 = vsel %vm347, %v6744, 0.0
    %v6773 = vadd.f32 %v6771, %v6772
    %v6774 = vsel %vm347, %v6745, 0.0
    %v6775 = vadd.f32 %v6773, %v6774
    %v6776 = vsel %vm347, %v6746, 0.0
    %v6777 = vadd.f32 %v6775, %v6776
    %v6778 = vrot.slane %v6777, 4
    %v6779 = vadd.f32 %v6777, %v6778
    %v6780 = vrot.slane %v6779, 2
    %v6781 = vadd.f32 %v6779, %v6780
    %v6782 = vrot.slane %v6781, 1
    %v6783 = vadd.f32 %v6781, %v6782
    %v6784 = vmul.f32 %v6783, %v385
    %v6785 = vadd.f32 %v6784, 1e-05
    %v6786 = vrsqrt.pop %v6785
    %v6787 = vmul.f32 %v6785, %v6786
    %vm6788 = vcmp.eq.f32.partialorder %v6785, inf
    %v6789 = vsel %vm6788, %v6785, %v6787
    %vm6790 = vcmp.eq.f32.partialorder %v6785, 0.0
    %v6791 = vand.u32 %v6785, 2147483648
    %v6792 = vsel %vm6790, %v6791, %v6789
    %v6793 = vrcp.pop %v6792
    %v6794 = vmul.f32 %v6675, %v6793
    %v6796 = vlaneseq
    %v6797 = vshrl.u32 %v6796, 7
    %v6798 = vsub.s32 0, %v6797
    %v6799 = vrot.slane %v6794, %v6798
    %v6801 = vmul.f32 %v6715, %v6799
    %v6802 = vmul.f32 %v6716, %v6799
    %v6803 = vmul.f32 %v6717, %v6799
    %v6804 = vmul.f32 %v6718, %v6799
    %v6805 = vmul.f32 %v6719, %v6799
    %v6806 = vmul.f32 %v6720, %v6799
    %v6807 = vmul.f32 %v6721, %v6799
    %v6808 = vmul.f32 %v6722, %v6799
    %v6809 = vmul.f32 %v6723, %v6799
    %v6810 = vmul.f32 %v6724, %v6799
    %v6811 = vmul.f32 %v6725, %v6799
    %v6812 = vmul.f32 %v6726, %v6799
    %v6813 = vmul.f32 %v6727, %v6799
    %v6814 = vmul.f32 %v6728, %v6799
    %v6815 = vmul.f32 %v6729, %v6799
    %v6816 = vmul.f32 %v6730, %v6799
    %v6818 = vlaneseq
    %v6819 = vshrl.u32 %v6818, 7
    %v6820 = vsub.s32 0, %v6819
    %v6821 = vrot.slane %v6676, %v6820
    %v6823 = vadd.f32 %v6801, %v6821
    %v6824 = vadd.f32 %v6802, %v6821
    %v6825 = vadd.f32 %v6803, %v6821
    %v6826 = vadd.f32 %v6804, %v6821
    %v6827 = vadd.f32 %v6805, %v6821
    %v6828 = vadd.f32 %v6806, %v6821
    %v6829 = vadd.f32 %v6807, %v6821
    %v6830 = vadd.f32 %v6808, %v6821
    %v6831 = vadd.f32 %v6809, %v6821
    %v6832 = vadd.f32 %v6810, %v6821
    %v6833 = vadd.f32 %v6811, %v6821
    %v6834 = vadd.f32 %v6812, %v6821
    %v6835 = vadd.f32 %v6813, %v6821
    %v6836 = vadd.f32 %v6814, %v6821
    %v6837 = vadd.f32 %v6815, %v6821
    %v6838 = vadd.f32 %v6816, %v6821
    %v6839 = vmax.f32 %v6823, 0.0
    %v6840 = vmax.f32 %v6824, 0.0
    %v6841 = vmax.f32 %v6825, 0.0
    %v6842 = vmax.f32 %v6826, 0.0
    %v6843 = vmax.f32 %v6827, 0.0
    %v6844 = vmax.f32 %v6828, 0.0
    %v6845 = vmax.f32 %v6829, 0.0
    %v6846 = vmax.f32 %v6830, 0.0
    %v6847 = vmax.f32 %v6831, 0.0
    %v6848 = vmax.f32 %v6832, 0.0
    %v6849 = vmax.f32 %v6833, 0.0
    %v6850 = vmax.f32 %v6834, 0.0
    %v6851 = vmax.f32 %v6835, 0.0
    %v6852 = vmax.f32 %v6836, 0.0
    %v6853 = vmax.f32 %v6837, 0.0
    %v6854 = vmax.f32 %v6838, 0.0
    %6855 = vst.msk [vmem:[#allocation2] sm:$0xff] %vm347, %v6839
    %6856 = vst.msk [vmem:[#allocation2 + $0x8] sm:$0xff] %vm347, %v6840
    %6857 = vst.msk [vmem:[#allocation2 + $0x10] sm:$0xff] %vm347, %v6841
    %6858 = vst.msk [vmem:[#allocation2 + $0x18] sm:$0xff] %vm347, %v6842
    %6859 = vst.msk [vmem:[#allocation2 + $0x20] sm:$0xff] %vm347, %v6843
    %6860 = vst.msk [vmem:[#allocation2 + $0x28] sm:$0xff] %vm347, %v6844
    %6861 = vst.msk [vmem:[#allocation2 + $0x30] sm:$0xff] %vm347, %v6845
    %6862 = vst.msk [vmem:[#allocation2 + $0x38] sm:$0xff] %vm347, %v6846
    %6863 = vst.msk [vmem:[#allocation2 + $0x40] sm:$0xff] %vm347, %v6847
    %6864 = vst.msk [vmem:[#allocation2 + $0x48] sm:$0xff] %vm347, %v6848
    %6865 = vst.msk [vmem:[#allocation2 + $0x50] sm:$0xff] %vm347, %v6849
    %6866 = vst.msk [vmem:[#allocation2 + $0x58] sm:$0xff] %vm347, %v6850
    %6867 = vst.msk [vmem:[#allocation2 + $0x60] sm:$0xff] %vm347, %v6851
    %6868 = vst.msk [vmem:[#allocation2 + $0x68] sm:$0xff] %vm347, %v6852
    %6869 = vst.msk [vmem:[#allocation2 + $0x70] sm:$0xff] %vm347, %v6853
    %6870 = vst.msk [vmem:[#allocation2 + $0x78] sm:$0xff] %vm347, %v6854
    // Predicated region
    $region122: #{pointnet_encoder.1} parent=1 // pred_check
      _
    $region123: #{pointnet_encoder.1} parent=1 // pred_check_branch
      %6872 = sbr.rel (0) target = $region125
    $region124: #{pointnet_encoder.1} parent=1 // pred_region
      %s6874 = ssub.s32 2048, 2048
      %6875 = vsyncadd [#allocation3], %s6874
      %s6876 = sshll.u32 [#allocation2], 4
      %s6877 = int_to_ptr.vmem [resolvable:$true] %s6876
      %6882 = dma.vmem_to_hbm [thread:$0]  %s6877, 2048, %s61, [#allocation3], 128, 128, 8
    $region125: #{pointnet_encoder.1} parent=1 // pred_fallthru
      _
    // Predicated region
    $region126: #{pointnet_encoder.1} parent=1 // pred_check
      _
    $region127: #{pointnet_encoder.1} parent=1 // pred_check_branch
      %6884 = sbr.rel (0) target = $region129
    $region128: #{pointnet_encoder.1} parent=1 // pred_region
      %6885 = dma.done [#allocation3], 2048
    $region129: #{pointnet_encoder.1} parent=1 // pred_fallthru
      _
    %6886 = vsyncpa [#allocation3], 1

</llo_original>
